<compile_context>
chip_gen: v7x
topology: tpu7x:2x2x1
jax: 0.10.0
libtpu: 0.0.40
codegen_flags: <defaults>
</compile_context>

<pallas_src>
import numpy as np
import jax
import jax.numpy as jnp
from jax.experimental import pallas as pl
from jax.experimental.pallas import tpu as pltpu

CHANNELS = (8, 16, 32, 64)     # stand-in for resnet18's (64, 128, 256, 512)
IMG_SIZE = 32                  # stand-in for the transform's Resize((224, 224))
NUM_CLASSES = 2
BN_EPS = 1e-5
CDT = jnp.bfloat16             # MXU input dtype; accumulation stays f32


# ---------------------------------------------------------------------------
# Constant "tap shift" operators: conv/pool window extraction as 0/1 matmuls
# ---------------------------------------------------------------------------

def shift_matrices(h, w, k, stride, pad):
    """T[t] @ x_flat selects, for tap t=(dy,dx), the shifted (and stride-
    subsampled) input pixels; out-of-bounds rows are all-zero (== zero pad)."""
    oh = (h + 2 * pad - k) // stride + 1
    ow = (w + 2 * pad - k) // stride + 1
    t = np.zeros((k * k, oh * ow, h * w), np.float32)
    for dy in range(k):
        for dx in range(k):
            tap = dy * k + dx
            for oy in range(oh):
                for ox in range(ow):
                    iy = oy * stride + dy - pad
                    ix = ox * stride + dx - pad
                    if 0 <= iy < h and 0 <= ix < w:
                        t[tap, oy * ow + ox, iy * w + ix] = 1.0
    return t, oh


# ---------------------------------------------------------------------------
# In-kernel building blocks (operate on VMEM refs / register values)
# ---------------------------------------------------------------------------

def _conv(x, t_ref, w_ref, b_ref, *, relu, residual=None):
    """Fused Conv+BN [+residual] [+ReLU]:  sum_t (T_t @ x) @ W_t + b."""
    taps, ohw, hw = t_ref.shape
    xb = x.astype(CDT)

    def tap_term(t):
        if ohw == 1 and hw == 1:                      # degenerate 1x1 spatial
            shifted = (x * t_ref[t].astype(jnp.float32)).astype(CDT)
        else:
            shifted = jnp.dot(t_ref[t], xb,
                              preferred_element_type=jnp.float32).astype(CDT)
        return jnp.dot(shifted, w_ref[t], preferred_element_type=jnp.float32)

    if taps == 1:
        acc = tap_term(0)
    else:
        acc = jax.lax.fori_loop(1, taps, lambda t, a: a + tap_term(t),
                                tap_term(0))
    acc = acc + b_ref[...]
    if residual is not None:
        acc = acc + residual
    if relu:
        acc = jnp.maximum(acc, 0.0)
    return acc


def _maxpool(x, t_ref):
    """3x3/s2/p1 max pool via 9 selection matmuls (zero pad is exact because
    the stem output is post-ReLU, i.e. >= 0)."""
    xb = x.astype(CDT)

    def tap(t):
        return jnp.dot(t_ref[t], xb, preferred_element_type=jnp.float32)

    return jax.lax.fori_loop(1, t_ref.shape[0],
                             lambda t, m: jnp.maximum(m, tap(t)), tap(0))


def make_kernel(block_plan):
    """block_plan: tuple of has_downsample flags, one per BasicBlock."""

    def kernel(*refs):
        out_ref = refs[-1]
        it = iter(refs[:-1])

        # Stem: 7x7/s2 conv (im2col rows prepared once by the wrapper), with
        # BN and Normalize folded into the weights, + ReLU.
        cols = next(it)[...]
        stem_w, stem_b = next(it), next(it)
        x = jnp.dot(cols, stem_w[...], preferred_element_type=jnp.float32)
        x = jnp.maximum(x + stem_b[...], 0.0)               # (256, C0) f32

        # 3x3/s2 max pool.
        x = _maxpool(x, next(it))                           # (64, C0)

        # 4 stages x 2 BasicBlocks; residual add + ReLU fused into conv2.
        for has_down in block_plan:
            c1 = (next(it), next(it), next(it))
            c2 = (next(it), next(it), next(it))
            if has_down:
                cd = (next(it), next(it), next(it))
                shortcut = _conv(x, *cd, relu=False)
            else:
                shortcut = x
            h = _conv(x, *c1, relu=True)
            x = _conv(h, *c2, relu=True, residual=shortcut)

        # Global average pool + FC + argmax, fused in the epilogue.
        fc_w, fc_b = next(it), next(it)
        pooled = jnp.mean(x, axis=0, keepdims=True)          # (1, C)
        logits = jnp.dot(pooled.astype(CDT), fc_w[...],
                         preferred_element_type=jnp.float32) + fc_b[...]
        lane = jax.lax.broadcasted_iota(jnp.int32, logits.shape, 1)
        lane = lane.astype(jnp.float32)
        mx = jnp.max(logits, axis=1, keepdims=True)
        idx = jnp.min(jnp.where(logits >= mx, lane, float(NUM_CLASSES)),
                      axis=1, keepdims=True)                 # first-max index
        out_ref[...] = idx.astype(jnp.int32)

    return kernel


# ---------------------------------------------------------------------------
# Parameter construction (BN + Normalize folded into conv weights)
# ---------------------------------------------------------------------------

def _init_conv_bn(key, k, cin, cout):
    """Conv2d(bias=False) + BatchNorm(eval) folded into (w, b)."""
    k1, k2, k3, k4, k5 = jax.random.split(key, 5)
    fan_in = k * k * cin
    w = jax.random.normal(k1, (k, k, cin, cout), jnp.float32) * jnp.sqrt(
        2.0 / fan_in)
    gamma = 1.0 + 0.1 * jax.random.normal(k2, (cout,), jnp.float32)
    beta = 0.1 * jax.random.normal(k3, (cout,), jnp.float32)
    mean = 0.1 * jax.random.normal(k4, (cout,), jnp.float32)
    var = 1.0 + 0.1 * jax.random.uniform(k5, (cout,), jnp.float32)
    scale = gamma / jnp.sqrt(var + BN_EPS)
    return w * scale, beta - mean * scale


def build_model(key):
    """Returns (flat kernel inputs, block_plan)."""
    # TODO(synk): pretrained ImageNet checkpoint load has no Pallas
    # equivalent; parameters are deterministic synthetic values instead.
    keys = iter(jax.random.split(key, 32))
    inputs = []
    block_plan = []

    # Stem, with Normalize((x-0.5)/0.5) folded in: w' = 2w, b' = b - sum(w).
    w, b = _init_conv_bn(next(keys), 7, 3, CHANNELS[0])
    stem_w = 2.0 * w
    stem_b = b - jnp.sum(w, axis=(0, 1, 2))
    inputs += [stem_w.reshape(7 * 7 * 3, CHANNELS[0]).astype(CDT),
               stem_b.reshape(1, -1)]

    h = (IMG_SIZE + 2 * 3 - 7) // 2 + 1                   # stem output: 16
    t_pool, h = shift_matrices(h, h, 3, 2, 1)             # maxpool -> 8
    inputs.append(jnp.asarray(t_pool, CDT))

    def add_conv(k, cin, cout, hin, stride, pad):
        cw, cb = _init_conv_bn(next(keys), k, cin, cout)
        t, hout = shift_matrices(hin, hin, k, stride, pad)
        inputs.extend([jnp.asarray(t, CDT),
                       cw.reshape(k * k, cin, cout).astype(CDT),
                       cb.reshape(1, cout)])
        return hout

    cin = CHANNELS[0]
    for stage, cout in enumerate(CHANNELS):
        for blk in range(2):
            stride = 2 if (blk == 0 and stage > 0) else 1
            hout = add_conv(3, cin, cout, h, stride, 1)    # conv1 (+ReLU)
            add_conv(3, cout, cout, hout, 1, 1)            # conv2
            has_down = stride != 1 or cin != cout
            if has_down:
                add_conv(1, cin, cout, h, stride, 0)       # 1x1/s2 downsample
            block_plan.append(has_down)
            cin, h = cout, hout

    kw, kb = jax.random.split(next(keys))
    inputs += [
        (jax.random.normal(kw, (CHANNELS[-1], NUM_CLASSES),
                           jnp.float32) * 0.05).astype(CDT),
        (jax.random.normal(kb, (NUM_CLASSES,), jnp.float32) * 0.01
         ).reshape(1, -1),
    ]
    return inputs, tuple(block_plan)


# ---------------------------------------------------------------------------
# Wrapper: input glue (resize + one-time stem patch rows) + the fused kernel
# ---------------------------------------------------------------------------

def stem_patches(img):
    """7x7/s2/p3 im2col rows of the resized image. Pad value 0.5 equals the
    normalized zero, keeping the Normalize->stem-weight fold exact."""
    k, s, pad = 7, 2, 3
    oh = (IMG_SIZE + 2 * pad - k) // s + 1
    xp = jnp.pad(img, ((pad, pad), (pad, pad), (0, 0)), constant_values=0.5)
    taps = [xp[i:i + s * oh:s, j:j + s * oh:s, :]
            for i in range(k) for j in range(k)]
    return jnp.stack(taps, axis=2).reshape(oh * oh, k * k * 3)


def build_forward(key):
    inputs, block_plan = build_model(key)
    kernel = make_kernel(block_plan)

    def forward(img_hwc):
        """Mirrors DrowseDetectionModel.forward:
        transform -> unsqueeze(0) -> resnet18 -> argmax (batch of 1)."""
        # TODO(synk): torchvision's antialiased bilinear Resize is
        # approximated with jax.image.resize bilinear (input glue only).
        x = jax.image.resize(img_hwc, (IMG_SIZE, IMG_SIZE, 3),
                             method="bilinear")
        cols = stem_patches(x).astype(CDT)
        cls = pl.pallas_call(
            kernel,
            out_shape=jax.ShapeDtypeStruct((1, 1), jnp.int32),
            compiler_params=pltpu.CompilerParams(
                vmem_limit_bytes=32 * 1024 * 1024),
        )(cols, *inputs)
        return cls[0, 0]

    return jax.jit(forward)


if __name__ == "__main__":
    key = jax.random.PRNGKey(0)
    pkey, xkey = jax.random.split(key)
    forward = build_forward(pkey)
    # Synthetic HWC image in [0, 1] (what ToTensor would produce).
    img = jax.random.uniform(xkey, (64, 64, 3), jnp.float32)
    pred = forward(img)
    jax.block_until_ready(pred)
    cls = int(pred)                 # mirrors `.item()` returning a Python int
    assert cls in (0, 1)
    print("KERNEL_OK")
</pallas_src>

<mosaic_0001>
module attributes {stable_mosaic.version = 11 : i64} {
  func.func @kernel(%arg0: memref<256x147xbf16, #tpu.memory_space<vmem>>, %arg1: memref<147x8xbf16, #tpu.memory_space<vmem>>, %arg2: memref<1x8xf32, #tpu.memory_space<vmem>>, %arg3: memref<9x64x256xbf16, #tpu.memory_space<vmem>>, %arg4: memref<9x64x64xbf16, #tpu.memory_space<vmem>>, %arg5: memref<9x8x8xbf16, #tpu.memory_space<vmem>>, %arg6: memref<1x8xf32, #tpu.memory_space<vmem>>, %arg7: memref<9x64x64xbf16, #tpu.memory_space<vmem>>, %arg8: memref<9x8x8xbf16, #tpu.memory_space<vmem>>, %arg9: memref<1x8xf32, #tpu.memory_space<vmem>>, %arg10: memref<9x64x64xbf16, #tpu.memory_space<vmem>>, %arg11: memref<9x8x8xbf16, #tpu.memory_space<vmem>>, %arg12: memref<1x8xf32, #tpu.memory_space<vmem>>, %arg13: memref<9x64x64xbf16, #tpu.memory_space<vmem>>, %arg14: memref<9x8x8xbf16, #tpu.memory_space<vmem>>, %arg15: memref<1x8xf32, #tpu.memory_space<vmem>>, %arg16: memref<9x16x64xbf16, #tpu.memory_space<vmem>>, %arg17: memref<9x8x16xbf16, #tpu.memory_space<vmem>>, %arg18: memref<1x16xf32, #tpu.memory_space<vmem>>, %arg19: memref<9x16x16xbf16, #tpu.memory_space<vmem>>, %arg20: memref<9x16x16xbf16, #tpu.memory_space<vmem>>, %arg21: memref<1x16xf32, #tpu.memory_space<vmem>>, %arg22: memref<1x16x64xbf16, #tpu.memory_space<vmem>>, %arg23: memref<1x8x16xbf16, #tpu.memory_space<vmem>>, %arg24: memref<1x16xf32, #tpu.memory_space<vmem>>, %arg25: memref<9x16x16xbf16, #tpu.memory_space<vmem>>, %arg26: memref<9x16x16xbf16, #tpu.memory_space<vmem>>, %arg27: memref<1x16xf32, #tpu.memory_space<vmem>>, %arg28: memref<9x16x16xbf16, #tpu.memory_space<vmem>>, %arg29: memref<9x16x16xbf16, #tpu.memory_space<vmem>>, %arg30: memref<1x16xf32, #tpu.memory_space<vmem>>, %arg31: memref<9x4x16xbf16, #tpu.memory_space<vmem>>, %arg32: memref<9x16x32xbf16, #tpu.memory_space<vmem>>, %arg33: memref<1x32xf32, #tpu.memory_space<vmem>>, %arg34: memref<9x4x4xbf16, #tpu.memory_space<vmem>>, %arg35: memref<9x32x32xbf16, #tpu.memory_space<vmem>>, %arg36: memref<1x32xf32, #tpu.memory_space<vmem>>, %arg37: memref<1x4x16xbf16, #tpu.memory_space<vmem>>, %arg38: memref<1x16x32xbf16, #tpu.memory_space<vmem>>, %arg39: memref<1x32xf32, #tpu.memory_space<vmem>>, %arg40: memref<9x4x4xbf16, #tpu.memory_space<vmem>>, %arg41: memref<9x32x32xbf16, #tpu.memory_space<vmem>>, %arg42: memref<1x32xf32, #tpu.memory_space<vmem>>, %arg43: memref<9x4x4xbf16, #tpu.memory_space<vmem>>, %arg44: memref<9x32x32xbf16, #tpu.memory_space<vmem>>, %arg45: memref<1x32xf32, #tpu.memory_space<vmem>>, %arg46: memref<9x1x4xbf16, #tpu.memory_space<vmem>>, %arg47: memref<9x32x64xbf16, #tpu.memory_space<vmem>>, %arg48: memref<1x64xf32, #tpu.memory_space<vmem>>, %arg49: memref<9x1x1xbf16, #tpu.memory_space<vmem>>, %arg50: memref<9x64x64xbf16, #tpu.memory_space<vmem>>, %arg51: memref<1x64xf32, #tpu.memory_space<vmem>>, %arg52: memref<1x1x4xbf16, #tpu.memory_space<vmem>>, %arg53: memref<1x32x64xbf16, #tpu.memory_space<vmem>>, %arg54: memref<1x64xf32, #tpu.memory_space<vmem>>, %arg55: memref<9x1x1xbf16, #tpu.memory_space<vmem>>, %arg56: memref<9x64x64xbf16, #tpu.memory_space<vmem>>, %arg57: memref<1x64xf32, #tpu.memory_space<vmem>>, %arg58: memref<9x1x1xbf16, #tpu.memory_space<vmem>>, %arg59: memref<9x64x64xbf16, #tpu.memory_space<vmem>>, %arg60: memref<1x64xf32, #tpu.memory_space<vmem>>, %arg61: memref<64x2xbf16, #tpu.memory_space<vmem>>, %arg62: memref<1x2xf32, #tpu.memory_space<vmem>>, %arg63: memref<1x1xi32, #tpu.memory_space<vmem>>) attributes {dimension_semantics = [], scalar_prefetch = 0 : i64, scratch_operands = 0 : i64, tpu.core_type = #tpu.core_type<tc>} {
    %c0 = arith.constant 0 : index
    %c0_0 = arith.constant 0 : index
    %0 = vector.load %arg0[%c0, %c0_0] : memref<256x147xbf16, #tpu.memory_space<vmem>>, vector<256x147xbf16>
    %c0_1 = arith.constant 0 : index
    %c0_2 = arith.constant 0 : index
    %1 = vector.load %arg1[%c0_1, %c0_2] : memref<147x8xbf16, #tpu.memory_space<vmem>>, vector<147x8xbf16>
    %cst = arith.constant dense<0.000000e+00> : vector<256x8xf32>
    %2 = tpu.matmul %0, %1, %cst {dimension_numbers = #tpu.dot_dimension_numbers<[1], [0], [0], [1], [0, 0, 1, 1], [], []>} : vector<256x147xbf16>, vector<147x8xbf16>, vector<256x8xf32> -> vector<256x8xf32>
    %c0_3 = arith.constant 0 : index
    %c0_4 = arith.constant 0 : index
    %3 = vector.load %arg2[%c0_3, %c0_4] : memref<1x8xf32, #tpu.memory_space<vmem>>, vector<1x8xf32>
    %4 = vector.broadcast %3 : vector<1x8xf32> to vector<256x8xf32>
    %5 = arith.addf %2, %4 : vector<256x8xf32>
    %cst_5 = arith.constant 0.000000e+00 : f32
    %6 = vector.broadcast %cst_5 : f32 to vector<256x8xf32>
    %7 = arith.maximumf %5, %6 : vector<256x8xf32>
    %8 = arith.truncf %7 : vector<256x8xf32> to vector<256x8xbf16>
    %c0_6 = arith.constant 0 : index
    %c0_7 = arith.constant 0 : index
    %c0_8 = arith.constant 0 : index
    %9 = vector.load %arg3[%c0_6, %c0_7, %c0_8] : memref<9x64x256xbf16, #tpu.memory_space<vmem>>, vector<1x64x256xbf16>
    %10 = vector.shape_cast %9 : vector<1x64x256xbf16> to vector<64x256xbf16>
    %cst_9 = arith.constant dense<0.000000e+00> : vector<64x8xf32>
    %11 = tpu.matmul %10, %8, %cst_9 {dimension_numbers = #tpu.dot_dimension_numbers<[1], [0], [0], [1], [0, 0, 1, 1], [], []>} : vector<64x256xbf16>, vector<256x8xbf16>, vector<64x8xf32> -> vector<64x8xf32>
    %c1_i32 = arith.constant 1 : i32
    %c8_i32 = arith.constant 8 : i32
    %12 = arith.addi %c1_i32, %c8_i32 : i32
    %c1_i32_10 = arith.constant 1 : i32
    %13 = scf.for %arg64 = %c1_i32 to %12 step %c1_i32_10 iter_args(%arg65 = %11) -> (vector<64x8xf32>)  : i32 {
      %314 = arith.index_cast %arg64 : i32 to index
      %c0_291 = arith.constant 0 : index
      %c0_292 = arith.constant 0 : index
      %315 = vector.load %arg3[%314, %c0_291, %c0_292] : memref<9x64x256xbf16, #tpu.memory_space<vmem>>, vector<1x64x256xbf16>
      %316 = vector.shape_cast %315 : vector<1x64x256xbf16> to vector<64x256xbf16>
      %cst_293 = arith.constant dense<0.000000e+00> : vector<64x8xf32>
      %317 = tpu.matmul %316, %8, %cst_293 {dimension_numbers = #tpu.dot_dimension_numbers<[1], [0], [0], [1], [0, 0, 1, 1], [], []>} : vector<64x256xbf16>, vector<256x8xbf16>, vector<64x8xf32> -> vector<64x8xf32>
      %318 = arith.maximumf %arg65, %317 : vector<64x8xf32>
      scf.yield %318 : vector<64x8xf32>
    }
    %c8_i32_11 = arith.constant 8 : i32
    %14 = arith.truncf %13 : vector<64x8xf32> to vector<64x8xbf16>
    %c0_12 = arith.constant 0 : index
    %c0_13 = arith.constant 0 : index
    %c0_14 = arith.constant 0 : index
    %15 = vector.load %arg4[%c0_12, %c0_13, %c0_14] : memref<9x64x64xbf16, #tpu.memory_space<vmem>>, vector<1x64x64xbf16>
    %16 = vector.shape_cast %15 : vector<1x64x64xbf16> to vector<64x64xbf16>
    %cst_15 = arith.constant dense<0.000000e+00> : vector<64x8xf32>
    %17 = tpu.matmul %16, %14, %cst_15 {dimension_numbers = #tpu.dot_dimension_numbers<[1], [0], [0], [1], [0, 0, 1, 1], [], []>} : vector<64x64xbf16>, vector<64x8xbf16>, vector<64x8xf32> -> vector<64x8xf32>
    %18 = arith.truncf %17 : vector<64x8xf32> to vector<64x8xbf16>
    %c0_16 = arith.constant 0 : index
    %c0_17 = arith.constant 0 : index
    %c0_18 = arith.constant 0 : index
    %19 = vector.load %arg5[%c0_16, %c0_17, %c0_18] : memref<9x8x8xbf16, #tpu.memory_space<vmem>>, vector<1x8x8xbf16>
    %20 = vector.shape_cast %19 : vector<1x8x8xbf16> to vector<8x8xbf16>
    %cst_19 = arith.constant dense<0.000000e+00> : vector<64x8xf32>
    %21 = tpu.matmul %18, %20, %cst_19 {dimension_numbers = #tpu.dot_dimension_numbers<[1], [0], [0], [1], [0, 0, 1, 1], [], []>} : vector<64x8xbf16>, vector<8x8xbf16>, vector<64x8xf32> -> vector<64x8xf32>
    %c1_i32_20 = arith.constant 1 : i32
    %c8_i32_21 = arith.constant 8 : i32
    %22 = arith.addi %c1_i32_20, %c8_i32_21 : i32
    %c1_i32_22 = arith.constant 1 : i32
    %23 = scf.for %arg64 = %c1_i32_20 to %22 step %c1_i32_22 iter_args(%arg65 = %21) -> (vector<64x8xf32>)  : i32 {
      %314 = arith.index_cast %arg64 : i32 to index
      %c0_291 = arith.constant 0 : index
      %c0_292 = arith.constant 0 : index
      %315 = vector.load %arg4[%314, %c0_291, %c0_292] : memref<9x64x64xbf16, #tpu.memory_space<vmem>>, vector<1x64x64xbf16>
      %316 = vector.shape_cast %315 : vector<1x64x64xbf16> to vector<64x64xbf16>
      %cst_293 = arith.constant dense<0.000000e+00> : vector<64x8xf32>
      %317 = tpu.matmul %316, %14, %cst_293 {dimension_numbers = #tpu.dot_dimension_numbers<[1], [0], [0], [1], [0, 0, 1, 1], [], []>} : vector<64x64xbf16>, vector<64x8xbf16>, vector<64x8xf32> -> vector<64x8xf32>
      %318 = arith.truncf %317 : vector<64x8xf32> to vector<64x8xbf16>
      %319 = arith.index_cast %arg64 : i32 to index
      %c0_294 = arith.constant 0 : index
      %c0_295 = arith.constant 0 : index
      %320 = vector.load %arg5[%319, %c0_294, %c0_295] : memref<9x8x8xbf16, #tpu.memory_space<vmem>>, vector<1x8x8xbf16>
      %321 = vector.shape_cast %320 : vector<1x8x8xbf16> to vector<8x8xbf16>
      %cst_296 = arith.constant dense<0.000000e+00> : vector<64x8xf32>
      %322 = tpu.matmul %318, %321, %cst_296 {dimension_numbers = #tpu.dot_dimension_numbers<[1], [0], [0], [1], [0, 0, 1, 1], [], []>} : vector<64x8xbf16>, vector<8x8xbf16>, vector<64x8xf32> -> vector<64x8xf32>
      %323 = arith.addf %arg65, %322 : vector<64x8xf32>
      scf.yield %323 : vector<64x8xf32>
    }
    %c8_i32_23 = arith.constant 8 : i32
    %c0_24 = arith.constant 0 : index
    %c0_25 = arith.constant 0 : index
    %24 = vector.load %arg6[%c0_24, %c0_25] : memref<1x8xf32, #tpu.memory_space<vmem>>, vector<1x8xf32>
    %25 = vector.broadcast %24 : vector<1x8xf32> to vector<64x8xf32>
    %26 = arith.addf %23, %25 : vector<64x8xf32>
    %cst_26 = arith.constant 0.000000e+00 : f32
    %27 = vector.broadcast %cst_26 : f32 to vector<64x8xf32>
    %28 = arith.maximumf %26, %27 : vector<64x8xf32>
    %29 = arith.truncf %28 : vector<64x8xf32> to vector<64x8xbf16>
    %c0_27 = arith.constant 0 : index
    %c0_28 = arith.constant 0 : index
    %c0_29 = arith.constant 0 : index
    %30 = vector.load %arg7[%c0_27, %c0_28, %c0_29] : memref<9x64x64xbf16, #tpu.memory_space<vmem>>, vector<1x64x64xbf16>
    %31 = vector.shape_cast %30 : vector<1x64x64xbf16> to vector<64x64xbf16>
    %cst_30 = arith.constant dense<0.000000e+00> : vector<64x8xf32>
    %32 = tpu.matmul %31, %29, %cst_30 {dimension_numbers = #tpu.dot_dimension_numbers<[1], [0], [0], [1], [0, 0, 1, 1], [], []>} : vector<64x64xbf16>, vector<64x8xbf16>, vector<64x8xf32> -> vector<64x8xf32>
    %33 = arith.truncf %32 : vector<64x8xf32> to vector<64x8xbf16>
    %c0_31 = arith.constant 0 : index
    %c0_32 = arith.constant 0 : index
    %c0_33 = arith.constant 0 : index
    %34 = vector.load %arg8[%c0_31, %c0_32, %c0_33] : memref<9x8x8xbf16, #tpu.memory_space<vmem>>, vector<1x8x8xbf16>
    %35 = vector.shape_cast %34 : vector<1x8x8xbf16> to vector<8x8xbf16>
    %cst_34 = arith.constant dense<0.000000e+00> : vector<64x8xf32>
    %36 = tpu.matmul %33, %35, %cst_34 {dimension_numbers = #tpu.dot_dimension_numbers<[1], [0], [0], [1], [0, 0, 1, 1], [], []>} : vector<64x8xbf16>, vector<8x8xbf16>, vector<64x8xf32> -> vector<64x8xf32>
    %c1_i32_35 = arith.constant 1 : i32
    %c8_i32_36 = arith.constant 8 : i32
    %37 = arith.addi %c1_i32_35, %c8_i32_36 : i32
    %c1_i32_37 = arith.constant 1 : i32
    %38 = scf.for %arg64 = %c1_i32_35 to %37 step %c1_i32_37 iter_args(%arg65 = %36) -> (vector<64x8xf32>)  : i32 {
      %314 = arith.index_cast %arg64 : i32 to index
      %c0_291 = arith.constant 0 : index
      %c0_292 = arith.constant 0 : index
      %315 = vector.load %arg7[%314, %c0_291, %c0_292] : memref<9x64x64xbf16, #tpu.memory_space<vmem>>, vector<1x64x64xbf16>
      %316 = vector.shape_cast %315 : vector<1x64x64xbf16> to vector<64x64xbf16>
      %cst_293 = arith.constant dense<0.000000e+00> : vector<64x8xf32>
      %317 = tpu.matmul %316, %29, %cst_293 {dimension_numbers = #tpu.dot_dimension_numbers<[1], [0], [0], [1], [0, 0, 1, 1], [], []>} : vector<64x64xbf16>, vector<64x8xbf16>, vector<64x8xf32> -> vector<64x8xf32>
      %318 = arith.truncf %317 : vector<64x8xf32> to vector<64x8xbf16>
      %319 = arith.index_cast %arg64 : i32 to index
      %c0_294 = arith.constant 0 : index
      %c0_295 = arith.constant 0 : index
      %320 = vector.load %arg8[%319, %c0_294, %c0_295] : memref<9x8x8xbf16, #tpu.memory_space<vmem>>, vector<1x8x8xbf16>
      %321 = vector.shape_cast %320 : vector<1x8x8xbf16> to vector<8x8xbf16>
      %cst_296 = arith.constant dense<0.000000e+00> : vector<64x8xf32>
      %322 = tpu.matmul %318, %321, %cst_296 {dimension_numbers = #tpu.dot_dimension_numbers<[1], [0], [0], [1], [0, 0, 1, 1], [], []>} : vector<64x8xbf16>, vector<8x8xbf16>, vector<64x8xf32> -> vector<64x8xf32>
      %323 = arith.addf %arg65, %322 : vector<64x8xf32>
      scf.yield %323 : vector<64x8xf32>
    }
    %c8_i32_38 = arith.constant 8 : i32
    %c0_39 = arith.constant 0 : index
    %c0_40 = arith.constant 0 : index
    %39 = vector.load %arg9[%c0_39, %c0_40] : memref<1x8xf32, #tpu.memory_space<vmem>>, vector<1x8xf32>
    %40 = vector.broadcast %39 : vector<1x8xf32> to vector<64x8xf32>
    %41 = arith.addf %38, %40 : vector<64x8xf32>
    %42 = arith.addf %41, %13 : vector<64x8xf32>
    %cst_41 = arith.constant 0.000000e+00 : f32
    %43 = vector.broadcast %cst_41 : f32 to vector<64x8xf32>
    %44 = arith.maximumf %42, %43 : vector<64x8xf32>
    %45 = arith.truncf %44 : vector<64x8xf32> to vector<64x8xbf16>
    %c0_42 = arith.constant 0 : index
    %c0_43 = arith.constant 0 : index
    %c0_44 = arith.constant 0 : index
    %46 = vector.load %arg10[%c0_42, %c0_43, %c0_44] : memref<9x64x64xbf16, #tpu.memory_space<vmem>>, vector<1x64x64xbf16>
    %47 = vector.shape_cast %46 : vector<1x64x64xbf16> to vector<64x64xbf16>
    %cst_45 = arith.constant dense<0.000000e+00> : vector<64x8xf32>
    %48 = tpu.matmul %47, %45, %cst_45 {dimension_numbers = #tpu.dot_dimension_numbers<[1], [0], [0], [1], [0, 0, 1, 1], [], []>} : vector<64x64xbf16>, vector<64x8xbf16>, vector<64x8xf32> -> vector<64x8xf32>
    %49 = arith.truncf %48 : vector<64x8xf32> to vector<64x8xbf16>
    %c0_46 = arith.constant 0 : index
    %c0_47 = arith.constant 0 : index
    %c0_48 = arith.constant 0 : index
    %50 = vector.load %arg11[%c0_46, %c0_47, %c0_48] : memref<9x8x8xbf16, #tpu.memory_space<vmem>>, vector<1x8x8xbf16>
    %51 = vector.shape_cast %50 : vector<1x8x8xbf16> to vector<8x8xbf16>
    %cst_49 = arith.constant dense<0.000000e+00> : vector<64x8xf32>
    %52 = tpu.matmul %49, %51, %cst_49 {dimension_numbers = #tpu.dot_dimension_numbers<[1], [0], [0], [1], [0, 0, 1, 1], [], []>} : vector<64x8xbf16>, vector<8x8xbf16>, vector<64x8xf32> -> vector<64x8xf32>
    %c1_i32_50 = arith.constant 1 : i32
    %c8_i32_51 = arith.constant 8 : i32
    %53 = arith.addi %c1_i32_50, %c8_i32_51 : i32
    %c1_i32_52 = arith.constant 1 : i32
    %54 = scf.for %arg64 = %c1_i32_50 to %53 step %c1_i32_52 iter_args(%arg65 = %52) -> (vector<64x8xf32>)  : i32 {
      %314 = arith.index_cast %arg64 : i32 to index
      %c0_291 = arith.constant 0 : index
      %c0_292 = arith.constant 0 : index
      %315 = vector.load %arg10[%314, %c0_291, %c0_292] : memref<9x64x64xbf16, #tpu.memory_space<vmem>>, vector<1x64x64xbf16>
      %316 = vector.shape_cast %315 : vector<1x64x64xbf16> to vector<64x64xbf16>
      %cst_293 = arith.constant dense<0.000000e+00> : vector<64x8xf32>
      %317 = tpu.matmul %316, %45, %cst_293 {dimension_numbers = #tpu.dot_dimension_numbers<[1], [0], [0], [1], [0, 0, 1, 1], [], []>} : vector<64x64xbf16>, vector<64x8xbf16>, vector<64x8xf32> -> vector<64x8xf32>
      %318 = arith.truncf %317 : vector<64x8xf32> to vector<64x8xbf16>
      %319 = arith.index_cast %arg64 : i32 to index
      %c0_294 = arith.constant 0 : index
      %c0_295 = arith.constant 0 : index
      %320 = vector.load %arg11[%319, %c0_294, %c0_295] : memref<9x8x8xbf16, #tpu.memory_space<vmem>>, vector<1x8x8xbf16>
      %321 = vector.shape_cast %320 : vector<1x8x8xbf16> to vector<8x8xbf16>
      %cst_296 = arith.constant dense<0.000000e+00> : vector<64x8xf32>
      %322 = tpu.matmul %318, %321, %cst_296 {dimension_numbers = #tpu.dot_dimension_numbers<[1], [0], [0], [1], [0, 0, 1, 1], [], []>} : vector<64x8xbf16>, vector<8x8xbf16>, vector<64x8xf32> -> vector<64x8xf32>
      %323 = arith.addf %arg65, %322 : vector<64x8xf32>
      scf.yield %323 : vector<64x8xf32>
    }
    %c8_i32_53 = arith.constant 8 : i32
    %c0_54 = arith.constant 0 : index
    %c0_55 = arith.constant 0 : index
    %55 = vector.load %arg12[%c0_54, %c0_55] : memref<1x8xf32, #tpu.memory_space<vmem>>, vector<1x8xf32>
    %56 = vector.broadcast %55 : vector<1x8xf32> to vector<64x8xf32>
    %57 = arith.addf %54, %56 : vector<64x8xf32>
    %cst_56 = arith.constant 0.000000e+00 : f32
    %58 = vector.broadcast %cst_56 : f32 to vector<64x8xf32>
    %59 = arith.maximumf %57, %58 : vector<64x8xf32>
    %60 = arith.truncf %59 : vector<64x8xf32> to vector<64x8xbf16>
    %c0_57 = arith.constant 0 : index
    %c0_58 = arith.constant 0 : index
    %c0_59 = arith.constant 0 : index
    %61 = vector.load %arg13[%c0_57, %c0_58, %c0_59] : memref<9x64x64xbf16, #tpu.memory_space<vmem>>, vector<1x64x64xbf16>
    %62 = vector.shape_cast %61 : vector<1x64x64xbf16> to vector<64x64xbf16>
    %cst_60 = arith.constant dense<0.000000e+00> : vector<64x8xf32>
    %63 = tpu.matmul %62, %60, %cst_60 {dimension_numbers = #tpu.dot_dimension_numbers<[1], [0], [0], [1], [0, 0, 1, 1], [], []>} : vector<64x64xbf16>, vector<64x8xbf16>, vector<64x8xf32> -> vector<64x8xf32>
    %64 = arith.truncf %63 : vector<64x8xf32> to vector<64x8xbf16>
    %c0_61 = arith.constant 0 : index
    %c0_62 = arith.constant 0 : index
    %c0_63 = arith.constant 0 : index
    %65 = vector.load %arg14[%c0_61, %c0_62, %c0_63] : memref<9x8x8xbf16, #tpu.memory_space<vmem>>, vector<1x8x8xbf16>
    %66 = vector.shape_cast %65 : vector<1x8x8xbf16> to vector<8x8xbf16>
    %cst_64 = arith.constant dense<0.000000e+00> : vector<64x8xf32>
    %67 = tpu.matmul %64, %66, %cst_64 {dimension_numbers = #tpu.dot_dimension_numbers<[1], [0], [0], [1], [0, 0, 1, 1], [], []>} : vector<64x8xbf16>, vector<8x8xbf16>, vector<64x8xf32> -> vector<64x8xf32>
    %c1_i32_65 = arith.constant 1 : i32
    %c8_i32_66 = arith.constant 8 : i32
    %68 = arith.addi %c1_i32_65, %c8_i32_66 : i32
    %c1_i32_67 = arith.constant 1 : i32
    %69 = scf.for %arg64 = %c1_i32_65 to %68 step %c1_i32_67 iter_args(%arg65 = %67) -> (vector<64x8xf32>)  : i32 {
      %314 = arith.index_cast %arg64 : i32 to index
      %c0_291 = arith.constant 0 : index
      %c0_292 = arith.constant 0 : index
      %315 = vector.load %arg13[%314, %c0_291, %c0_292] : memref<9x64x64xbf16, #tpu.memory_space<vmem>>, vector<1x64x64xbf16>
      %316 = vector.shape_cast %315 : vector<1x64x64xbf16> to vector<64x64xbf16>
      %cst_293 = arith.constant dense<0.000000e+00> : vector<64x8xf32>
      %317 = tpu.matmul %316, %60, %cst_293 {dimension_numbers = #tpu.dot_dimension_numbers<[1], [0], [0], [1], [0, 0, 1, 1], [], []>} : vector<64x64xbf16>, vector<64x8xbf16>, vector<64x8xf32> -> vector<64x8xf32>
      %318 = arith.truncf %317 : vector<64x8xf32> to vector<64x8xbf16>
      %319 = arith.index_cast %arg64 : i32 to index
      %c0_294 = arith.constant 0 : index
      %c0_295 = arith.constant 0 : index
      %320 = vector.load %arg14[%319, %c0_294, %c0_295] : memref<9x8x8xbf16, #tpu.memory_space<vmem>>, vector<1x8x8xbf16>
      %321 = vector.shape_cast %320 : vector<1x8x8xbf16> to vector<8x8xbf16>
      %cst_296 = arith.constant dense<0.000000e+00> : vector<64x8xf32>
      %322 = tpu.matmul %318, %321, %cst_296 {dimension_numbers = #tpu.dot_dimension_numbers<[1], [0], [0], [1], [0, 0, 1, 1], [], []>} : vector<64x8xbf16>, vector<8x8xbf16>, vector<64x8xf32> -> vector<64x8xf32>
      %323 = arith.addf %arg65, %322 : vector<64x8xf32>
      scf.yield %323 : vector<64x8xf32>
    }
    %c8_i32_68 = arith.constant 8 : i32
    %c0_69 = arith.constant 0 : index
    %c0_70 = arith.constant 0 : index
    %70 = vector.load %arg15[%c0_69, %c0_70] : memref<1x8xf32, #tpu.memory_space<vmem>>, vector<1x8xf32>
    %71 = vector.broadcast %70 : vector<1x8xf32> to vector<64x8xf32>
    %72 = arith.addf %69, %71 : vector<64x8xf32>
    %73 = arith.addf %72, %44 : vector<64x8xf32>
    %cst_71 = arith.constant 0.000000e+00 : f32
    %74 = vector.broadcast %cst_71 : f32 to vector<64x8xf32>
    %75 = arith.maximumf %73, %74 : vector<64x8xf32>
    %76 = arith.truncf %75 : vector<64x8xf32> to vector<64x8xbf16>
    %c0_72 = arith.constant 0 : index
    %c0_73 = arith.constant 0 : index
    %c0_74 = arith.constant 0 : index
    %77 = vector.load %arg22[%c0_72, %c0_73, %c0_74] : memref<1x16x64xbf16, #tpu.memory_space<vmem>>, vector<1x16x64xbf16>
    %78 = vector.shape_cast %77 : vector<1x16x64xbf16> to vector<16x64xbf16>
    %cst_75 = arith.constant dense<0.000000e+00> : vector<16x8xf32>
    %79 = tpu.matmul %78, %76, %cst_75 {dimension_numbers = #tpu.dot_dimension_numbers<[1], [0], [0], [1], [0, 0, 1, 1], [], []>} : vector<16x64xbf16>, vector<64x8xbf16>, vector<16x8xf32> -> vector<16x8xf32>
    %80 = arith.truncf %79 : vector<16x8xf32> to vector<16x8xbf16>
    %c0_76 = arith.constant 0 : index
    %c0_77 = arith.constant 0 : index
    %c0_78 = arith.constant 0 : index
    %81 = vector.load %arg23[%c0_76, %c0_77, %c0_78] : memref<1x8x16xbf16, #tpu.memory_space<vmem>>, vector<1x8x16xbf16>
    %82 = vector.shape_cast %81 : vector<1x8x16xbf16> to vector<8x16xbf16>
    %cst_79 = arith.constant dense<0.000000e+00> : vector<16x16xf32>
    %83 = tpu.matmul %80, %82, %cst_79 {dimension_numbers = #tpu.dot_dimension_numbers<[1], [0], [0], [1], [0, 0, 1, 1], [], []>} : vector<16x8xbf16>, vector<8x16xbf16>, vector<16x16xf32> -> vector<16x16xf32>
    %c0_80 = arith.constant 0 : index
    %c0_81 = arith.constant 0 : index
    %84 = vector.load %arg24[%c0_80, %c0_81] : memref<1x16xf32, #tpu.memory_space<vmem>>, vector<1x16xf32>
    %85 = vector.broadcast %84 : vector<1x16xf32> to vector<16x16xf32>
    %86 = arith.addf %83, %85 : vector<16x16xf32>
    %87 = arith.truncf %75 : vector<64x8xf32> to vector<64x8xbf16>
    %c0_82 = arith.constant 0 : index
    %c0_83 = arith.constant 0 : index
    %c0_84 = arith.constant 0 : index
    %88 = vector.load %arg16[%c0_82, %c0_83, %c0_84] : memref<9x16x64xbf16, #tpu.memory_space<vmem>>, vector<1x16x64xbf16>
    %89 = vector.shape_cast %88 : vector<1x16x64xbf16> to vector<16x64xbf16>
    %cst_85 = arith.constant dense<0.000000e+00> : vector<16x8xf32>
    %90 = tpu.matmul %89, %87, %cst_85 {dimension_numbers = #tpu.dot_dimension_numbers<[1], [0], [0], [1], [0, 0, 1, 1], [], []>} : vector<16x64xbf16>, vector<64x8xbf16>, vector<16x8xf32> -> vector<16x8xf32>
    %91 = arith.truncf %90 : vector<16x8xf32> to vector<16x8xbf16>
    %c0_86 = arith.constant 0 : index
    %c0_87 = arith.constant 0 : index
    %c0_88 = arith.constant 0 : index
    %92 = vector.load %arg17[%c0_86, %c0_87, %c0_88] : memref<9x8x16xbf16, #tpu.memory_space<vmem>>, vector<1x8x16xbf16>
    %93 = vector.shape_cast %92 : vector<1x8x16xbf16> to vector<8x16xbf16>
    %cst_89 = arith.constant dense<0.000000e+00> : vector<16x16xf32>
    %94 = tpu.matmul %91, %93, %cst_89 {dimension_numbers = #tpu.dot_dimension_numbers<[1], [0], [0], [1], [0, 0, 1, 1], [], []>} : vector<16x8xbf16>, vector<8x16xbf16>, vector<16x16xf32> -> vector<16x16xf32>
    %c1_i32_90 = arith.constant 1 : i32
    %c8_i32_91 = arith.constant 8 : i32
    %95 = arith.addi %c1_i32_90, %c8_i32_91 : i32
    %c1_i32_92 = arith.constant 1 : i32
    %96 = scf.for %arg64 = %c1_i32_90 to %95 step %c1_i32_92 iter_args(%arg65 = %94) -> (vector<16x16xf32>)  : i32 {
      %314 = arith.index_cast %arg64 : i32 to index
      %c0_291 = arith.constant 0 : index
      %c0_292 = arith.constant 0 : index
      %315 = vector.load %arg16[%314, %c0_291, %c0_292] : memref<9x16x64xbf16, #tpu.memory_space<vmem>>, vector<1x16x64xbf16>
      %316 = vector.shape_cast %315 : vector<1x16x64xbf16> to vector<16x64xbf16>
      %cst_293 = arith.constant dense<0.000000e+00> : vector<16x8xf32>
      %317 = tpu.matmul %316, %87, %cst_293 {dimension_numbers = #tpu.dot_dimension_numbers<[1], [0], [0], [1], [0, 0, 1, 1], [], []>} : vector<16x64xbf16>, vector<64x8xbf16>, vector<16x8xf32> -> vector<16x8xf32>
      %318 = arith.truncf %317 : vector<16x8xf32> to vector<16x8xbf16>
      %319 = arith.index_cast %arg64 : i32 to index
      %c0_294 = arith.constant 0 : index
      %c0_295 = arith.constant 0 : index
      %320 = vector.load %arg17[%319, %c0_294, %c0_295] : memref<9x8x16xbf16, #tpu.memory_space<vmem>>, vector<1x8x16xbf16>
      %321 = vector.shape_cast %320 : vector<1x8x16xbf16> to vector<8x16xbf16>
      %cst_296 = arith.constant dense<0.000000e+00> : vector<16x16xf32>
      %322 = tpu.matmul %318, %321, %cst_296 {dimension_numbers = #tpu.dot_dimension_numbers<[1], [0], [0], [1], [0, 0, 1, 1], [], []>} : vector<16x8xbf16>, vector<8x16xbf16>, vector<16x16xf32> -> vector<16x16xf32>
      %323 = arith.addf %arg65, %322 : vector<16x16xf32>
      scf.yield %323 : vector<16x16xf32>
    }
    %c8_i32_93 = arith.constant 8 : i32
    %c0_94 = arith.constant 0 : index
    %c0_95 = arith.constant 0 : index
    %97 = vector.load %arg18[%c0_94, %c0_95] : memref<1x16xf32, #tpu.memory_space<vmem>>, vector<1x16xf32>
    %98 = vector.broadcast %97 : vector<1x16xf32> to vector<16x16xf32>
    %99 = arith.addf %96, %98 : vector<16x16xf32>
    %cst_96 = arith.constant 0.000000e+00 : f32
    %100 = vector.broadcast %cst_96 : f32 to vector<16x16xf32>
    %101 = arith.maximumf %99, %100 : vector<16x16xf32>
    %102 = arith.truncf %101 : vector<16x16xf32> to vector<16x16xbf16>
    %c0_97 = arith.constant 0 : index
    %c0_98 = arith.constant 0 : index
    %c0_99 = arith.constant 0 : index
    %103 = vector.load %arg19[%c0_97, %c0_98, %c0_99] : memref<9x16x16xbf16, #tpu.memory_space<vmem>>, vector<1x16x16xbf16>
    %104 = vector.shape_cast %103 : vector<1x16x16xbf16> to vector<16x16xbf16>
    %cst_100 = arith.constant dense<0.000000e+00> : vector<16x16xf32>
    %105 = tpu.matmul %104, %102, %cst_100 {dimension_numbers = #tpu.dot_dimension_numbers<[1], [0], [0], [1], [0, 0, 1, 1], [], []>} : vector<16x16xbf16>, vector<16x16xbf16>, vector<16x16xf32> -> vector<16x16xf32>
    %106 = arith.truncf %105 : vector<16x16xf32> to vector<16x16xbf16>
    %c0_101 = arith.constant 0 : index
    %c0_102 = arith.constant 0 : index
    %c0_103 = arith.constant 0 : index
    %107 = vector.load %arg20[%c0_101, %c0_102, %c0_103] : memref<9x16x16xbf16, #tpu.memory_space<vmem>>, vector<1x16x16xbf16>
    %108 = vector.shape_cast %107 : vector<1x16x16xbf16> to vector<16x16xbf16>
    %cst_104 = arith.constant dense<0.000000e+00> : vector<16x16xf32>
    %109 = tpu.matmul %106, %108, %cst_104 {dimension_numbers = #tpu.dot_dimension_numbers<[1], [0], [0], [1], [0, 0, 1, 1], [], []>} : vector<16x16xbf16>, vector<16x16xbf16>, vector<16x16xf32> -> vector<16x16xf32>
    %c1_i32_105 = arith.constant 1 : i32
    %c8_i32_106 = arith.constant 8 : i32
    %110 = arith.addi %c1_i32_105, %c8_i32_106 : i32
    %c1_i32_107 = arith.constant 1 : i32
    %111 = scf.for %arg64 = %c1_i32_105 to %110 step %c1_i32_107 iter_args(%arg65 = %109) -> (vector<16x16xf32>)  : i32 {
      %314 = arith.index_cast %arg64 : i32 to index
      %c0_291 = arith.constant 0 : index
      %c0_292 = arith.constant 0 : index
      %315 = vector.load %arg19[%314, %c0_291, %c0_292] : memref<9x16x16xbf16, #tpu.memory_space<vmem>>, vector<1x16x16xbf16>
      %316 = vector.shape_cast %315 : vector<1x16x16xbf16> to vector<16x16xbf16>
      %cst_293 = arith.constant dense<0.000000e+00> : vector<16x16xf32>
      %317 = tpu.matmul %316, %102, %cst_293 {dimension_numbers = #tpu.dot_dimension_numbers<[1], [0], [0], [1], [0, 0, 1, 1], [], []>} : vector<16x16xbf16>, vector<16x16xbf16>, vector<16x16xf32> -> vector<16x16xf32>
      %318 = arith.truncf %317 : vector<16x16xf32> to vector<16x16xbf16>
      %319 = arith.index_cast %arg64 : i32 to index
      %c0_294 = arith.constant 0 : index
      %c0_295 = arith.constant 0 : index
      %320 = vector.load %arg20[%319, %c0_294, %c0_295] : memref<9x16x16xbf16, #tpu.memory_space<vmem>>, vector<1x16x16xbf16>
      %321 = vector.shape_cast %320 : vector<1x16x16xbf16> to vector<16x16xbf16>
      %cst_296 = arith.constant dense<0.000000e+00> : vector<16x16xf32>
      %322 = tpu.matmul %318, %321, %cst_296 {dimension_numbers = #tpu.dot_dimension_numbers<[1], [0], [0], [1], [0, 0, 1, 1], [], []>} : vector<16x16xbf16>, vector<16x16xbf16>, vector<16x16xf32> -> vector<16x16xf32>
      %323 = arith.addf %arg65, %322 : vector<16x16xf32>
      scf.yield %323 : vector<16x16xf32>
    }
    %c8_i32_108 = arith.constant 8 : i32
    %c0_109 = arith.constant 0 : index
    %c0_110 = arith.constant 0 : index
    %112 = vector.load %arg21[%c0_109, %c0_110] : memref<1x16xf32, #tpu.memory_space<vmem>>, vector<1x16xf32>
    %113 = vector.broadcast %112 : vector<1x16xf32> to vector<16x16xf32>
    %114 = arith.addf %111, %113 : vector<16x16xf32>
    %115 = arith.addf %114, %86 : vector<16x16xf32>
    %cst_111 = arith.constant 0.000000e+00 : f32
    %116 = vector.broadcast %cst_111 : f32 to vector<16x16xf32>
    %117 = arith.maximumf %115, %116 : vector<16x16xf32>
    %118 = arith.truncf %117 : vector<16x16xf32> to vector<16x16xbf16>
    %c0_112 = arith.constant 0 : index
    %c0_113 = arith.constant 0 : index
    %c0_114 = arith.constant 0 : index
    %119 = vector.load %arg25[%c0_112, %c0_113, %c0_114] : memref<9x16x16xbf16, #tpu.memory_space<vmem>>, vector<1x16x16xbf16>
    %120 = vector.shape_cast %119 : vector<1x16x16xbf16> to vector<16x16xbf16>
    %cst_115 = arith.constant dense<0.000000e+00> : vector<16x16xf32>
    %121 = tpu.matmul %120, %118, %cst_115 {dimension_numbers = #tpu.dot_dimension_numbers<[1], [0], [0], [1], [0, 0, 1, 1], [], []>} : vector<16x16xbf16>, vector<16x16xbf16>, vector<16x16xf32> -> vector<16x16xf32>
    %122 = arith.truncf %121 : vector<16x16xf32> to vector<16x16xbf16>
    %c0_116 = arith.constant 0 : index
    %c0_117 = arith.constant 0 : index
    %c0_118 = arith.constant 0 : index
    %123 = vector.load %arg26[%c0_116, %c0_117, %c0_118] : memref<9x16x16xbf16, #tpu.memory_space<vmem>>, vector<1x16x16xbf16>
    %124 = vector.shape_cast %123 : vector<1x16x16xbf16> to vector<16x16xbf16>
    %cst_119 = arith.constant dense<0.000000e+00> : vector<16x16xf32>
    %125 = tpu.matmul %122, %124, %cst_119 {dimension_numbers = #tpu.dot_dimension_numbers<[1], [0], [0], [1], [0, 0, 1, 1], [], []>} : vector<16x16xbf16>, vector<16x16xbf16>, vector<16x16xf32> -> vector<16x16xf32>
    %c1_i32_120 = arith.constant 1 : i32
    %c8_i32_121 = arith.constant 8 : i32
    %126 = arith.addi %c1_i32_120, %c8_i32_121 : i32
    %c1_i32_122 = arith.constant 1 : i32
    %127 = scf.for %arg64 = %c1_i32_120 to %126 step %c1_i32_122 iter_args(%arg65 = %125) -> (vector<16x16xf32>)  : i32 {
      %314 = arith.index_cast %arg64 : i32 to index
      %c0_291 = arith.constant 0 : index
      %c0_292 = arith.constant 0 : index
      %315 = vector.load %arg25[%314, %c0_291, %c0_292] : memref<9x16x16xbf16, #tpu.memory_space<vmem>>, vector<1x16x16xbf16>
      %316 = vector.shape_cast %315 : vector<1x16x16xbf16> to vector<16x16xbf16>
      %cst_293 = arith.constant dense<0.000000e+00> : vector<16x16xf32>
      %317 = tpu.matmul %316, %118, %cst_293 {dimension_numbers = #tpu.dot_dimension_numbers<[1], [0], [0], [1], [0, 0, 1, 1], [], []>} : vector<16x16xbf16>, vector<16x16xbf16>, vector<16x16xf32> -> vector<16x16xf32>
      %318 = arith.truncf %317 : vector<16x16xf32> to vector<16x16xbf16>
      %319 = arith.index_cast %arg64 : i32 to index
      %c0_294 = arith.constant 0 : index
      %c0_295 = arith.constant 0 : index
      %320 = vector.load %arg26[%319, %c0_294, %c0_295] : memref<9x16x16xbf16, #tpu.memory_space<vmem>>, vector<1x16x16xbf16>
      %321 = vector.shape_cast %320 : vector<1x16x16xbf16> to vector<16x16xbf16>
      %cst_296 = arith.constant dense<0.000000e+00> : vector<16x16xf32>
      %322 = tpu.matmul %318, %321, %cst_296 {dimension_numbers = #tpu.dot_dimension_numbers<[1], [0], [0], [1], [0, 0, 1, 1], [], []>} : vector<16x16xbf16>, vector<16x16xbf16>, vector<16x16xf32> -> vector<16x16xf32>
      %323 = arith.addf %arg65, %322 : vector<16x16xf32>
      scf.yield %323 : vector<16x16xf32>
    }
    %c8_i32_123 = arith.constant 8 : i32
    %c0_124 = arith.constant 0 : index
    %c0_125 = arith.constant 0 : index
    %128 = vector.load %arg27[%c0_124, %c0_125] : memref<1x16xf32, #tpu.memory_space<vmem>>, vector<1x16xf32>
    %129 = vector.broadcast %128 : vector<1x16xf32> to vector<16x16xf32>
    %130 = arith.addf %127, %129 : vector<16x16xf32>
    %cst_126 = arith.constant 0.000000e+00 : f32
    %131 = vector.broadcast %cst_126 : f32 to vector<16x16xf32>
    %132 = arith.maximumf %130, %131 : vector<16x16xf32>
    %133 = arith.truncf %132 : vector<16x16xf32> to vector<16x16xbf16>
    %c0_127 = arith.constant 0 : index
    %c0_128 = arith.constant 0 : index
    %c0_129 = arith.constant 0 : index
    %134 = vector.load %arg28[%c0_127, %c0_128, %c0_129] : memref<9x16x16xbf16, #tpu.memory_space<vmem>>, vector<1x16x16xbf16>
    %135 = vector.shape_cast %134 : vector<1x16x16xbf16> to vector<16x16xbf16>
    %cst_130 = arith.constant dense<0.000000e+00> : vector<16x16xf32>
    %136 = tpu.matmul %135, %133, %cst_130 {dimension_numbers = #tpu.dot_dimension_numbers<[1], [0], [0], [1], [0, 0, 1, 1], [], []>} : vector<16x16xbf16>, vector<16x16xbf16>, vector<16x16xf32> -> vector<16x16xf32>
    %137 = arith.truncf %136 : vector<16x16xf32> to vector<16x16xbf16>
    %c0_131 = arith.constant 0 : index
    %c0_132 = arith.constant 0 : index
    %c0_133 = arith.constant 0 : index
    %138 = vector.load %arg29[%c0_131, %c0_132, %c0_133] : memref<9x16x16xbf16, #tpu.memory_space<vmem>>, vector<1x16x16xbf16>
    %139 = vector.shape_cast %138 : vector<1x16x16xbf16> to vector<16x16xbf16>
    %cst_134 = arith.constant dense<0.000000e+00> : vector<16x16xf32>
    %140 = tpu.matmul %137, %139, %cst_134 {dimension_numbers = #tpu.dot_dimension_numbers<[1], [0], [0], [1], [0, 0, 1, 1], [], []>} : vector<16x16xbf16>, vector<16x16xbf16>, vector<16x16xf32> -> vector<16x16xf32>
    %c1_i32_135 = arith.constant 1 : i32
    %c8_i32_136 = arith.constant 8 : i32
    %141 = arith.addi %c1_i32_135, %c8_i32_136 : i32
    %c1_i32_137 = arith.constant 1 : i32
    %142 = scf.for %arg64 = %c1_i32_135 to %141 step %c1_i32_137 iter_args(%arg65 = %140) -> (vector<16x16xf32>)  : i32 {
      %314 = arith.index_cast %arg64 : i32 to index
      %c0_291 = arith.constant 0 : index
      %c0_292 = arith.constant 0 : index
      %315 = vector.load %arg28[%314, %c0_291, %c0_292] : memref<9x16x16xbf16, #tpu.memory_space<vmem>>, vector<1x16x16xbf16>
      %316 = vector.shape_cast %315 : vector<1x16x16xbf16> to vector<16x16xbf16>
      %cst_293 = arith.constant dense<0.000000e+00> : vector<16x16xf32>
      %317 = tpu.matmul %316, %133, %cst_293 {dimension_numbers = #tpu.dot_dimension_numbers<[1], [0], [0], [1], [0, 0, 1, 1], [], []>} : vector<16x16xbf16>, vector<16x16xbf16>, vector<16x16xf32> -> vector<16x16xf32>
      %318 = arith.truncf %317 : vector<16x16xf32> to vector<16x16xbf16>
      %319 = arith.index_cast %arg64 : i32 to index
      %c0_294 = arith.constant 0 : index
      %c0_295 = arith.constant 0 : index
      %320 = vector.load %arg29[%319, %c0_294, %c0_295] : memref<9x16x16xbf16, #tpu.memory_space<vmem>>, vector<1x16x16xbf16>
      %321 = vector.shape_cast %320 : vector<1x16x16xbf16> to vector<16x16xbf16>
      %cst_296 = arith.constant dense<0.000000e+00> : vector<16x16xf32>
      %322 = tpu.matmul %318, %321, %cst_296 {dimension_numbers = #tpu.dot_dimension_numbers<[1], [0], [0], [1], [0, 0, 1, 1], [], []>} : vector<16x16xbf16>, vector<16x16xbf16>, vector<16x16xf32> -> vector<16x16xf32>
      %323 = arith.addf %arg65, %322 : vector<16x16xf32>
      scf.yield %323 : vector<16x16xf32>
    }
    %c8_i32_138 = arith.constant 8 : i32
    %c0_139 = arith.constant 0 : index
    %c0_140 = arith.constant 0 : index
    %143 = vector.load %arg30[%c0_139, %c0_140] : memref<1x16xf32, #tpu.memory_space<vmem>>, vector<1x16xf32>
    %144 = vector.broadcast %143 : vector<1x16xf32> to vector<16x16xf32>
    %145 = arith.addf %142, %144 : vector<16x16xf32>
    %146 = arith.addf %145, %117 : vector<16x16xf32>
    %cst_141 = arith.constant 0.000000e+00 : f32
    %147 = vector.broadcast %cst_141 : f32 to vector<16x16xf32>
    %148 = arith.maximumf %146, %147 : vector<16x16xf32>
    %149 = arith.truncf %148 : vector<16x16xf32> to vector<16x16xbf16>
    %c0_142 = arith.constant 0 : index
    %c0_143 = arith.constant 0 : index
    %c0_144 = arith.constant 0 : index
    %150 = vector.load %arg37[%c0_142, %c0_143, %c0_144] : memref<1x4x16xbf16, #tpu.memory_space<vmem>>, vector<1x4x16xbf16>
    %151 = vector.shape_cast %150 : vector<1x4x16xbf16> to vector<4x16xbf16>
    %cst_145 = arith.constant dense<0.000000e+00> : vector<4x16xf32>
    %152 = tpu.matmul %151, %149, %cst_145 {dimension_numbers = #tpu.dot_dimension_numbers<[1], [0], [0], [1], [0, 0, 1, 1], [], []>} : vector<4x16xbf16>, vector<16x16xbf16>, vector<4x16xf32> -> vector<4x16xf32>
    %153 = arith.truncf %152 : vector<4x16xf32> to vector<4x16xbf16>
    %c0_146 = arith.constant 0 : index
    %c0_147 = arith.constant 0 : index
    %c0_148 = arith.constant 0 : index
    %154 = vector.load %arg38[%c0_146, %c0_147, %c0_148] : memref<1x16x32xbf16, #tpu.memory_space<vmem>>, vector<1x16x32xbf16>
    %155 = vector.shape_cast %154 : vector<1x16x32xbf16> to vector<16x32xbf16>
    %cst_149 = arith.constant dense<0.000000e+00> : vector<4x32xf32>
    %156 = tpu.matmul %153, %155, %cst_149 {dimension_numbers = #tpu.dot_dimension_numbers<[1], [0], [0], [1], [0, 0, 1, 1], [], []>} : vector<4x16xbf16>, vector<16x32xbf16>, vector<4x32xf32> -> vector<4x32xf32>
    %c0_150 = arith.constant 0 : index
    %c0_151 = arith.constant 0 : index
    %157 = vector.load %arg39[%c0_150, %c0_151] : memref<1x32xf32, #tpu.memory_space<vmem>>, vector<1x32xf32>
    %158 = vector.broadcast %157 : vector<1x32xf32> to vector<4x32xf32>
    %159 = arith.addf %156, %158 : vector<4x32xf32>
    %160 = arith.truncf %148 : vector<16x16xf32> to vector<16x16xbf16>
    %c0_152 = arith.constant 0 : index
    %c0_153 = arith.constant 0 : index
    %c0_154 = arith.constant 0 : index
    %161 = vector.load %arg31[%c0_152, %c0_153, %c0_154] : memref<9x4x16xbf16, #tpu.memory_space<vmem>>, vector<1x4x16xbf16>
    %162 = vector.shape_cast %161 : vector<1x4x16xbf16> to vector<4x16xbf16>
    %cst_155 = arith.constant dense<0.000000e+00> : vector<4x16xf32>
    %163 = tpu.matmul %162, %160, %cst_155 {dimension_numbers = #tpu.dot_dimension_numbers<[1], [0], [0], [1], [0, 0, 1, 1], [], []>} : vector<4x16xbf16>, vector<16x16xbf16>, vector<4x16xf32> -> vector<4x16xf32>
    %164 = arith.truncf %163 : vector<4x16xf32> to vector<4x16xbf16>
    %c0_156 = arith.constant 0 : index
    %c0_157 = arith.constant 0 : index
    %c0_158 = arith.constant 0 : index
    %165 = vector.load %arg32[%c0_156, %c0_157, %c0_158] : memref<9x16x32xbf16, #tpu.memory_space<vmem>>, vector<1x16x32xbf16>
    %166 = vector.shape_cast %165 : vector<1x16x32xbf16> to vector<16x32xbf16>
    %cst_159 = arith.constant dense<0.000000e+00> : vector<4x32xf32>
    %167 = tpu.matmul %164, %166, %cst_159 {dimension_numbers = #tpu.dot_dimension_numbers<[1], [0], [0], [1], [0, 0, 1, 1], [], []>} : vector<4x16xbf16>, vector<16x32xbf16>, vector<4x32xf32> -> vector<4x32xf32>
    %c1_i32_160 = arith.constant 1 : i32
    %c8_i32_161 = arith.constant 8 : i32
    %168 = arith.addi %c1_i32_160, %c8_i32_161 : i32
    %c1_i32_162 = arith.constant 1 : i32
    %169 = scf.for %arg64 = %c1_i32_160 to %168 step %c1_i32_162 iter_args(%arg65 = %167) -> (vector<4x32xf32>)  : i32 {
      %314 = arith.index_cast %arg64 : i32 to index
      %c0_291 = arith.constant 0 : index
      %c0_292 = arith.constant 0 : index
      %315 = vector.load %arg31[%314, %c0_291, %c0_292] : memref<9x4x16xbf16, #tpu.memory_space<vmem>>, vector<1x4x16xbf16>
      %316 = vector.shape_cast %315 : vector<1x4x16xbf16> to vector<4x16xbf16>
      %cst_293 = arith.constant dense<0.000000e+00> : vector<4x16xf32>
      %317 = tpu.matmul %316, %160, %cst_293 {dimension_numbers = #tpu.dot_dimension_numbers<[1], [0], [0], [1], [0, 0, 1, 1], [], []>} : vector<4x16xbf16>, vector<16x16xbf16>, vector<4x16xf32> -> vector<4x16xf32>
      %318 = arith.truncf %317 : vector<4x16xf32> to vector<4x16xbf16>
      %319 = arith.index_cast %arg64 : i32 to index
      %c0_294 = arith.constant 0 : index
      %c0_295 = arith.constant 0 : index
      %320 = vector.load %arg32[%319, %c0_294, %c0_295] : memref<9x16x32xbf16, #tpu.memory_space<vmem>>, vector<1x16x32xbf16>
      %321 = vector.shape_cast %320 : vector<1x16x32xbf16> to vector<16x32xbf16>
      %cst_296 = arith.constant dense<0.000000e+00> : vector<4x32xf32>
      %322 = tpu.matmul %318, %321, %cst_296 {dimension_numbers = #tpu.dot_dimension_numbers<[1], [0], [0], [1], [0, 0, 1, 1], [], []>} : vector<4x16xbf16>, vector<16x32xbf16>, vector<4x32xf32> -> vector<4x32xf32>
      %323 = arith.addf %arg65, %322 : vector<4x32xf32>
      scf.yield %323 : vector<4x32xf32>
    }
    %c8_i32_163 = arith.constant 8 : i32
    %c0_164 = arith.constant 0 : index
    %c0_165 = arith.constant 0 : index
    %170 = vector.load %arg33[%c0_164, %c0_165] : memref<1x32xf32, #tpu.memory_space<vmem>>, vector<1x32xf32>
    %171 = vector.broadcast %170 : vector<1x32xf32> to vector<4x32xf32>
    %172 = arith.addf %169, %171 : vector<4x32xf32>
    %cst_166 = arith.constant 0.000000e+00 : f32
    %173 = vector.broadcast %cst_166 : f32 to vector<4x32xf32>
    %174 = arith.maximumf %172, %173 : vector<4x32xf32>
    %175 = arith.truncf %174 : vector<4x32xf32> to vector<4x32xbf16>
    %c0_167 = arith.constant 0 : index
    %c0_168 = arith.constant 0 : index
    %c0_169 = arith.constant 0 : index
    %176 = vector.load %arg34[%c0_167, %c0_168, %c0_169] : memref<9x4x4xbf16, #tpu.memory_space<vmem>>, vector<1x4x4xbf16>
    %177 = vector.shape_cast %176 : vector<1x4x4xbf16> to vector<4x4xbf16>
    %cst_170 = arith.constant dense<0.000000e+00> : vector<4x32xf32>
    %178 = tpu.matmul %177, %175, %cst_170 {dimension_numbers = #tpu.dot_dimension_numbers<[1], [0], [0], [1], [0, 0, 1, 1], [], []>} : vector<4x4xbf16>, vector<4x32xbf16>, vector<4x32xf32> -> vector<4x32xf32>
    %179 = arith.truncf %178 : vector<4x32xf32> to vector<4x32xbf16>
    %c0_171 = arith.constant 0 : index
    %c0_172 = arith.constant 0 : index
    %c0_173 = arith.constant 0 : index
    %180 = vector.load %arg35[%c0_171, %c0_172, %c0_173] : memref<9x32x32xbf16, #tpu.memory_space<vmem>>, vector<1x32x32xbf16>
    %181 = vector.shape_cast %180 : vector<1x32x32xbf16> to vector<32x32xbf16>
    %cst_174 = arith.constant dense<0.000000e+00> : vector<4x32xf32>
    %182 = tpu.matmul %179, %181, %cst_174 {dimension_numbers = #tpu.dot_dimension_numbers<[1], [0], [0], [1], [0, 0, 1, 1], [], []>} : vector<4x32xbf16>, vector<32x32xbf16>, vector<4x32xf32> -> vector<4x32xf32>
    %c1_i32_175 = arith.constant 1 : i32
    %c8_i32_176 = arith.constant 8 : i32
    %183 = arith.addi %c1_i32_175, %c8_i32_176 : i32
    %c1_i32_177 = arith.constant 1 : i32
    %184 = scf.for %arg64 = %c1_i32_175 to %183 step %c1_i32_177 iter_args(%arg65 = %182) -> (vector<4x32xf32>)  : i32 {
      %314 = arith.index_cast %arg64 : i32 to index
      %c0_291 = arith.constant 0 : index
      %c0_292 = arith.constant 0 : index
      %315 = vector.load %arg34[%314, %c0_291, %c0_292] : memref<9x4x4xbf16, #tpu.memory_space<vmem>>, vector<1x4x4xbf16>
      %316 = vector.shape_cast %315 : vector<1x4x4xbf16> to vector<4x4xbf16>
      %cst_293 = arith.constant dense<0.000000e+00> : vector<4x32xf32>
      %317 = tpu.matmul %316, %175, %cst_293 {dimension_numbers = #tpu.dot_dimension_numbers<[1], [0], [0], [1], [0, 0, 1, 1], [], []>} : vector<4x4xbf16>, vector<4x32xbf16>, vector<4x32xf32> -> vector<4x32xf32>
      %318 = arith.truncf %317 : vector<4x32xf32> to vector<4x32xbf16>
      %319 = arith.index_cast %arg64 : i32 to index
      %c0_294 = arith.constant 0 : index
      %c0_295 = arith.constant 0 : index
      %320 = vector.load %arg35[%319, %c0_294, %c0_295] : memref<9x32x32xbf16, #tpu.memory_space<vmem>>, vector<1x32x32xbf16>
      %321 = vector.shape_cast %320 : vector<1x32x32xbf16> to vector<32x32xbf16>
      %cst_296 = arith.constant dense<0.000000e+00> : vector<4x32xf32>
      %322 = tpu.matmul %318, %321, %cst_296 {dimension_numbers = #tpu.dot_dimension_numbers<[1], [0], [0], [1], [0, 0, 1, 1], [], []>} : vector<4x32xbf16>, vector<32x32xbf16>, vector<4x32xf32> -> vector<4x32xf32>
      %323 = arith.addf %arg65, %322 : vector<4x32xf32>
      scf.yield %323 : vector<4x32xf32>
    }
    %c8_i32_178 = arith.constant 8 : i32
    %c0_179 = arith.constant 0 : index
    %c0_180 = arith.constant 0 : index
    %185 = vector.load %arg36[%c0_179, %c0_180] : memref<1x32xf32, #tpu.memory_space<vmem>>, vector<1x32xf32>
    %186 = vector.broadcast %185 : vector<1x32xf32> to vector<4x32xf32>
    %187 = arith.addf %184, %186 : vector<4x32xf32>
    %188 = arith.addf %187, %159 : vector<4x32xf32>
    %cst_181 = arith.constant 0.000000e+00 : f32
    %189 = vector.broadcast %cst_181 : f32 to vector<4x32xf32>
    %190 = arith.maximumf %188, %189 : vector<4x32xf32>
    %191 = arith.truncf %190 : vector<4x32xf32> to vector<4x32xbf16>
    %c0_182 = arith.constant 0 : index
    %c0_183 = arith.constant 0 : index
    %c0_184 = arith.constant 0 : index
    %192 = vector.load %arg40[%c0_182, %c0_183, %c0_184] : memref<9x4x4xbf16, #tpu.memory_space<vmem>>, vector<1x4x4xbf16>
    %193 = vector.shape_cast %192 : vector<1x4x4xbf16> to vector<4x4xbf16>
    %cst_185 = arith.constant dense<0.000000e+00> : vector<4x32xf32>
    %194 = tpu.matmul %193, %191, %cst_185 {dimension_numbers = #tpu.dot_dimension_numbers<[1], [0], [0], [1], [0, 0, 1, 1], [], []>} : vector<4x4xbf16>, vector<4x32xbf16>, vector<4x32xf32> -> vector<4x32xf32>
    %195 = arith.truncf %194 : vector<4x32xf32> to vector<4x32xbf16>
    %c0_186 = arith.constant 0 : index
    %c0_187 = arith.constant 0 : index
    %c0_188 = arith.constant 0 : index
    %196 = vector.load %arg41[%c0_186, %c0_187, %c0_188] : memref<9x32x32xbf16, #tpu.memory_space<vmem>>, vector<1x32x32xbf16>
    %197 = vector.shape_cast %196 : vector<1x32x32xbf16> to vector<32x32xbf16>
    %cst_189 = arith.constant dense<0.000000e+00> : vector<4x32xf32>
    %198 = tpu.matmul %195, %197, %cst_189 {dimension_numbers = #tpu.dot_dimension_numbers<[1], [0], [0], [1], [0, 0, 1, 1], [], []>} : vector<4x32xbf16>, vector<32x32xbf16>, vector<4x32xf32> -> vector<4x32xf32>
    %c1_i32_190 = arith.constant 1 : i32
    %c8_i32_191 = arith.constant 8 : i32
    %199 = arith.addi %c1_i32_190, %c8_i32_191 : i32
    %c1_i32_192 = arith.constant 1 : i32
    %200 = scf.for %arg64 = %c1_i32_190 to %199 step %c1_i32_192 iter_args(%arg65 = %198) -> (vector<4x32xf32>)  : i32 {
      %314 = arith.index_cast %arg64 : i32 to index
      %c0_291 = arith.constant 0 : index
      %c0_292 = arith.constant 0 : index
      %315 = vector.load %arg40[%314, %c0_291, %c0_292] : memref<9x4x4xbf16, #tpu.memory_space<vmem>>, vector<1x4x4xbf16>
      %316 = vector.shape_cast %315 : vector<1x4x4xbf16> to vector<4x4xbf16>
      %cst_293 = arith.constant dense<0.000000e+00> : vector<4x32xf32>
      %317 = tpu.matmul %316, %191, %cst_293 {dimension_numbers = #tpu.dot_dimension_numbers<[1], [0], [0], [1], [0, 0, 1, 1], [], []>} : vector<4x4xbf16>, vector<4x32xbf16>, vector<4x32xf32> -> vector<4x32xf32>
      %318 = arith.truncf %317 : vector<4x32xf32> to vector<4x32xbf16>
      %319 = arith.index_cast %arg64 : i32 to index
      %c0_294 = arith.constant 0 : index
      %c0_295 = arith.constant 0 : index
      %320 = vector.load %arg41[%319, %c0_294, %c0_295] : memref<9x32x32xbf16, #tpu.memory_space<vmem>>, vector<1x32x32xbf16>
      %321 = vector.shape_cast %320 : vector<1x32x32xbf16> to vector<32x32xbf16>
      %cst_296 = arith.constant dense<0.000000e+00> : vector<4x32xf32>
      %322 = tpu.matmul %318, %321, %cst_296 {dimension_numbers = #tpu.dot_dimension_numbers<[1], [0], [0], [1], [0, 0, 1, 1], [], []>} : vector<4x32xbf16>, vector<32x32xbf16>, vector<4x32xf32> -> vector<4x32xf32>
      %323 = arith.addf %arg65, %322 : vector<4x32xf32>
      scf.yield %323 : vector<4x32xf32>
    }
    %c8_i32_193 = arith.constant 8 : i32
    %c0_194 = arith.constant 0 : index
    %c0_195 = arith.constant 0 : index
    %201 = vector.load %arg42[%c0_194, %c0_195] : memref<1x32xf32, #tpu.memory_space<vmem>>, vector<1x32xf32>
    %202 = vector.broadcast %201 : vector<1x32xf32> to vector<4x32xf32>
    %203 = arith.addf %200, %202 : vector<4x32xf32>
    %cst_196 = arith.constant 0.000000e+00 : f32
    %204 = vector.broadcast %cst_196 : f32 to vector<4x32xf32>
    %205 = arith.maximumf %203, %204 : vector<4x32xf32>
    %206 = arith.truncf %205 : vector<4x32xf32> to vector<4x32xbf16>
    %c0_197 = arith.constant 0 : index
    %c0_198 = arith.constant 0 : index
    %c0_199 = arith.constant 0 : index
    %207 = vector.load %arg43[%c0_197, %c0_198, %c0_199] : memref<9x4x4xbf16, #tpu.memory_space<vmem>>, vector<1x4x4xbf16>
    %208 = vector.shape_cast %207 : vector<1x4x4xbf16> to vector<4x4xbf16>
    %cst_200 = arith.constant dense<0.000000e+00> : vector<4x32xf32>
    %209 = tpu.matmul %208, %206, %cst_200 {dimension_numbers = #tpu.dot_dimension_numbers<[1], [0], [0], [1], [0, 0, 1, 1], [], []>} : vector<4x4xbf16>, vector<4x32xbf16>, vector<4x32xf32> -> vector<4x32xf32>
    %210 = arith.truncf %209 : vector<4x32xf32> to vector<4x32xbf16>
    %c0_201 = arith.constant 0 : index
    %c0_202 = arith.constant 0 : index
    %c0_203 = arith.constant 0 : index
    %211 = vector.load %arg44[%c0_201, %c0_202, %c0_203] : memref<9x32x32xbf16, #tpu.memory_space<vmem>>, vector<1x32x32xbf16>
    %212 = vector.shape_cast %211 : vector<1x32x32xbf16> to vector<32x32xbf16>
    %cst_204 = arith.constant dense<0.000000e+00> : vector<4x32xf32>
    %213 = tpu.matmul %210, %212, %cst_204 {dimension_numbers = #tpu.dot_dimension_numbers<[1], [0], [0], [1], [0, 0, 1, 1], [], []>} : vector<4x32xbf16>, vector<32x32xbf16>, vector<4x32xf32> -> vector<4x32xf32>
    %c1_i32_205 = arith.constant 1 : i32
    %c8_i32_206 = arith.constant 8 : i32
    %214 = arith.addi %c1_i32_205, %c8_i32_206 : i32
    %c1_i32_207 = arith.constant 1 : i32
    %215 = scf.for %arg64 = %c1_i32_205 to %214 step %c1_i32_207 iter_args(%arg65 = %213) -> (vector<4x32xf32>)  : i32 {
      %314 = arith.index_cast %arg64 : i32 to index
      %c0_291 = arith.constant 0 : index
      %c0_292 = arith.constant 0 : index
      %315 = vector.load %arg43[%314, %c0_291, %c0_292] : memref<9x4x4xbf16, #tpu.memory_space<vmem>>, vector<1x4x4xbf16>
      %316 = vector.shape_cast %315 : vector<1x4x4xbf16> to vector<4x4xbf16>
      %cst_293 = arith.constant dense<0.000000e+00> : vector<4x32xf32>
      %317 = tpu.matmul %316, %206, %cst_293 {dimension_numbers = #tpu.dot_dimension_numbers<[1], [0], [0], [1], [0, 0, 1, 1], [], []>} : vector<4x4xbf16>, vector<4x32xbf16>, vector<4x32xf32> -> vector<4x32xf32>
      %318 = arith.truncf %317 : vector<4x32xf32> to vector<4x32xbf16>
      %319 = arith.index_cast %arg64 : i32 to index
      %c0_294 = arith.constant 0 : index
      %c0_295 = arith.constant 0 : index
      %320 = vector.load %arg44[%319, %c0_294, %c0_295] : memref<9x32x32xbf16, #tpu.memory_space<vmem>>, vector<1x32x32xbf16>
      %321 = vector.shape_cast %320 : vector<1x32x32xbf16> to vector<32x32xbf16>
      %cst_296 = arith.constant dense<0.000000e+00> : vector<4x32xf32>
      %322 = tpu.matmul %318, %321, %cst_296 {dimension_numbers = #tpu.dot_dimension_numbers<[1], [0], [0], [1], [0, 0, 1, 1], [], []>} : vector<4x32xbf16>, vector<32x32xbf16>, vector<4x32xf32> -> vector<4x32xf32>
      %323 = arith.addf %arg65, %322 : vector<4x32xf32>
      scf.yield %323 : vector<4x32xf32>
    }
    %c8_i32_208 = arith.constant 8 : i32
    %c0_209 = arith.constant 0 : index
    %c0_210 = arith.constant 0 : index
    %216 = vector.load %arg45[%c0_209, %c0_210] : memref<1x32xf32, #tpu.memory_space<vmem>>, vector<1x32xf32>
    %217 = vector.broadcast %216 : vector<1x32xf32> to vector<4x32xf32>
    %218 = arith.addf %215, %217 : vector<4x32xf32>
    %219 = arith.addf %218, %190 : vector<4x32xf32>
    %cst_211 = arith.constant 0.000000e+00 : f32
    %220 = vector.broadcast %cst_211 : f32 to vector<4x32xf32>
    %221 = arith.maximumf %219, %220 : vector<4x32xf32>
    %222 = arith.truncf %221 : vector<4x32xf32> to vector<4x32xbf16>
    %c0_212 = arith.constant 0 : index
    %c0_213 = arith.constant 0 : index
    %c0_214 = arith.constant 0 : index
    %223 = vector.load %arg52[%c0_212, %c0_213, %c0_214] : memref<1x1x4xbf16, #tpu.memory_space<vmem>>, vector<1x1x4xbf16>
    %224 = vector.shape_cast %223 : vector<1x1x4xbf16> to vector<1x4xbf16>
    %cst_215 = arith.constant dense<0.000000e+00> : vector<1x32xf32>
    %225 = tpu.matmul %224, %222, %cst_215 {dimension_numbers = #tpu.dot_dimension_numbers<[1], [0], [0], [1], [0, 0, 1, 1], [], []>} : vector<1x4xbf16>, vector<4x32xbf16>, vector<1x32xf32> -> vector<1x32xf32>
    %226 = arith.truncf %225 : vector<1x32xf32> to vector<1x32xbf16>
    %c0_216 = arith.constant 0 : index
    %c0_217 = arith.constant 0 : index
    %c0_218 = arith.constant 0 : index
    %227 = vector.load %arg53[%c0_216, %c0_217, %c0_218] : memref<1x32x64xbf16, #tpu.memory_space<vmem>>, vector<1x32x64xbf16>
    %228 = vector.shape_cast %227 : vector<1x32x64xbf16> to vector<32x64xbf16>
    %cst_219 = arith.constant dense<0.000000e+00> : vector<1x64xf32>
    %229 = tpu.matmul %226, %228, %cst_219 {dimension_numbers = #tpu.dot_dimension_numbers<[1], [0], [0], [1], [0, 0, 1, 1], [], []>} : vector<1x32xbf16>, vector<32x64xbf16>, vector<1x64xf32> -> vector<1x64xf32>
    %c0_220 = arith.constant 0 : index
    %c0_221 = arith.constant 0 : index
    %230 = vector.load %arg54[%c0_220, %c0_221] : memref<1x64xf32, #tpu.memory_space<vmem>>, vector<1x64xf32>
    %231 = arith.addf %229, %230 : vector<1x64xf32>
    %232 = arith.truncf %221 : vector<4x32xf32> to vector<4x32xbf16>
    %c0_222 = arith.constant 0 : index
    %c0_223 = arith.constant 0 : index
    %c0_224 = arith.constant 0 : index
    %233 = vector.load %arg46[%c0_222, %c0_223, %c0_224] : memref<9x1x4xbf16, #tpu.memory_space<vmem>>, vector<1x1x4xbf16>
    %234 = vector.shape_cast %233 : vector<1x1x4xbf16> to vector<1x4xbf16>
    %cst_225 = arith.constant dense<0.000000e+00> : vector<1x32xf32>
    %235 = tpu.matmul %234, %232, %cst_225 {dimension_numbers = #tpu.dot_dimension_numbers<[1], [0], [0], [1], [0, 0, 1, 1], [], []>} : vector<1x4xbf16>, vector<4x32xbf16>, vector<1x32xf32> -> vector<1x32xf32>
    %236 = arith.truncf %235 : vector<1x32xf32> to vector<1x32xbf16>
    %c0_226 = arith.constant 0 : index
    %c0_227 = arith.constant 0 : index
    %c0_228 = arith.constant 0 : index
    %237 = vector.load %arg47[%c0_226, %c0_227, %c0_228] : memref<9x32x64xbf16, #tpu.memory_space<vmem>>, vector<1x32x64xbf16>
    %238 = vector.shape_cast %237 : vector<1x32x64xbf16> to vector<32x64xbf16>
    %cst_229 = arith.constant dense<0.000000e+00> : vector<1x64xf32>
    %239 = tpu.matmul %236, %238, %cst_229 {dimension_numbers = #tpu.dot_dimension_numbers<[1], [0], [0], [1], [0, 0, 1, 1], [], []>} : vector<1x32xbf16>, vector<32x64xbf16>, vector<1x64xf32> -> vector<1x64xf32>
    %c1_i32_230 = arith.constant 1 : i32
    %c8_i32_231 = arith.constant 8 : i32
    %240 = arith.addi %c1_i32_230, %c8_i32_231 : i32
    %c1_i32_232 = arith.constant 1 : i32
    %241 = scf.for %arg64 = %c1_i32_230 to %240 step %c1_i32_232 iter_args(%arg65 = %239) -> (vector<1x64xf32>)  : i32 {
      %314 = arith.index_cast %arg64 : i32 to index
      %c0_291 = arith.constant 0 : index
      %c0_292 = arith.constant 0 : index
      %315 = vector.load %arg46[%314, %c0_291, %c0_292] : memref<9x1x4xbf16, #tpu.memory_space<vmem>>, vector<1x1x4xbf16>
      %316 = vector.shape_cast %315 : vector<1x1x4xbf16> to vector<1x4xbf16>
      %cst_293 = arith.constant dense<0.000000e+00> : vector<1x32xf32>
      %317 = tpu.matmul %316, %232, %cst_293 {dimension_numbers = #tpu.dot_dimension_numbers<[1], [0], [0], [1], [0, 0, 1, 1], [], []>} : vector<1x4xbf16>, vector<4x32xbf16>, vector<1x32xf32> -> vector<1x32xf32>
      %318 = arith.truncf %317 : vector<1x32xf32> to vector<1x32xbf16>
      %319 = arith.index_cast %arg64 : i32 to index
      %c0_294 = arith.constant 0 : index
      %c0_295 = arith.constant 0 : index
      %320 = vector.load %arg47[%319, %c0_294, %c0_295] : memref<9x32x64xbf16, #tpu.memory_space<vmem>>, vector<1x32x64xbf16>
      %321 = vector.shape_cast %320 : vector<1x32x64xbf16> to vector<32x64xbf16>
      %cst_296 = arith.constant dense<0.000000e+00> : vector<1x64xf32>
      %322 = tpu.matmul %318, %321, %cst_296 {dimension_numbers = #tpu.dot_dimension_numbers<[1], [0], [0], [1], [0, 0, 1, 1], [], []>} : vector<1x32xbf16>, vector<32x64xbf16>, vector<1x64xf32> -> vector<1x64xf32>
      %323 = arith.addf %arg65, %322 : vector<1x64xf32>
      scf.yield %323 : vector<1x64xf32>
    }
    %c8_i32_233 = arith.constant 8 : i32
    %c0_234 = arith.constant 0 : index
    %c0_235 = arith.constant 0 : index
    %242 = vector.load %arg48[%c0_234, %c0_235] : memref<1x64xf32, #tpu.memory_space<vmem>>, vector<1x64xf32>
    %243 = arith.addf %241, %242 : vector<1x64xf32>
    %cst_236 = arith.constant 0.000000e+00 : f32
    %244 = vector.broadcast %cst_236 : f32 to vector<1x64xf32>
    %245 = arith.maximumf %243, %244 : vector<1x64xf32>
    %c0_237 = arith.constant 0 : index
    %c0_238 = arith.constant 0 : index
    %c0_239 = arith.constant 0 : index
    %246 = vector.load %arg49[%c0_237, %c0_238, %c0_239] : memref<9x1x1xbf16, #tpu.memory_space<vmem>>, vector<1x1x1xbf16>
    %247 = vector.shape_cast %246 : vector<1x1x1xbf16> to vector<1x1xbf16>
    %248 = arith.extf %247 : vector<1x1xbf16> to vector<1x1xf32>
    %249 = vector.broadcast %248 : vector<1x1xf32> to vector<1x64xf32>
    %250 = arith.mulf %245, %249 : vector<1x64xf32>
    %251 = arith.truncf %250 : vector<1x64xf32> to vector<1x64xbf16>
    %c0_240 = arith.constant 0 : index
    %c0_241 = arith.constant 0 : index
    %c0_242 = arith.constant 0 : index
    %252 = vector.load %arg50[%c0_240, %c0_241, %c0_242] : memref<9x64x64xbf16, #tpu.memory_space<vmem>>, vector<1x64x64xbf16>
    %253 = vector.shape_cast %252 : vector<1x64x64xbf16> to vector<64x64xbf16>
    %cst_243 = arith.constant dense<0.000000e+00> : vector<1x64xf32>
    %254 = tpu.matmul %251, %253, %cst_243 {dimension_numbers = #tpu.dot_dimension_numbers<[1], [0], [0], [1], [0, 0, 1, 1], [], []>} : vector<1x64xbf16>, vector<64x64xbf16>, vector<1x64xf32> -> vector<1x64xf32>
    %c1_i32_244 = arith.constant 1 : i32
    %c8_i32_245 = arith.constant 8 : i32
    %255 = arith.addi %c1_i32_244, %c8_i32_245 : i32
    %c1_i32_246 = arith.constant 1 : i32
    %256 = scf.for %arg64 = %c1_i32_244 to %255 step %c1_i32_246 iter_args(%arg65 = %254) -> (vector<1x64xf32>)  : i32 {
      %314 = arith.index_cast %arg64 : i32 to index
      %c0_291 = arith.constant 0 : index
      %c0_292 = arith.constant 0 : index
      %315 = vector.load %arg49[%314, %c0_291, %c0_292] : memref<9x1x1xbf16, #tpu.memory_space<vmem>>, vector<1x1x1xbf16>
      %316 = vector.shape_cast %315 : vector<1x1x1xbf16> to vector<1x1xbf16>
      %317 = arith.extf %316 : vector<1x1xbf16> to vector<1x1xf32>
      %318 = vector.broadcast %317 : vector<1x1xf32> to vector<1x64xf32>
      %319 = arith.mulf %245, %318 : vector<1x64xf32>
      %320 = arith.truncf %319 : vector<1x64xf32> to vector<1x64xbf16>
      %321 = arith.index_cast %arg64 : i32 to index
      %c0_293 = arith.constant 0 : index
      %c0_294 = arith.constant 0 : index
      %322 = vector.load %arg50[%321, %c0_293, %c0_294] : memref<9x64x64xbf16, #tpu.memory_space<vmem>>, vector<1x64x64xbf16>
      %323 = vector.shape_cast %322 : vector<1x64x64xbf16> to vector<64x64xbf16>
      %cst_295 = arith.constant dense<0.000000e+00> : vector<1x64xf32>
      %324 = tpu.matmul %320, %323, %cst_295 {dimension_numbers = #tpu.dot_dimension_numbers<[1], [0], [0], [1], [0, 0, 1, 1], [], []>} : vector<1x64xbf16>, vector<64x64xbf16>, vector<1x64xf32> -> vector<1x64xf32>
      %325 = arith.addf %arg65, %324 : vector<1x64xf32>
      scf.yield %325 : vector<1x64xf32>
    }
    %c8_i32_247 = arith.constant 8 : i32
    %c0_248 = arith.constant 0 : index
    %c0_249 = arith.constant 0 : index
    %257 = vector.load %arg51[%c0_248, %c0_249] : memref<1x64xf32, #tpu.memory_space<vmem>>, vector<1x64xf32>
    %258 = arith.addf %256, %257 : vector<1x64xf32>
    %259 = arith.addf %258, %231 : vector<1x64xf32>
    %cst_250 = arith.constant 0.000000e+00 : f32
    %260 = vector.broadcast %cst_250 : f32 to vector<1x64xf32>
    %261 = arith.maximumf %259, %260 : vector<1x64xf32>
    %c0_251 = arith.constant 0 : index
    %c0_252 = arith.constant 0 : index
    %c0_253 = arith.constant 0 : index
    %262 = vector.load %arg55[%c0_251, %c0_252, %c0_253] : memref<9x1x1xbf16, #tpu.memory_space<vmem>>, vector<1x1x1xbf16>
    %263 = vector.shape_cast %262 : vector<1x1x1xbf16> to vector<1x1xbf16>
    %264 = arith.extf %263 : vector<1x1xbf16> to vector<1x1xf32>
    %265 = vector.broadcast %264 : vector<1x1xf32> to vector<1x64xf32>
    %266 = arith.mulf %261, %265 : vector<1x64xf32>
    %267 = arith.truncf %266 : vector<1x64xf32> to vector<1x64xbf16>
    %c0_254 = arith.constant 0 : index
    %c0_255 = arith.constant 0 : index
    %c0_256 = arith.constant 0 : index
    %268 = vector.load %arg56[%c0_254, %c0_255, %c0_256] : memref<9x64x64xbf16, #tpu.memory_space<vmem>>, vector<1x64x64xbf16>
    %269 = vector.shape_cast %268 : vector<1x64x64xbf16> to vector<64x64xbf16>
    %cst_257 = arith.constant dense<0.000000e+00> : vector<1x64xf32>
    %270 = tpu.matmul %267, %269, %cst_257 {dimension_numbers = #tpu.dot_dimension_numbers<[1], [0], [0], [1], [0, 0, 1, 1], [], []>} : vector<1x64xbf16>, vector<64x64xbf16>, vector<1x64xf32> -> vector<1x64xf32>
    %c1_i32_258 = arith.constant 1 : i32
    %c8_i32_259 = arith.constant 8 : i32
    %271 = arith.addi %c1_i32_258, %c8_i32_259 : i32
    %c1_i32_260 = arith.constant 1 : i32
    %272 = scf.for %arg64 = %c1_i32_258 to %271 step %c1_i32_260 iter_args(%arg65 = %270) -> (vector<1x64xf32>)  : i32 {
      %314 = arith.index_cast %arg64 : i32 to index
      %c0_291 = arith.constant 0 : index
      %c0_292 = arith.constant 0 : index
      %315 = vector.load %arg55[%314, %c0_291, %c0_292] : memref<9x1x1xbf16, #tpu.memory_space<vmem>>, vector<1x1x1xbf16>
      %316 = vector.shape_cast %315 : vector<1x1x1xbf16> to vector<1x1xbf16>
      %317 = arith.extf %316 : vector<1x1xbf16> to vector<1x1xf32>
      %318 = vector.broadcast %317 : vector<1x1xf32> to vector<1x64xf32>
      %319 = arith.mulf %261, %318 : vector<1x64xf32>
      %320 = arith.truncf %319 : vector<1x64xf32> to vector<1x64xbf16>
      %321 = arith.index_cast %arg64 : i32 to index
      %c0_293 = arith.constant 0 : index
      %c0_294 = arith.constant 0 : index
      %322 = vector.load %arg56[%321, %c0_293, %c0_294] : memref<9x64x64xbf16, #tpu.memory_space<vmem>>, vector<1x64x64xbf16>
      %323 = vector.shape_cast %322 : vector<1x64x64xbf16> to vector<64x64xbf16>
      %cst_295 = arith.constant dense<0.000000e+00> : vector<1x64xf32>
      %324 = tpu.matmul %320, %323, %cst_295 {dimension_numbers = #tpu.dot_dimension_numbers<[1], [0], [0], [1], [0, 0, 1, 1], [], []>} : vector<1x64xbf16>, vector<64x64xbf16>, vector<1x64xf32> -> vector<1x64xf32>
      %325 = arith.addf %arg65, %324 : vector<1x64xf32>
      scf.yield %325 : vector<1x64xf32>
    }
    %c8_i32_261 = arith.constant 8 : i32
    %c0_262 = arith.constant 0 : index
    %c0_263 = arith.constant 0 : index
    %273 = vector.load %arg57[%c0_262, %c0_263] : memref<1x64xf32, #tpu.memory_space<vmem>>, vector<1x64xf32>
    %274 = arith.addf %272, %273 : vector<1x64xf32>
    %cst_264 = arith.constant 0.000000e+00 : f32
    %275 = vector.broadcast %cst_264 : f32 to vector<1x64xf32>
    %276 = arith.maximumf %274, %275 : vector<1x64xf32>
    %c0_265 = arith.constant 0 : index
    %c0_266 = arith.constant 0 : index
    %c0_267 = arith.constant 0 : index
    %277 = vector.load %arg58[%c0_265, %c0_266, %c0_267] : memref<9x1x1xbf16, #tpu.memory_space<vmem>>, vector<1x1x1xbf16>
    %278 = vector.shape_cast %277 : vector<1x1x1xbf16> to vector<1x1xbf16>
    %279 = arith.extf %278 : vector<1x1xbf16> to vector<1x1xf32>
    %280 = vector.broadcast %279 : vector<1x1xf32> to vector<1x64xf32>
    %281 = arith.mulf %276, %280 : vector<1x64xf32>
    %282 = arith.truncf %281 : vector<1x64xf32> to vector<1x64xbf16>
    %c0_268 = arith.constant 0 : index
    %c0_269 = arith.constant 0 : index
    %c0_270 = arith.constant 0 : index
    %283 = vector.load %arg59[%c0_268, %c0_269, %c0_270] : memref<9x64x64xbf16, #tpu.memory_space<vmem>>, vector<1x64x64xbf16>
    %284 = vector.shape_cast %283 : vector<1x64x64xbf16> to vector<64x64xbf16>
    %cst_271 = arith.constant dense<0.000000e+00> : vector<1x64xf32>
    %285 = tpu.matmul %282, %284, %cst_271 {dimension_numbers = #tpu.dot_dimension_numbers<[1], [0], [0], [1], [0, 0, 1, 1], [], []>} : vector<1x64xbf16>, vector<64x64xbf16>, vector<1x64xf32> -> vector<1x64xf32>
    %c1_i32_272 = arith.constant 1 : i32
    %c8_i32_273 = arith.constant 8 : i32
    %286 = arith.addi %c1_i32_272, %c8_i32_273 : i32
    %c1_i32_274 = arith.constant 1 : i32
    %287 = scf.for %arg64 = %c1_i32_272 to %286 step %c1_i32_274 iter_args(%arg65 = %285) -> (vector<1x64xf32>)  : i32 {
      %314 = arith.index_cast %arg64 : i32 to index
      %c0_291 = arith.constant 0 : index
      %c0_292 = arith.constant 0 : index
      %315 = vector.load %arg58[%314, %c0_291, %c0_292] : memref<9x1x1xbf16, #tpu.memory_space<vmem>>, vector<1x1x1xbf16>
      %316 = vector.shape_cast %315 : vector<1x1x1xbf16> to vector<1x1xbf16>
      %317 = arith.extf %316 : vector<1x1xbf16> to vector<1x1xf32>
      %318 = vector.broadcast %317 : vector<1x1xf32> to vector<1x64xf32>
      %319 = arith.mulf %276, %318 : vector<1x64xf32>
      %320 = arith.truncf %319 : vector<1x64xf32> to vector<1x64xbf16>
      %321 = arith.index_cast %arg64 : i32 to index
      %c0_293 = arith.constant 0 : index
      %c0_294 = arith.constant 0 : index
      %322 = vector.load %arg59[%321, %c0_293, %c0_294] : memref<9x64x64xbf16, #tpu.memory_space<vmem>>, vector<1x64x64xbf16>
      %323 = vector.shape_cast %322 : vector<1x64x64xbf16> to vector<64x64xbf16>
      %cst_295 = arith.constant dense<0.000000e+00> : vector<1x64xf32>
      %324 = tpu.matmul %320, %323, %cst_295 {dimension_numbers = #tpu.dot_dimension_numbers<[1], [0], [0], [1], [0, 0, 1, 1], [], []>} : vector<1x64xbf16>, vector<64x64xbf16>, vector<1x64xf32> -> vector<1x64xf32>
      %325 = arith.addf %arg65, %324 : vector<1x64xf32>
      scf.yield %325 : vector<1x64xf32>
    }
    %c8_i32_275 = arith.constant 8 : i32
    %c0_276 = arith.constant 0 : index
    %c0_277 = arith.constant 0 : index
    %288 = vector.load %arg60[%c0_276, %c0_277] : memref<1x64xf32, #tpu.memory_space<vmem>>, vector<1x64xf32>
    %289 = arith.addf %287, %288 : vector<1x64xf32>
    %290 = arith.addf %289, %261 : vector<1x64xf32>
    %cst_278 = arith.constant 0.000000e+00 : f32
    %291 = vector.broadcast %cst_278 : f32 to vector<1x64xf32>
    %292 = arith.maximumf %290, %291 : vector<1x64xf32>
    %cst_279 = arith.constant dense<0.000000e+00> : vector<64xf32>
    %293 = vector.multi_reduction <add>, %292, %cst_279 [0] : vector<1x64xf32> to vector<64xf32>
    %294 = vector.shape_cast %293 : vector<64xf32> to vector<1x64xf32>
    %cst_280 = arith.constant 1.000000e+00 : f32
    %295 = vector.broadcast %cst_280 : f32 to vector<1x64xf32>
    %296 = arith.divf %294, %295 : vector<1x64xf32>
    %297 = arith.truncf %296 : vector<1x64xf32> to vector<1x64xbf16>
    %c0_281 = arith.constant 0 : index
    %c0_282 = arith.constant 0 : index
    %298 = vector.load %arg61[%c0_281, %c0_282] : memref<64x2xbf16, #tpu.memory_space<vmem>>, vector<64x2xbf16>
    %cst_283 = arith.constant dense<0.000000e+00> : vector<1x2xf32>
    %299 = tpu.matmul %297, %298, %cst_283 {dimension_numbers = #tpu.dot_dimension_numbers<[1], [0], [0], [1], [0, 0, 1, 1], [], []>} : vector<1x64xbf16>, vector<64x2xbf16>, vector<1x2xf32> -> vector<1x2xf32>
    %c0_284 = arith.constant 0 : index
    %c0_285 = arith.constant 0 : index
    %300 = vector.load %arg62[%c0_284, %c0_285] : memref<1x2xf32, #tpu.memory_space<vmem>>, vector<1x2xf32>
    %301 = arith.addf %299, %300 : vector<1x2xf32>
    %302 = tpu.iota {dimensions = array<i32: 1>} : vector<1x2xi32>
    %303 = arith.sitofp %302 : vector<1x2xi32> to vector<1x2xf32>
    %cst_286 = arith.constant dense<0xFF800000> : vector<1xf32>
    %304 = vector.multi_reduction <maximumf>, %301, %cst_286 [1] : vector<1x2xf32> to vector<1xf32>
    %305 = vector.shape_cast %304 : vector<1xf32> to vector<1x1xf32>
    %306 = vector.broadcast %305 : vector<1x1xf32> to vector<1x2xf32>
    %307 = arith.cmpf oge, %301, %306 : vector<1x2xf32>
    %cst_287 = arith.constant 2.000000e+00 : f32
    %308 = vector.broadcast %cst_287 : f32 to vector<1x2xf32>
    %309 = arith.select %307, %303, %308 : vector<1x2xi1>, vector<1x2xf32>
    %cst_288 = arith.constant dense<0x7F800000> : vector<1xf32>
    %310 = vector.multi_reduction <minimumf>, %309, %cst_288 [1] : vector<1x2xf32> to vector<1xf32>
    %311 = vector.shape_cast %310 : vector<1xf32> to vector<1x1xf32>
    %312 = arith.fptosi %311 : vector<1x1xf32> to vector<1x1xi32>
    %c0_289 = arith.constant 0 : index
    %c0_290 = arith.constant 0 : index
    %313 = vector.load %arg63[%c0_289, %c0_290] : memref<1x1xi32, #tpu.memory_space<vmem>>, vector<1x1xi32>
    tpu.vector_store %arg63[%c0_289, %c0_290], %312 {strides = array<i32>} : memref<1x1xi32, #tpu.memory_space<vmem>>, vector<1x1xi32>,
    return
  }
}

</mosaic_0001>

<llo_original>
// kernel: forward.1
$region0: #{forward.1}
  #allocation0 [shape = 'u32[]', space=smem, size = 0x4, offset = 0x4, fixed_abs, tag = 'smem constant byte address 0x4 - core index']
  #allocation1 [shape = 'u32[144,128]{1,0:T(1,128)}', space=vmem, size = 0x12000, scoped, tag = 'internal scratch']
  %s0 = inlined_call_operand.smem [shape: u32[64], index: -1, kind: input, shape index: {}]
  %s1 = sld [smem:[%s0]]
  %s2 = scalar_lea.smem %s0, 1
  %s3 = sld [smem:[%s2]]
  %s4 = scalar_lea.smem %s0, 2
  %s5 = sld [smem:[%s4]]
  %s6 = scalar_lea.smem %s0, 3
  %s7 = sld [smem:[%s6]]
  %s8 = scalar_lea.smem %s0, 4
  %s9 = sld [smem:[%s8]]
  %s10 = scalar_lea.smem %s0, 5
  %s11 = sld [smem:[%s10]]
  %s12 = scalar_lea.smem %s0, 6
  %s13 = sld [smem:[%s12]]
  %s14 = scalar_lea.smem %s0, 7
  %s15 = sld [smem:[%s14]]
  %s16 = scalar_lea.smem %s0, 8
  %s17 = sld [smem:[%s16]]
  %s18 = scalar_lea.smem %s0, 9
  %s19 = sld [smem:[%s18]]
  %s20 = scalar_lea.smem %s0, 10
  %s21 = sld [smem:[%s20]]
  %s22 = scalar_lea.smem %s0, 11
  %s23 = sld [smem:[%s22]]
  %s24 = scalar_lea.smem %s0, 12
  %s25 = sld [smem:[%s24]]
  %s26 = scalar_lea.smem %s0, 13
  %s27 = sld [smem:[%s26]]
  %s28 = scalar_lea.smem %s0, 14
  %s29 = sld [smem:[%s28]]
  %s30 = scalar_lea.smem %s0, 15
  %s31 = sld [smem:[%s30]]
  %s32 = scalar_lea.smem %s0, 16
  %s33 = sld [smem:[%s32]]
  %s34 = scalar_lea.smem %s0, 17
  %s35 = sld [smem:[%s34]]
  %s36 = scalar_lea.smem %s0, 18
  %s37 = sld [smem:[%s36]]
  %s38 = scalar_lea.smem %s0, 19
  %s39 = sld [smem:[%s38]]
  %s40 = scalar_lea.smem %s0, 20
  %s41 = sld [smem:[%s40]]
  %s42 = scalar_lea.smem %s0, 21
  %s43 = sld [smem:[%s42]]
  %s44 = scalar_lea.smem %s0, 22
  %s45 = sld [smem:[%s44]]
  %s46 = scalar_lea.smem %s0, 23
  %s47 = sld [smem:[%s46]]
  %s48 = scalar_lea.smem %s0, 24
  %s49 = sld [smem:[%s48]]
  %s50 = scalar_lea.smem %s0, 25
  %s51 = sld [smem:[%s50]]
  %s52 = scalar_lea.smem %s0, 26
  %s53 = sld [smem:[%s52]]
  %s54 = scalar_lea.smem %s0, 27
  %s55 = sld [smem:[%s54]]
  %s56 = scalar_lea.smem %s0, 28
  %s57 = sld [smem:[%s56]]
  %s58 = scalar_lea.smem %s0, 29
  %s59 = sld [smem:[%s58]]
  %s60 = scalar_lea.smem %s0, 30
  %s61 = sld [smem:[%s60]]
  %s62 = scalar_lea.smem %s0, 31
  %s63 = sld [smem:[%s62]]
  %s64 = scalar_lea.smem %s0, 32
  %s65 = sld [smem:[%s64]]
  %s66 = scalar_lea.smem %s0, 33
  %s67 = sld [smem:[%s66]]
  %s68 = scalar_lea.smem %s0, 34
  %s69 = sld [smem:[%s68]]
  %s70 = scalar_lea.smem %s0, 35
  %s71 = sld [smem:[%s70]]
  %s72 = scalar_lea.smem %s0, 36
  %s73 = sld [smem:[%s72]]
  %s74 = scalar_lea.smem %s0, 37
  %s75 = sld [smem:[%s74]]
  %s76 = scalar_lea.smem %s0, 38
  %s77 = sld [smem:[%s76]]
  %s78 = scalar_lea.smem %s0, 39
  %s79 = sld [smem:[%s78]]
  %s80 = scalar_lea.smem %s0, 40
  %s81 = sld [smem:[%s80]]
  %s82 = scalar_lea.smem %s0, 41
  %s83 = sld [smem:[%s82]]
  %s84 = scalar_lea.smem %s0, 42
  %s85 = sld [smem:[%s84]]
  %s86 = scalar_lea.smem %s0, 43
  %s87 = sld [smem:[%s86]]
  %s88 = scalar_lea.smem %s0, 44
  %s89 = sld [smem:[%s88]]
  %s90 = scalar_lea.smem %s0, 45
  %s91 = sld [smem:[%s90]]
  %s92 = scalar_lea.smem %s0, 46
  %s93 = sld [smem:[%s92]]
  %s94 = scalar_lea.smem %s0, 47
  %s95 = sld [smem:[%s94]]
  %s96 = scalar_lea.smem %s0, 48
  %s97 = sld [smem:[%s96]]
  %s98 = scalar_lea.smem %s0, 49
  %s99 = sld [smem:[%s98]]
  %s100 = scalar_lea.smem %s0, 50
  %s101 = sld [smem:[%s100]]
  %s102 = scalar_lea.smem %s0, 51
  %s103 = sld [smem:[%s102]]
  %s104 = scalar_lea.smem %s0, 52
  %s105 = sld [smem:[%s104]]
  %s106 = scalar_lea.smem %s0, 53
  %s107 = sld [smem:[%s106]]
  %s108 = scalar_lea.smem %s0, 54
  %s109 = sld [smem:[%s108]]
  %s110 = scalar_lea.smem %s0, 55
  %s111 = sld [smem:[%s110]]
  %s112 = scalar_lea.smem %s0, 56
  %s113 = sld [smem:[%s112]]
  %s114 = scalar_lea.smem %s0, 57
  %s115 = sld [smem:[%s114]]
  %s116 = scalar_lea.smem %s0, 58
  %s117 = sld [smem:[%s116]]
  %s118 = scalar_lea.smem %s0, 59
  %s119 = sld [smem:[%s118]]
  %s120 = scalar_lea.smem %s0, 60
  %s121 = sld [smem:[%s120]]
  %s122 = scalar_lea.smem %s0, 61
  %s123 = sld [smem:[%s122]]
  %s124 = scalar_lea.smem %s0, 62
  %s125 = sld [smem:[%s124]]
  %s126 = scalar_lea.smem %s0, 63
  %s127 = sld [smem:[%s126]]
  %s128 = sld [smem:[#allocation0]]
  $region433: #{forward.1} parent=0
    _
  %s130 = ssub.s32 1, %s128
  %s131 = scalar_select 0, %s130, %s128
  $region1: #{forward.1} parent=0
    #allocation2 [shape = 'u8[512]{0}', space=vmem, size = 0x400, scoped, tag = 'input window, operand 2, single buffered']
    #allocation3 [shape = 's32[1]{0}', space=sflag, size = 0x4, scoped, tag = 'scoped memory for forward.1']
    #allocation4 [shape = 's32[1]{0}', space=sflag, size = 0x4, scoped, tag = 'scoped memory for forward.1']
    #allocation5 [shape = 'u8[512]{0}', space=vmem, size = 0x400, scoped, tag = 'input window, operand 6, single buffered']
    #allocation6 [shape = 's32[1]{0}', space=sflag, size = 0x4, scoped, tag = 'scoped memory for forward.1']
    #allocation7 [shape = 'u8[512]{0}', space=vmem, size = 0x400, scoped, tag = 'input window, operand 9, single buffered']
    #allocation8 [shape = 'u8[512]{0}', space=vmem, size = 0x400, scoped, tag = 'input window, operand 12, single buffered']
    #allocation9 [shape = 's32[1]{0}', space=sflag, size = 0x4, scoped, tag = 'scoped memory for forward.1']
    #allocation10 [shape = 'u8[512]{0}', space=vmem, size = 0x400, scoped, tag = 'input window, operand 15, single buffered']
    #allocation11 [shape = 'u8[512]{0}', space=vmem, size = 0x400, scoped, tag = 'input window, operand 18, single buffered']
    #allocation12 [shape = 's32[1]{0}', space=sflag, size = 0x4, scoped, tag = 'scoped memory for forward.1']
    #allocation13 [shape = 'u8[512]{0}', space=vmem, size = 0x400, scoped, tag = 'input window, operand 21, single buffered']
    #allocation14 [shape = 'u8[512]{0}', space=vmem, size = 0x400, scoped, tag = 'input window, operand 24, single buffered']
    #allocation15 [shape = 's32[1]{0}', space=sflag, size = 0x4, scoped, tag = 'scoped memory for forward.1']
    #allocation16 [shape = 'u8[512]{0}', space=vmem, size = 0x400, scoped, tag = 'input window, operand 52, single buffered']
    #allocation17 [shape = 'u8[512]{0}', space=vmem, size = 0x400, scoped, tag = 'input window, operand 54, single buffered']
    #allocation18 [shape = 's32[1]{0}', space=sflag, size = 0x4, scoped, tag = 'scoped memory for forward.1']
    #allocation19 [shape = 'u8[512]{0}', space=vmem, size = 0x400, scoped, tag = 'input window, operand 57, single buffered']
    #allocation20 [shape = 'u8[512]{0}', space=vmem, size = 0x400, scoped, tag = 'input window, operand 60, single buffered']
    #allocation21 [shape = 's32[1]{0}', space=sflag, size = 0x4, scoped, tag = 'scoped memory for forward.1']
    #allocation22 [shape = 'u8[512]{0}', space=vmem, size = 0x400, scoped, tag = 'input window, operand 62, single buffered']
    #allocation23 [shape = 'u8[512]{0}', space=vmem, size = 0x400, scoped, tag = 'output window, operand 0, single buffered']
    %132 = vsyncpa [#allocation3], 0
    %133 = vsyncpa [#allocation6], 0
    %134 = vsyncpa [#allocation9], 0
    %135 = vsyncpa [#allocation12], 0
    %136 = vsyncpa [#allocation15], 0
    %137 = vsyncpa [#allocation18], 0
    %138 = vsyncpa [#allocation21], 0
    %139 = vsyncpa [#allocation4], 0
    // Predicated region
    $region2: #{forward.1} parent=1 // pred_check
      _
    $region3: #{forward.1} parent=1 // pred_check_branch
      %141 = sbr.rel (0) target = $region5
    $region4: #{forward.1} parent=1 // pred_region
      _
    $region5: #{forward.1} parent=1 // pred_fallthru
      _
    // Predicated region
    $region6: #{forward.1} parent=1 // pred_check
      _
    $region7: #{forward.1} parent=1 // pred_check_branch
      %143 = sbr.rel (0) target = $region9
    $region8: #{forward.1} parent=1 // pred_region
      _
    $region9: #{forward.1} parent=1 // pred_fallthru
      _
    // Predicated region
    $region10: #{forward.1} parent=1 // pred_check
      _
    $region11: #{forward.1} parent=1 // pred_check_branch
      %145 = sbr.rel (0) target = $region13
    $region12: #{forward.1} parent=1 // pred_region
      %s147 = ssub.s32 16, 16
      %148 = vsyncadd [#allocation3], %s147
      %s150 = sshll.u32 [#allocation2], 4
      %s151 = int_to_ptr.vmem [resolvable:$true] %s150
      %153 = dma.hbm_to_vmem [thread:$0]  %s5, 16, %s151, [#allocation3]
    $region13: #{forward.1} parent=1 // pred_fallthru
      _
    // Predicated region
    $region14: #{forward.1} parent=1 // pred_check
      _
    $region15: #{forward.1} parent=1 // pred_check_branch
      %155 = sbr.rel (0) target = $region17
    $region16: #{forward.1} parent=1 // pred_region
      _
    $region17: #{forward.1} parent=1 // pred_fallthru
      _
    // Predicated region
    $region18: #{forward.1} parent=1 // pred_check
      _
    $region19: #{forward.1} parent=1 // pred_check_branch
      %157 = sbr.rel (0) target = $region21
    $region20: #{forward.1} parent=1 // pred_region
      _
    $region21: #{forward.1} parent=1 // pred_fallthru
      _
    // Predicated region
    $region22: #{forward.1} parent=1 // pred_check
      _
    $region23: #{forward.1} parent=1 // pred_check_branch
      %159 = sbr.rel (0) target = $region25
    $region24: #{forward.1} parent=1 // pred_region
      _
    $region25: #{forward.1} parent=1 // pred_fallthru
      _
    // Predicated region
    $region26: #{forward.1} parent=1 // pred_check
      _
    $region27: #{forward.1} parent=1 // pred_check_branch
      %161 = sbr.rel (0) target = $region29
    $region28: #{forward.1} parent=1 // pred_region
      %s163 = ssub.s32 16, 16
      %164 = vsyncadd [#allocation6], %s163
      %s166 = sshll.u32 [#allocation5], 4
      %s167 = int_to_ptr.vmem [resolvable:$true] %s166
      %169 = dma.hbm_to_vmem [thread:$0]  %s13, 16, %s167, [#allocation6]
    $region29: #{forward.1} parent=1 // pred_fallthru
      _
    // Predicated region
    $region30: #{forward.1} parent=1 // pred_check
      _
    $region31: #{forward.1} parent=1 // pred_check_branch
      %171 = sbr.rel (0) target = $region33
    $region32: #{forward.1} parent=1 // pred_region
      _
    $region33: #{forward.1} parent=1 // pred_fallthru
      _
    // Predicated region
    $region34: #{forward.1} parent=1 // pred_check
      _
    $region35: #{forward.1} parent=1 // pred_check_branch
      %173 = sbr.rel (0) target = $region37
    $region36: #{forward.1} parent=1 // pred_region
      _
    $region37: #{forward.1} parent=1 // pred_fallthru
      _
    // Predicated region
    $region38: #{forward.1} parent=1 // pred_check
      _
    $region39: #{forward.1} parent=1 // pred_check_branch
      %175 = sbr.rel (0) target = $region41
    $region40: #{forward.1} parent=1 // pred_region
      %s177 = ssub.s32 16, 16
      %178 = vsyncadd [#allocation6], %s177
      %s180 = sshll.u32 [#allocation7], 4
      %s181 = int_to_ptr.vmem [resolvable:$true] %s180
      %183 = dma.hbm_to_vmem [thread:$0]  %s19, 16, %s181, [#allocation6]
    $region41: #{forward.1} parent=1 // pred_fallthru
      _
    // Predicated region
    $region42: #{forward.1} parent=1 // pred_check
      _
    $region43: #{forward.1} parent=1 // pred_check_branch
      %185 = sbr.rel (0) target = $region45
    $region44: #{forward.1} parent=1 // pred_region
      _
    $region45: #{forward.1} parent=1 // pred_fallthru
      _
    // Predicated region
    $region46: #{forward.1} parent=1 // pred_check
      _
    $region47: #{forward.1} parent=1 // pred_check_branch
      %187 = sbr.rel (0) target = $region49
    $region48: #{forward.1} parent=1 // pred_region
      _
    $region49: #{forward.1} parent=1 // pred_fallthru
      _
    // Predicated region
    $region50: #{forward.1} parent=1 // pred_check
      _
    $region51: #{forward.1} parent=1 // pred_check_branch
      %189 = sbr.rel (0) target = $region53
    $region52: #{forward.1} parent=1 // pred_region
      %s191 = ssub.s32 16, 16
      %192 = vsyncadd [#allocation9], %s191
      %s194 = sshll.u32 [#allocation8], 4
      %s195 = int_to_ptr.vmem [resolvable:$true] %s194
      %197 = dma.hbm_to_vmem [thread:$0]  %s25, 16, %s195, [#allocation9]
    $region53: #{forward.1} parent=1 // pred_fallthru
      _
    // Predicated region
    $region54: #{forward.1} parent=1 // pred_check
      _
    $region55: #{forward.1} parent=1 // pred_check_branch
      %199 = sbr.rel (0) target = $region57
    $region56: #{forward.1} parent=1 // pred_region
      _
    $region57: #{forward.1} parent=1 // pred_fallthru
      _
    // Predicated region
    $region58: #{forward.1} parent=1 // pred_check
      _
    $region59: #{forward.1} parent=1 // pred_check_branch
      %201 = sbr.rel (0) target = $region61
    $region60: #{forward.1} parent=1 // pred_region
      _
    $region61: #{forward.1} parent=1 // pred_fallthru
      _
    // Predicated region
    $region62: #{forward.1} parent=1 // pred_check
      _
    $region63: #{forward.1} parent=1 // pred_check_branch
      %203 = sbr.rel (0) target = $region65
    $region64: #{forward.1} parent=1 // pred_region
      %s205 = ssub.s32 16, 16
      %206 = vsyncadd [#allocation9], %s205
      %s208 = sshll.u32 [#allocation10], 4
      %s209 = int_to_ptr.vmem [resolvable:$true] %s208
      %211 = dma.hbm_to_vmem [thread:$0]  %s31, 16, %s209, [#allocation9]
    $region65: #{forward.1} parent=1 // pred_fallthru
      _
    // Predicated region
    $region66: #{forward.1} parent=1 // pred_check
      _
    $region67: #{forward.1} parent=1 // pred_check_branch
      %213 = sbr.rel (0) target = $region69
    $region68: #{forward.1} parent=1 // pred_region
      _
    $region69: #{forward.1} parent=1 // pred_fallthru
      _
    // Predicated region
    $region70: #{forward.1} parent=1 // pred_check
      _
    $region71: #{forward.1} parent=1 // pred_check_branch
      %215 = sbr.rel (0) target = $region73
    $region72: #{forward.1} parent=1 // pred_region
      _
    $region73: #{forward.1} parent=1 // pred_fallthru
      _
    // Predicated region
    $region74: #{forward.1} parent=1 // pred_check
      _
    $region75: #{forward.1} parent=1 // pred_check_branch
      %217 = sbr.rel (0) target = $region77
    $region76: #{forward.1} parent=1 // pred_region
      %s219 = ssub.s32 16, 16
      %220 = vsyncadd [#allocation12], %s219
      %s222 = sshll.u32 [#allocation11], 4
      %s223 = int_to_ptr.vmem [resolvable:$true] %s222
      %225 = dma.hbm_to_vmem [thread:$0]  %s37, 16, %s223, [#allocation12]
    $region77: #{forward.1} parent=1 // pred_fallthru
      _
    // Predicated region
    $region78: #{forward.1} parent=1 // pred_check
      _
    $region79: #{forward.1} parent=1 // pred_check_branch
      %227 = sbr.rel (0) target = $region81
    $region80: #{forward.1} parent=1 // pred_region
      _
    $region81: #{forward.1} parent=1 // pred_fallthru
      _
    // Predicated region
    $region82: #{forward.1} parent=1 // pred_check
      _
    $region83: #{forward.1} parent=1 // pred_check_branch
      %229 = sbr.rel (0) target = $region85
    $region84: #{forward.1} parent=1 // pred_region
      _
    $region85: #{forward.1} parent=1 // pred_fallthru
      _
    // Predicated region
    $region86: #{forward.1} parent=1 // pred_check
      _
    $region87: #{forward.1} parent=1 // pred_check_branch
      %231 = sbr.rel (0) target = $region89
    $region88: #{forward.1} parent=1 // pred_region
      %s233 = ssub.s32 16, 16
      %234 = vsyncadd [#allocation12], %s233
      %s236 = sshll.u32 [#allocation13], 4
      %s237 = int_to_ptr.vmem [resolvable:$true] %s236
      %239 = dma.hbm_to_vmem [thread:$0]  %s43, 16, %s237, [#allocation12]
    $region89: #{forward.1} parent=1 // pred_fallthru
      _
    // Predicated region
    $region90: #{forward.1} parent=1 // pred_check
      _
    $region91: #{forward.1} parent=1 // pred_check_branch
      %241 = sbr.rel (0) target = $region93
    $region92: #{forward.1} parent=1 // pred_region
      _
    $region93: #{forward.1} parent=1 // pred_fallthru
      _
    // Predicated region
    $region94: #{forward.1} parent=1 // pred_check
      _
    $region95: #{forward.1} parent=1 // pred_check_branch
      %243 = sbr.rel (0) target = $region97
    $region96: #{forward.1} parent=1 // pred_region
      _
    $region97: #{forward.1} parent=1 // pred_fallthru
      _
    // Predicated region
    $region98: #{forward.1} parent=1 // pred_check
      _
    $region99: #{forward.1} parent=1 // pred_check_branch
      %245 = sbr.rel (0) target = $region101
    $region100: #{forward.1} parent=1 // pred_region
      %s247 = ssub.s32 16, 16
      %248 = vsyncadd [#allocation15], %s247
      %s250 = sshll.u32 [#allocation14], 4
      %s251 = int_to_ptr.vmem [resolvable:$true] %s250
      %253 = dma.hbm_to_vmem [thread:$0]  %s49, 16, %s251, [#allocation15]
    $region101: #{forward.1} parent=1 // pred_fallthru
      _
    // Predicated region
    $region102: #{forward.1} parent=1 // pred_check
      _
    $region103: #{forward.1} parent=1 // pred_check_branch
      %255 = sbr.rel (0) target = $region105
    $region104: #{forward.1} parent=1 // pred_region
      _
    $region105: #{forward.1} parent=1 // pred_fallthru
      _
    // Predicated region
    $region106: #{forward.1} parent=1 // pred_check
      _
    $region107: #{forward.1} parent=1 // pred_check_branch
      %257 = sbr.rel (0) target = $region109
    $region108: #{forward.1} parent=1 // pred_region
      _
    $region109: #{forward.1} parent=1 // pred_fallthru
      _
    // Predicated region
    $region110: #{forward.1} parent=1 // pred_check
      _
    $region111: #{forward.1} parent=1 // pred_check_branch
      %259 = sbr.rel (0) target = $region113
    $region112: #{forward.1} parent=1 // pred_region
      _
    $region113: #{forward.1} parent=1 // pred_fallthru
      _
    // Predicated region
    $region114: #{forward.1} parent=1 // pred_check
      _
    $region115: #{forward.1} parent=1 // pred_check_branch
      %261 = sbr.rel (0) target = $region117
    $region116: #{forward.1} parent=1 // pred_region
      _
    $region117: #{forward.1} parent=1 // pred_fallthru
      _
    // Predicated region
    $region118: #{forward.1} parent=1 // pred_check
      _
    $region119: #{forward.1} parent=1 // pred_check_branch
      %263 = sbr.rel (0) target = $region121
    $region120: #{forward.1} parent=1 // pred_region
      _
    $region121: #{forward.1} parent=1 // pred_fallthru
      _
    // Predicated region
    $region122: #{forward.1} parent=1 // pred_check
      _
    $region123: #{forward.1} parent=1 // pred_check_branch
      %265 = sbr.rel (0) target = $region125
    $region124: #{forward.1} parent=1 // pred_region
      _
    $region125: #{forward.1} parent=1 // pred_fallthru
      _
    // Predicated region
    $region126: #{forward.1} parent=1 // pred_check
      _
    $region127: #{forward.1} parent=1 // pred_check_branch
      %267 = sbr.rel (0) target = $region129
    $region128: #{forward.1} parent=1 // pred_region
      _
    $region129: #{forward.1} parent=1 // pred_fallthru
      _
    // Predicated region
    $region130: #{forward.1} parent=1 // pred_check
      _
    $region131: #{forward.1} parent=1 // pred_check_branch
      %269 = sbr.rel (0) target = $region133
    $region132: #{forward.1} parent=1 // pred_region
      _
    $region133: #{forward.1} parent=1 // pred_fallthru
      _
    // Predicated region
    $region134: #{forward.1} parent=1 // pred_check
      _
    $region135: #{forward.1} parent=1 // pred_check_branch
      %271 = sbr.rel (0) target = $region137
    $region136: #{forward.1} parent=1 // pred_region
      _
    $region137: #{forward.1} parent=1 // pred_fallthru
      _
    // Predicated region
    $region138: #{forward.1} parent=1 // pred_check
      _
    $region139: #{forward.1} parent=1 // pred_check_branch
      %273 = sbr.rel (0) target = $region141
    $region140: #{forward.1} parent=1 // pred_region
      _
    $region141: #{forward.1} parent=1 // pred_fallthru
      _
    // Predicated region
    $region142: #{forward.1} parent=1 // pred_check
      _
    $region143: #{forward.1} parent=1 // pred_check_branch
      %275 = sbr.rel (0) target = $region145
    $region144: #{forward.1} parent=1 // pred_region
      _
    $region145: #{forward.1} parent=1 // pred_fallthru
      _
    // Predicated region
    $region146: #{forward.1} parent=1 // pred_check
      _
    $region147: #{forward.1} parent=1 // pred_check_branch
      %277 = sbr.rel (0) target = $region149
    $region148: #{forward.1} parent=1 // pred_region
      _
    $region149: #{forward.1} parent=1 // pred_fallthru
      _
    // Predicated region
    $region150: #{forward.1} parent=1 // pred_check
      _
    $region151: #{forward.1} parent=1 // pred_check_branch
      %279 = sbr.rel (0) target = $region153
    $region152: #{forward.1} parent=1 // pred_region
      _
    $region153: #{forward.1} parent=1 // pred_fallthru
      _
    // Predicated region
    $region154: #{forward.1} parent=1 // pred_check
      _
    $region155: #{forward.1} parent=1 // pred_check_branch
      %281 = sbr.rel (0) target = $region157
    $region156: #{forward.1} parent=1 // pred_region
      _
    $region157: #{forward.1} parent=1 // pred_fallthru
      _
    // Predicated region
    $region158: #{forward.1} parent=1 // pred_check
      _
    $region159: #{forward.1} parent=1 // pred_check_branch
      %283 = sbr.rel (0) target = $region161
    $region160: #{forward.1} parent=1 // pred_region
      _
    $region161: #{forward.1} parent=1 // pred_fallthru
      _
    // Predicated region
    $region162: #{forward.1} parent=1 // pred_check
      _
    $region163: #{forward.1} parent=1 // pred_check_branch
      %285 = sbr.rel (0) target = $region165
    $region164: #{forward.1} parent=1 // pred_region
      _
    $region165: #{forward.1} parent=1 // pred_fallthru
      _
    // Predicated region
    $region166: #{forward.1} parent=1 // pred_check
      _
    $region167: #{forward.1} parent=1 // pred_check_branch
      %287 = sbr.rel (0) target = $region169
    $region168: #{forward.1} parent=1 // pred_region
      _
    $region169: #{forward.1} parent=1 // pred_fallthru
      _
    // Predicated region
    $region170: #{forward.1} parent=1 // pred_check
      _
    $region171: #{forward.1} parent=1 // pred_check_branch
      %289 = sbr.rel (0) target = $region173
    $region172: #{forward.1} parent=1 // pred_region
      _
    $region173: #{forward.1} parent=1 // pred_fallthru
      _
    // Predicated region
    $region174: #{forward.1} parent=1 // pred_check
      _
    $region175: #{forward.1} parent=1 // pred_check_branch
      %291 = sbr.rel (0) target = $region177
    $region176: #{forward.1} parent=1 // pred_region
      _
    $region177: #{forward.1} parent=1 // pred_fallthru
      _
    // Predicated region
    $region178: #{forward.1} parent=1 // pred_check
      _
    $region179: #{forward.1} parent=1 // pred_check_branch
      %293 = sbr.rel (0) target = $region181
    $region180: #{forward.1} parent=1 // pred_region
      _
    $region181: #{forward.1} parent=1 // pred_fallthru
      _
    // Predicated region
    $region182: #{forward.1} parent=1 // pred_check
      _
    $region183: #{forward.1} parent=1 // pred_check_branch
      %295 = sbr.rel (0) target = $region185
    $region184: #{forward.1} parent=1 // pred_region
      _
    $region185: #{forward.1} parent=1 // pred_fallthru
      _
    // Predicated region
    $region186: #{forward.1} parent=1 // pred_check
      _
    $region187: #{forward.1} parent=1 // pred_check_branch
      %297 = sbr.rel (0) target = $region189
    $region188: #{forward.1} parent=1 // pred_region
      _
    $region189: #{forward.1} parent=1 // pred_fallthru
      _
    // Predicated region
    $region190: #{forward.1} parent=1 // pred_check
      _
    $region191: #{forward.1} parent=1 // pred_check_branch
      %299 = sbr.rel (0) target = $region193
    $region192: #{forward.1} parent=1 // pred_region
      _
    $region193: #{forward.1} parent=1 // pred_fallthru
      _
    // Predicated region
    $region194: #{forward.1} parent=1 // pred_check
      _
    $region195: #{forward.1} parent=1 // pred_check_branch
      %301 = sbr.rel (0) target = $region197
    $region196: #{forward.1} parent=1 // pred_region
      _
    $region197: #{forward.1} parent=1 // pred_fallthru
      _
    // Predicated region
    $region198: #{forward.1} parent=1 // pred_check
      _
    $region199: #{forward.1} parent=1 // pred_check_branch
      %303 = sbr.rel (0) target = $region201
    $region200: #{forward.1} parent=1 // pred_region
      _
    $region201: #{forward.1} parent=1 // pred_fallthru
      _
    // Predicated region
    $region202: #{forward.1} parent=1 // pred_check
      _
    $region203: #{forward.1} parent=1 // pred_check_branch
      %305 = sbr.rel (0) target = $region205
    $region204: #{forward.1} parent=1 // pred_region
      _
    $region205: #{forward.1} parent=1 // pred_fallthru
      _
    // Predicated region
    $region206: #{forward.1} parent=1 // pred_check
      _
    $region207: #{forward.1} parent=1 // pred_check_branch
      %307 = sbr.rel (0) target = $region209
    $region208: #{forward.1} parent=1 // pred_region
      _
    $region209: #{forward.1} parent=1 // pred_fallthru
      _
    // Predicated region
    $region210: #{forward.1} parent=1 // pred_check
      _
    $region211: #{forward.1} parent=1 // pred_check_branch
      %309 = sbr.rel (0) target = $region213
    $region212: #{forward.1} parent=1 // pred_region
      %s311 = ssub.s32 16, 16
      %312 = vsyncadd [#allocation15], %s311
      %s314 = sshll.u32 [#allocation16], 4
      %s315 = int_to_ptr.vmem [resolvable:$true] %s314
      %317 = dma.hbm_to_vmem [thread:$0]  %s105, 16, %s315, [#allocation15]
    $region213: #{forward.1} parent=1 // pred_fallthru
      _
    // Predicated region
    $region214: #{forward.1} parent=1 // pred_check
      _
    $region215: #{forward.1} parent=1 // pred_check_branch
      %319 = sbr.rel (0) target = $region217
    $region216: #{forward.1} parent=1 // pred_region
      _
    $region217: #{forward.1} parent=1 // pred_fallthru
      _
    // Predicated region
    $region218: #{forward.1} parent=1 // pred_check
      _
    $region219: #{forward.1} parent=1 // pred_check_branch
      %321 = sbr.rel (0) target = $region221
    $region220: #{forward.1} parent=1 // pred_region
      %s323 = ssub.s32 16, 16
      %324 = vsyncadd [#allocation18], %s323
      %s326 = sshll.u32 [#allocation17], 4
      %s327 = int_to_ptr.vmem [resolvable:$true] %s326
      %329 = dma.hbm_to_vmem [thread:$0]  %s109, 16, %s327, [#allocation18]
    $region221: #{forward.1} parent=1 // pred_fallthru
      _
    // Predicated region
    $region222: #{forward.1} parent=1 // pred_check
      _
    $region223: #{forward.1} parent=1 // pred_check_branch
      %331 = sbr.rel (0) target = $region225
    $region224: #{forward.1} parent=1 // pred_region
      _
    $region225: #{forward.1} parent=1 // pred_fallthru
      _
    // Predicated region
    $region226: #{forward.1} parent=1 // pred_check
      _
    $region227: #{forward.1} parent=1 // pred_check_branch
      %333 = sbr.rel (0) target = $region229
    $region228: #{forward.1} parent=1 // pred_region
      _
    $region229: #{forward.1} parent=1 // pred_fallthru
      _
    // Predicated region
    $region230: #{forward.1} parent=1 // pred_check
      _
    $region231: #{forward.1} parent=1 // pred_check_branch
      %335 = sbr.rel (0) target = $region233
    $region232: #{forward.1} parent=1 // pred_region
      %s337 = ssub.s32 16, 16
      %338 = vsyncadd [#allocation18], %s337
      %s340 = sshll.u32 [#allocation19], 4
      %s341 = int_to_ptr.vmem [resolvable:$true] %s340
      %343 = dma.hbm_to_vmem [thread:$0]  %s115, 16, %s341, [#allocation18]
    $region233: #{forward.1} parent=1 // pred_fallthru
      _
    // Predicated region
    $region234: #{forward.1} parent=1 // pred_check
      _
    $region235: #{forward.1} parent=1 // pred_check_branch
      %345 = sbr.rel (0) target = $region237
    $region236: #{forward.1} parent=1 // pred_region
      _
    $region237: #{forward.1} parent=1 // pred_fallthru
      _
    // Predicated region
    $region238: #{forward.1} parent=1 // pred_check
      _
    $region239: #{forward.1} parent=1 // pred_check_branch
      %347 = sbr.rel (0) target = $region241
    $region240: #{forward.1} parent=1 // pred_region
      _
    $region241: #{forward.1} parent=1 // pred_fallthru
      _
    // Predicated region
    $region242: #{forward.1} parent=1 // pred_check
      _
    $region243: #{forward.1} parent=1 // pred_check_branch
      %349 = sbr.rel (0) target = $region245
    $region244: #{forward.1} parent=1 // pred_region
      %s351 = ssub.s32 16, 16
      %352 = vsyncadd [#allocation21], %s351
      %s354 = sshll.u32 [#allocation20], 4
      %s355 = int_to_ptr.vmem [resolvable:$true] %s354
      %357 = dma.hbm_to_vmem [thread:$0]  %s121, 16, %s355, [#allocation21]
    $region245: #{forward.1} parent=1 // pred_fallthru
      _
    // Predicated region
    $region246: #{forward.1} parent=1 // pred_check
      _
    $region247: #{forward.1} parent=1 // pred_check_branch
      %359 = sbr.rel (0) target = $region249
    $region248: #{forward.1} parent=1 // pred_region
      _
    $region249: #{forward.1} parent=1 // pred_fallthru
      _
    // Predicated region
    $region250: #{forward.1} parent=1 // pred_check
      _
    $region251: #{forward.1} parent=1 // pred_check_branch
      %361 = sbr.rel (0) target = $region253
    $region252: #{forward.1} parent=1 // pred_region
      %s363 = ssub.s32 16, 16
      %364 = vsyncadd [#allocation21], %s363
      %s366 = sshll.u32 [#allocation22], 4
      %s367 = int_to_ptr.vmem [resolvable:$true] %s366
      %369 = dma.hbm_to_vmem [thread:$0]  %s125, 16, %s367, [#allocation21]
    $region253: #{forward.1} parent=1 // pred_fallthru
      _
    // Predicated region
    $region254: #{forward.1} parent=1 // pred_check
      _
    $region255: #{forward.1} parent=1 // pred_check_branch
      %371 = sbr.rel (0) target = $region257
    $region256: #{forward.1} parent=1 // pred_region
      %372 = dma.done [#allocation3], 16
    $region257: #{forward.1} parent=1 // pred_fallthru
      _
    // Predicated region
    $region258: #{forward.1} parent=1 // pred_check
      _
    $region259: #{forward.1} parent=1 // pred_check_branch
      %374 = sbr.rel (0) target = $region261
    $region260: #{forward.1} parent=1 // pred_region
      %375 = dma.done [#allocation6], 16
    $region261: #{forward.1} parent=1 // pred_fallthru
      _
    // Predicated region
    $region262: #{forward.1} parent=1 // pred_check
      _
    $region263: #{forward.1} parent=1 // pred_check_branch
      %377 = sbr.rel (0) target = $region265
    $region264: #{forward.1} parent=1 // pred_region
      %378 = dma.done [#allocation6], 16
    $region265: #{forward.1} parent=1 // pred_fallthru
      _
    // Predicated region
    $region266: #{forward.1} parent=1 // pred_check
      _
    $region267: #{forward.1} parent=1 // pred_check_branch
      %380 = sbr.rel (0) target = $region269
    $region268: #{forward.1} parent=1 // pred_region
      %381 = dma.done [#allocation9], 16
    $region269: #{forward.1} parent=1 // pred_fallthru
      _
    // Predicated region
    $region270: #{forward.1} parent=1 // pred_check
      _
    $region271: #{forward.1} parent=1 // pred_check_branch
      %383 = sbr.rel (0) target = $region273
    $region272: #{forward.1} parent=1 // pred_region
      %384 = dma.done [#allocation9], 16
    $region273: #{forward.1} parent=1 // pred_fallthru
      _
    // Predicated region
    $region274: #{forward.1} parent=1 // pred_check
      _
    $region275: #{forward.1} parent=1 // pred_check_branch
      %386 = sbr.rel (0) target = $region277
    $region276: #{forward.1} parent=1 // pred_region
      %387 = dma.done [#allocation12], 16
    $region277: #{forward.1} parent=1 // pred_fallthru
      _
    // Predicated region
    $region278: #{forward.1} parent=1 // pred_check
      _
    $region279: #{forward.1} parent=1 // pred_check_branch
      %389 = sbr.rel (0) target = $region281
    $region280: #{forward.1} parent=1 // pred_region
      %390 = dma.done [#allocation12], 16
    $region281: #{forward.1} parent=1 // pred_fallthru
      _
    // Predicated region
    $region282: #{forward.1} parent=1 // pred_check
      _
    $region283: #{forward.1} parent=1 // pred_check_branch
      %392 = sbr.rel (0) target = $region285
    $region284: #{forward.1} parent=1 // pred_region
      %393 = dma.done [#allocation15], 16
    $region285: #{forward.1} parent=1 // pred_fallthru
      _
    // Predicated region
    $region286: #{forward.1} parent=1 // pred_check
      _
    $region287: #{forward.1} parent=1 // pred_check_branch
      %395 = sbr.rel (0) target = $region289
    $region288: #{forward.1} parent=1 // pred_region
      %396 = dma.done [#allocation15], 16
    $region289: #{forward.1} parent=1 // pred_fallthru
      _
    // Predicated region
    $region290: #{forward.1} parent=1 // pred_check
      _
    $region291: #{forward.1} parent=1 // pred_check_branch
      %398 = sbr.rel (0) target = $region293
    $region292: #{forward.1} parent=1 // pred_region
      %399 = dma.done [#allocation18], 16
    $region293: #{forward.1} parent=1 // pred_fallthru
      _
    // Predicated region
    $region294: #{forward.1} parent=1 // pred_check
      _
    $region295: #{forward.1} parent=1 // pred_check_branch
      %401 = sbr.rel (0) target = $region297
    $region296: #{forward.1} parent=1 // pred_region
      %402 = dma.done [#allocation18], 16
    $region297: #{forward.1} parent=1 // pred_fallthru
      _
    // Predicated region
    $region298: #{forward.1} parent=1 // pred_check
      _
    $region299: #{forward.1} parent=1 // pred_check_branch
      %404 = sbr.rel (0) target = $region301
    $region300: #{forward.1} parent=1 // pred_region
      %405 = dma.done [#allocation21], 16
    $region301: #{forward.1} parent=1 // pred_fallthru
      _
    // Predicated region
    $region302: #{forward.1} parent=1 // pred_check
      _
    $region303: #{forward.1} parent=1 // pred_check_branch
      %407 = sbr.rel (0) target = $region305
    $region304: #{forward.1} parent=1 // pred_region
      %408 = dma.done [#allocation21], 16
    $region305: #{forward.1} parent=1 // pred_fallthru
      _
    %v410 = vld [vmem:[%s1] sm:$0xff]
    %v411 = vld [vmem:[%s1 + $0x8] sm:$0xff]
    %v412 = vld [vmem:[%s1 + $0x10] sm:$0xff]
    %v413 = vld [vmem:[%s1 + $0x18] sm:$0xff]
    %v414 = vld [vmem:[%s1 + $0x20] sm:$0xff]
    %v415 = vld [vmem:[%s1 + $0x28] sm:$0xff]
    %v416 = vld [vmem:[%s1 + $0x30] sm:$0xff]
    %v417 = vld [vmem:[%s1 + $0x38] sm:$0xff]
    %v418 = vld [vmem:[%s1 + $0x40] sm:$0xff]
    %v419 = vld [vmem:[%s1 + $0x48] sm:$0xff]
    %v420 = vld [vmem:[%s1 + $0x50] sm:$0xff]
    %v421 = vld [vmem:[%s1 + $0x58] sm:$0xff]
    %v422 = vld [vmem:[%s1 + $0x60] sm:$0xff]
    %v423 = vld [vmem:[%s1 + $0x68] sm:$0xff]
    %v424 = vld [vmem:[%s1 + $0x70] sm:$0xff]
    %v425 = vld [vmem:[%s1 + $0x78] sm:$0xff]
    %v426 = vld [vmem:[%s1 + $0x80] sm:$0xff]
    %v427 = vld [vmem:[%s1 + $0x88] sm:$0xff]
    %v428 = vld [vmem:[%s1 + $0x90] sm:$0xff]
    %v429 = vld [vmem:[%s1 + $0x98] sm:$0xff]
    %v430 = vld [vmem:[%s1 + $0xa0] sm:$0xff]
    %v431 = vld [vmem:[%s1 + $0xa8] sm:$0xff]
    %v432 = vld [vmem:[%s1 + $0xb0] sm:$0xff]
    %v433 = vld [vmem:[%s1 + $0xb8] sm:$0xff]
    %v434 = vld [vmem:[%s1 + $0xc0] sm:$0xff]
    %v435 = vld [vmem:[%s1 + $0xc8] sm:$0xff]
    %v436 = vld [vmem:[%s1 + $0xd0] sm:$0xff]
    %v437 = vld [vmem:[%s1 + $0xd8] sm:$0xff]
    %v438 = vld [vmem:[%s1 + $0xe0] sm:$0xff]
    %v439 = vld [vmem:[%s1 + $0xe8] sm:$0xff]
    %v440 = vld [vmem:[%s1 + $0xf0] sm:$0xff]
    %v441 = vld [vmem:[%s1 + $0xf8] sm:$0xff]
    %v442 = vld [vmem:[%s3] sm:$0xf]
    %v443 = vld [vmem:[%s3 + $0x4] sm:$0xf]
    %v444 = vld [vmem:[%s3 + $0x8] sm:$0xf]
    %v445 = vld [vmem:[%s3 + $0xc] sm:$0xf]
    %v446 = vld [vmem:[%s3 + $0x10] sm:$0xf]
    %v447 = vld [vmem:[%s3 + $0x14] sm:$0xf]
    %v448 = vld [vmem:[%s3 + $0x18] sm:$0xf]
    %v449 = vld [vmem:[%s3 + $0x1c] sm:$0xf]
    %v450 = vld [vmem:[%s3 + $0x20] sm:$0xf]
    %v451 = vld [vmem:[%s3 + $0x24] sm:$0xf]
    %v452 = vld [vmem:[%s3 + $0x28] sm:$0xf]
    %v453 = vld [vmem:[%s3 + $0x2c] sm:$0xf]
    %v454 = vld [vmem:[%s3 + $0x30] sm:$0xf]
    %v455 = vld [vmem:[%s3 + $0x34] sm:$0xf]
    %v456 = vld [vmem:[%s3 + $0x38] sm:$0xf]
    %v457 = vld [vmem:[%s3 + $0x3c] sm:$0xf]
    %v458 = vld [vmem:[%s3 + $0x40] sm:$0xf]
    %v459 = vld [vmem:[%s3 + $0x44] sm:$0xf]
    %v460 = vld [vmem:[%s3 + $0x48] sm:$0x3]
    %v461 = vld [vmem:[#allocation2] sm:$0x1]
    %v463 = vlaneseq
    %v464 = vshrl.u32 %v463, 7
    %v465 = vsub.s32 0, %v464
    %v466 = vrot.slane %v461, %v465
    %v500 = vunpack.c.l.b16 %v410
    %v501 = vunpack.c.h.b16 %v410
    %v502 = vunpack.c.l.b16 %v411
    %v503 = vunpack.c.h.b16 %v411
    %v504 = vunpack.c.l.b16 %v412
    %v505 = vunpack.c.h.b16 %v412
    %v506 = vunpack.c.l.b16 %v413
    %v507 = vunpack.c.h.b16 %v413
    %v508 = vunpack.c.l.b16 %v414
    %v509 = vunpack.c.h.b16 %v414
    %v510 = vunpack.c.l.b16 %v415
    %v511 = vunpack.c.h.b16 %v415
    %v512 = vunpack.c.l.b16 %v416
    %v513 = vunpack.c.h.b16 %v416
    %v514 = vunpack.c.l.b16 %v417
    %v515 = vunpack.c.h.b16 %v417
    %v516 = vunpack.c.l.b16 %v418
    %v517 = vunpack.c.h.b16 %v418
    %v518 = vunpack.c.l.b16 %v419
    %v519 = vunpack.c.h.b16 %v419
    %v520 = vunpack.c.l.b16 %v420
    %v521 = vunpack.c.h.b16 %v420
    %v522 = vunpack.c.l.b16 %v421
    %v523 = vunpack.c.h.b16 %v421
    %v524 = vunpack.c.l.b16 %v422
    %v525 = vunpack.c.h.b16 %v422
    %v526 = vunpack.c.l.b16 %v423
    %v527 = vunpack.c.h.b16 %v423
    %v528 = vunpack.c.l.b16 %v424
    %v529 = vunpack.c.h.b16 %v424
    %v530 = vunpack.c.l.b16 %v425
    %v531 = vunpack.c.h.b16 %v425
    %v532 = vunpack.c.l.b16 %v426
    %v533 = vunpack.c.h.b16 %v426
    %v534 = vunpack.c.l.b16 %v427
    %v535 = vunpack.c.h.b16 %v427
    %v536 = vunpack.c.l.b16 %v428
    %v537 = vunpack.c.h.b16 %v428
    %v538 = vunpack.c.l.b16 %v429
    %v539 = vunpack.c.h.b16 %v429
    %v540 = vunpack.c.l.b16 %v430
    %v541 = vunpack.c.h.b16 %v430
    %v542 = vunpack.c.l.b16 %v431
    %v543 = vunpack.c.h.b16 %v431
    %v544 = vunpack.c.l.b16 %v432
    %v545 = vunpack.c.h.b16 %v432
    %v546 = vunpack.c.l.b16 %v433
    %v547 = vunpack.c.h.b16 %v433
    %v548 = vunpack.c.l.b16 %v434
    %v549 = vunpack.c.h.b16 %v434
    %v550 = vunpack.c.l.b16 %v435
    %v551 = vunpack.c.h.b16 %v435
    %v552 = vunpack.c.l.b16 %v436
    %v553 = vunpack.c.h.b16 %v436
    %v554 = vunpack.c.l.b16 %v437
    %v555 = vunpack.c.h.b16 %v437
    %v556 = vunpack.c.l.b16 %v438
    %v557 = vunpack.c.h.b16 %v438
    %v558 = vunpack.c.l.b16 %v439
    %v559 = vunpack.c.h.b16 %v439
    %v560 = vunpack.c.l.b16 %v440
    %v561 = vunpack.c.h.b16 %v440
    %v562 = vunpack.c.l.b16 %v441
    %v563 = vunpack.c.h.b16 %v441
    %v564 = vpack.c.b16 %v502, %v500
    %v565 = vpack.c.b16 %v503, %v501
    %v566 = vpack.c.b16 %v506, %v504
    %v567 = vpack.c.b16 %v507, %v505
    %v568 = vpack.c.b16 %v510, %v508
    %v569 = vpack.c.b16 %v511, %v509
    %v570 = vpack.c.b16 %v514, %v512
    %v571 = vpack.c.b16 %v515, %v513
    %v572 = vpack.c.b16 %v518, %v516
    %v573 = vpack.c.b16 %v519, %v517
    %v574 = vpack.c.b16 %v522, %v520
    %v575 = vpack.c.b16 %v523, %v521
    %v576 = vpack.c.b16 %v526, %v524
    %v577 = vpack.c.b16 %v527, %v525
    %v578 = vpack.c.b16 %v530, %v528
    %v579 = vpack.c.b16 %v531, %v529
    %v580 = vpack.c.b16 %v534, %v532
    %v581 = vpack.c.b16 %v535, %v533
    %v582 = vpack.c.b16 %v538, %v536
    %v583 = vpack.c.b16 %v539, %v537
    %v584 = vpack.c.b16 %v542, %v540
    %v585 = vpack.c.b16 %v543, %v541
    %v586 = vpack.c.b16 %v546, %v544
    %v587 = vpack.c.b16 %v547, %v545
    %v588 = vpack.c.b16 %v550, %v548
    %v589 = vpack.c.b16 %v551, %v549
    %v590 = vpack.c.b16 %v554, %v552
    %v591 = vpack.c.b16 %v555, %v553
    %v592 = vpack.c.b16 %v558, %v556
    %v593 = vpack.c.b16 %v559, %v557
    %v594 = vpack.c.b16 %v562, %v560
    %v595 = vpack.c.b16 %v563, %v561
    %v631 = vunpack.c.l.b16 %v442
    %v632 = vunpack.c.l.b16 %v443
    %v633 = vunpack.c.l.b16 %v444
    %v634 = vunpack.c.l.b16 %v445
    %v635 = vunpack.c.l.b16 %v446
    %v636 = vunpack.c.l.b16 %v447
    %v637 = vunpack.c.l.b16 %v448
    %v638 = vunpack.c.l.b16 %v449
    %v639 = vunpack.c.l.b16 %v450
    %v640 = vunpack.c.l.b16 %v451
    %v641 = vunpack.c.l.b16 %v452
    %v642 = vunpack.c.l.b16 %v453
    %v643 = vunpack.c.l.b16 %v454
    %v644 = vunpack.c.l.b16 %v455
    %v645 = vunpack.c.l.b16 %v456
    %v646 = vunpack.c.l.b16 %v457
    %v647 = vunpack.c.l.b16 %v458
    %v648 = vunpack.c.l.b16 %v459
    %v649 = vunpack.c.l.b16 %v460
    %v650 = vpack.c.b16 %v632, %v631
    %v651 = vpack.c.b16 %v634, %v633
    %v652 = vpack.c.b16 %v636, %v635
    %v653 = vpack.c.b16 %v638, %v637
    %v654 = vpack.c.b16 %v640, %v639
    %v655 = vpack.c.b16 %v642, %v641
    %v656 = vpack.c.b16 %v644, %v643
    %v657 = vpack.c.b16 %v646, %v645
    %v658 = vpack.c.b16 %v648, %v647
    %v659 = vpack.c.b16 %v649, %v649
    %vm669 = vcmask 154624
    %v671 = vsel %vm669, %v565, 0
    %v674 = vsel %vm669, %v567, 0
    %v677 = vsel %vm669, %v569, 0
    %v680 = vsel %vm669, %v571, 0
    %v683 = vsel %vm669, %v573, 0
    %v686 = vsel %vm669, %v575, 0
    %v689 = vsel %vm669, %v577, 0
    %v692 = vsel %vm669, %v579, 0
    %v695 = vsel %vm669, %v581, 0
    %v698 = vsel %vm669, %v583, 0
    %v701 = vsel %vm669, %v585, 0
    %v704 = vsel %vm669, %v587, 0
    %v707 = vsel %vm669, %v589, 0
    %v710 = vsel %vm669, %v591, 0
    %v713 = vsel %vm669, %v593, 0
    %v716 = vsel %vm669, %v595, 0
    %vm718 = vcmask 1040384
    %vm719 = vcmask 1041408
    %v720 = vsel %vm718, 4294967295, 65535
    %v721 = vsel %vm719, %v720, 0
    %v723 = vand.u32 %v659, %v721
    %725 = vmatprep.subr.bf16.mxu0 0
    %726 = vmatpush1.bf16.msra.mxu0 %v650
    %727 = vmatprep.subr.bf16.mxu0 0
    %728 = vmatpush1.bf16.msra.mxu0 %v651
    %729 = vmatprep.subr.bf16.mxu0 0
    %730 = vmatpush1.bf16.msra.mxu0 %v652
    %731 = vmatprep.subr.bf16.mxu0 0
    %732 = vmatpush1.bf16.msra.mxu0 %v653
    %733 = vmatprep.subr.bf16.mxu0 0
    %734 = vmatpush1.bf16.msra.mxu0 %v654
    %735 = vmatprep.subr.bf16.mxu0 0
    %736 = vmatpush1.bf16.msra.mxu0 %v655
    %737 = vmatprep.subr.bf16.mxu0 0
    %738 = vmatpush1.bf16.msra.mxu0 %v656
    %739 = vmatprep.subr.bf16.mxu0 0
    %740 = vmatpush1.bf16.msra.mxu0 %v657
    %741 = vmatprep.subr.bf16.mxu0 0
    %742 = vmatpush1.bf16.msra.mxu0 %v658
    %743 = vmatprep.subr.bf16.mxu0 0
    %744 = vmatpush1.bf16.msra.mxu0 %v723
    %745 = vmatprep.subr.bf16.mxu0 0
    %746 = vmatpush1.bf16.msra.mxu0 0
    %747 = vmatprep.subr.bf16.mxu0 0
    %748 = vmatpush1.bf16.msra.mxu0 0
    %749 = vmatprep.subr.bf16.mxu0 0
    %750 = vmatpush1.bf16.msra.mxu0 0
    %751 = vmatprep.subr.bf16.mxu0 0
    %752 = vmatpush1.bf16.msra.mxu0 0
    %753 = vmatprep.subr.bf16.mxu0 0
    %754 = vmatpush1.bf16.msra.mxu0 0
    %755 = vmatprep.subr.bf16.mxu0 0
    %756 = vmatpush1.bf16.msra.mxu0 0
    %757 = vmatprep.mubr.bf16.mxu0 %v671
    %758 = vmatmul.mubr.bf16.gmra.mrb[0].mxu0 %v564
    %v759 = vpop.f32.mrb[0].mxu0
    %v760 = vadd.f32 %v466, %v759
    %v761 = vpop.f32.mrb[0].mxu0
    %v762 = vpop.f32.mrb[0].mxu0
    %v763 = vadd.f32 %v466, %v762
    %v764 = vpop.f32.mrb[0].mxu0
    %765 = vmatprep.mubr.bf16.mxu0 %v674
    %766 = vmatmul.mubr.bf16.gmra.mrb[0].mxu0 %v566
    %v767 = vpop.f32.mrb[0].mxu0
    %v768 = vadd.f32 %v466, %v767
    %v769 = vpop.f32.mrb[0].mxu0
    %v770 = vpop.f32.mrb[0].mxu0
    %v771 = vadd.f32 %v466, %v770
    %v772 = vpop.f32.mrb[0].mxu0
    %773 = vmatprep.mubr.bf16.mxu0 %v677
    %774 = vmatmul.mubr.bf16.gmra.mrb[0].mxu0 %v568
    %v775 = vpop.f32.mrb[0].mxu0
    %v776 = vadd.f32 %v466, %v775
    %v777 = vpop.f32.mrb[0].mxu0
    %v778 = vpop.f32.mrb[0].mxu0
    %v779 = vadd.f32 %v466, %v778
    %v780 = vpop.f32.mrb[0].mxu0
    %781 = vmatprep.mubr.bf16.mxu0 %v680
    %782 = vmatmul.mubr.bf16.gmra.mrb[0].mxu0 %v570
    %v783 = vpop.f32.mrb[0].mxu0
    %v784 = vadd.f32 %v466, %v783
    %v785 = vpop.f32.mrb[0].mxu0
    %v786 = vpop.f32.mrb[0].mxu0
    %v787 = vadd.f32 %v466, %v786
    %v788 = vpop.f32.mrb[0].mxu0
    %789 = vmatprep.mubr.bf16.mxu0 %v683
    %790 = vmatmul.mubr.bf16.gmra.mrb[0].mxu0 %v572
    %v791 = vpop.f32.mrb[0].mxu0
    %v792 = vadd.f32 %v466, %v791
    %v793 = vpop.f32.mrb[0].mxu0
    %v794 = vpop.f32.mrb[0].mxu0
    %v795 = vadd.f32 %v466, %v794
    %v796 = vpop.f32.mrb[0].mxu0
    %797 = vmatprep.mubr.bf16.mxu0 %v686
    %798 = vmatmul.mubr.bf16.gmra.mrb[0].mxu0 %v574
    %v799 = vpop.f32.mrb[0].mxu0
    %v800 = vadd.f32 %v466, %v799
    %v801 = vpop.f32.mrb[0].mxu0
    %v802 = vpop.f32.mrb[0].mxu0
    %v803 = vadd.f32 %v466, %v802
    %v804 = vpop.f32.mrb[0].mxu0
    %805 = vmatprep.mubr.bf16.mxu0 %v689
    %806 = vmatmul.mubr.bf16.gmra.mrb[0].mxu0 %v576
    %v807 = vpop.f32.mrb[0].mxu0
    %v808 = vadd.f32 %v466, %v807
    %v809 = vpop.f32.mrb[0].mxu0
    %v810 = vpop.f32.mrb[0].mxu0
    %v811 = vadd.f32 %v466, %v810
    %v812 = vpop.f32.mrb[0].mxu0
    %813 = vmatprep.mubr.bf16.mxu0 %v692
    %814 = vmatmul.mubr.bf16.gmra.mrb[0].mxu0 %v578
    %v815 = vpop.f32.mrb[0].mxu0
    %v816 = vadd.f32 %v466, %v815
    %v817 = vpop.f32.mrb[0].mxu0
    %v818 = vpop.f32.mrb[0].mxu0
    %v819 = vadd.f32 %v466, %v818
    %v820 = vpop.f32.mrb[0].mxu0
    %821 = vmatprep.mubr.bf16.mxu0 %v695
    %822 = vmatmul.mubr.bf16.gmra.mrb[0].mxu0 %v580
    %v823 = vpop.f32.mrb[0].mxu0
    %v824 = vadd.f32 %v466, %v823
    %v825 = vpop.f32.mrb[0].mxu0
    %v826 = vpop.f32.mrb[0].mxu0
    %v827 = vadd.f32 %v466, %v826
    %v828 = vpop.f32.mrb[0].mxu0
    %829 = vmatprep.mubr.bf16.mxu0 %v698
    %830 = vmatmul.mubr.bf16.gmra.mrb[0].mxu0 %v582
    %v831 = vpop.f32.mrb[0].mxu0
    %v832 = vadd.f32 %v466, %v831
    %v833 = vpop.f32.mrb[0].mxu0
    %v834 = vpop.f32.mrb[0].mxu0
    %v835 = vadd.f32 %v466, %v834
    %v836 = vpop.f32.mrb[0].mxu0
    %837 = vmatprep.mubr.bf16.mxu0 %v701
    %838 = vmatmul.mubr.bf16.gmra.mrb[0].mxu0 %v584
    %v839 = vpop.f32.mrb[0].mxu0
    %v840 = vadd.f32 %v466, %v839
    %v841 = vpop.f32.mrb[0].mxu0
    %v842 = vpop.f32.mrb[0].mxu0
    %v843 = vadd.f32 %v466, %v842
    %v844 = vpop.f32.mrb[0].mxu0
    %845 = vmatprep.mubr.bf16.mxu0 %v704
    %846 = vmatmul.mubr.bf16.gmra.mrb[0].mxu0 %v586
    %v847 = vpop.f32.mrb[0].mxu0
    %v848 = vadd.f32 %v466, %v847
    %v849 = vpop.f32.mrb[0].mxu0
    %v850 = vpop.f32.mrb[0].mxu0
    %v851 = vadd.f32 %v466, %v850
    %v852 = vpop.f32.mrb[0].mxu0
    %853 = vmatprep.mubr.bf16.mxu0 %v707
    %854 = vmatmul.mubr.bf16.gmra.mrb[0].mxu0 %v588
    %v855 = vpop.f32.mrb[0].mxu0
    %v856 = vadd.f32 %v466, %v855
    %v857 = vpop.f32.mrb[0].mxu0
    %v858 = vpop.f32.mrb[0].mxu0
    %v859 = vadd.f32 %v466, %v858
    %v860 = vpop.f32.mrb[0].mxu0
    %861 = vmatprep.mubr.bf16.mxu0 %v710
    %862 = vmatmul.mubr.bf16.gmra.mrb[0].mxu0 %v590
    %v863 = vpop.f32.mrb[0].mxu0
    %v864 = vadd.f32 %v466, %v863
    %v865 = vpop.f32.mrb[0].mxu0
    %v866 = vpop.f32.mrb[0].mxu0
    %v867 = vadd.f32 %v466, %v866
    %v868 = vpop.f32.mrb[0].mxu0
    %869 = vmatprep.mubr.bf16.mxu0 %v713
    %870 = vmatmul.mubr.bf16.gmra.mrb[0].mxu0 %v592
    %v871 = vpop.f32.mrb[0].mxu0
    %v872 = vadd.f32 %v466, %v871
    %v873 = vpop.f32.mrb[0].mxu0
    %v874 = vpop.f32.mrb[0].mxu0
    %v875 = vadd.f32 %v466, %v874
    %v876 = vpop.f32.mrb[0].mxu0
    %877 = vmatprep.mubr.bf16.mxu0 %v716
    %878 = vmatmul.mubr.bf16.gmra.mrb[0].mxu0 %v594
    %v879 = vpop.f32.mrb[0].mxu0
    %v880 = vadd.f32 %v466, %v879
    %v881 = vpop.f32.mrb[0].mxu0
    %v882 = vpop.f32.mrb[0].mxu0
    %v883 = vadd.f32 %v466, %v882
    %v884 = vpop.f32.mrb[0].mxu0
    %885 = vdwg.mxu0
    %v886 = vmax.f32 %v760, 0.0
    %v887 = vmax.f32 %v763, 0.0
    %v888 = vmax.f32 %v768, 0.0
    %v889 = vmax.f32 %v771, 0.0
    %v890 = vmax.f32 %v776, 0.0
    %v891 = vmax.f32 %v779, 0.0
    %v892 = vmax.f32 %v784, 0.0
    %v893 = vmax.f32 %v787, 0.0
    %v894 = vmax.f32 %v792, 0.0
    %v895 = vmax.f32 %v795, 0.0
    %v896 = vmax.f32 %v800, 0.0
    %v897 = vmax.f32 %v803, 0.0
    %v898 = vmax.f32 %v808, 0.0
    %v899 = vmax.f32 %v811, 0.0
    %v900 = vmax.f32 %v816, 0.0
    %v901 = vmax.f32 %v819, 0.0
    %v902 = vmax.f32 %v824, 0.0
    %v903 = vmax.f32 %v827, 0.0
    %v904 = vmax.f32 %v832, 0.0
    %v905 = vmax.f32 %v835, 0.0
    %v906 = vmax.f32 %v840, 0.0
    %v907 = vmax.f32 %v843, 0.0
    %v908 = vmax.f32 %v848, 0.0
    %v909 = vmax.f32 %v851, 0.0
    %v910 = vmax.f32 %v856, 0.0
    %v911 = vmax.f32 %v859, 0.0
    %v912 = vmax.f32 %v864, 0.0
    %v913 = vmax.f32 %v867, 0.0
    %v914 = vmax.f32 %v872, 0.0
    %v915 = vmax.f32 %v875, 0.0
    %v916 = vmax.f32 %v880, 0.0
    %v917 = vmax.f32 %v883, 0.0
    %v918 = vpack.c.bf16 %v887, %v886
    %v919 = vpack.c.bf16 %v889, %v888
    %v920 = vpack.c.bf16 %v891, %v890
    %v921 = vpack.c.bf16 %v893, %v892
    %v922 = vpack.c.bf16 %v895, %v894
    %v923 = vpack.c.bf16 %v897, %v896
    %v924 = vpack.c.bf16 %v899, %v898
    %v925 = vpack.c.bf16 %v901, %v900
    %v926 = vpack.c.bf16 %v903, %v902
    %v927 = vpack.c.bf16 %v905, %v904
    %v928 = vpack.c.bf16 %v907, %v906
    %v929 = vpack.c.bf16 %v909, %v908
    %v930 = vpack.c.bf16 %v911, %v910
    %v931 = vpack.c.bf16 %v913, %v912
    %v932 = vpack.c.bf16 %v915, %v914
    %v933 = vpack.c.bf16 %v917, %v916
    %v934 = vld [vmem:[%s7] sm:$0xff]
    %v935 = vld [vmem:[%s7 + $0x8] sm:$0xff]
    %v936 = vld [vmem:[%s7 + $0x10] sm:$0xff]
    %v937 = vld [vmem:[%s7 + $0x18] sm:$0xff]
    %v938 = vld [vmem:[%s7 + $0x20] sm:$0xff]
    %v939 = vld [vmem:[%s7 + $0x28] sm:$0xff]
    %v940 = vld [vmem:[%s7 + $0x30] sm:$0xff]
    %v941 = vld [vmem:[%s7 + $0x38] sm:$0xff]
    %v950 = vunpack.c.l.b16 %v934
    %v951 = vunpack.c.h.b16 %v934
    %v952 = vunpack.c.l.b16 %v935
    %v953 = vunpack.c.h.b16 %v935
    %v954 = vunpack.c.l.b16 %v936
    %v955 = vunpack.c.h.b16 %v936
    %v956 = vunpack.c.l.b16 %v937
    %v957 = vunpack.c.h.b16 %v937
    %v958 = vunpack.c.l.b16 %v938
    %v959 = vunpack.c.h.b16 %v938
    %v960 = vunpack.c.l.b16 %v939
    %v961 = vunpack.c.h.b16 %v939
    %v962 = vunpack.c.l.b16 %v940
    %v963 = vunpack.c.h.b16 %v940
    %v964 = vunpack.c.l.b16 %v941
    %v965 = vunpack.c.h.b16 %v941
    %v966 = vpack.c.b16 %v952, %v950
    %v967 = vpack.c.b16 %v953, %v951
    %v968 = vpack.c.b16 %v956, %v954
    %v969 = vpack.c.b16 %v957, %v955
    %v970 = vpack.c.b16 %v960, %v958
    %v971 = vpack.c.b16 %v961, %v959
    %v972 = vpack.c.b16 %v964, %v962
    %v973 = vpack.c.b16 %v965, %v963
    %982 = vmatprep.subr.bf16.mxu0 0
    %983 = vmatpush1.bf16.msra.mxu0 %v918
    %984 = vmatprep.subr.bf16.mxu0 0
    %985 = vmatpush1.bf16.msra.mxu0 %v919
    %986 = vmatprep.subr.bf16.mxu0 0
    %987 = vmatpush1.bf16.msra.mxu0 %v920
    %988 = vmatprep.subr.bf16.mxu0 0
    %989 = vmatpush1.bf16.msra.mxu0 %v921
    %990 = vmatprep.subr.bf16.mxu0 0
    %991 = vmatpush1.bf16.msra.mxu0 %v922
    %992 = vmatprep.subr.bf16.mxu0 0
    %993 = vmatpush1.bf16.msra.mxu0 %v923
    %994 = vmatprep.subr.bf16.mxu0 0
    %995 = vmatpush1.bf16.msra.mxu0 %v924
    %996 = vmatprep.subr.bf16.mxu0 0
    %997 = vmatpush1.bf16.msra.mxu0 %v925
    %998 = vmatprep.subr.bf16.mxu0 0
    %999 = vmatpush1.bf16.msra.mxu0 %v926
    %1000 = vmatprep.subr.bf16.mxu0 0
    %1001 = vmatpush1.bf16.msra.mxu0 %v927
    %1002 = vmatprep.subr.bf16.mxu0 0
    %1003 = vmatpush1.bf16.msra.mxu0 %v928
    %1004 = vmatprep.subr.bf16.mxu0 0
    %1005 = vmatpush1.bf16.msra.mxu0 %v929
    %1006 = vmatprep.subr.bf16.mxu0 0
    %1007 = vmatpush1.bf16.msra.mxu0 %v930
    %1008 = vmatprep.subr.bf16.mxu0 0
    %1009 = vmatpush1.bf16.msra.mxu0 %v931
    %1010 = vmatprep.subr.bf16.mxu0 0
    %1011 = vmatpush1.bf16.msra.mxu0 %v932
    %1012 = vmatprep.subr.bf16.mxu0 0
    %1013 = vmatpush1.bf16.msra.mxu0 %v933
    %1014 = vmatprep.mubr.bf16.mxu0 %v967
    %1015 = vmatmul.mubr.bf16.gmra.mrb[0].mxu0 %v966
    %v1016 = vpop.f32.mrb[0].mxu0
    %v1017 = vadd.f32 0.0, %v1016
    %v1018 = vpop.f32.mrb[0].mxu0
    %v1019 = vpop.f32.mrb[0].mxu0
    %v1020 = vadd.f32 0.0, %v1019
    %v1021 = vpop.f32.mrb[0].mxu0
    %1022 = vmatprep.mubr.bf16.mxu0 %v969
    %1023 = vmatmul.mubr.bf16.gmra.mrb[0].mxu0 %v968
    %v1024 = vpop.f32.mrb[0].mxu0
    %v1025 = vadd.f32 0.0, %v1024
    %v1026 = vpop.f32.mrb[0].mxu0
    %v1027 = vpop.f32.mrb[0].mxu0
    %v1028 = vadd.f32 0.0, %v1027
    %v1029 = vpop.f32.mrb[0].mxu0
    %1030 = vmatprep.mubr.bf16.mxu0 %v971
    %1031 = vmatmul.mubr.bf16.gmra.mrb[0].mxu0 %v970
    %v1032 = vpop.f32.mrb[0].mxu0
    %v1033 = vadd.f32 0.0, %v1032
    %v1034 = vpop.f32.mrb[0].mxu0
    %v1035 = vpop.f32.mrb[0].mxu0
    %v1036 = vadd.f32 0.0, %v1035
    %v1037 = vpop.f32.mrb[0].mxu0
    %1038 = vmatprep.mubr.bf16.mxu0 %v973
    %1039 = vmatmul.mubr.bf16.gmra.mrb[0].mxu0 %v972
    %v1040 = vpop.f32.mrb[0].mxu0
    %v1041 = vadd.f32 0.0, %v1040
    %v1042 = vpop.f32.mrb[0].mxu0
    %v1043 = vpop.f32.mrb[0].mxu0
    %v1044 = vadd.f32 0.0, %v1043
    %v1045 = vpop.f32.mrb[0].mxu0
    %1046 = vdwg.mxu0
    loop: start=1, step=1, limit=9
    $region306: #{forward.1} parent=1 // loop_pre_header
      _
    $region307: #{forward.1} parent=1 // loop_header
      %s1048 = sphi 1, %s1052
      %p1049 = scmp.ge.s32.totalorder %s1048, 9
      %v1053 = vphi %v1017, %v1177
      %v1054 = vphi %v1020, %v1178
      %v1055 = vphi %v1025, %v1179
      %v1056 = vphi %v1028, %v1180
      %v1057 = vphi %v1033, %v1181
      %v1058 = vphi %v1036, %v1182
      %v1059 = vphi %v1041, %v1183
      %v1060 = vphi %v1044, %v1184
    $region308: #{forward.1} parent=1 // loop_header_branch
      %1051 = sbr.rel (%p1049) target = $region312
    $region309: #{forward.1} parent=1 // loop_body
      %s1061 = smul.u32 %s1048, 16
      %s1062 = smul.addr %s1061, 4
      %s1063 = scalar_lea.vmem %s7, %s1062
      %v1064 = vld [vmem:[%s1063] sm:$0xff]
      %v1065 = vld [vmem:[%s1063 + $0x8] sm:$0xff]
      %v1066 = vld [vmem:[%s1063 + $0x10] sm:$0xff]
      %v1067 = vld [vmem:[%s1063 + $0x18] sm:$0xff]
      %v1068 = vld [vmem:[%s1063 + $0x20] sm:$0xff]
      %v1069 = vld [vmem:[%s1063 + $0x28] sm:$0xff]
      %v1070 = vld [vmem:[%s1063 + $0x30] sm:$0xff]
      %v1071 = vld [vmem:[%s1063 + $0x38] sm:$0xff]
      %v1080 = vunpack.c.l.b16 %v1064
      %v1081 = vunpack.c.h.b16 %v1064
      %v1082 = vunpack.c.l.b16 %v1065
      %v1083 = vunpack.c.h.b16 %v1065
      %v1084 = vunpack.c.l.b16 %v1066
      %v1085 = vunpack.c.h.b16 %v1066
      %v1086 = vunpack.c.l.b16 %v1067
      %v1087 = vunpack.c.h.b16 %v1067
      %v1088 = vunpack.c.l.b16 %v1068
      %v1089 = vunpack.c.h.b16 %v1068
      %v1090 = vunpack.c.l.b16 %v1069
      %v1091 = vunpack.c.h.b16 %v1069
      %v1092 = vunpack.c.l.b16 %v1070
      %v1093 = vunpack.c.h.b16 %v1070
      %v1094 = vunpack.c.l.b16 %v1071
      %v1095 = vunpack.c.h.b16 %v1071
      %v1096 = vpack.c.b16 %v1082, %v1080
      %v1097 = vpack.c.b16 %v1083, %v1081
      %v1098 = vpack.c.b16 %v1086, %v1084
      %v1099 = vpack.c.b16 %v1087, %v1085
      %v1100 = vpack.c.b16 %v1090, %v1088
      %v1101 = vpack.c.b16 %v1091, %v1089
      %v1102 = vpack.c.b16 %v1094, %v1092
      %v1103 = vpack.c.b16 %v1095, %v1093
      %1112 = vmatprep.subr.bf16.mxu0 0
      %1113 = vmatpush1.bf16.msra.mxu0 %v918
      %1114 = vmatprep.subr.bf16.mxu0 0
      %1115 = vmatpush1.bf16.msra.mxu0 %v919
      %1116 = vmatprep.subr.bf16.mxu0 0
      %1117 = vmatpush1.bf16.msra.mxu0 %v920
      %1118 = vmatprep.subr.bf16.mxu0 0
      %1119 = vmatpush1.bf16.msra.mxu0 %v921
      %1120 = vmatprep.subr.bf16.mxu0 0
      %1121 = vmatpush1.bf16.msra.mxu0 %v922
      %1122 = vmatprep.subr.bf16.mxu0 0
      %1123 = vmatpush1.bf16.msra.mxu0 %v923
      %1124 = vmatprep.subr.bf16.mxu0 0
      %1125 = vmatpush1.bf16.msra.mxu0 %v924
      %1126 = vmatprep.subr.bf16.mxu0 0
      %1127 = vmatpush1.bf16.msra.mxu0 %v925
      %1128 = vmatprep.subr.bf16.mxu0 0
      %1129 = vmatpush1.bf16.msra.mxu0 %v926
      %1130 = vmatprep.subr.bf16.mxu0 0
      %1131 = vmatpush1.bf16.msra.mxu0 %v927
      %1132 = vmatprep.subr.bf16.mxu0 0
      %1133 = vmatpush1.bf16.msra.mxu0 %v928
      %1134 = vmatprep.subr.bf16.mxu0 0
      %1135 = vmatpush1.bf16.msra.mxu0 %v929
      %1136 = vmatprep.subr.bf16.mxu0 0
      %1137 = vmatpush1.bf16.msra.mxu0 %v930
      %1138 = vmatprep.subr.bf16.mxu0 0
      %1139 = vmatpush1.bf16.msra.mxu0 %v931
      %1140 = vmatprep.subr.bf16.mxu0 0
      %1141 = vmatpush1.bf16.msra.mxu0 %v932
      %1142 = vmatprep.subr.bf16.mxu0 0
      %1143 = vmatpush1.bf16.msra.mxu0 %v933
      %1144 = vmatprep.mubr.bf16.mxu0 %v1097
      %1145 = vmatmul.mubr.bf16.gmra.mrb[0].mxu0 %v1096
      %v1146 = vpop.f32.mrb[0].mxu0
      %v1147 = vadd.f32 0.0, %v1146
      %v1148 = vpop.f32.mrb[0].mxu0
      %v1149 = vpop.f32.mrb[0].mxu0
      %v1150 = vadd.f32 0.0, %v1149
      %v1151 = vpop.f32.mrb[0].mxu0
      %1152 = vmatprep.mubr.bf16.mxu0 %v1099
      %1153 = vmatmul.mubr.bf16.gmra.mrb[0].mxu0 %v1098
      %v1154 = vpop.f32.mrb[0].mxu0
      %v1155 = vadd.f32 0.0, %v1154
      %v1156 = vpop.f32.mrb[0].mxu0
      %v1157 = vpop.f32.mrb[0].mxu0
      %v1158 = vadd.f32 0.0, %v1157
      %v1159 = vpop.f32.mrb[0].mxu0
      %1160 = vmatprep.mubr.bf16.mxu0 %v1101
      %1161 = vmatmul.mubr.bf16.gmra.mrb[0].mxu0 %v1100
      %v1162 = vpop.f32.mrb[0].mxu0
      %v1163 = vadd.f32 0.0, %v1162
      %v1164 = vpop.f32.mrb[0].mxu0
      %v1165 = vpop.f32.mrb[0].mxu0
      %v1166 = vadd.f32 0.0, %v1165
      %v1167 = vpop.f32.mrb[0].mxu0
      %1168 = vmatprep.mubr.bf16.mxu0 %v1103
      %1169 = vmatmul.mubr.bf16.gmra.mrb[0].mxu0 %v1102
      %v1170 = vpop.f32.mrb[0].mxu0
      %v1171 = vadd.f32 0.0, %v1170
      %v1172 = vpop.f32.mrb[0].mxu0
      %v1173 = vpop.f32.mrb[0].mxu0
      %v1174 = vadd.f32 0.0, %v1173
      %v1175 = vpop.f32.mrb[0].mxu0
      %1176 = vdwg.mxu0
      %v1177 = vmax.f32 %v1053, %v1147
      %v1178 = vmax.f32 %v1054, %v1150
      %v1179 = vmax.f32 %v1055, %v1155
      %v1180 = vmax.f32 %v1056, %v1158
      %v1181 = vmax.f32 %v1057, %v1163
      %v1182 = vmax.f32 %v1058, %v1166
      %v1183 = vmax.f32 %v1059, %v1171
      %v1184 = vmax.f32 %v1060, %v1174
    $region310: #{forward.1} parent=1 // loop_footer
      %s1052 = sadd.s32 1, %s1048
    $region311: #{forward.1} parent=1 // loop_footer_branch
      %1047 = sbr.rel target = $region307
    $region312: #{forward.1} parent=1 // loop_exit
      _
    %v1185 = vpack.c.bf16 %v1054, %v1053
    %v1186 = vpack.c.bf16 %v1056, %v1055
    %v1187 = vpack.c.bf16 %v1058, %v1057
    %v1188 = vpack.c.bf16 %v1060, %v1059
    %v1189 = vld [vmem:[%s9] sm:$0xf]
    %v1190 = vld [vmem:[%s9 + $0x4] sm:$0xf]
    %v1191 = vld [vmem:[%s9 + $0x8] sm:$0xf]
    %v1192 = vld [vmem:[%s9 + $0xc] sm:$0xf]
    %v1193 = vld [vmem:[%s9 + $0x10] sm:$0xf]
    %v1194 = vld [vmem:[%s9 + $0x14] sm:$0xf]
    %v1195 = vld [vmem:[%s9 + $0x18] sm:$0xf]
    %v1196 = vld [vmem:[%s9 + $0x1c] sm:$0xf]
    %v1205 = vunpack.c.l.b16 %v1189
    %v1206 = vunpack.c.l.b16 %v1190
    %v1207 = vunpack.c.l.b16 %v1191
    %v1208 = vunpack.c.l.b16 %v1192
    %v1209 = vunpack.c.l.b16 %v1193
    %v1210 = vunpack.c.l.b16 %v1194
    %v1211 = vunpack.c.l.b16 %v1195
    %v1212 = vunpack.c.l.b16 %v1196
    %v1213 = vpack.c.b16 %v1206, %v1205
    %v1214 = vpack.c.b16 %v1208, %v1207
    %v1215 = vpack.c.b16 %v1210, %v1209
    %v1216 = vpack.c.b16 %v1212, %v1211
    %vm1217 = vcmask 523264
    %v1219 = vsel %vm1217, %v1213, 0
    %v1222 = vsel %vm1217, %v1214, 0
    %v1225 = vsel %vm1217, %v1215, 0
    %v1228 = vsel %vm1217, %v1216, 0
    %1230 = vmatprep.subr.bf16.mxu0 0
    %1231 = vmatpush1.bf16.msra.mxu0 %v1185
    %1232 = vmatprep.subr.bf16.mxu0 0
    %1233 = vmatpush1.bf16.msra.mxu0 %v1186
    %1234 = vmatprep.subr.bf16.mxu0 0
    %1235 = vmatpush1.bf16.msra.mxu0 %v1187
    %1236 = vmatprep.subr.bf16.mxu0 0
    %1237 = vmatpush1.bf16.msra.mxu0 %v1188
    %1238 = vmatprep.subr.bf16.mxu0 0
    %1239 = vmatpush1.bf16.msra.mxu0 0
    %1240 = vmatprep.subr.bf16.mxu0 0
    %1241 = vmatpush1.bf16.msra.mxu0 0
    %1242 = vmatprep.subr.bf16.mxu0 0
    %1243 = vmatpush1.bf16.msra.mxu0 0
    %1244 = vmatprep.subr.bf16.mxu0 0
    %1245 = vmatpush1.bf16.msra.mxu0 0
    %1246 = vmatprep.subr.bf16.mxu0 0
    %1247 = vmatpush1.bf16.msra.mxu0 0
    %1248 = vmatprep.subr.bf16.mxu0 0
    %1249 = vmatpush1.bf16.msra.mxu0 0
    %1250 = vmatprep.subr.bf16.mxu0 0
    %1251 = vmatpush1.bf16.msra.mxu0 0
    %1252 = vmatprep.subr.bf16.mxu0 0
    %1253 = vmatpush1.bf16.msra.mxu0 0
    %1254 = vmatprep.subr.bf16.mxu0 0
    %1255 = vmatpush1.bf16.msra.mxu0 0
    %1256 = vmatprep.subr.bf16.mxu0 0
    %1257 = vmatpush1.bf16.msra.mxu0 0
    %1258 = vmatprep.subr.bf16.mxu0 0
    %1259 = vmatpush1.bf16.msra.mxu0 0
    %1260 = vmatprep.subr.bf16.mxu0 0
    %1261 = vmatpush1.bf16.msra.mxu0 0
    %1262 = vmatprep.mubr.bf16.mxu0 0
    %1263 = vmatmul.mubr.bf16.gmra.mrb[0].mxu0 %v1219
    %v1264 = vpop.f32.mrb[0].mxu0
    %v1265 = vadd.f32 0.0, %v1264
    %v1266 = vpop.f32.mrb[0].mxu0
    %v1267 = vpop.f32.mrb[0].mxu0
    %v1268 = vadd.f32 0.0, %v1267
    %v1269 = vpop.f32.mrb[0].mxu0
    %1270 = vmatprep.mubr.bf16.mxu0 0
    %1271 = vmatmul.mubr.bf16.gmra.mrb[0].mxu0 %v1222
    %v1272 = vpop.f32.mrb[0].mxu0
    %v1273 = vadd.f32 0.0, %v1272
    %v1274 = vpop.f32.mrb[0].mxu0
    %v1275 = vpop.f32.mrb[0].mxu0
    %v1276 = vadd.f32 0.0, %v1275
    %v1277 = vpop.f32.mrb[0].mxu0
    %1278 = vmatprep.mubr.bf16.mxu0 0
    %1279 = vmatmul.mubr.bf16.gmra.mrb[0].mxu0 %v1225
    %v1280 = vpop.f32.mrb[0].mxu0
    %v1281 = vadd.f32 0.0, %v1280
    %v1282 = vpop.f32.mrb[0].mxu0
    %v1283 = vpop.f32.mrb[0].mxu0
    %v1284 = vadd.f32 0.0, %v1283
    %v1285 = vpop.f32.mrb[0].mxu0
    %1286 = vmatprep.mubr.bf16.mxu0 0
    %1287 = vmatmul.mubr.bf16.gmra.mrb[0].mxu0 %v1228
    %v1288 = vpop.f32.mrb[0].mxu0
    %v1289 = vadd.f32 0.0, %v1288
    %v1290 = vpop.f32.mrb[0].mxu0
    %v1291 = vpop.f32.mrb[0].mxu0
    %v1292 = vadd.f32 0.0, %v1291
    %v1293 = vpop.f32.mrb[0].mxu0
    %1294 = vdwg.mxu0
    %v1295 = vpack.c.bf16 %v1268, %v1265
    %v1296 = vpack.c.bf16 %v1276, %v1273
    %v1297 = vpack.c.bf16 %v1284, %v1281
    %v1298 = vpack.c.bf16 %v1292, %v1289
    %v1299 = vld [vmem:[%s11] sm:$0xf]
    %vm1300 = vcmask 64512
    %v1302 = vsel %vm1300, %v1295, 0
    %v1305 = vsel %vm1300, %v1296, 0
    %v1308 = vsel %vm1300, %v1297, 0
    %v1311 = vsel %vm1300, %v1298, 0
    %vm1313 = vcmask 1043456
    %v1315 = vsel %vm1313, %v1299, 0
    %1317 = vmatprep.subr.bf16.mxu0 0
    %1318 = vmatpush1.bf16.msra.mxu0 %v1315
    %1319 = vmatprep.subr.bf16.mxu0 0
    %1320 = vmatpush1.bf16.msra.mxu0 0
    %1321 = vmatprep.subr.bf16.mxu0 0
    %1322 = vmatpush1.bf16.msra.mxu0 0
    %1323 = vmatprep.subr.bf16.mxu0 0
    %1324 = vmatpush1.bf16.msra.mxu0 0
    %1325 = vmatprep.subr.bf16.mxu0 0
    %1326 = vmatpush1.bf16.msra.mxu0 0
    %1327 = vmatprep.subr.bf16.mxu0 0
    %1328 = vmatpush1.bf16.msra.mxu0 0
    %1329 = vmatprep.subr.bf16.mxu0 0
    %1330 = vmatpush1.bf16.msra.mxu0 0
    %1331 = vmatprep.subr.bf16.mxu0 0
    %1332 = vmatpush1.bf16.msra.mxu0 0
    %1333 = vmatprep.subr.bf16.mxu0 0
    %1334 = vmatpush1.bf16.msra.mxu0 0
    %1335 = vmatprep.subr.bf16.mxu0 0
    %1336 = vmatpush1.bf16.msra.mxu0 0
    %1337 = vmatprep.subr.bf16.mxu0 0
    %1338 = vmatpush1.bf16.msra.mxu0 0
    %1339 = vmatprep.subr.bf16.mxu0 0
    %1340 = vmatpush1.bf16.msra.mxu0 0
    %1341 = vmatprep.subr.bf16.mxu0 0
    %1342 = vmatpush1.bf16.msra.mxu0 0
    %1343 = vmatprep.subr.bf16.mxu0 0
    %1344 = vmatpush1.bf16.msra.mxu0 0
    %1345 = vmatprep.subr.bf16.mxu0 0
    %1346 = vmatpush1.bf16.msra.mxu0 0
    %1347 = vmatprep.subr.bf16.mxu0 0
    %1348 = vmatpush1.bf16.msra.mxu0 0
    %1349 = vmatprep.mubr.bf16.mxu0 0
    %1350 = vmatmul.mubr.bf16.gmra.mrb[0].mxu0 %v1302
    %v1351 = vpop.f32.mrb[0].mxu0
    %v1352 = vadd.f32 0.0, %v1351
    %v1353 = vpop.f32.mrb[0].mxu0
    %v1354 = vpop.f32.mrb[0].mxu0
    %v1355 = vadd.f32 0.0, %v1354
    %v1356 = vpop.f32.mrb[0].mxu0
    %1357 = vmatprep.mubr.bf16.mxu0 0
    %1358 = vmatmul.mubr.bf16.gmra.mrb[0].mxu0 %v1305
    %v1359 = vpop.f32.mrb[0].mxu0
    %v1360 = vadd.f32 0.0, %v1359
    %v1361 = vpop.f32.mrb[0].mxu0
    %v1362 = vpop.f32.mrb[0].mxu0
    %v1363 = vadd.f32 0.0, %v1362
    %v1364 = vpop.f32.mrb[0].mxu0
    %1365 = vmatprep.mubr.bf16.mxu0 0
    %1366 = vmatmul.mubr.bf16.gmra.mrb[0].mxu0 %v1308
    %v1367 = vpop.f32.mrb[0].mxu0
    %v1368 = vadd.f32 0.0, %v1367
    %v1369 = vpop.f32.mrb[0].mxu0
    %v1370 = vpop.f32.mrb[0].mxu0
    %v1371 = vadd.f32 0.0, %v1370
    %v1372 = vpop.f32.mrb[0].mxu0
    %1373 = vmatprep.mubr.bf16.mxu0 0
    %1374 = vmatmul.mubr.bf16.gmra.mrb[0].mxu0 %v1311
    %v1375 = vpop.f32.mrb[0].mxu0
    %v1376 = vadd.f32 0.0, %v1375
    %v1377 = vpop.f32.mrb[0].mxu0
    %v1378 = vpop.f32.mrb[0].mxu0
    %v1379 = vadd.f32 0.0, %v1378
    %v1380 = vpop.f32.mrb[0].mxu0
    %1381 = vdwg.mxu0
    loop: start=1, step=1, limit=9
    $region313: #{forward.1} parent=1 // loop_pre_header
      _
    $region314: #{forward.1} parent=1 // loop_header
      %s1383 = sphi 1, %s1387
      %p1384 = scmp.ge.s32.totalorder %s1383, 9
      %v1388 = vphi %v1352, %v1591
      %v1389 = vphi %v1355, %v1592
      %v1390 = vphi %v1360, %v1593
      %v1391 = vphi %v1363, %v1594
      %v1392 = vphi %v1368, %v1595
      %v1393 = vphi %v1371, %v1596
      %v1394 = vphi %v1376, %v1597
      %v1395 = vphi %v1379, %v1598
    $region315: #{forward.1} parent=1 // loop_header_branch
      %1386 = sbr.rel (%p1384) target = $region319
    $region316: #{forward.1} parent=1 // loop_body
      %s1396 = smul.u32 %s1383, 8
      %s1397 = smul.addr %s1396, 4
      %s1398 = scalar_lea.vmem %s9, %s1397
      %v1399 = vld [vmem:[%s1398] sm:$0xf]
      %v1400 = vld [vmem:[%s1398 + $0x4] sm:$0xf]
      %v1401 = vld [vmem:[%s1398 + $0x8] sm:$0xf]
      %v1402 = vld [vmem:[%s1398 + $0xc] sm:$0xf]
      %v1403 = vld [vmem:[%s1398 + $0x10] sm:$0xf]
      %v1404 = vld [vmem:[%s1398 + $0x14] sm:$0xf]
      %v1405 = vld [vmem:[%s1398 + $0x18] sm:$0xf]
      %v1406 = vld [vmem:[%s1398 + $0x1c] sm:$0xf]
      %v1415 = vunpack.c.l.b16 %v1399
      %v1416 = vunpack.c.l.b16 %v1400
      %v1417 = vunpack.c.l.b16 %v1401
      %v1418 = vunpack.c.l.b16 %v1402
      %v1419 = vunpack.c.l.b16 %v1403
      %v1420 = vunpack.c.l.b16 %v1404
      %v1421 = vunpack.c.l.b16 %v1405
      %v1422 = vunpack.c.l.b16 %v1406
      %v1423 = vpack.c.b16 %v1416, %v1415
      %v1424 = vpack.c.b16 %v1418, %v1417
      %v1425 = vpack.c.b16 %v1420, %v1419
      %v1426 = vpack.c.b16 %v1422, %v1421
      %v1428 = vsel %vm1217, %v1423, 0
      %v1431 = vsel %vm1217, %v1424, 0
      %v1434 = vsel %vm1217, %v1425, 0
      %v1437 = vsel %vm1217, %v1426, 0
      %1439 = vmatprep.subr.bf16.mxu0 0
      %1440 = vmatpush1.bf16.msra.mxu0 %v1185
      %1441 = vmatprep.subr.bf16.mxu0 0
      %1442 = vmatpush1.bf16.msra.mxu0 %v1186
      %1443 = vmatprep.subr.bf16.mxu0 0
      %1444 = vmatpush1.bf16.msra.mxu0 %v1187
      %1445 = vmatprep.subr.bf16.mxu0 0
      %1446 = vmatpush1.bf16.msra.mxu0 %v1188
      %1447 = vmatprep.subr.bf16.mxu0 0
      %1448 = vmatpush1.bf16.msra.mxu0 0
      %1449 = vmatprep.subr.bf16.mxu0 0
      %1450 = vmatpush1.bf16.msra.mxu0 0
      %1451 = vmatprep.subr.bf16.mxu0 0
      %1452 = vmatpush1.bf16.msra.mxu0 0
      %1453 = vmatprep.subr.bf16.mxu0 0
      %1454 = vmatpush1.bf16.msra.mxu0 0
      %1455 = vmatprep.subr.bf16.mxu0 0
      %1456 = vmatpush1.bf16.msra.mxu0 0
      %1457 = vmatprep.subr.bf16.mxu0 0
      %1458 = vmatpush1.bf16.msra.mxu0 0
      %1459 = vmatprep.subr.bf16.mxu0 0
      %1460 = vmatpush1.bf16.msra.mxu0 0
      %1461 = vmatprep.subr.bf16.mxu0 0
      %1462 = vmatpush1.bf16.msra.mxu0 0
      %1463 = vmatprep.subr.bf16.mxu0 0
      %1464 = vmatpush1.bf16.msra.mxu0 0
      %1465 = vmatprep.subr.bf16.mxu0 0
      %1466 = vmatpush1.bf16.msra.mxu0 0
      %1467 = vmatprep.subr.bf16.mxu0 0
      %1468 = vmatpush1.bf16.msra.mxu0 0
      %1469 = vmatprep.subr.bf16.mxu0 0
      %1470 = vmatpush1.bf16.msra.mxu0 0
      %1471 = vmatprep.mubr.bf16.mxu0 0
      %1472 = vmatmul.mubr.bf16.gmra.mrb[0].mxu0 %v1428
      %v1473 = vpop.f32.mrb[0].mxu0
      %v1474 = vadd.f32 0.0, %v1473
      %v1475 = vpop.f32.mrb[0].mxu0
      %v1476 = vpop.f32.mrb[0].mxu0
      %v1477 = vadd.f32 0.0, %v1476
      %v1478 = vpop.f32.mrb[0].mxu0
      %1479 = vmatprep.mubr.bf16.mxu0 0
      %1480 = vmatmul.mubr.bf16.gmra.mrb[0].mxu0 %v1431
      %v1481 = vpop.f32.mrb[0].mxu0
      %v1482 = vadd.f32 0.0, %v1481
      %v1483 = vpop.f32.mrb[0].mxu0
      %v1484 = vpop.f32.mrb[0].mxu0
      %v1485 = vadd.f32 0.0, %v1484
      %v1486 = vpop.f32.mrb[0].mxu0
      %1487 = vmatprep.mubr.bf16.mxu0 0
      %1488 = vmatmul.mubr.bf16.gmra.mrb[0].mxu0 %v1434
      %v1489 = vpop.f32.mrb[0].mxu0
      %v1490 = vadd.f32 0.0, %v1489
      %v1491 = vpop.f32.mrb[0].mxu0
      %v1492 = vpop.f32.mrb[0].mxu0
      %v1493 = vadd.f32 0.0, %v1492
      %v1494 = vpop.f32.mrb[0].mxu0
      %1495 = vmatprep.mubr.bf16.mxu0 0
      %1496 = vmatmul.mubr.bf16.gmra.mrb[0].mxu0 %v1437
      %v1497 = vpop.f32.mrb[0].mxu0
      %v1498 = vadd.f32 0.0, %v1497
      %v1499 = vpop.f32.mrb[0].mxu0
      %v1500 = vpop.f32.mrb[0].mxu0
      %v1501 = vadd.f32 0.0, %v1500
      %v1502 = vpop.f32.mrb[0].mxu0
      %1503 = vdwg.mxu0
      %v1504 = vpack.c.bf16 %v1477, %v1474
      %v1505 = vpack.c.bf16 %v1485, %v1482
      %v1506 = vpack.c.bf16 %v1493, %v1490
      %v1507 = vpack.c.bf16 %v1501, %v1498
      %s1508 = smul.addr %s1383, 4
      %s1509 = scalar_lea.vmem %s11, %s1508
      %v1510 = vld [vmem:[%s1509] sm:$0xf]
      %v1512 = vsel %vm1300, %v1504, 0
      %v1515 = vsel %vm1300, %v1505, 0
      %v1518 = vsel %vm1300, %v1506, 0
      %v1521 = vsel %vm1300, %v1507, 0
      %v1524 = vsel %vm1313, %v1510, 0
      %1526 = vmatprep.subr.bf16.mxu0 0
      %1527 = vmatpush1.bf16.msra.mxu0 %v1524
      %1528 = vmatprep.subr.bf16.mxu0 0
      %1529 = vmatpush1.bf16.msra.mxu0 0
      %1530 = vmatprep.subr.bf16.mxu0 0
      %1531 = vmatpush1.bf16.msra.mxu0 0
      %1532 = vmatprep.subr.bf16.mxu0 0
      %1533 = vmatpush1.bf16.msra.mxu0 0
      %1534 = vmatprep.subr.bf16.mxu0 0
      %1535 = vmatpush1.bf16.msra.mxu0 0
      %1536 = vmatprep.subr.bf16.mxu0 0
      %1537 = vmatpush1.bf16.msra.mxu0 0
      %1538 = vmatprep.subr.bf16.mxu0 0
      %1539 = vmatpush1.bf16.msra.mxu0 0
      %1540 = vmatprep.subr.bf16.mxu0 0
      %1541 = vmatpush1.bf16.msra.mxu0 0
      %1542 = vmatprep.subr.bf16.mxu0 0
      %1543 = vmatpush1.bf16.msra.mxu0 0
      %1544 = vmatprep.subr.bf16.mxu0 0
      %1545 = vmatpush1.bf16.msra.mxu0 0
      %1546 = vmatprep.subr.bf16.mxu0 0
      %1547 = vmatpush1.bf16.msra.mxu0 0
      %1548 = vmatprep.subr.bf16.mxu0 0
      %1549 = vmatpush1.bf16.msra.mxu0 0
      %1550 = vmatprep.subr.bf16.mxu0 0
      %1551 = vmatpush1.bf16.msra.mxu0 0
      %1552 = vmatprep.subr.bf16.mxu0 0
      %1553 = vmatpush1.bf16.msra.mxu0 0
      %1554 = vmatprep.subr.bf16.mxu0 0
      %1555 = vmatpush1.bf16.msra.mxu0 0
      %1556 = vmatprep.subr.bf16.mxu0 0
      %1557 = vmatpush1.bf16.msra.mxu0 0
      %1558 = vmatprep.mubr.bf16.mxu0 0
      %1559 = vmatmul.mubr.bf16.gmra.mrb[0].mxu0 %v1512
      %v1560 = vpop.f32.mrb[0].mxu0
      %v1561 = vadd.f32 0.0, %v1560
      %v1562 = vpop.f32.mrb[0].mxu0
      %v1563 = vpop.f32.mrb[0].mxu0
      %v1564 = vadd.f32 0.0, %v1563
      %v1565 = vpop.f32.mrb[0].mxu0
      %1566 = vmatprep.mubr.bf16.mxu0 0
      %1567 = vmatmul.mubr.bf16.gmra.mrb[0].mxu0 %v1515
      %v1568 = vpop.f32.mrb[0].mxu0
      %v1569 = vadd.f32 0.0, %v1568
      %v1570 = vpop.f32.mrb[0].mxu0
      %v1571 = vpop.f32.mrb[0].mxu0
      %v1572 = vadd.f32 0.0, %v1571
      %v1573 = vpop.f32.mrb[0].mxu0
      %1574 = vmatprep.mubr.bf16.mxu0 0
      %1575 = vmatmul.mubr.bf16.gmra.mrb[0].mxu0 %v1518
      %v1576 = vpop.f32.mrb[0].mxu0
      %v1577 = vadd.f32 0.0, %v1576
      %v1578 = vpop.f32.mrb[0].mxu0
      %v1579 = vpop.f32.mrb[0].mxu0
      %v1580 = vadd.f32 0.0, %v1579
      %v1581 = vpop.f32.mrb[0].mxu0
      %1582 = vmatprep.mubr.bf16.mxu0 0
      %1583 = vmatmul.mubr.bf16.gmra.mrb[0].mxu0 %v1521
      %v1584 = vpop.f32.mrb[0].mxu0
      %v1585 = vadd.f32 0.0, %v1584
      %v1586 = vpop.f32.mrb[0].mxu0
      %v1587 = vpop.f32.mrb[0].mxu0
      %v1588 = vadd.f32 0.0, %v1587
      %v1589 = vpop.f32.mrb[0].mxu0
      %1590 = vdwg.mxu0
      %v1591 = vadd.f32 %v1388, %v1561
      %v1592 = vadd.f32 %v1389, %v1564
      %v1593 = vadd.f32 %v1390, %v1569
      %v1594 = vadd.f32 %v1391, %v1572
      %v1595 = vadd.f32 %v1392, %v1577
      %v1596 = vadd.f32 %v1393, %v1580
      %v1597 = vadd.f32 %v1394, %v1585
      %v1598 = vadd.f32 %v1395, %v1588
    $region317: #{forward.1} parent=1 // loop_footer
      %s1387 = sadd.s32 1, %s1383
    $region318: #{forward.1} parent=1 // loop_footer_branch
      %1382 = sbr.rel target = $region314
    $region319: #{forward.1} parent=1 // loop_exit
      _
    %v1599 = vld [vmem:[#allocation5] sm:$0x1]
    %v1601 = vlaneseq
    %v1602 = vshrl.u32 %v1601, 7
    %v1603 = vsub.s32 0, %v1602
    %v1604 = vrot.slane %v1599, %v1603
    %v1606 = vadd.f32 %v1388, %v1604
    %v1607 = vadd.f32 %v1389, %v1604
    %v1608 = vadd.f32 %v1390, %v1604
    %v1609 = vadd.f32 %v1391, %v1604
    %v1610 = vadd.f32 %v1392, %v1604
    %v1611 = vadd.f32 %v1393, %v1604
    %v1612 = vadd.f32 %v1394, %v1604
    %v1613 = vadd.f32 %v1395, %v1604
    %v1614 = vmax.f32 %v1606, 0.0
    %v1615 = vmax.f32 %v1607, 0.0
    %v1616 = vmax.f32 %v1608, 0.0
    %v1617 = vmax.f32 %v1609, 0.0
    %v1618 = vmax.f32 %v1610, 0.0
    %v1619 = vmax.f32 %v1611, 0.0
    %v1620 = vmax.f32 %v1612, 0.0
    %v1621 = vmax.f32 %v1613, 0.0
    %v1622 = vpack.c.bf16 %v1615, %v1614
    %v1623 = vpack.c.bf16 %v1617, %v1616
    %v1624 = vpack.c.bf16 %v1619, %v1618
    %v1625 = vpack.c.bf16 %v1621, %v1620
    %v1626 = vld [vmem:[%s15] sm:$0xf]
    %v1627 = vld [vmem:[%s15 + $0x4] sm:$0xf]
    %v1628 = vld [vmem:[%s15 + $0x8] sm:$0xf]
    %v1629 = vld [vmem:[%s15 + $0xc] sm:$0xf]
    %v1630 = vld [vmem:[%s15 + $0x10] sm:$0xf]
    %v1631 = vld [vmem:[%s15 + $0x14] sm:$0xf]
    %v1632 = vld [vmem:[%s15 + $0x18] sm:$0xf]
    %v1633 = vld [vmem:[%s15 + $0x1c] sm:$0xf]
    %v1642 = vunpack.c.l.b16 %v1626
    %v1643 = vunpack.c.l.b16 %v1627
    %v1644 = vunpack.c.l.b16 %v1628
    %v1645 = vunpack.c.l.b16 %v1629
    %v1646 = vunpack.c.l.b16 %v1630
    %v1647 = vunpack.c.l.b16 %v1631
    %v1648 = vunpack.c.l.b16 %v1632
    %v1649 = vunpack.c.l.b16 %v1633
    %v1650 = vpack.c.b16 %v1643, %v1642
    %v1651 = vpack.c.b16 %v1645, %v1644
    %v1652 = vpack.c.b16 %v1647, %v1646
    %v1653 = vpack.c.b16 %v1649, %v1648
    %v1655 = vsel %vm1217, %v1650, 0
    %v1658 = vsel %vm1217, %v1651, 0
    %v1661 = vsel %vm1217, %v1652, 0
    %v1664 = vsel %vm1217, %v1653, 0
    %1666 = vmatprep.subr.bf16.mxu0 0
    %1667 = vmatpush1.bf16.msra.mxu0 %v1622
    %1668 = vmatprep.subr.bf16.mxu0 0
    %1669 = vmatpush1.bf16.msra.mxu0 %v1623
    %1670 = vmatprep.subr.bf16.mxu0 0
    %1671 = vmatpush1.bf16.msra.mxu0 %v1624
    %1672 = vmatprep.subr.bf16.mxu0 0
    %1673 = vmatpush1.bf16.msra.mxu0 %v1625
    %1674 = vmatprep.subr.bf16.mxu0 0
    %1675 = vmatpush1.bf16.msra.mxu0 0
    %1676 = vmatprep.subr.bf16.mxu0 0
    %1677 = vmatpush1.bf16.msra.mxu0 0
    %1678 = vmatprep.subr.bf16.mxu0 0
    %1679 = vmatpush1.bf16.msra.mxu0 0
    %1680 = vmatprep.subr.bf16.mxu0 0
    %1681 = vmatpush1.bf16.msra.mxu0 0
    %1682 = vmatprep.subr.bf16.mxu0 0
    %1683 = vmatpush1.bf16.msra.mxu0 0
    %1684 = vmatprep.subr.bf16.mxu0 0
    %1685 = vmatpush1.bf16.msra.mxu0 0
    %1686 = vmatprep.subr.bf16.mxu0 0
    %1687 = vmatpush1.bf16.msra.mxu0 0
    %1688 = vmatprep.subr.bf16.mxu0 0
    %1689 = vmatpush1.bf16.msra.mxu0 0
    %1690 = vmatprep.subr.bf16.mxu0 0
    %1691 = vmatpush1.bf16.msra.mxu0 0
    %1692 = vmatprep.subr.bf16.mxu0 0
    %1693 = vmatpush1.bf16.msra.mxu0 0
    %1694 = vmatprep.subr.bf16.mxu0 0
    %1695 = vmatpush1.bf16.msra.mxu0 0
    %1696 = vmatprep.subr.bf16.mxu0 0
    %1697 = vmatpush1.bf16.msra.mxu0 0
    %1698 = vmatprep.mubr.bf16.mxu0 0
    %1699 = vmatmul.mubr.bf16.gmra.mrb[0].mxu0 %v1655
    %v1700 = vpop.f32.mrb[0].mxu0
    %v1701 = vadd.f32 0.0, %v1700
    %v1702 = vpop.f32.mrb[0].mxu0
    %v1703 = vpop.f32.mrb[0].mxu0
    %v1704 = vadd.f32 0.0, %v1703
    %v1705 = vpop.f32.mrb[0].mxu0
    %1706 = vmatprep.mubr.bf16.mxu0 0
    %1707 = vmatmul.mubr.bf16.gmra.mrb[0].mxu0 %v1658
    %v1708 = vpop.f32.mrb[0].mxu0
    %v1709 = vadd.f32 0.0, %v1708
    %v1710 = vpop.f32.mrb[0].mxu0
    %v1711 = vpop.f32.mrb[0].mxu0
    %v1712 = vadd.f32 0.0, %v1711
    %v1713 = vpop.f32.mrb[0].mxu0
    %1714 = vmatprep.mubr.bf16.mxu0 0
    %1715 = vmatmul.mubr.bf16.gmra.mrb[0].mxu0 %v1661
    %v1716 = vpop.f32.mrb[0].mxu0
    %v1717 = vadd.f32 0.0, %v1716
    %v1718 = vpop.f32.mrb[0].mxu0
    %v1719 = vpop.f32.mrb[0].mxu0
    %v1720 = vadd.f32 0.0, %v1719
    %v1721 = vpop.f32.mrb[0].mxu0
    %1722 = vmatprep.mubr.bf16.mxu0 0
    %1723 = vmatmul.mubr.bf16.gmra.mrb[0].mxu0 %v1664
    %v1724 = vpop.f32.mrb[0].mxu0
    %v1725 = vadd.f32 0.0, %v1724
    %v1726 = vpop.f32.mrb[0].mxu0
    %v1727 = vpop.f32.mrb[0].mxu0
    %v1728 = vadd.f32 0.0, %v1727
    %v1729 = vpop.f32.mrb[0].mxu0
    %1730 = vdwg.mxu0
    %v1731 = vpack.c.bf16 %v1704, %v1701
    %v1732 = vpack.c.bf16 %v1712, %v1709
    %v1733 = vpack.c.bf16 %v1720, %v1717
    %v1734 = vpack.c.bf16 %v1728, %v1725
    %v1735 = vld [vmem:[%s17] sm:$0xf]
    %v1737 = vsel %vm1300, %v1731, 0
    %v1740 = vsel %vm1300, %v1732, 0
    %v1743 = vsel %vm1300, %v1733, 0
    %v1746 = vsel %vm1300, %v1734, 0
    %v1749 = vsel %vm1313, %v1735, 0
    %1751 = vmatprep.subr.bf16.mxu0 0
    %1752 = vmatpush1.bf16.msra.mxu0 %v1749
    %1753 = vmatprep.subr.bf16.mxu0 0
    %1754 = vmatpush1.bf16.msra.mxu0 0
    %1755 = vmatprep.subr.bf16.mxu0 0
    %1756 = vmatpush1.bf16.msra.mxu0 0
    %1757 = vmatprep.subr.bf16.mxu0 0
    %1758 = vmatpush1.bf16.msra.mxu0 0
    %1759 = vmatprep.subr.bf16.mxu0 0
    %1760 = vmatpush1.bf16.msra.mxu0 0
    %1761 = vmatprep.subr.bf16.mxu0 0
    %1762 = vmatpush1.bf16.msra.mxu0 0
    %1763 = vmatprep.subr.bf16.mxu0 0
    %1764 = vmatpush1.bf16.msra.mxu0 0
    %1765 = vmatprep.subr.bf16.mxu0 0
    %1766 = vmatpush1.bf16.msra.mxu0 0
    %1767 = vmatprep.subr.bf16.mxu0 0
    %1768 = vmatpush1.bf16.msra.mxu0 0
    %1769 = vmatprep.subr.bf16.mxu0 0
    %1770 = vmatpush1.bf16.msra.mxu0 0
    %1771 = vmatprep.subr.bf16.mxu0 0
    %1772 = vmatpush1.bf16.msra.mxu0 0
    %1773 = vmatprep.subr.bf16.mxu0 0
    %1774 = vmatpush1.bf16.msra.mxu0 0
    %1775 = vmatprep.subr.bf16.mxu0 0
    %1776 = vmatpush1.bf16.msra.mxu0 0
    %1777 = vmatprep.subr.bf16.mxu0 0
    %1778 = vmatpush1.bf16.msra.mxu0 0
    %1779 = vmatprep.subr.bf16.mxu0 0
    %1780 = vmatpush1.bf16.msra.mxu0 0
    %1781 = vmatprep.subr.bf16.mxu0 0
    %1782 = vmatpush1.bf16.msra.mxu0 0
    %1783 = vmatprep.mubr.bf16.mxu0 0
    %1784 = vmatmul.mubr.bf16.gmra.mrb[0].mxu0 %v1737
    %v1785 = vpop.f32.mrb[0].mxu0
    %v1786 = vadd.f32 0.0, %v1785
    %v1787 = vpop.f32.mrb[0].mxu0
    %v1788 = vpop.f32.mrb[0].mxu0
    %v1789 = vadd.f32 0.0, %v1788
    %v1790 = vpop.f32.mrb[0].mxu0
    %1791 = vmatprep.mubr.bf16.mxu0 0
    %1792 = vmatmul.mubr.bf16.gmra.mrb[0].mxu0 %v1740
    %v1793 = vpop.f32.mrb[0].mxu0
    %v1794 = vadd.f32 0.0, %v1793
    %v1795 = vpop.f32.mrb[0].mxu0
    %v1796 = vpop.f32.mrb[0].mxu0
    %v1797 = vadd.f32 0.0, %v1796
    %v1798 = vpop.f32.mrb[0].mxu0
    %1799 = vmatprep.mubr.bf16.mxu0 0
    %1800 = vmatmul.mubr.bf16.gmra.mrb[0].mxu0 %v1743
    %v1801 = vpop.f32.mrb[0].mxu0
    %v1802 = vadd.f32 0.0, %v1801
    %v1803 = vpop.f32.mrb[0].mxu0
    %v1804 = vpop.f32.mrb[0].mxu0
    %v1805 = vadd.f32 0.0, %v1804
    %v1806 = vpop.f32.mrb[0].mxu0
    %1807 = vmatprep.mubr.bf16.mxu0 0
    %1808 = vmatmul.mubr.bf16.gmra.mrb[0].mxu0 %v1746
    %v1809 = vpop.f32.mrb[0].mxu0
    %v1810 = vadd.f32 0.0, %v1809
    %v1811 = vpop.f32.mrb[0].mxu0
    %v1812 = vpop.f32.mrb[0].mxu0
    %v1813 = vadd.f32 0.0, %v1812
    %v1814 = vpop.f32.mrb[0].mxu0
    %1815 = vdwg.mxu0
    loop: start=1, step=1, limit=9
    $region320: #{forward.1} parent=1 // loop_pre_header
      _
    $region321: #{forward.1} parent=1 // loop_header
      %s1817 = sphi 1, %s1821
      %p1818 = scmp.ge.s32.totalorder %s1817, 9
      %v1822 = vphi %v1786, %v2025
      %v1823 = vphi %v1789, %v2026
      %v1824 = vphi %v1794, %v2027
      %v1825 = vphi %v1797, %v2028
      %v1826 = vphi %v1802, %v2029
      %v1827 = vphi %v1805, %v2030
      %v1828 = vphi %v1810, %v2031
      %v1829 = vphi %v1813, %v2032
    $region322: #{forward.1} parent=1 // loop_header_branch
      %1820 = sbr.rel (%p1818) target = $region326
    $region323: #{forward.1} parent=1 // loop_body
      %s1830 = smul.u32 %s1817, 8
      %s1831 = smul.addr %s1830, 4
      %s1832 = scalar_lea.vmem %s15, %s1831
      %v1833 = vld [vmem:[%s1832] sm:$0xf]
      %v1834 = vld [vmem:[%s1832 + $0x4] sm:$0xf]
      %v1835 = vld [vmem:[%s1832 + $0x8] sm:$0xf]
      %v1836 = vld [vmem:[%s1832 + $0xc] sm:$0xf]
      %v1837 = vld [vmem:[%s1832 + $0x10] sm:$0xf]
      %v1838 = vld [vmem:[%s1832 + $0x14] sm:$0xf]
      %v1839 = vld [vmem:[%s1832 + $0x18] sm:$0xf]
      %v1840 = vld [vmem:[%s1832 + $0x1c] sm:$0xf]
      %v1849 = vunpack.c.l.b16 %v1833
      %v1850 = vunpack.c.l.b16 %v1834
      %v1851 = vunpack.c.l.b16 %v1835
      %v1852 = vunpack.c.l.b16 %v1836
      %v1853 = vunpack.c.l.b16 %v1837
      %v1854 = vunpack.c.l.b16 %v1838
      %v1855 = vunpack.c.l.b16 %v1839
      %v1856 = vunpack.c.l.b16 %v1840
      %v1857 = vpack.c.b16 %v1850, %v1849
      %v1858 = vpack.c.b16 %v1852, %v1851
      %v1859 = vpack.c.b16 %v1854, %v1853
      %v1860 = vpack.c.b16 %v1856, %v1855
      %v1862 = vsel %vm1217, %v1857, 0
      %v1865 = vsel %vm1217, %v1858, 0
      %v1868 = vsel %vm1217, %v1859, 0
      %v1871 = vsel %vm1217, %v1860, 0
      %1873 = vmatprep.subr.bf16.mxu0 0
      %1874 = vmatpush1.bf16.msra.mxu0 %v1622
      %1875 = vmatprep.subr.bf16.mxu0 0
      %1876 = vmatpush1.bf16.msra.mxu0 %v1623
      %1877 = vmatprep.subr.bf16.mxu0 0
      %1878 = vmatpush1.bf16.msra.mxu0 %v1624
      %1879 = vmatprep.subr.bf16.mxu0 0
      %1880 = vmatpush1.bf16.msra.mxu0 %v1625
      %1881 = vmatprep.subr.bf16.mxu0 0
      %1882 = vmatpush1.bf16.msra.mxu0 0
      %1883 = vmatprep.subr.bf16.mxu0 0
      %1884 = vmatpush1.bf16.msra.mxu0 0
      %1885 = vmatprep.subr.bf16.mxu0 0
      %1886 = vmatpush1.bf16.msra.mxu0 0
      %1887 = vmatprep.subr.bf16.mxu0 0
      %1888 = vmatpush1.bf16.msra.mxu0 0
      %1889 = vmatprep.subr.bf16.mxu0 0
      %1890 = vmatpush1.bf16.msra.mxu0 0
      %1891 = vmatprep.subr.bf16.mxu0 0
      %1892 = vmatpush1.bf16.msra.mxu0 0
      %1893 = vmatprep.subr.bf16.mxu0 0
      %1894 = vmatpush1.bf16.msra.mxu0 0
      %1895 = vmatprep.subr.bf16.mxu0 0
      %1896 = vmatpush1.bf16.msra.mxu0 0
      %1897 = vmatprep.subr.bf16.mxu0 0
      %1898 = vmatpush1.bf16.msra.mxu0 0
      %1899 = vmatprep.subr.bf16.mxu0 0
      %1900 = vmatpush1.bf16.msra.mxu0 0
      %1901 = vmatprep.subr.bf16.mxu0 0
      %1902 = vmatpush1.bf16.msra.mxu0 0
      %1903 = vmatprep.subr.bf16.mxu0 0
      %1904 = vmatpush1.bf16.msra.mxu0 0
      %1905 = vmatprep.mubr.bf16.mxu0 0
      %1906 = vmatmul.mubr.bf16.gmra.mrb[0].mxu0 %v1862
      %v1907 = vpop.f32.mrb[0].mxu0
      %v1908 = vadd.f32 0.0, %v1907
      %v1909 = vpop.f32.mrb[0].mxu0
      %v1910 = vpop.f32.mrb[0].mxu0
      %v1911 = vadd.f32 0.0, %v1910
      %v1912 = vpop.f32.mrb[0].mxu0
      %1913 = vmatprep.mubr.bf16.mxu0 0
      %1914 = vmatmul.mubr.bf16.gmra.mrb[0].mxu0 %v1865
      %v1915 = vpop.f32.mrb[0].mxu0
      %v1916 = vadd.f32 0.0, %v1915
      %v1917 = vpop.f32.mrb[0].mxu0
      %v1918 = vpop.f32.mrb[0].mxu0
      %v1919 = vadd.f32 0.0, %v1918
      %v1920 = vpop.f32.mrb[0].mxu0
      %1921 = vmatprep.mubr.bf16.mxu0 0
      %1922 = vmatmul.mubr.bf16.gmra.mrb[0].mxu0 %v1868
      %v1923 = vpop.f32.mrb[0].mxu0
      %v1924 = vadd.f32 0.0, %v1923
      %v1925 = vpop.f32.mrb[0].mxu0
      %v1926 = vpop.f32.mrb[0].mxu0
      %v1927 = vadd.f32 0.0, %v1926
      %v1928 = vpop.f32.mrb[0].mxu0
      %1929 = vmatprep.mubr.bf16.mxu0 0
      %1930 = vmatmul.mubr.bf16.gmra.mrb[0].mxu0 %v1871
      %v1931 = vpop.f32.mrb[0].mxu0
      %v1932 = vadd.f32 0.0, %v1931
      %v1933 = vpop.f32.mrb[0].mxu0
      %v1934 = vpop.f32.mrb[0].mxu0
      %v1935 = vadd.f32 0.0, %v1934
      %v1936 = vpop.f32.mrb[0].mxu0
      %1937 = vdwg.mxu0
      %v1938 = vpack.c.bf16 %v1911, %v1908
      %v1939 = vpack.c.bf16 %v1919, %v1916
      %v1940 = vpack.c.bf16 %v1927, %v1924
      %v1941 = vpack.c.bf16 %v1935, %v1932
      %s1942 = smul.addr %s1817, 4
      %s1943 = scalar_lea.vmem %s17, %s1942
      %v1944 = vld [vmem:[%s1943] sm:$0xf]
      %v1946 = vsel %vm1300, %v1938, 0
      %v1949 = vsel %vm1300, %v1939, 0
      %v1952 = vsel %vm1300, %v1940, 0
      %v1955 = vsel %vm1300, %v1941, 0
      %v1958 = vsel %vm1313, %v1944, 0
      %1960 = vmatprep.subr.bf16.mxu0 0
      %1961 = vmatpush1.bf16.msra.mxu0 %v1958
      %1962 = vmatprep.subr.bf16.mxu0 0
      %1963 = vmatpush1.bf16.msra.mxu0 0
      %1964 = vmatprep.subr.bf16.mxu0 0
      %1965 = vmatpush1.bf16.msra.mxu0 0
      %1966 = vmatprep.subr.bf16.mxu0 0
      %1967 = vmatpush1.bf16.msra.mxu0 0
      %1968 = vmatprep.subr.bf16.mxu0 0
      %1969 = vmatpush1.bf16.msra.mxu0 0
      %1970 = vmatprep.subr.bf16.mxu0 0
      %1971 = vmatpush1.bf16.msra.mxu0 0
      %1972 = vmatprep.subr.bf16.mxu0 0
      %1973 = vmatpush1.bf16.msra.mxu0 0
      %1974 = vmatprep.subr.bf16.mxu0 0
      %1975 = vmatpush1.bf16.msra.mxu0 0
      %1976 = vmatprep.subr.bf16.mxu0 0
      %1977 = vmatpush1.bf16.msra.mxu0 0
      %1978 = vmatprep.subr.bf16.mxu0 0
      %1979 = vmatpush1.bf16.msra.mxu0 0
      %1980 = vmatprep.subr.bf16.mxu0 0
      %1981 = vmatpush1.bf16.msra.mxu0 0
      %1982 = vmatprep.subr.bf16.mxu0 0
      %1983 = vmatpush1.bf16.msra.mxu0 0
      %1984 = vmatprep.subr.bf16.mxu0 0
      %1985 = vmatpush1.bf16.msra.mxu0 0
      %1986 = vmatprep.subr.bf16.mxu0 0
      %1987 = vmatpush1.bf16.msra.mxu0 0
      %1988 = vmatprep.subr.bf16.mxu0 0
      %1989 = vmatpush1.bf16.msra.mxu0 0
      %1990 = vmatprep.subr.bf16.mxu0 0
      %1991 = vmatpush1.bf16.msra.mxu0 0
      %1992 = vmatprep.mubr.bf16.mxu0 0
      %1993 = vmatmul.mubr.bf16.gmra.mrb[0].mxu0 %v1946
      %v1994 = vpop.f32.mrb[0].mxu0
      %v1995 = vadd.f32 0.0, %v1994
      %v1996 = vpop.f32.mrb[0].mxu0
      %v1997 = vpop.f32.mrb[0].mxu0
      %v1998 = vadd.f32 0.0, %v1997
      %v1999 = vpop.f32.mrb[0].mxu0
      %2000 = vmatprep.mubr.bf16.mxu0 0
      %2001 = vmatmul.mubr.bf16.gmra.mrb[0].mxu0 %v1949
      %v2002 = vpop.f32.mrb[0].mxu0
      %v2003 = vadd.f32 0.0, %v2002
      %v2004 = vpop.f32.mrb[0].mxu0
      %v2005 = vpop.f32.mrb[0].mxu0
      %v2006 = vadd.f32 0.0, %v2005
      %v2007 = vpop.f32.mrb[0].mxu0
      %2008 = vmatprep.mubr.bf16.mxu0 0
      %2009 = vmatmul.mubr.bf16.gmra.mrb[0].mxu0 %v1952
      %v2010 = vpop.f32.mrb[0].mxu0
      %v2011 = vadd.f32 0.0, %v2010
      %v2012 = vpop.f32.mrb[0].mxu0
      %v2013 = vpop.f32.mrb[0].mxu0
      %v2014 = vadd.f32 0.0, %v2013
      %v2015 = vpop.f32.mrb[0].mxu0
      %2016 = vmatprep.mubr.bf16.mxu0 0
      %2017 = vmatmul.mubr.bf16.gmra.mrb[0].mxu0 %v1955
      %v2018 = vpop.f32.mrb[0].mxu0
      %v2019 = vadd.f32 0.0, %v2018
      %v2020 = vpop.f32.mrb[0].mxu0
      %v2021 = vpop.f32.mrb[0].mxu0
      %v2022 = vadd.f32 0.0, %v2021
      %v2023 = vpop.f32.mrb[0].mxu0
      %2024 = vdwg.mxu0
      %v2025 = vadd.f32 %v1822, %v1995
      %v2026 = vadd.f32 %v1823, %v1998
      %v2027 = vadd.f32 %v1824, %v2003
      %v2028 = vadd.f32 %v1825, %v2006
      %v2029 = vadd.f32 %v1826, %v2011
      %v2030 = vadd.f32 %v1827, %v2014
      %v2031 = vadd.f32 %v1828, %v2019
      %v2032 = vadd.f32 %v1829, %v2022
    $region324: #{forward.1} parent=1 // loop_footer
      %s1821 = sadd.s32 1, %s1817
    $region325: #{forward.1} parent=1 // loop_footer_branch
      %1816 = sbr.rel target = $region321
    $region326: #{forward.1} parent=1 // loop_exit
      _
    %v2033 = vld [vmem:[#allocation7] sm:$0x1]
    %v2035 = vlaneseq
    %v2036 = vshrl.u32 %v2035, 7
    %v2037 = vsub.s32 0, %v2036
    %v2038 = vrot.slane %v2033, %v2037
    %v2040 = vadd.f32 %v1822, %v2038
    %v2041 = vadd.f32 %v1823, %v2038
    %v2042 = vadd.f32 %v1824, %v2038
    %v2043 = vadd.f32 %v1825, %v2038
    %v2044 = vadd.f32 %v1826, %v2038
    %v2045 = vadd.f32 %v1827, %v2038
    %v2046 = vadd.f32 %v1828, %v2038
    %v2047 = vadd.f32 %v1829, %v2038
    %v2048 = vadd.f32 %v2040, %v1053
    %v2049 = vadd.f32 %v2041, %v1054
    %v2050 = vadd.f32 %v2042, %v1055
    %v2051 = vadd.f32 %v2043, %v1056
    %v2052 = vadd.f32 %v2044, %v1057
    %v2053 = vadd.f32 %v2045, %v1058
    %v2054 = vadd.f32 %v2046, %v1059
    %v2055 = vadd.f32 %v2047, %v1060
    %v2056 = vmax.f32 %v2048, 0.0
    %v2057 = vmax.f32 %v2049, 0.0
    %v2058 = vmax.f32 %v2050, 0.0
    %v2059 = vmax.f32 %v2051, 0.0
    %v2060 = vmax.f32 %v2052, 0.0
    %v2061 = vmax.f32 %v2053, 0.0
    %v2062 = vmax.f32 %v2054, 0.0
    %v2063 = vmax.f32 %v2055, 0.0
    %v2064 = vpack.c.bf16 %v2057, %v2056
    %v2065 = vpack.c.bf16 %v2059, %v2058
    %v2066 = vpack.c.bf16 %v2061, %v2060
    %v2067 = vpack.c.bf16 %v2063, %v2062
    %v2068 = vld [vmem:[%s21] sm:$0xf]
    %v2069 = vld [vmem:[%s21 + $0x4] sm:$0xf]
    %v2070 = vld [vmem:[%s21 + $0x8] sm:$0xf]
    %v2071 = vld [vmem:[%s21 + $0xc] sm:$0xf]
    %v2072 = vld [vmem:[%s21 + $0x10] sm:$0xf]
    %v2073 = vld [vmem:[%s21 + $0x14] sm:$0xf]
    %v2074 = vld [vmem:[%s21 + $0x18] sm:$0xf]
    %v2075 = vld [vmem:[%s21 + $0x1c] sm:$0xf]
    %v2084 = vunpack.c.l.b16 %v2068
    %v2085 = vunpack.c.l.b16 %v2069
    %v2086 = vunpack.c.l.b16 %v2070
    %v2087 = vunpack.c.l.b16 %v2071
    %v2088 = vunpack.c.l.b16 %v2072
    %v2089 = vunpack.c.l.b16 %v2073
    %v2090 = vunpack.c.l.b16 %v2074
    %v2091 = vunpack.c.l.b16 %v2075
    %v2092 = vpack.c.b16 %v2085, %v2084
    %v2093 = vpack.c.b16 %v2087, %v2086
    %v2094 = vpack.c.b16 %v2089, %v2088
    %v2095 = vpack.c.b16 %v2091, %v2090
    %v2097 = vsel %vm1217, %v2092, 0
    %v2100 = vsel %vm1217, %v2093, 0
    %v2103 = vsel %vm1217, %v2094, 0
    %v2106 = vsel %vm1217, %v2095, 0
    %2108 = vmatprep.subr.bf16.mxu0 0
    %2109 = vmatpush1.bf16.msra.mxu0 %v2064
    %2110 = vmatprep.subr.bf16.mxu0 0
    %2111 = vmatpush1.bf16.msra.mxu0 %v2065
    %2112 = vmatprep.subr.bf16.mxu0 0
    %2113 = vmatpush1.bf16.msra.mxu0 %v2066
    %2114 = vmatprep.subr.bf16.mxu0 0
    %2115 = vmatpush1.bf16.msra.mxu0 %v2067
    %2116 = vmatprep.subr.bf16.mxu0 0
    %2117 = vmatpush1.bf16.msra.mxu0 0
    %2118 = vmatprep.subr.bf16.mxu0 0
    %2119 = vmatpush1.bf16.msra.mxu0 0
    %2120 = vmatprep.subr.bf16.mxu0 0
    %2121 = vmatpush1.bf16.msra.mxu0 0
    %2122 = vmatprep.subr.bf16.mxu0 0
    %2123 = vmatpush1.bf16.msra.mxu0 0
    %2124 = vmatprep.subr.bf16.mxu0 0
    %2125 = vmatpush1.bf16.msra.mxu0 0
    %2126 = vmatprep.subr.bf16.mxu0 0
    %2127 = vmatpush1.bf16.msra.mxu0 0
    %2128 = vmatprep.subr.bf16.mxu0 0
    %2129 = vmatpush1.bf16.msra.mxu0 0
    %2130 = vmatprep.subr.bf16.mxu0 0
    %2131 = vmatpush1.bf16.msra.mxu0 0
    %2132 = vmatprep.subr.bf16.mxu0 0
    %2133 = vmatpush1.bf16.msra.mxu0 0
    %2134 = vmatprep.subr.bf16.mxu0 0
    %2135 = vmatpush1.bf16.msra.mxu0 0
    %2136 = vmatprep.subr.bf16.mxu0 0
    %2137 = vmatpush1.bf16.msra.mxu0 0
    %2138 = vmatprep.subr.bf16.mxu0 0
    %2139 = vmatpush1.bf16.msra.mxu0 0
    %2140 = vmatprep.mubr.bf16.mxu0 0
    %2141 = vmatmul.mubr.bf16.gmra.mrb[0].mxu0 %v2097
    %v2142 = vpop.f32.mrb[0].mxu0
    %v2143 = vadd.f32 0.0, %v2142
    %v2144 = vpop.f32.mrb[0].mxu0
    %v2145 = vpop.f32.mrb[0].mxu0
    %v2146 = vadd.f32 0.0, %v2145
    %v2147 = vpop.f32.mrb[0].mxu0
    %2148 = vmatprep.mubr.bf16.mxu0 0
    %2149 = vmatmul.mubr.bf16.gmra.mrb[0].mxu0 %v2100
    %v2150 = vpop.f32.mrb[0].mxu0
    %v2151 = vadd.f32 0.0, %v2150
    %v2152 = vpop.f32.mrb[0].mxu0
    %v2153 = vpop.f32.mrb[0].mxu0
    %v2154 = vadd.f32 0.0, %v2153
    %v2155 = vpop.f32.mrb[0].mxu0
    %2156 = vmatprep.mubr.bf16.mxu0 0
    %2157 = vmatmul.mubr.bf16.gmra.mrb[0].mxu0 %v2103
    %v2158 = vpop.f32.mrb[0].mxu0
    %v2159 = vadd.f32 0.0, %v2158
    %v2160 = vpop.f32.mrb[0].mxu0
    %v2161 = vpop.f32.mrb[0].mxu0
    %v2162 = vadd.f32 0.0, %v2161
    %v2163 = vpop.f32.mrb[0].mxu0
    %2164 = vmatprep.mubr.bf16.mxu0 0
    %2165 = vmatmul.mubr.bf16.gmra.mrb[0].mxu0 %v2106
    %v2166 = vpop.f32.mrb[0].mxu0
    %v2167 = vadd.f32 0.0, %v2166
    %v2168 = vpop.f32.mrb[0].mxu0
    %v2169 = vpop.f32.mrb[0].mxu0
    %v2170 = vadd.f32 0.0, %v2169
    %v2171 = vpop.f32.mrb[0].mxu0
    %2172 = vdwg.mxu0
    %v2173 = vpack.c.bf16 %v2146, %v2143
    %v2174 = vpack.c.bf16 %v2154, %v2151
    %v2175 = vpack.c.bf16 %v2162, %v2159
    %v2176 = vpack.c.bf16 %v2170, %v2167
    %v2177 = vld [vmem:[%s23] sm:$0xf]
    %v2179 = vsel %vm1300, %v2173, 0
    %v2182 = vsel %vm1300, %v2174, 0
    %v2185 = vsel %vm1300, %v2175, 0
    %v2188 = vsel %vm1300, %v2176, 0
    %v2191 = vsel %vm1313, %v2177, 0
    %2193 = vmatprep.subr.bf16.mxu0 0
    %2194 = vmatpush1.bf16.msra.mxu0 %v2191
    %2195 = vmatprep.subr.bf16.mxu0 0
    %2196 = vmatpush1.bf16.msra.mxu0 0
    %2197 = vmatprep.subr.bf16.mxu0 0
    %2198 = vmatpush1.bf16.msra.mxu0 0
    %2199 = vmatprep.subr.bf16.mxu0 0
    %2200 = vmatpush1.bf16.msra.mxu0 0
    %2201 = vmatprep.subr.bf16.mxu0 0
    %2202 = vmatpush1.bf16.msra.mxu0 0
    %2203 = vmatprep.subr.bf16.mxu0 0
    %2204 = vmatpush1.bf16.msra.mxu0 0
    %2205 = vmatprep.subr.bf16.mxu0 0
    %2206 = vmatpush1.bf16.msra.mxu0 0
    %2207 = vmatprep.subr.bf16.mxu0 0
    %2208 = vmatpush1.bf16.msra.mxu0 0
    %2209 = vmatprep.subr.bf16.mxu0 0
    %2210 = vmatpush1.bf16.msra.mxu0 0
    %2211 = vmatprep.subr.bf16.mxu0 0
    %2212 = vmatpush1.bf16.msra.mxu0 0
    %2213 = vmatprep.subr.bf16.mxu0 0
    %2214 = vmatpush1.bf16.msra.mxu0 0
    %2215 = vmatprep.subr.bf16.mxu0 0
    %2216 = vmatpush1.bf16.msra.mxu0 0
    %2217 = vmatprep.subr.bf16.mxu0 0
    %2218 = vmatpush1.bf16.msra.mxu0 0
    %2219 = vmatprep.subr.bf16.mxu0 0
    %2220 = vmatpush1.bf16.msra.mxu0 0
    %2221 = vmatprep.subr.bf16.mxu0 0
    %2222 = vmatpush1.bf16.msra.mxu0 0
    %2223 = vmatprep.subr.bf16.mxu0 0
    %2224 = vmatpush1.bf16.msra.mxu0 0
    %2225 = vmatprep.mubr.bf16.mxu0 0
    %2226 = vmatmul.mubr.bf16.gmra.mrb[0].mxu0 %v2179
    %v2227 = vpop.f32.mrb[0].mxu0
    %v2228 = vadd.f32 0.0, %v2227
    %v2229 = vpop.f32.mrb[0].mxu0
    %v2230 = vpop.f32.mrb[0].mxu0
    %v2231 = vadd.f32 0.0, %v2230
    %v2232 = vpop.f32.mrb[0].mxu0
    %2233 = vmatprep.mubr.bf16.mxu0 0
    %2234 = vmatmul.mubr.bf16.gmra.mrb[0].mxu0 %v2182
    %v2235 = vpop.f32.mrb[0].mxu0
    %v2236 = vadd.f32 0.0, %v2235
    %v2237 = vpop.f32.mrb[0].mxu0
    %v2238 = vpop.f32.mrb[0].mxu0
    %v2239 = vadd.f32 0.0, %v2238
    %v2240 = vpop.f32.mrb[0].mxu0
    %2241 = vmatprep.mubr.bf16.mxu0 0
    %2242 = vmatmul.mubr.bf16.gmra.mrb[0].mxu0 %v2185
    %v2243 = vpop.f32.mrb[0].mxu0
    %v2244 = vadd.f32 0.0, %v2243
    %v2245 = vpop.f32.mrb[0].mxu0
    %v2246 = vpop.f32.mrb[0].mxu0
    %v2247 = vadd.f32 0.0, %v2246
    %v2248 = vpop.f32.mrb[0].mxu0
    %2249 = vmatprep.mubr.bf16.mxu0 0
    %2250 = vmatmul.mubr.bf16.gmra.mrb[0].mxu0 %v2188
    %v2251 = vpop.f32.mrb[0].mxu0
    %v2252 = vadd.f32 0.0, %v2251
    %v2253 = vpop.f32.mrb[0].mxu0
    %v2254 = vpop.f32.mrb[0].mxu0
    %v2255 = vadd.f32 0.0, %v2254
    %v2256 = vpop.f32.mrb[0].mxu0
    %2257 = vdwg.mxu0
    loop: start=1, step=1, limit=9
    $region327: #{forward.1} parent=1 // loop_pre_header
      _
    $region328: #{forward.1} parent=1 // loop_header
      %s2259 = sphi 1, %s2263
      %p2260 = scmp.ge.s32.totalorder %s2259, 9
      %v2264 = vphi %v2228, %v2467
      %v2265 = vphi %v2231, %v2468
      %v2266 = vphi %v2236, %v2469
      %v2267 = vphi %v2239, %v2470
      %v2268 = vphi %v2244, %v2471
      %v2269 = vphi %v2247, %v2472
      %v2270 = vphi %v2252, %v2473
      %v2271 = vphi %v2255, %v2474
    $region329: #{forward.1} parent=1 // loop_header_branch
      %2262 = sbr.rel (%p2260) target = $region333
    $region330: #{forward.1} parent=1 // loop_body
      %s2272 = smul.u32 %s2259, 8
      %s2273 = smul.addr %s2272, 4
      %s2274 = scalar_lea.vmem %s21, %s2273
      %v2275 = vld [vmem:[%s2274] sm:$0xf]
      %v2276 = vld [vmem:[%s2274 + $0x4] sm:$0xf]
      %v2277 = vld [vmem:[%s2274 + $0x8] sm:$0xf]
      %v2278 = vld [vmem:[%s2274 + $0xc] sm:$0xf]
      %v2279 = vld [vmem:[%s2274 + $0x10] sm:$0xf]
      %v2280 = vld [vmem:[%s2274 + $0x14] sm:$0xf]
      %v2281 = vld [vmem:[%s2274 + $0x18] sm:$0xf]
      %v2282 = vld [vmem:[%s2274 + $0x1c] sm:$0xf]
      %v2291 = vunpack.c.l.b16 %v2275
      %v2292 = vunpack.c.l.b16 %v2276
      %v2293 = vunpack.c.l.b16 %v2277
      %v2294 = vunpack.c.l.b16 %v2278
      %v2295 = vunpack.c.l.b16 %v2279
      %v2296 = vunpack.c.l.b16 %v2280
      %v2297 = vunpack.c.l.b16 %v2281
      %v2298 = vunpack.c.l.b16 %v2282
      %v2299 = vpack.c.b16 %v2292, %v2291
      %v2300 = vpack.c.b16 %v2294, %v2293
      %v2301 = vpack.c.b16 %v2296, %v2295
      %v2302 = vpack.c.b16 %v2298, %v2297
      %v2304 = vsel %vm1217, %v2299, 0
      %v2307 = vsel %vm1217, %v2300, 0
      %v2310 = vsel %vm1217, %v2301, 0
      %v2313 = vsel %vm1217, %v2302, 0
      %2315 = vmatprep.subr.bf16.mxu0 0
      %2316 = vmatpush1.bf16.msra.mxu0 %v2064
      %2317 = vmatprep.subr.bf16.mxu0 0
      %2318 = vmatpush1.bf16.msra.mxu0 %v2065
      %2319 = vmatprep.subr.bf16.mxu0 0
      %2320 = vmatpush1.bf16.msra.mxu0 %v2066
      %2321 = vmatprep.subr.bf16.mxu0 0
      %2322 = vmatpush1.bf16.msra.mxu0 %v2067
      %2323 = vmatprep.subr.bf16.mxu0 0
      %2324 = vmatpush1.bf16.msra.mxu0 0
      %2325 = vmatprep.subr.bf16.mxu0 0
      %2326 = vmatpush1.bf16.msra.mxu0 0
      %2327 = vmatprep.subr.bf16.mxu0 0
      %2328 = vmatpush1.bf16.msra.mxu0 0
      %2329 = vmatprep.subr.bf16.mxu0 0
      %2330 = vmatpush1.bf16.msra.mxu0 0
      %2331 = vmatprep.subr.bf16.mxu0 0
      %2332 = vmatpush1.bf16.msra.mxu0 0
      %2333 = vmatprep.subr.bf16.mxu0 0
      %2334 = vmatpush1.bf16.msra.mxu0 0
      %2335 = vmatprep.subr.bf16.mxu0 0
      %2336 = vmatpush1.bf16.msra.mxu0 0
      %2337 = vmatprep.subr.bf16.mxu0 0
      %2338 = vmatpush1.bf16.msra.mxu0 0
      %2339 = vmatprep.subr.bf16.mxu0 0
      %2340 = vmatpush1.bf16.msra.mxu0 0
      %2341 = vmatprep.subr.bf16.mxu0 0
      %2342 = vmatpush1.bf16.msra.mxu0 0
      %2343 = vmatprep.subr.bf16.mxu0 0
      %2344 = vmatpush1.bf16.msra.mxu0 0
      %2345 = vmatprep.subr.bf16.mxu0 0
      %2346 = vmatpush1.bf16.msra.mxu0 0
      %2347 = vmatprep.mubr.bf16.mxu0 0
      %2348 = vmatmul.mubr.bf16.gmra.mrb[0].mxu0 %v2304
      %v2349 = vpop.f32.mrb[0].mxu0
      %v2350 = vadd.f32 0.0, %v2349
      %v2351 = vpop.f32.mrb[0].mxu0
      %v2352 = vpop.f32.mrb[0].mxu0
      %v2353 = vadd.f32 0.0, %v2352
      %v2354 = vpop.f32.mrb[0].mxu0
      %2355 = vmatprep.mubr.bf16.mxu0 0
      %2356 = vmatmul.mubr.bf16.gmra.mrb[0].mxu0 %v2307
      %v2357 = vpop.f32.mrb[0].mxu0
      %v2358 = vadd.f32 0.0, %v2357
      %v2359 = vpop.f32.mrb[0].mxu0
      %v2360 = vpop.f32.mrb[0].mxu0
      %v2361 = vadd.f32 0.0, %v2360
      %v2362 = vpop.f32.mrb[0].mxu0
      %2363 = vmatprep.mubr.bf16.mxu0 0
      %2364 = vmatmul.mubr.bf16.gmra.mrb[0].mxu0 %v2310
      %v2365 = vpop.f32.mrb[0].mxu0
      %v2366 = vadd.f32 0.0, %v2365
      %v2367 = vpop.f32.mrb[0].mxu0
      %v2368 = vpop.f32.mrb[0].mxu0
      %v2369 = vadd.f32 0.0, %v2368
      %v2370 = vpop.f32.mrb[0].mxu0
      %2371 = vmatprep.mubr.bf16.mxu0 0
      %2372 = vmatmul.mubr.bf16.gmra.mrb[0].mxu0 %v2313
      %v2373 = vpop.f32.mrb[0].mxu0
      %v2374 = vadd.f32 0.0, %v2373
      %v2375 = vpop.f32.mrb[0].mxu0
      %v2376 = vpop.f32.mrb[0].mxu0
      %v2377 = vadd.f32 0.0, %v2376
      %v2378 = vpop.f32.mrb[0].mxu0
      %2379 = vdwg.mxu0
      %v2380 = vpack.c.bf16 %v2353, %v2350
      %v2381 = vpack.c.bf16 %v2361, %v2358
      %v2382 = vpack.c.bf16 %v2369, %v2366
      %v2383 = vpack.c.bf16 %v2377, %v2374
      %s2384 = smul.addr %s2259, 4
      %s2385 = scalar_lea.vmem %s23, %s2384
      %v2386 = vld [vmem:[%s2385] sm:$0xf]
      %v2388 = vsel %vm1300, %v2380, 0
      %v2391 = vsel %vm1300, %v2381, 0
      %v2394 = vsel %vm1300, %v2382, 0
      %v2397 = vsel %vm1300, %v2383, 0
      %v2400 = vsel %vm1313, %v2386, 0
      %2402 = vmatprep.subr.bf16.mxu0 0
      %2403 = vmatpush1.bf16.msra.mxu0 %v2400
      %2404 = vmatprep.subr.bf16.mxu0 0
      %2405 = vmatpush1.bf16.msra.mxu0 0
      %2406 = vmatprep.subr.bf16.mxu0 0
      %2407 = vmatpush1.bf16.msra.mxu0 0
      %2408 = vmatprep.subr.bf16.mxu0 0
      %2409 = vmatpush1.bf16.msra.mxu0 0
      %2410 = vmatprep.subr.bf16.mxu0 0
      %2411 = vmatpush1.bf16.msra.mxu0 0
      %2412 = vmatprep.subr.bf16.mxu0 0
      %2413 = vmatpush1.bf16.msra.mxu0 0
      %2414 = vmatprep.subr.bf16.mxu0 0
      %2415 = vmatpush1.bf16.msra.mxu0 0
      %2416 = vmatprep.subr.bf16.mxu0 0
      %2417 = vmatpush1.bf16.msra.mxu0 0
      %2418 = vmatprep.subr.bf16.mxu0 0
      %2419 = vmatpush1.bf16.msra.mxu0 0
      %2420 = vmatprep.subr.bf16.mxu0 0
      %2421 = vmatpush1.bf16.msra.mxu0 0
      %2422 = vmatprep.subr.bf16.mxu0 0
      %2423 = vmatpush1.bf16.msra.mxu0 0
      %2424 = vmatprep.subr.bf16.mxu0 0
      %2425 = vmatpush1.bf16.msra.mxu0 0
      %2426 = vmatprep.subr.bf16.mxu0 0
      %2427 = vmatpush1.bf16.msra.mxu0 0
      %2428 = vmatprep.subr.bf16.mxu0 0
      %2429 = vmatpush1.bf16.msra.mxu0 0
      %2430 = vmatprep.subr.bf16.mxu0 0
      %2431 = vmatpush1.bf16.msra.mxu0 0
      %2432 = vmatprep.subr.bf16.mxu0 0
      %2433 = vmatpush1.bf16.msra.mxu0 0
      %2434 = vmatprep.mubr.bf16.mxu0 0
      %2435 = vmatmul.mubr.bf16.gmra.mrb[0].mxu0 %v2388
      %v2436 = vpop.f32.mrb[0].mxu0
      %v2437 = vadd.f32 0.0, %v2436
      %v2438 = vpop.f32.mrb[0].mxu0
      %v2439 = vpop.f32.mrb[0].mxu0
      %v2440 = vadd.f32 0.0, %v2439
      %v2441 = vpop.f32.mrb[0].mxu0
      %2442 = vmatprep.mubr.bf16.mxu0 0
      %2443 = vmatmul.mubr.bf16.gmra.mrb[0].mxu0 %v2391
      %v2444 = vpop.f32.mrb[0].mxu0
      %v2445 = vadd.f32 0.0, %v2444
      %v2446 = vpop.f32.mrb[0].mxu0
      %v2447 = vpop.f32.mrb[0].mxu0
      %v2448 = vadd.f32 0.0, %v2447
      %v2449 = vpop.f32.mrb[0].mxu0
      %2450 = vmatprep.mubr.bf16.mxu0 0
      %2451 = vmatmul.mubr.bf16.gmra.mrb[0].mxu0 %v2394
      %v2452 = vpop.f32.mrb[0].mxu0
      %v2453 = vadd.f32 0.0, %v2452
      %v2454 = vpop.f32.mrb[0].mxu0
      %v2455 = vpop.f32.mrb[0].mxu0
      %v2456 = vadd.f32 0.0, %v2455
      %v2457 = vpop.f32.mrb[0].mxu0
      %2458 = vmatprep.mubr.bf16.mxu0 0
      %2459 = vmatmul.mubr.bf16.gmra.mrb[0].mxu0 %v2397
      %v2460 = vpop.f32.mrb[0].mxu0
      %v2461 = vadd.f32 0.0, %v2460
      %v2462 = vpop.f32.mrb[0].mxu0
      %v2463 = vpop.f32.mrb[0].mxu0
      %v2464 = vadd.f32 0.0, %v2463
      %v2465 = vpop.f32.mrb[0].mxu0
      %2466 = vdwg.mxu0
      %v2467 = vadd.f32 %v2264, %v2437
      %v2468 = vadd.f32 %v2265, %v2440
      %v2469 = vadd.f32 %v2266, %v2445
      %v2470 = vadd.f32 %v2267, %v2448
      %v2471 = vadd.f32 %v2268, %v2453
      %v2472 = vadd.f32 %v2269, %v2456
      %v2473 = vadd.f32 %v2270, %v2461
      %v2474 = vadd.f32 %v2271, %v2464
    $region331: #{forward.1} parent=1 // loop_footer
      %s2263 = sadd.s32 1, %s2259
    $region332: #{forward.1} parent=1 // loop_footer_branch
      %2258 = sbr.rel target = $region328
    $region333: #{forward.1} parent=1 // loop_exit
      _
    %v2475 = vld [vmem:[#allocation8] sm:$0x1]
    %v2477 = vlaneseq
    %v2478 = vshrl.u32 %v2477, 7
    %v2479 = vsub.s32 0, %v2478
    %v2480 = vrot.slane %v2475, %v2479
    %v2482 = vadd.f32 %v2264, %v2480
    %v2483 = vadd.f32 %v2265, %v2480
    %v2484 = vadd.f32 %v2266, %v2480
    %v2485 = vadd.f32 %v2267, %v2480
    %v2486 = vadd.f32 %v2268, %v2480
    %v2487 = vadd.f32 %v2269, %v2480
    %v2488 = vadd.f32 %v2270, %v2480
    %v2489 = vadd.f32 %v2271, %v2480
    %v2490 = vmax.f32 %v2482, 0.0
    %v2491 = vmax.f32 %v2483, 0.0
    %v2492 = vmax.f32 %v2484, 0.0
    %v2493 = vmax.f32 %v2485, 0.0
    %v2494 = vmax.f32 %v2486, 0.0
    %v2495 = vmax.f32 %v2487, 0.0
    %v2496 = vmax.f32 %v2488, 0.0
    %v2497 = vmax.f32 %v2489, 0.0
    %v2498 = vpack.c.bf16 %v2491, %v2490
    %v2499 = vpack.c.bf16 %v2493, %v2492
    %v2500 = vpack.c.bf16 %v2495, %v2494
    %v2501 = vpack.c.bf16 %v2497, %v2496
    %v2502 = vld [vmem:[%s27] sm:$0xf]
    %v2503 = vld [vmem:[%s27 + $0x4] sm:$0xf]
    %v2504 = vld [vmem:[%s27 + $0x8] sm:$0xf]
    %v2505 = vld [vmem:[%s27 + $0xc] sm:$0xf]
    %v2506 = vld [vmem:[%s27 + $0x10] sm:$0xf]
    %v2507 = vld [vmem:[%s27 + $0x14] sm:$0xf]
    %v2508 = vld [vmem:[%s27 + $0x18] sm:$0xf]
    %v2509 = vld [vmem:[%s27 + $0x1c] sm:$0xf]
    %v2518 = vunpack.c.l.b16 %v2502
    %v2519 = vunpack.c.l.b16 %v2503
    %v2520 = vunpack.c.l.b16 %v2504
    %v2521 = vunpack.c.l.b16 %v2505
    %v2522 = vunpack.c.l.b16 %v2506
    %v2523 = vunpack.c.l.b16 %v2507
    %v2524 = vunpack.c.l.b16 %v2508
    %v2525 = vunpack.c.l.b16 %v2509
    %v2526 = vpack.c.b16 %v2519, %v2518
    %v2527 = vpack.c.b16 %v2521, %v2520
    %v2528 = vpack.c.b16 %v2523, %v2522
    %v2529 = vpack.c.b16 %v2525, %v2524
    %v2531 = vsel %vm1217, %v2526, 0
    %v2534 = vsel %vm1217, %v2527, 0
    %v2537 = vsel %vm1217, %v2528, 0
    %v2540 = vsel %vm1217, %v2529, 0
    %2542 = vmatprep.subr.bf16.mxu0 0
    %2543 = vmatpush1.bf16.msra.mxu0 %v2498
    %2544 = vmatprep.subr.bf16.mxu0 0
    %2545 = vmatpush1.bf16.msra.mxu0 %v2499
    %2546 = vmatprep.subr.bf16.mxu0 0
    %2547 = vmatpush1.bf16.msra.mxu0 %v2500
    %2548 = vmatprep.subr.bf16.mxu0 0
    %2549 = vmatpush1.bf16.msra.mxu0 %v2501
    %2550 = vmatprep.subr.bf16.mxu0 0
    %2551 = vmatpush1.bf16.msra.mxu0 0
    %2552 = vmatprep.subr.bf16.mxu0 0
    %2553 = vmatpush1.bf16.msra.mxu0 0
    %2554 = vmatprep.subr.bf16.mxu0 0
    %2555 = vmatpush1.bf16.msra.mxu0 0
    %2556 = vmatprep.subr.bf16.mxu0 0
    %2557 = vmatpush1.bf16.msra.mxu0 0
    %2558 = vmatprep.subr.bf16.mxu0 0
    %2559 = vmatpush1.bf16.msra.mxu0 0
    %2560 = vmatprep.subr.bf16.mxu0 0
    %2561 = vmatpush1.bf16.msra.mxu0 0
    %2562 = vmatprep.subr.bf16.mxu0 0
    %2563 = vmatpush1.bf16.msra.mxu0 0
    %2564 = vmatprep.subr.bf16.mxu0 0
    %2565 = vmatpush1.bf16.msra.mxu0 0
    %2566 = vmatprep.subr.bf16.mxu0 0
    %2567 = vmatpush1.bf16.msra.mxu0 0
    %2568 = vmatprep.subr.bf16.mxu0 0
    %2569 = vmatpush1.bf16.msra.mxu0 0
    %2570 = vmatprep.subr.bf16.mxu0 0
    %2571 = vmatpush1.bf16.msra.mxu0 0
    %2572 = vmatprep.subr.bf16.mxu0 0
    %2573 = vmatpush1.bf16.msra.mxu0 0
    %2574 = vmatprep.mubr.bf16.mxu0 0
    %2575 = vmatmul.mubr.bf16.gmra.mrb[0].mxu0 %v2531
    %v2576 = vpop.f32.mrb[0].mxu0
    %v2577 = vadd.f32 0.0, %v2576
    %v2578 = vpop.f32.mrb[0].mxu0
    %v2579 = vpop.f32.mrb[0].mxu0
    %v2580 = vadd.f32 0.0, %v2579
    %v2581 = vpop.f32.mrb[0].mxu0
    %2582 = vmatprep.mubr.bf16.mxu0 0
    %2583 = vmatmul.mubr.bf16.gmra.mrb[0].mxu0 %v2534
    %v2584 = vpop.f32.mrb[0].mxu0
    %v2585 = vadd.f32 0.0, %v2584
    %v2586 = vpop.f32.mrb[0].mxu0
    %v2587 = vpop.f32.mrb[0].mxu0
    %v2588 = vadd.f32 0.0, %v2587
    %v2589 = vpop.f32.mrb[0].mxu0
    %2590 = vmatprep.mubr.bf16.mxu0 0
    %2591 = vmatmul.mubr.bf16.gmra.mrb[0].mxu0 %v2537
    %v2592 = vpop.f32.mrb[0].mxu0
    %v2593 = vadd.f32 0.0, %v2592
    %v2594 = vpop.f32.mrb[0].mxu0
    %v2595 = vpop.f32.mrb[0].mxu0
    %v2596 = vadd.f32 0.0, %v2595
    %v2597 = vpop.f32.mrb[0].mxu0
    %2598 = vmatprep.mubr.bf16.mxu0 0
    %2599 = vmatmul.mubr.bf16.gmra.mrb[0].mxu0 %v2540
    %v2600 = vpop.f32.mrb[0].mxu0
    %v2601 = vadd.f32 0.0, %v2600
    %v2602 = vpop.f32.mrb[0].mxu0
    %v2603 = vpop.f32.mrb[0].mxu0
    %v2604 = vadd.f32 0.0, %v2603
    %v2605 = vpop.f32.mrb[0].mxu0
    %2606 = vdwg.mxu0
    %v2607 = vpack.c.bf16 %v2580, %v2577
    %v2608 = vpack.c.bf16 %v2588, %v2585
    %v2609 = vpack.c.bf16 %v2596, %v2593
    %v2610 = vpack.c.bf16 %v2604, %v2601
    %v2611 = vld [vmem:[%s29] sm:$0xf]
    %v2613 = vsel %vm1300, %v2607, 0
    %v2616 = vsel %vm1300, %v2608, 0
    %v2619 = vsel %vm1300, %v2609, 0
    %v2622 = vsel %vm1300, %v2610, 0
    %v2625 = vsel %vm1313, %v2611, 0
    %2627 = vmatprep.subr.bf16.mxu0 0
    %2628 = vmatpush1.bf16.msra.mxu0 %v2625
    %2629 = vmatprep.subr.bf16.mxu0 0
    %2630 = vmatpush1.bf16.msra.mxu0 0
    %2631 = vmatprep.subr.bf16.mxu0 0
    %2632 = vmatpush1.bf16.msra.mxu0 0
    %2633 = vmatprep.subr.bf16.mxu0 0
    %2634 = vmatpush1.bf16.msra.mxu0 0
    %2635 = vmatprep.subr.bf16.mxu0 0
    %2636 = vmatpush1.bf16.msra.mxu0 0
    %2637 = vmatprep.subr.bf16.mxu0 0
    %2638 = vmatpush1.bf16.msra.mxu0 0
    %2639 = vmatprep.subr.bf16.mxu0 0
    %2640 = vmatpush1.bf16.msra.mxu0 0
    %2641 = vmatprep.subr.bf16.mxu0 0
    %2642 = vmatpush1.bf16.msra.mxu0 0
    %2643 = vmatprep.subr.bf16.mxu0 0
    %2644 = vmatpush1.bf16.msra.mxu0 0
    %2645 = vmatprep.subr.bf16.mxu0 0
    %2646 = vmatpush1.bf16.msra.mxu0 0
    %2647 = vmatprep.subr.bf16.mxu0 0
    %2648 = vmatpush1.bf16.msra.mxu0 0
    %2649 = vmatprep.subr.bf16.mxu0 0
    %2650 = vmatpush1.bf16.msra.mxu0 0
    %2651 = vmatprep.subr.bf16.mxu0 0
    %2652 = vmatpush1.bf16.msra.mxu0 0
    %2653 = vmatprep.subr.bf16.mxu0 0
    %2654 = vmatpush1.bf16.msra.mxu0 0
    %2655 = vmatprep.subr.bf16.mxu0 0
    %2656 = vmatpush1.bf16.msra.mxu0 0
    %2657 = vmatprep.subr.bf16.mxu0 0
    %2658 = vmatpush1.bf16.msra.mxu0 0
    %2659 = vmatprep.mubr.bf16.mxu0 0
    %2660 = vmatmul.mubr.bf16.gmra.mrb[0].mxu0 %v2613
    %v2661 = vpop.f32.mrb[0].mxu0
    %v2662 = vadd.f32 0.0, %v2661
    %v2663 = vpop.f32.mrb[0].mxu0
    %v2664 = vpop.f32.mrb[0].mxu0
    %v2665 = vadd.f32 0.0, %v2664
    %v2666 = vpop.f32.mrb[0].mxu0
    %2667 = vmatprep.mubr.bf16.mxu0 0
    %2668 = vmatmul.mubr.bf16.gmra.mrb[0].mxu0 %v2616
    %v2669 = vpop.f32.mrb[0].mxu0
    %v2670 = vadd.f32 0.0, %v2669
    %v2671 = vpop.f32.mrb[0].mxu0
    %v2672 = vpop.f32.mrb[0].mxu0
    %v2673 = vadd.f32 0.0, %v2672
    %v2674 = vpop.f32.mrb[0].mxu0
    %2675 = vmatprep.mubr.bf16.mxu0 0
    %2676 = vmatmul.mubr.bf16.gmra.mrb[0].mxu0 %v2619
    %v2677 = vpop.f32.mrb[0].mxu0
    %v2678 = vadd.f32 0.0, %v2677
    %v2679 = vpop.f32.mrb[0].mxu0
    %v2680 = vpop.f32.mrb[0].mxu0
    %v2681 = vadd.f32 0.0, %v2680
    %v2682 = vpop.f32.mrb[0].mxu0
    %2683 = vmatprep.mubr.bf16.mxu0 0
    %2684 = vmatmul.mubr.bf16.gmra.mrb[0].mxu0 %v2622
    %v2685 = vpop.f32.mrb[0].mxu0
    %v2686 = vadd.f32 0.0, %v2685
    %v2687 = vpop.f32.mrb[0].mxu0
    %v2688 = vpop.f32.mrb[0].mxu0
    %v2689 = vadd.f32 0.0, %v2688
    %v2690 = vpop.f32.mrb[0].mxu0
    %2691 = vdwg.mxu0
    loop: start=1, step=1, limit=9
    $region334: #{forward.1} parent=1 // loop_pre_header
      _
    $region335: #{forward.1} parent=1 // loop_header
      %s2693 = sphi 1, %s2697
      %p2694 = scmp.ge.s32.totalorder %s2693, 9
      %v2698 = vphi %v2662, %v2901
      %v2699 = vphi %v2665, %v2902
      %v2700 = vphi %v2670, %v2903
      %v2701 = vphi %v2673, %v2904
      %v2702 = vphi %v2678, %v2905
      %v2703 = vphi %v2681, %v2906
      %v2704 = vphi %v2686, %v2907
      %v2705 = vphi %v2689, %v2908
    $region336: #{forward.1} parent=1 // loop_header_branch
      %2696 = sbr.rel (%p2694) target = $region340
    $region337: #{forward.1} parent=1 // loop_body
      %s2706 = smul.u32 %s2693, 8
      %s2707 = smul.addr %s2706, 4
      %s2708 = scalar_lea.vmem %s27, %s2707
      %v2709 = vld [vmem:[%s2708] sm:$0xf]
      %v2710 = vld [vmem:[%s2708 + $0x4] sm:$0xf]
      %v2711 = vld [vmem:[%s2708 + $0x8] sm:$0xf]
      %v2712 = vld [vmem:[%s2708 + $0xc] sm:$0xf]
      %v2713 = vld [vmem:[%s2708 + $0x10] sm:$0xf]
      %v2714 = vld [vmem:[%s2708 + $0x14] sm:$0xf]
      %v2715 = vld [vmem:[%s2708 + $0x18] sm:$0xf]
      %v2716 = vld [vmem:[%s2708 + $0x1c] sm:$0xf]
      %v2725 = vunpack.c.l.b16 %v2709
      %v2726 = vunpack.c.l.b16 %v2710
      %v2727 = vunpack.c.l.b16 %v2711
      %v2728 = vunpack.c.l.b16 %v2712
      %v2729 = vunpack.c.l.b16 %v2713
      %v2730 = vunpack.c.l.b16 %v2714
      %v2731 = vunpack.c.l.b16 %v2715
      %v2732 = vunpack.c.l.b16 %v2716
      %v2733 = vpack.c.b16 %v2726, %v2725
      %v2734 = vpack.c.b16 %v2728, %v2727
      %v2735 = vpack.c.b16 %v2730, %v2729
      %v2736 = vpack.c.b16 %v2732, %v2731
      %v2738 = vsel %vm1217, %v2733, 0
      %v2741 = vsel %vm1217, %v2734, 0
      %v2744 = vsel %vm1217, %v2735, 0
      %v2747 = vsel %vm1217, %v2736, 0
      %2749 = vmatprep.subr.bf16.mxu0 0
      %2750 = vmatpush1.bf16.msra.mxu0 %v2498
      %2751 = vmatprep.subr.bf16.mxu0 0
      %2752 = vmatpush1.bf16.msra.mxu0 %v2499
      %2753 = vmatprep.subr.bf16.mxu0 0
      %2754 = vmatpush1.bf16.msra.mxu0 %v2500
      %2755 = vmatprep.subr.bf16.mxu0 0
      %2756 = vmatpush1.bf16.msra.mxu0 %v2501
      %2757 = vmatprep.subr.bf16.mxu0 0
      %2758 = vmatpush1.bf16.msra.mxu0 0
      %2759 = vmatprep.subr.bf16.mxu0 0
      %2760 = vmatpush1.bf16.msra.mxu0 0
      %2761 = vmatprep.subr.bf16.mxu0 0
      %2762 = vmatpush1.bf16.msra.mxu0 0
      %2763 = vmatprep.subr.bf16.mxu0 0
      %2764 = vmatpush1.bf16.msra.mxu0 0
      %2765 = vmatprep.subr.bf16.mxu0 0
      %2766 = vmatpush1.bf16.msra.mxu0 0
      %2767 = vmatprep.subr.bf16.mxu0 0
      %2768 = vmatpush1.bf16.msra.mxu0 0
      %2769 = vmatprep.subr.bf16.mxu0 0
      %2770 = vmatpush1.bf16.msra.mxu0 0
      %2771 = vmatprep.subr.bf16.mxu0 0
      %2772 = vmatpush1.bf16.msra.mxu0 0
      %2773 = vmatprep.subr.bf16.mxu0 0
      %2774 = vmatpush1.bf16.msra.mxu0 0
      %2775 = vmatprep.subr.bf16.mxu0 0
      %2776 = vmatpush1.bf16.msra.mxu0 0
      %2777 = vmatprep.subr.bf16.mxu0 0
      %2778 = vmatpush1.bf16.msra.mxu0 0
      %2779 = vmatprep.subr.bf16.mxu0 0
      %2780 = vmatpush1.bf16.msra.mxu0 0
      %2781 = vmatprep.mubr.bf16.mxu0 0
      %2782 = vmatmul.mubr.bf16.gmra.mrb[0].mxu0 %v2738
      %v2783 = vpop.f32.mrb[0].mxu0
      %v2784 = vadd.f32 0.0, %v2783
      %v2785 = vpop.f32.mrb[0].mxu0
      %v2786 = vpop.f32.mrb[0].mxu0
      %v2787 = vadd.f32 0.0, %v2786
      %v2788 = vpop.f32.mrb[0].mxu0
      %2789 = vmatprep.mubr.bf16.mxu0 0
      %2790 = vmatmul.mubr.bf16.gmra.mrb[0].mxu0 %v2741
      %v2791 = vpop.f32.mrb[0].mxu0
      %v2792 = vadd.f32 0.0, %v2791
      %v2793 = vpop.f32.mrb[0].mxu0
      %v2794 = vpop.f32.mrb[0].mxu0
      %v2795 = vadd.f32 0.0, %v2794
      %v2796 = vpop.f32.mrb[0].mxu0
      %2797 = vmatprep.mubr.bf16.mxu0 0
      %2798 = vmatmul.mubr.bf16.gmra.mrb[0].mxu0 %v2744
      %v2799 = vpop.f32.mrb[0].mxu0
      %v2800 = vadd.f32 0.0, %v2799
      %v2801 = vpop.f32.mrb[0].mxu0
      %v2802 = vpop.f32.mrb[0].mxu0
      %v2803 = vadd.f32 0.0, %v2802
      %v2804 = vpop.f32.mrb[0].mxu0
      %2805 = vmatprep.mubr.bf16.mxu0 0
      %2806 = vmatmul.mubr.bf16.gmra.mrb[0].mxu0 %v2747
      %v2807 = vpop.f32.mrb[0].mxu0
      %v2808 = vadd.f32 0.0, %v2807
      %v2809 = vpop.f32.mrb[0].mxu0
      %v2810 = vpop.f32.mrb[0].mxu0
      %v2811 = vadd.f32 0.0, %v2810
      %v2812 = vpop.f32.mrb[0].mxu0
      %2813 = vdwg.mxu0
      %v2814 = vpack.c.bf16 %v2787, %v2784
      %v2815 = vpack.c.bf16 %v2795, %v2792
      %v2816 = vpack.c.bf16 %v2803, %v2800
      %v2817 = vpack.c.bf16 %v2811, %v2808
      %s2818 = smul.addr %s2693, 4
      %s2819 = scalar_lea.vmem %s29, %s2818
      %v2820 = vld [vmem:[%s2819] sm:$0xf]
      %v2822 = vsel %vm1300, %v2814, 0
      %v2825 = vsel %vm1300, %v2815, 0
      %v2828 = vsel %vm1300, %v2816, 0
      %v2831 = vsel %vm1300, %v2817, 0
      %v2834 = vsel %vm1313, %v2820, 0
      %2836 = vmatprep.subr.bf16.mxu0 0
      %2837 = vmatpush1.bf16.msra.mxu0 %v2834
      %2838 = vmatprep.subr.bf16.mxu0 0
      %2839 = vmatpush1.bf16.msra.mxu0 0
      %2840 = vmatprep.subr.bf16.mxu0 0
      %2841 = vmatpush1.bf16.msra.mxu0 0
      %2842 = vmatprep.subr.bf16.mxu0 0
      %2843 = vmatpush1.bf16.msra.mxu0 0
      %2844 = vmatprep.subr.bf16.mxu0 0
      %2845 = vmatpush1.bf16.msra.mxu0 0
      %2846 = vmatprep.subr.bf16.mxu0 0
      %2847 = vmatpush1.bf16.msra.mxu0 0
      %2848 = vmatprep.subr.bf16.mxu0 0
      %2849 = vmatpush1.bf16.msra.mxu0 0
      %2850 = vmatprep.subr.bf16.mxu0 0
      %2851 = vmatpush1.bf16.msra.mxu0 0
      %2852 = vmatprep.subr.bf16.mxu0 0
      %2853 = vmatpush1.bf16.msra.mxu0 0
      %2854 = vmatprep.subr.bf16.mxu0 0
      %2855 = vmatpush1.bf16.msra.mxu0 0
      %2856 = vmatprep.subr.bf16.mxu0 0
      %2857 = vmatpush1.bf16.msra.mxu0 0
      %2858 = vmatprep.subr.bf16.mxu0 0
      %2859 = vmatpush1.bf16.msra.mxu0 0
      %2860 = vmatprep.subr.bf16.mxu0 0
      %2861 = vmatpush1.bf16.msra.mxu0 0
      %2862 = vmatprep.subr.bf16.mxu0 0
      %2863 = vmatpush1.bf16.msra.mxu0 0
      %2864 = vmatprep.subr.bf16.mxu0 0
      %2865 = vmatpush1.bf16.msra.mxu0 0
      %2866 = vmatprep.subr.bf16.mxu0 0
      %2867 = vmatpush1.bf16.msra.mxu0 0
      %2868 = vmatprep.mubr.bf16.mxu0 0
      %2869 = vmatmul.mubr.bf16.gmra.mrb[0].mxu0 %v2822
      %v2870 = vpop.f32.mrb[0].mxu0
      %v2871 = vadd.f32 0.0, %v2870
      %v2872 = vpop.f32.mrb[0].mxu0
      %v2873 = vpop.f32.mrb[0].mxu0
      %v2874 = vadd.f32 0.0, %v2873
      %v2875 = vpop.f32.mrb[0].mxu0
      %2876 = vmatprep.mubr.bf16.mxu0 0
      %2877 = vmatmul.mubr.bf16.gmra.mrb[0].mxu0 %v2825
      %v2878 = vpop.f32.mrb[0].mxu0
      %v2879 = vadd.f32 0.0, %v2878
      %v2880 = vpop.f32.mrb[0].mxu0
      %v2881 = vpop.f32.mrb[0].mxu0
      %v2882 = vadd.f32 0.0, %v2881
      %v2883 = vpop.f32.mrb[0].mxu0
      %2884 = vmatprep.mubr.bf16.mxu0 0
      %2885 = vmatmul.mubr.bf16.gmra.mrb[0].mxu0 %v2828
      %v2886 = vpop.f32.mrb[0].mxu0
      %v2887 = vadd.f32 0.0, %v2886
      %v2888 = vpop.f32.mrb[0].mxu0
      %v2889 = vpop.f32.mrb[0].mxu0
      %v2890 = vadd.f32 0.0, %v2889
      %v2891 = vpop.f32.mrb[0].mxu0
      %2892 = vmatprep.mubr.bf16.mxu0 0
      %2893 = vmatmul.mubr.bf16.gmra.mrb[0].mxu0 %v2831
      %v2894 = vpop.f32.mrb[0].mxu0
      %v2895 = vadd.f32 0.0, %v2894
      %v2896 = vpop.f32.mrb[0].mxu0
      %v2897 = vpop.f32.mrb[0].mxu0
      %v2898 = vadd.f32 0.0, %v2897
      %v2899 = vpop.f32.mrb[0].mxu0
      %2900 = vdwg.mxu0
      %v2901 = vadd.f32 %v2698, %v2871
      %v2902 = vadd.f32 %v2699, %v2874
      %v2903 = vadd.f32 %v2700, %v2879
      %v2904 = vadd.f32 %v2701, %v2882
      %v2905 = vadd.f32 %v2702, %v2887
      %v2906 = vadd.f32 %v2703, %v2890
      %v2907 = vadd.f32 %v2704, %v2895
      %v2908 = vadd.f32 %v2705, %v2898
    $region338: #{forward.1} parent=1 // loop_footer
      %s2697 = sadd.s32 1, %s2693
    $region339: #{forward.1} parent=1 // loop_footer_branch
      %2692 = sbr.rel target = $region335
    $region340: #{forward.1} parent=1 // loop_exit
      _
    %v2909 = vld [vmem:[#allocation10] sm:$0x1]
    %v2911 = vlaneseq
    %v2912 = vshrl.u32 %v2911, 7
    %v2913 = vsub.s32 0, %v2912
    %v2914 = vrot.slane %v2909, %v2913
    %v2916 = vadd.f32 %v2698, %v2914
    %v2917 = vadd.f32 %v2699, %v2914
    %v2918 = vadd.f32 %v2700, %v2914
    %v2919 = vadd.f32 %v2701, %v2914
    %v2920 = vadd.f32 %v2702, %v2914
    %v2921 = vadd.f32 %v2703, %v2914
    %v2922 = vadd.f32 %v2704, %v2914
    %v2923 = vadd.f32 %v2705, %v2914
    %v2924 = vadd.f32 %v2916, %v2056
    %v2925 = vadd.f32 %v2917, %v2057
    %v2926 = vadd.f32 %v2918, %v2058
    %v2927 = vadd.f32 %v2919, %v2059
    %v2928 = vadd.f32 %v2920, %v2060
    %v2929 = vadd.f32 %v2921, %v2061
    %v2930 = vadd.f32 %v2922, %v2062
    %v2931 = vadd.f32 %v2923, %v2063
    %v2932 = vmax.f32 %v2924, 0.0
    %v2933 = vmax.f32 %v2925, 0.0
    %v2934 = vmax.f32 %v2926, 0.0
    %v2935 = vmax.f32 %v2927, 0.0
    %v2936 = vmax.f32 %v2928, 0.0
    %v2937 = vmax.f32 %v2929, 0.0
    %v2938 = vmax.f32 %v2930, 0.0
    %v2939 = vmax.f32 %v2931, 0.0
    %v2940 = vpack.c.bf16 %v2933, %v2932
    %v2941 = vpack.c.bf16 %v2935, %v2934
    %v2942 = vpack.c.bf16 %v2937, %v2936
    %v2943 = vpack.c.bf16 %v2939, %v2938
    %v2944 = vld [vmem:[%s45] sm:$0xf]
    %v2945 = vld [vmem:[%s45 + $0x4] sm:$0xf]
    %v2948 = vunpack.c.l.b16 %v2944
    %v2949 = vunpack.c.l.b16 %v2945
    %v2950 = vpack.c.b16 %v2949, %v2948
    %v2952 = vsel %vm1217, %v2950, 0
    %2954 = vmatprep.subr.bf16.mxu0 0
    %2955 = vmatpush1.bf16.msra.mxu0 %v2940
    %2956 = vmatprep.subr.bf16.mxu0 0
    %2957 = vmatpush1.bf16.msra.mxu0 %v2941
    %2958 = vmatprep.subr.bf16.mxu0 0
    %2959 = vmatpush1.bf16.msra.mxu0 %v2942
    %2960 = vmatprep.subr.bf16.mxu0 0
    %2961 = vmatpush1.bf16.msra.mxu0 %v2943
    %2962 = vmatprep.subr.bf16.mxu0 0
    %2963 = vmatpush1.bf16.msra.mxu0 0
    %2964 = vmatprep.subr.bf16.mxu0 0
    %2965 = vmatpush1.bf16.msra.mxu0 0
    %2966 = vmatprep.subr.bf16.mxu0 0
    %2967 = vmatpush1.bf16.msra.mxu0 0
    %2968 = vmatprep.subr.bf16.mxu0 0
    %2969 = vmatpush1.bf16.msra.mxu0 0
    %2970 = vmatprep.subr.bf16.mxu0 0
    %2971 = vmatpush1.bf16.msra.mxu0 0
    %2972 = vmatprep.subr.bf16.mxu0 0
    %2973 = vmatpush1.bf16.msra.mxu0 0
    %2974 = vmatprep.subr.bf16.mxu0 0
    %2975 = vmatpush1.bf16.msra.mxu0 0
    %2976 = vmatprep.subr.bf16.mxu0 0
    %2977 = vmatpush1.bf16.msra.mxu0 0
    %2978 = vmatprep.subr.bf16.mxu0 0
    %2979 = vmatpush1.bf16.msra.mxu0 0
    %2980 = vmatprep.subr.bf16.mxu0 0
    %2981 = vmatpush1.bf16.msra.mxu0 0
    %2982 = vmatprep.subr.bf16.mxu0 0
    %2983 = vmatpush1.bf16.msra.mxu0 0
    %2984 = vmatprep.subr.bf16.mxu0 0
    %2985 = vmatpush1.bf16.msra.mxu0 0
    %2986 = vmatprep.mubr.bf16.mxu0 0
    %2987 = vmatmul.mubr.bf16.gmra.mrb[0].mxu0 %v2952
    %v2988 = vpop.f32.mrb[0].mxu0
    %v2989 = vadd.f32 0.0, %v2988
    %v2990 = vpop.f32.mrb[0].mxu0
    %v2991 = vpop.f32.mrb[0].mxu0
    %v2992 = vadd.f32 0.0, %v2991
    %v2993 = vpop.f32.mrb[0].mxu0
    %2994 = vdwg.mxu0
    %v2995 = vpack.c.bf16 %v2992, %v2989
    %v2996 = vld [vmem:[%s47] sm:$0xf]
    %v2997 = vld [vmem:[#allocation14] sm:$0x1]
    %v2999 = vlaneseq
    %v3000 = vshrl.u32 %v2999, 7
    %v3001 = vsub.s32 0, %v3000
    %v3002 = vrot.slane %v2997, %v3001
    %v3005 = vsel %vm1300, %v2995, 0
    %v3008 = vsel %vm1313, %v2996, 0
    %3010 = vmatprep.subr.bf16.mxu0 0
    %3011 = vmatpush1.bf16.msra.mxu0 %v3008
    %3012 = vmatprep.subr.bf16.mxu0 0
    %3013 = vmatpush1.bf16.msra.mxu0 0
    %3014 = vmatprep.subr.bf16.mxu0 0
    %3015 = vmatpush1.bf16.msra.mxu0 0
    %3016 = vmatprep.subr.bf16.mxu0 0
    %3017 = vmatpush1.bf16.msra.mxu0 0
    %3018 = vmatprep.subr.bf16.mxu0 0
    %3019 = vmatpush1.bf16.msra.mxu0 0
    %3020 = vmatprep.subr.bf16.mxu0 0
    %3021 = vmatpush1.bf16.msra.mxu0 0
    %3022 = vmatprep.subr.bf16.mxu0 0
    %3023 = vmatpush1.bf16.msra.mxu0 0
    %3024 = vmatprep.subr.bf16.mxu0 0
    %3025 = vmatpush1.bf16.msra.mxu0 0
    %3026 = vmatprep.subr.bf16.mxu0 0
    %3027 = vmatpush1.bf16.msra.mxu0 0
    %3028 = vmatprep.subr.bf16.mxu0 0
    %3029 = vmatpush1.bf16.msra.mxu0 0
    %3030 = vmatprep.subr.bf16.mxu0 0
    %3031 = vmatpush1.bf16.msra.mxu0 0
    %3032 = vmatprep.subr.bf16.mxu0 0
    %3033 = vmatpush1.bf16.msra.mxu0 0
    %3034 = vmatprep.subr.bf16.mxu0 0
    %3035 = vmatpush1.bf16.msra.mxu0 0
    %3036 = vmatprep.subr.bf16.mxu0 0
    %3037 = vmatpush1.bf16.msra.mxu0 0
    %3038 = vmatprep.subr.bf16.mxu0 0
    %3039 = vmatpush1.bf16.msra.mxu0 0
    %3040 = vmatprep.subr.bf16.mxu0 0
    %3041 = vmatpush1.bf16.msra.mxu0 0
    %3042 = vmatprep.mubr.bf16.mxu0 0
    %3043 = vmatmul.mubr.bf16.gmra.mrb[0].mxu0 %v3005
    %v3044 = vpop.f32.mrb[0].mxu0
    %v3045 = vadd.f32 %v3002, %v3044
    %v3046 = vpop.f32.mrb[0].mxu0
    %v3047 = vpop.f32.mrb[0].mxu0
    %v3048 = vadd.f32 %v3002, %v3047
    %v3049 = vpop.f32.mrb[0].mxu0
    %3050 = vdwg.mxu0
    %v3051 = vld [vmem:[%s33] sm:$0xf]
    %v3052 = vld [vmem:[%s33 + $0x4] sm:$0xf]
    %v3055 = vunpack.c.l.b16 %v3051
    %v3056 = vunpack.c.l.b16 %v3052
    %v3057 = vpack.c.b16 %v3056, %v3055
    %v3059 = vsel %vm1217, %v3057, 0
    %3061 = vmatprep.subr.bf16.mxu0 0
    %3062 = vmatpush1.bf16.msra.mxu0 %v2940
    %3063 = vmatprep.subr.bf16.mxu0 0
    %3064 = vmatpush1.bf16.msra.mxu0 %v2941
    %3065 = vmatprep.subr.bf16.mxu0 0
    %3066 = vmatpush1.bf16.msra.mxu0 %v2942
    %3067 = vmatprep.subr.bf16.mxu0 0
    %3068 = vmatpush1.bf16.msra.mxu0 %v2943
    %3069 = vmatprep.subr.bf16.mxu0 0
    %3070 = vmatpush1.bf16.msra.mxu0 0
    %3071 = vmatprep.subr.bf16.mxu0 0
    %3072 = vmatpush1.bf16.msra.mxu0 0
    %3073 = vmatprep.subr.bf16.mxu0 0
    %3074 = vmatpush1.bf16.msra.mxu0 0
    %3075 = vmatprep.subr.bf16.mxu0 0
    %3076 = vmatpush1.bf16.msra.mxu0 0
    %3077 = vmatprep.subr.bf16.mxu0 0
    %3078 = vmatpush1.bf16.msra.mxu0 0
    %3079 = vmatprep.subr.bf16.mxu0 0
    %3080 = vmatpush1.bf16.msra.mxu0 0
    %3081 = vmatprep.subr.bf16.mxu0 0
    %3082 = vmatpush1.bf16.msra.mxu0 0
    %3083 = vmatprep.subr.bf16.mxu0 0
    %3084 = vmatpush1.bf16.msra.mxu0 0
    %3085 = vmatprep.subr.bf16.mxu0 0
    %3086 = vmatpush1.bf16.msra.mxu0 0
    %3087 = vmatprep.subr.bf16.mxu0 0
    %3088 = vmatpush1.bf16.msra.mxu0 0
    %3089 = vmatprep.subr.bf16.mxu0 0
    %3090 = vmatpush1.bf16.msra.mxu0 0
    %3091 = vmatprep.subr.bf16.mxu0 0
    %3092 = vmatpush1.bf16.msra.mxu0 0
    %3093 = vmatprep.mubr.bf16.mxu0 0
    %3094 = vmatmul.mubr.bf16.gmra.mrb[0].mxu0 %v3059
    %v3095 = vpop.f32.mrb[0].mxu0
    %v3096 = vadd.f32 0.0, %v3095
    %v3097 = vpop.f32.mrb[0].mxu0
    %v3098 = vpop.f32.mrb[0].mxu0
    %v3099 = vadd.f32 0.0, %v3098
    %v3100 = vpop.f32.mrb[0].mxu0
    %3101 = vdwg.mxu0
    %v3102 = vpack.c.bf16 %v3099, %v3096
    %v3103 = vld [vmem:[%s35] sm:$0xf]
    %v3105 = vsel %vm1300, %v3102, 0
    %v3108 = vsel %vm1313, %v3103, 0
    %3110 = vmatprep.subr.bf16.mxu0 0
    %3111 = vmatpush1.bf16.msra.mxu0 %v3108
    %3112 = vmatprep.subr.bf16.mxu0 0
    %3113 = vmatpush1.bf16.msra.mxu0 0
    %3114 = vmatprep.subr.bf16.mxu0 0
    %3115 = vmatpush1.bf16.msra.mxu0 0
    %3116 = vmatprep.subr.bf16.mxu0 0
    %3117 = vmatpush1.bf16.msra.mxu0 0
    %3118 = vmatprep.subr.bf16.mxu0 0
    %3119 = vmatpush1.bf16.msra.mxu0 0
    %3120 = vmatprep.subr.bf16.mxu0 0
    %3121 = vmatpush1.bf16.msra.mxu0 0
    %3122 = vmatprep.subr.bf16.mxu0 0
    %3123 = vmatpush1.bf16.msra.mxu0 0
    %3124 = vmatprep.subr.bf16.mxu0 0
    %3125 = vmatpush1.bf16.msra.mxu0 0
    %3126 = vmatprep.subr.bf16.mxu0 0
    %3127 = vmatpush1.bf16.msra.mxu0 0
    %3128 = vmatprep.subr.bf16.mxu0 0
    %3129 = vmatpush1.bf16.msra.mxu0 0
    %3130 = vmatprep.subr.bf16.mxu0 0
    %3131 = vmatpush1.bf16.msra.mxu0 0
    %3132 = vmatprep.subr.bf16.mxu0 0
    %3133 = vmatpush1.bf16.msra.mxu0 0
    %3134 = vmatprep.subr.bf16.mxu0 0
    %3135 = vmatpush1.bf16.msra.mxu0 0
    %3136 = vmatprep.subr.bf16.mxu0 0
    %3137 = vmatpush1.bf16.msra.mxu0 0
    %3138 = vmatprep.subr.bf16.mxu0 0
    %3139 = vmatpush1.bf16.msra.mxu0 0
    %3140 = vmatprep.subr.bf16.mxu0 0
    %3141 = vmatpush1.bf16.msra.mxu0 0
    %3142 = vmatprep.mubr.bf16.mxu0 0
    %3143 = vmatmul.mubr.bf16.gmra.mrb[0].mxu0 %v3105
    %v3144 = vpop.f32.mrb[0].mxu0
    %v3145 = vadd.f32 0.0, %v3144
    %v3146 = vpop.f32.mrb[0].mxu0
    %v3147 = vpop.f32.mrb[0].mxu0
    %v3148 = vadd.f32 0.0, %v3147
    %v3149 = vpop.f32.mrb[0].mxu0
    %3150 = vdwg.mxu0
    loop: start=1, step=1, limit=9
    $region341: #{forward.1} parent=1 // loop_pre_header
      _
    $region342: #{forward.1} parent=1 // loop_header
      %s3152 = sphi 1, %s3156
      %p3153 = scmp.ge.s32.totalorder %s3152, 9
      %v3157 = vphi %v3145, %v3264
      %v3158 = vphi %v3148, %v3265
    $region343: #{forward.1} parent=1 // loop_header_branch
      %3155 = sbr.rel (%p3153) target = $region347
    $region344: #{forward.1} parent=1 // loop_body
      %s3159 = smul.u32 %s3152, 2
      %s3160 = smul.addr %s3159, 4
      %s3161 = scalar_lea.vmem %s33, %s3160
      %v3162 = vld [vmem:[%s3161] sm:$0xf]
      %v3163 = vld [vmem:[%s3161 + $0x4] sm:$0xf]
      %v3166 = vunpack.c.l.b16 %v3162
      %v3167 = vunpack.c.l.b16 %v3163
      %v3168 = vpack.c.b16 %v3167, %v3166
      %v3170 = vsel %vm1217, %v3168, 0
      %3172 = vmatprep.subr.bf16.mxu0 0
      %3173 = vmatpush1.bf16.msra.mxu0 %v2940
      %3174 = vmatprep.subr.bf16.mxu0 0
      %3175 = vmatpush1.bf16.msra.mxu0 %v2941
      %3176 = vmatprep.subr.bf16.mxu0 0
      %3177 = vmatpush1.bf16.msra.mxu0 %v2942
      %3178 = vmatprep.subr.bf16.mxu0 0
      %3179 = vmatpush1.bf16.msra.mxu0 %v2943
      %3180 = vmatprep.subr.bf16.mxu0 0
      %3181 = vmatpush1.bf16.msra.mxu0 0
      %3182 = vmatprep.subr.bf16.mxu0 0
      %3183 = vmatpush1.bf16.msra.mxu0 0
      %3184 = vmatprep.subr.bf16.mxu0 0
      %3185 = vmatpush1.bf16.msra.mxu0 0
      %3186 = vmatprep.subr.bf16.mxu0 0
      %3187 = vmatpush1.bf16.msra.mxu0 0
      %3188 = vmatprep.subr.bf16.mxu0 0
      %3189 = vmatpush1.bf16.msra.mxu0 0
      %3190 = vmatprep.subr.bf16.mxu0 0
      %3191 = vmatpush1.bf16.msra.mxu0 0
      %3192 = vmatprep.subr.bf16.mxu0 0
      %3193 = vmatpush1.bf16.msra.mxu0 0
      %3194 = vmatprep.subr.bf16.mxu0 0
      %3195 = vmatpush1.bf16.msra.mxu0 0
      %3196 = vmatprep.subr.bf16.mxu0 0
      %3197 = vmatpush1.bf16.msra.mxu0 0
      %3198 = vmatprep.subr.bf16.mxu0 0
      %3199 = vmatpush1.bf16.msra.mxu0 0
      %3200 = vmatprep.subr.bf16.mxu0 0
      %3201 = vmatpush1.bf16.msra.mxu0 0
      %3202 = vmatprep.subr.bf16.mxu0 0
      %3203 = vmatpush1.bf16.msra.mxu0 0
      %3204 = vmatprep.mubr.bf16.mxu0 0
      %3205 = vmatmul.mubr.bf16.gmra.mrb[0].mxu0 %v3170
      %v3206 = vpop.f32.mrb[0].mxu0
      %v3207 = vadd.f32 0.0, %v3206
      %v3208 = vpop.f32.mrb[0].mxu0
      %v3209 = vpop.f32.mrb[0].mxu0
      %v3210 = vadd.f32 0.0, %v3209
      %v3211 = vpop.f32.mrb[0].mxu0
      %3212 = vdwg.mxu0
      %v3213 = vpack.c.bf16 %v3210, %v3207
      %s3214 = smul.addr %s3152, 4
      %s3215 = scalar_lea.vmem %s35, %s3214
      %v3216 = vld [vmem:[%s3215] sm:$0xf]
      %v3218 = vsel %vm1300, %v3213, 0
      %v3221 = vsel %vm1313, %v3216, 0
      %3223 = vmatprep.subr.bf16.mxu0 0
      %3224 = vmatpush1.bf16.msra.mxu0 %v3221
      %3225 = vmatprep.subr.bf16.mxu0 0
      %3226 = vmatpush1.bf16.msra.mxu0 0
      %3227 = vmatprep.subr.bf16.mxu0 0
      %3228 = vmatpush1.bf16.msra.mxu0 0
      %3229 = vmatprep.subr.bf16.mxu0 0
      %3230 = vmatpush1.bf16.msra.mxu0 0
      %3231 = vmatprep.subr.bf16.mxu0 0
      %3232 = vmatpush1.bf16.msra.mxu0 0
      %3233 = vmatprep.subr.bf16.mxu0 0
      %3234 = vmatpush1.bf16.msra.mxu0 0
      %3235 = vmatprep.subr.bf16.mxu0 0
      %3236 = vmatpush1.bf16.msra.mxu0 0
      %3237 = vmatprep.subr.bf16.mxu0 0
      %3238 = vmatpush1.bf16.msra.mxu0 0
      %3239 = vmatprep.subr.bf16.mxu0 0
      %3240 = vmatpush1.bf16.msra.mxu0 0
      %3241 = vmatprep.subr.bf16.mxu0 0
      %3242 = vmatpush1.bf16.msra.mxu0 0
      %3243 = vmatprep.subr.bf16.mxu0 0
      %3244 = vmatpush1.bf16.msra.mxu0 0
      %3245 = vmatprep.subr.bf16.mxu0 0
      %3246 = vmatpush1.bf16.msra.mxu0 0
      %3247 = vmatprep.subr.bf16.mxu0 0
      %3248 = vmatpush1.bf16.msra.mxu0 0
      %3249 = vmatprep.subr.bf16.mxu0 0
      %3250 = vmatpush1.bf16.msra.mxu0 0
      %3251 = vmatprep.subr.bf16.mxu0 0
      %3252 = vmatpush1.bf16.msra.mxu0 0
      %3253 = vmatprep.subr.bf16.mxu0 0
      %3254 = vmatpush1.bf16.msra.mxu0 0
      %3255 = vmatprep.mubr.bf16.mxu0 0
      %3256 = vmatmul.mubr.bf16.gmra.mrb[0].mxu0 %v3218
      %v3257 = vpop.f32.mrb[0].mxu0
      %v3258 = vadd.f32 0.0, %v3257
      %v3259 = vpop.f32.mrb[0].mxu0
      %v3260 = vpop.f32.mrb[0].mxu0
      %v3261 = vadd.f32 0.0, %v3260
      %v3262 = vpop.f32.mrb[0].mxu0
      %3263 = vdwg.mxu0
      %v3264 = vadd.f32 %v3157, %v3258
      %v3265 = vadd.f32 %v3158, %v3261
    $region345: #{forward.1} parent=1 // loop_footer
      %s3156 = sadd.s32 1, %s3152
    $region346: #{forward.1} parent=1 // loop_footer_branch
      %3151 = sbr.rel target = $region342
    $region347: #{forward.1} parent=1 // loop_exit
      _
    %v3266 = vld [vmem:[#allocation11] sm:$0x1]
    %v3268 = vlaneseq
    %v3269 = vshrl.u32 %v3268, 7
    %v3270 = vsub.s32 0, %v3269
    %v3271 = vrot.slane %v3266, %v3270
    %v3273 = vadd.f32 %v3157, %v3271
    %v3274 = vadd.f32 %v3158, %v3271
    %v3275 = vmax.f32 %v3273, 0.0
    %v3276 = vmax.f32 %v3274, 0.0
    %v3277 = vpack.c.bf16 %v3276, %v3275
    %v3278 = vld [vmem:[%s39] sm:$0xf]
    %v3279 = vld [vmem:[%s39 + $0x4] sm:$0xf]
    %v3282 = vunpack.c.l.b16 %v3278
    %v3283 = vunpack.c.l.b16 %v3279
    %v3284 = vpack.c.b16 %v3283, %v3282
    %vm3285 = vcmask 130048
    %v3287 = vsel %vm3285, %v3284, 0
    %3289 = vmatprep.subr.bf16.mxu0 0
    %3290 = vmatpush1.bf16.msra.mxu0 %v3277
    %3291 = vmatprep.subr.bf16.mxu0 0
    %3292 = vmatpush1.bf16.msra.mxu0 0
    %3293 = vmatprep.subr.bf16.mxu0 0
    %3294 = vmatpush1.bf16.msra.mxu0 0
    %3295 = vmatprep.subr.bf16.mxu0 0
    %3296 = vmatpush1.bf16.msra.mxu0 0
    %3297 = vmatprep.subr.bf16.mxu0 0
    %3298 = vmatpush1.bf16.msra.mxu0 0
    %3299 = vmatprep.subr.bf16.mxu0 0
    %3300 = vmatpush1.bf16.msra.mxu0 0
    %3301 = vmatprep.subr.bf16.mxu0 0
    %3302 = vmatpush1.bf16.msra.mxu0 0
    %3303 = vmatprep.subr.bf16.mxu0 0
    %3304 = vmatpush1.bf16.msra.mxu0 0
    %3305 = vmatprep.subr.bf16.mxu0 0
    %3306 = vmatpush1.bf16.msra.mxu0 0
    %3307 = vmatprep.subr.bf16.mxu0 0
    %3308 = vmatpush1.bf16.msra.mxu0 0
    %3309 = vmatprep.subr.bf16.mxu0 0
    %3310 = vmatpush1.bf16.msra.mxu0 0
    %3311 = vmatprep.subr.bf16.mxu0 0
    %3312 = vmatpush1.bf16.msra.mxu0 0
    %3313 = vmatprep.subr.bf16.mxu0 0
    %3314 = vmatpush1.bf16.msra.mxu0 0
    %3315 = vmatprep.subr.bf16.mxu0 0
    %3316 = vmatpush1.bf16.msra.mxu0 0
    %3317 = vmatprep.subr.bf16.mxu0 0
    %3318 = vmatpush1.bf16.msra.mxu0 0
    %3319 = vmatprep.subr.bf16.mxu0 0
    %3320 = vmatpush1.bf16.msra.mxu0 0
    %3321 = vmatprep.mubr.bf16.mxu0 0
    %3322 = vmatmul.mubr.bf16.gmra.mrb[0].mxu0 %v3287
    %v3323 = vpop.f32.mrb[0].mxu0
    %v3324 = vadd.f32 0.0, %v3323
    %v3325 = vpop.f32.mrb[0].mxu0
    %v3326 = vpop.f32.mrb[0].mxu0
    %v3327 = vadd.f32 0.0, %v3326
    %v3328 = vpop.f32.mrb[0].mxu0
    %3329 = vdwg.mxu0
    %v3330 = vpack.c.bf16 %v3327, %v3324
    %v3331 = vld [vmem:[%s41] sm:$0xf]
    %v3332 = vld [vmem:[%s41 + $0x4] sm:$0xf]
    %v3335 = vunpack.c.l.b16 %v3331
    %v3336 = vunpack.c.l.b16 %v3332
    %v3337 = vpack.c.b16 %v3336, %v3335
    %v3340 = vsel %vm3285, %v3330, 0
    %3342 = vmatprep.subr.bf16.mxu0 0
    %3343 = vmatpush1.bf16.msra.mxu0 %v3337
    %3344 = vmatprep.subr.bf16.mxu0 0
    %3345 = vmatpush1.bf16.msra.mxu0 0
    %3346 = vmatprep.subr.bf16.mxu0 0
    %3347 = vmatpush1.bf16.msra.mxu0 0
    %3348 = vmatprep.subr.bf16.mxu0 0
    %3349 = vmatpush1.bf16.msra.mxu0 0
    %3350 = vmatprep.subr.bf16.mxu0 0
    %3351 = vmatpush1.bf16.msra.mxu0 0
    %3352 = vmatprep.subr.bf16.mxu0 0
    %3353 = vmatpush1.bf16.msra.mxu0 0
    %3354 = vmatprep.subr.bf16.mxu0 0
    %3355 = vmatpush1.bf16.msra.mxu0 0
    %3356 = vmatprep.subr.bf16.mxu0 0
    %3357 = vmatpush1.bf16.msra.mxu0 0
    %3358 = vmatprep.subr.bf16.mxu0 0
    %3359 = vmatpush1.bf16.msra.mxu0 0
    %3360 = vmatprep.subr.bf16.mxu0 0
    %3361 = vmatpush1.bf16.msra.mxu0 0
    %3362 = vmatprep.subr.bf16.mxu0 0
    %3363 = vmatpush1.bf16.msra.mxu0 0
    %3364 = vmatprep.subr.bf16.mxu0 0
    %3365 = vmatpush1.bf16.msra.mxu0 0
    %3366 = vmatprep.subr.bf16.mxu0 0
    %3367 = vmatpush1.bf16.msra.mxu0 0
    %3368 = vmatprep.subr.bf16.mxu0 0
    %3369 = vmatpush1.bf16.msra.mxu0 0
    %3370 = vmatprep.subr.bf16.mxu0 0
    %3371 = vmatpush1.bf16.msra.mxu0 0
    %3372 = vmatprep.subr.bf16.mxu0 0
    %3373 = vmatpush1.bf16.msra.mxu0 0
    %3374 = vmatprep.mubr.bf16.mxu0 0
    %3375 = vmatmul.mubr.bf16.gmra.mrb[0].mxu0 %v3340
    %v3376 = vpop.f32.mrb[0].mxu0
    %v3377 = vadd.f32 0.0, %v3376
    %v3378 = vpop.f32.mrb[0].mxu0
    %v3379 = vpop.f32.mrb[0].mxu0
    %v3380 = vadd.f32 0.0, %v3379
    %v3381 = vpop.f32.mrb[0].mxu0
    %3382 = vdwg.mxu0
    loop: start=1, step=1, limit=9
    $region348: #{forward.1} parent=1 // loop_pre_header
      _
    $region349: #{forward.1} parent=1 // loop_header
      %s3384 = sphi 1, %s3388
      %p3385 = scmp.ge.s32.totalorder %s3384, 9
      %v3389 = vphi %v3377, %v3500
      %v3390 = vphi %v3380, %v3501
    $region350: #{forward.1} parent=1 // loop_header_branch
      %3387 = sbr.rel (%p3385) target = $region354
    $region351: #{forward.1} parent=1 // loop_body
      %s3391 = smul.u32 %s3384, 2
      %s3392 = smul.addr %s3391, 4
      %s3393 = scalar_lea.vmem %s39, %s3392
      %v3394 = vld [vmem:[%s3393] sm:$0xf]
      %v3395 = vld [vmem:[%s3393 + $0x4] sm:$0xf]
      %v3398 = vunpack.c.l.b16 %v3394
      %v3399 = vunpack.c.l.b16 %v3395
      %v3400 = vpack.c.b16 %v3399, %v3398
      %v3402 = vsel %vm3285, %v3400, 0
      %3404 = vmatprep.subr.bf16.mxu0 0
      %3405 = vmatpush1.bf16.msra.mxu0 %v3277
      %3406 = vmatprep.subr.bf16.mxu0 0
      %3407 = vmatpush1.bf16.msra.mxu0 0
      %3408 = vmatprep.subr.bf16.mxu0 0
      %3409 = vmatpush1.bf16.msra.mxu0 0
      %3410 = vmatprep.subr.bf16.mxu0 0
      %3411 = vmatpush1.bf16.msra.mxu0 0
      %3412 = vmatprep.subr.bf16.mxu0 0
      %3413 = vmatpush1.bf16.msra.mxu0 0
      %3414 = vmatprep.subr.bf16.mxu0 0
      %3415 = vmatpush1.bf16.msra.mxu0 0
      %3416 = vmatprep.subr.bf16.mxu0 0
      %3417 = vmatpush1.bf16.msra.mxu0 0
      %3418 = vmatprep.subr.bf16.mxu0 0
      %3419 = vmatpush1.bf16.msra.mxu0 0
      %3420 = vmatprep.subr.bf16.mxu0 0
      %3421 = vmatpush1.bf16.msra.mxu0 0
      %3422 = vmatprep.subr.bf16.mxu0 0
      %3423 = vmatpush1.bf16.msra.mxu0 0
      %3424 = vmatprep.subr.bf16.mxu0 0
      %3425 = vmatpush1.bf16.msra.mxu0 0
      %3426 = vmatprep.subr.bf16.mxu0 0
      %3427 = vmatpush1.bf16.msra.mxu0 0
      %3428 = vmatprep.subr.bf16.mxu0 0
      %3429 = vmatpush1.bf16.msra.mxu0 0
      %3430 = vmatprep.subr.bf16.mxu0 0
      %3431 = vmatpush1.bf16.msra.mxu0 0
      %3432 = vmatprep.subr.bf16.mxu0 0
      %3433 = vmatpush1.bf16.msra.mxu0 0
      %3434 = vmatprep.subr.bf16.mxu0 0
      %3435 = vmatpush1.bf16.msra.mxu0 0
      %3436 = vmatprep.mubr.bf16.mxu0 0
      %3437 = vmatmul.mubr.bf16.gmra.mrb[0].mxu0 %v3402
      %v3438 = vpop.f32.mrb[0].mxu0
      %v3439 = vadd.f32 0.0, %v3438
      %v3440 = vpop.f32.mrb[0].mxu0
      %v3441 = vpop.f32.mrb[0].mxu0
      %v3442 = vadd.f32 0.0, %v3441
      %v3443 = vpop.f32.mrb[0].mxu0
      %3444 = vdwg.mxu0
      %v3445 = vpack.c.bf16 %v3442, %v3439
      %s3446 = smul.addr %s3391, 4
      %s3447 = scalar_lea.vmem %s41, %s3446
      %v3448 = vld [vmem:[%s3447] sm:$0xf]
      %v3449 = vld [vmem:[%s3447 + $0x4] sm:$0xf]
      %v3452 = vunpack.c.l.b16 %v3448
      %v3453 = vunpack.c.l.b16 %v3449
      %v3454 = vpack.c.b16 %v3453, %v3452
      %v3457 = vsel %vm3285, %v3445, 0
      %3459 = vmatprep.subr.bf16.mxu0 0
      %3460 = vmatpush1.bf16.msra.mxu0 %v3454
      %3461 = vmatprep.subr.bf16.mxu0 0
      %3462 = vmatpush1.bf16.msra.mxu0 0
      %3463 = vmatprep.subr.bf16.mxu0 0
      %3464 = vmatpush1.bf16.msra.mxu0 0
      %3465 = vmatprep.subr.bf16.mxu0 0
      %3466 = vmatpush1.bf16.msra.mxu0 0
      %3467 = vmatprep.subr.bf16.mxu0 0
      %3468 = vmatpush1.bf16.msra.mxu0 0
      %3469 = vmatprep.subr.bf16.mxu0 0
      %3470 = vmatpush1.bf16.msra.mxu0 0
      %3471 = vmatprep.subr.bf16.mxu0 0
      %3472 = vmatpush1.bf16.msra.mxu0 0
      %3473 = vmatprep.subr.bf16.mxu0 0
      %3474 = vmatpush1.bf16.msra.mxu0 0
      %3475 = vmatprep.subr.bf16.mxu0 0
      %3476 = vmatpush1.bf16.msra.mxu0 0
      %3477 = vmatprep.subr.bf16.mxu0 0
      %3478 = vmatpush1.bf16.msra.mxu0 0
      %3479 = vmatprep.subr.bf16.mxu0 0
      %3480 = vmatpush1.bf16.msra.mxu0 0
      %3481 = vmatprep.subr.bf16.mxu0 0
      %3482 = vmatpush1.bf16.msra.mxu0 0
      %3483 = vmatprep.subr.bf16.mxu0 0
      %3484 = vmatpush1.bf16.msra.mxu0 0
      %3485 = vmatprep.subr.bf16.mxu0 0
      %3486 = vmatpush1.bf16.msra.mxu0 0
      %3487 = vmatprep.subr.bf16.mxu0 0
      %3488 = vmatpush1.bf16.msra.mxu0 0
      %3489 = vmatprep.subr.bf16.mxu0 0
      %3490 = vmatpush1.bf16.msra.mxu0 0
      %3491 = vmatprep.mubr.bf16.mxu0 0
      %3492 = vmatmul.mubr.bf16.gmra.mrb[0].mxu0 %v3457
      %v3493 = vpop.f32.mrb[0].mxu0
      %v3494 = vadd.f32 0.0, %v3493
      %v3495 = vpop.f32.mrb[0].mxu0
      %v3496 = vpop.f32.mrb[0].mxu0
      %v3497 = vadd.f32 0.0, %v3496
      %v3498 = vpop.f32.mrb[0].mxu0
      %3499 = vdwg.mxu0
      %v3500 = vadd.f32 %v3389, %v3494
      %v3501 = vadd.f32 %v3390, %v3497
    $region352: #{forward.1} parent=1 // loop_footer
      %s3388 = sadd.s32 1, %s3384
    $region353: #{forward.1} parent=1 // loop_footer_branch
      %3383 = sbr.rel target = $region349
    $region354: #{forward.1} parent=1 // loop_exit
      _
    %v3502 = vld [vmem:[#allocation13] sm:$0x1]
    %v3504 = vlaneseq
    %v3505 = vshrl.u32 %v3504, 7
    %v3506 = vsub.s32 0, %v3505
    %v3507 = vrot.slane %v3502, %v3506
    %v3509 = vadd.f32 %v3389, %v3507
    %v3510 = vadd.f32 %v3390, %v3507
    %v3511 = vadd.f32 %v3509, %v3045
    %v3512 = vadd.f32 %v3510, %v3048
    %v3513 = vmax.f32 %v3511, 0.0
    %v3514 = vmax.f32 %v3512, 0.0
    %v3515 = vpack.c.bf16 %v3514, %v3513
    %v3516 = vld [vmem:[%s51] sm:$0xf]
    %v3517 = vld [vmem:[%s51 + $0x4] sm:$0xf]
    %v3520 = vunpack.c.l.b16 %v3516
    %v3521 = vunpack.c.l.b16 %v3517
    %v3522 = vpack.c.b16 %v3521, %v3520
    %v3524 = vsel %vm3285, %v3522, 0
    %3526 = vmatprep.subr.bf16.mxu0 0
    %3527 = vmatpush1.bf16.msra.mxu0 %v3515
    %3528 = vmatprep.subr.bf16.mxu0 0
    %3529 = vmatpush1.bf16.msra.mxu0 0
    %3530 = vmatprep.subr.bf16.mxu0 0
    %3531 = vmatpush1.bf16.msra.mxu0 0
    %3532 = vmatprep.subr.bf16.mxu0 0
    %3533 = vmatpush1.bf16.msra.mxu0 0
    %3534 = vmatprep.subr.bf16.mxu0 0
    %3535 = vmatpush1.bf16.msra.mxu0 0
    %3536 = vmatprep.subr.bf16.mxu0 0
    %3537 = vmatpush1.bf16.msra.mxu0 0
    %3538 = vmatprep.subr.bf16.mxu0 0
    %3539 = vmatpush1.bf16.msra.mxu0 0
    %3540 = vmatprep.subr.bf16.mxu0 0
    %3541 = vmatpush1.bf16.msra.mxu0 0
    %3542 = vmatprep.subr.bf16.mxu0 0
    %3543 = vmatpush1.bf16.msra.mxu0 0
    %3544 = vmatprep.subr.bf16.mxu0 0
    %3545 = vmatpush1.bf16.msra.mxu0 0
    %3546 = vmatprep.subr.bf16.mxu0 0
    %3547 = vmatpush1.bf16.msra.mxu0 0
    %3548 = vmatprep.subr.bf16.mxu0 0
    %3549 = vmatpush1.bf16.msra.mxu0 0
    %3550 = vmatprep.subr.bf16.mxu0 0
    %3551 = vmatpush1.bf16.msra.mxu0 0
    %3552 = vmatprep.subr.bf16.mxu0 0
    %3553 = vmatpush1.bf16.msra.mxu0 0
    %3554 = vmatprep.subr.bf16.mxu0 0
    %3555 = vmatpush1.bf16.msra.mxu0 0
    %3556 = vmatprep.subr.bf16.mxu0 0
    %3557 = vmatpush1.bf16.msra.mxu0 0
    %3558 = vmatprep.mubr.bf16.mxu0 0
    %3559 = vmatmul.mubr.bf16.gmra.mrb[0].mxu0 %v3524
    %v3560 = vpop.f32.mrb[0].mxu0
    %v3561 = vadd.f32 0.0, %v3560
    %v3562 = vpop.f32.mrb[0].mxu0
    %v3563 = vpop.f32.mrb[0].mxu0
    %v3564 = vadd.f32 0.0, %v3563
    %v3565 = vpop.f32.mrb[0].mxu0
    %3566 = vdwg.mxu0
    %v3567 = vpack.c.bf16 %v3564, %v3561
    %v3568 = vld [vmem:[%s53] sm:$0xf]
    %v3569 = vld [vmem:[%s53 + $0x4] sm:$0xf]
    %v3572 = vunpack.c.l.b16 %v3568
    %v3573 = vunpack.c.l.b16 %v3569
    %v3574 = vpack.c.b16 %v3573, %v3572
    %v3577 = vsel %vm3285, %v3567, 0
    %3579 = vmatprep.subr.bf16.mxu0 0
    %3580 = vmatpush1.bf16.msra.mxu0 %v3574
    %3581 = vmatprep.subr.bf16.mxu0 0
    %3582 = vmatpush1.bf16.msra.mxu0 0
    %3583 = vmatprep.subr.bf16.mxu0 0
    %3584 = vmatpush1.bf16.msra.mxu0 0
    %3585 = vmatprep.subr.bf16.mxu0 0
    %3586 = vmatpush1.bf16.msra.mxu0 0
    %3587 = vmatprep.subr.bf16.mxu0 0
    %3588 = vmatpush1.bf16.msra.mxu0 0
    %3589 = vmatprep.subr.bf16.mxu0 0
    %3590 = vmatpush1.bf16.msra.mxu0 0
    %3591 = vmatprep.subr.bf16.mxu0 0
    %3592 = vmatpush1.bf16.msra.mxu0 0
    %3593 = vmatprep.subr.bf16.mxu0 0
    %3594 = vmatpush1.bf16.msra.mxu0 0
    %3595 = vmatprep.subr.bf16.mxu0 0
    %3596 = vmatpush1.bf16.msra.mxu0 0
    %3597 = vmatprep.subr.bf16.mxu0 0
    %3598 = vmatpush1.bf16.msra.mxu0 0
    %3599 = vmatprep.subr.bf16.mxu0 0
    %3600 = vmatpush1.bf16.msra.mxu0 0
    %3601 = vmatprep.subr.bf16.mxu0 0
    %3602 = vmatpush1.bf16.msra.mxu0 0
    %3603 = vmatprep.subr.bf16.mxu0 0
    %3604 = vmatpush1.bf16.msra.mxu0 0
    %3605 = vmatprep.subr.bf16.mxu0 0
    %3606 = vmatpush1.bf16.msra.mxu0 0
    %3607 = vmatprep.subr.bf16.mxu0 0
    %3608 = vmatpush1.bf16.msra.mxu0 0
    %3609 = vmatprep.subr.bf16.mxu0 0
    %3610 = vmatpush1.bf16.msra.mxu0 0
    %3611 = vmatprep.mubr.bf16.mxu0 0
    %3612 = vmatmul.mubr.bf16.gmra.mrb[0].mxu0 %v3577
    %v3613 = vpop.f32.mrb[0].mxu0
    %v3614 = vadd.f32 0.0, %v3613
    %v3615 = vpop.f32.mrb[0].mxu0
    %v3616 = vpop.f32.mrb[0].mxu0
    %v3617 = vadd.f32 0.0, %v3616
    %v3618 = vpop.f32.mrb[0].mxu0
    %3619 = vdwg.mxu0
    loop: start=1, step=1, limit=9
    $region355: #{forward.1} parent=1 // loop_pre_header
      _
    $region356: #{forward.1} parent=1 // loop_header
      %s3621 = sphi 1, %s3625
      %p3622 = scmp.ge.s32.totalorder %s3621, 9
      %v3626 = vphi %v3614, %v3737
      %v3627 = vphi %v3617, %v3738
    $region357: #{forward.1} parent=1 // loop_header_branch
      %3624 = sbr.rel (%p3622) target = $region361
    $region358: #{forward.1} parent=1 // loop_body
      %s3628 = smul.u32 %s3621, 2
      %s3629 = smul.addr %s3628, 4
      %s3630 = scalar_lea.vmem %s51, %s3629
      %v3631 = vld [vmem:[%s3630] sm:$0xf]
      %v3632 = vld [vmem:[%s3630 + $0x4] sm:$0xf]
      %v3635 = vunpack.c.l.b16 %v3631
      %v3636 = vunpack.c.l.b16 %v3632
      %v3637 = vpack.c.b16 %v3636, %v3635
      %v3639 = vsel %vm3285, %v3637, 0
      %3641 = vmatprep.subr.bf16.mxu0 0
      %3642 = vmatpush1.bf16.msra.mxu0 %v3515
      %3643 = vmatprep.subr.bf16.mxu0 0
      %3644 = vmatpush1.bf16.msra.mxu0 0
      %3645 = vmatprep.subr.bf16.mxu0 0
      %3646 = vmatpush1.bf16.msra.mxu0 0
      %3647 = vmatprep.subr.bf16.mxu0 0
      %3648 = vmatpush1.bf16.msra.mxu0 0
      %3649 = vmatprep.subr.bf16.mxu0 0
      %3650 = vmatpush1.bf16.msra.mxu0 0
      %3651 = vmatprep.subr.bf16.mxu0 0
      %3652 = vmatpush1.bf16.msra.mxu0 0
      %3653 = vmatprep.subr.bf16.mxu0 0
      %3654 = vmatpush1.bf16.msra.mxu0 0
      %3655 = vmatprep.subr.bf16.mxu0 0
      %3656 = vmatpush1.bf16.msra.mxu0 0
      %3657 = vmatprep.subr.bf16.mxu0 0
      %3658 = vmatpush1.bf16.msra.mxu0 0
      %3659 = vmatprep.subr.bf16.mxu0 0
      %3660 = vmatpush1.bf16.msra.mxu0 0
      %3661 = vmatprep.subr.bf16.mxu0 0
      %3662 = vmatpush1.bf16.msra.mxu0 0
      %3663 = vmatprep.subr.bf16.mxu0 0
      %3664 = vmatpush1.bf16.msra.mxu0 0
      %3665 = vmatprep.subr.bf16.mxu0 0
      %3666 = vmatpush1.bf16.msra.mxu0 0
      %3667 = vmatprep.subr.bf16.mxu0 0
      %3668 = vmatpush1.bf16.msra.mxu0 0
      %3669 = vmatprep.subr.bf16.mxu0 0
      %3670 = vmatpush1.bf16.msra.mxu0 0
      %3671 = vmatprep.subr.bf16.mxu0 0
      %3672 = vmatpush1.bf16.msra.mxu0 0
      %3673 = vmatprep.mubr.bf16.mxu0 0
      %3674 = vmatmul.mubr.bf16.gmra.mrb[0].mxu0 %v3639
      %v3675 = vpop.f32.mrb[0].mxu0
      %v3676 = vadd.f32 0.0, %v3675
      %v3677 = vpop.f32.mrb[0].mxu0
      %v3678 = vpop.f32.mrb[0].mxu0
      %v3679 = vadd.f32 0.0, %v3678
      %v3680 = vpop.f32.mrb[0].mxu0
      %3681 = vdwg.mxu0
      %v3682 = vpack.c.bf16 %v3679, %v3676
      %s3683 = smul.addr %s3628, 4
      %s3684 = scalar_lea.vmem %s53, %s3683
      %v3685 = vld [vmem:[%s3684] sm:$0xf]
      %v3686 = vld [vmem:[%s3684 + $0x4] sm:$0xf]
      %v3689 = vunpack.c.l.b16 %v3685
      %v3690 = vunpack.c.l.b16 %v3686
      %v3691 = vpack.c.b16 %v3690, %v3689
      %v3694 = vsel %vm3285, %v3682, 0
      %3696 = vmatprep.subr.bf16.mxu0 0
      %3697 = vmatpush1.bf16.msra.mxu0 %v3691
      %3698 = vmatprep.subr.bf16.mxu0 0
      %3699 = vmatpush1.bf16.msra.mxu0 0
      %3700 = vmatprep.subr.bf16.mxu0 0
      %3701 = vmatpush1.bf16.msra.mxu0 0
      %3702 = vmatprep.subr.bf16.mxu0 0
      %3703 = vmatpush1.bf16.msra.mxu0 0
      %3704 = vmatprep.subr.bf16.mxu0 0
      %3705 = vmatpush1.bf16.msra.mxu0 0
      %3706 = vmatprep.subr.bf16.mxu0 0
      %3707 = vmatpush1.bf16.msra.mxu0 0
      %3708 = vmatprep.subr.bf16.mxu0 0
      %3709 = vmatpush1.bf16.msra.mxu0 0
      %3710 = vmatprep.subr.bf16.mxu0 0
      %3711 = vmatpush1.bf16.msra.mxu0 0
      %3712 = vmatprep.subr.bf16.mxu0 0
      %3713 = vmatpush1.bf16.msra.mxu0 0
      %3714 = vmatprep.subr.bf16.mxu0 0
      %3715 = vmatpush1.bf16.msra.mxu0 0
      %3716 = vmatprep.subr.bf16.mxu0 0
      %3717 = vmatpush1.bf16.msra.mxu0 0
      %3718 = vmatprep.subr.bf16.mxu0 0
      %3719 = vmatpush1.bf16.msra.mxu0 0
      %3720 = vmatprep.subr.bf16.mxu0 0
      %3721 = vmatpush1.bf16.msra.mxu0 0
      %3722 = vmatprep.subr.bf16.mxu0 0
      %3723 = vmatpush1.bf16.msra.mxu0 0
      %3724 = vmatprep.subr.bf16.mxu0 0
      %3725 = vmatpush1.bf16.msra.mxu0 0
      %3726 = vmatprep.subr.bf16.mxu0 0
      %3727 = vmatpush1.bf16.msra.mxu0 0
      %3728 = vmatprep.mubr.bf16.mxu0 0
      %3729 = vmatmul.mubr.bf16.gmra.mrb[0].mxu0 %v3694
      %v3730 = vpop.f32.mrb[0].mxu0
      %v3731 = vadd.f32 0.0, %v3730
      %v3732 = vpop.f32.mrb[0].mxu0
      %v3733 = vpop.f32.mrb[0].mxu0
      %v3734 = vadd.f32 0.0, %v3733
      %v3735 = vpop.f32.mrb[0].mxu0
      %3736 = vdwg.mxu0
      %v3737 = vadd.f32 %v3626, %v3731
      %v3738 = vadd.f32 %v3627, %v3734
    $region359: #{forward.1} parent=1 // loop_footer
      %s3625 = sadd.s32 1, %s3621
    $region360: #{forward.1} parent=1 // loop_footer_branch
      %3620 = sbr.rel target = $region356
    $region361: #{forward.1} parent=1 // loop_exit
      _
    %v3739 = vld [vmem:[%s55] sm:$0x1]
    %v3741 = vlaneseq
    %v3742 = vshrl.u32 %v3741, 7
    %v3743 = vsub.s32 0, %v3742
    %v3744 = vrot.slane %v3739, %v3743
    %v3746 = vadd.f32 %v3626, %v3744
    %v3747 = vadd.f32 %v3627, %v3744
    %v3748 = vmax.f32 %v3746, 0.0
    %v3749 = vmax.f32 %v3747, 0.0
    %v3750 = vpack.c.bf16 %v3749, %v3748
    %v3751 = vld [vmem:[%s57] sm:$0xf]
    %v3752 = vld [vmem:[%s57 + $0x4] sm:$0xf]
    %v3755 = vunpack.c.l.b16 %v3751
    %v3756 = vunpack.c.l.b16 %v3752
    %v3757 = vpack.c.b16 %v3756, %v3755
    %v3759 = vsel %vm3285, %v3757, 0
    %3761 = vmatprep.subr.bf16.mxu0 0
    %3762 = vmatpush1.bf16.msra.mxu0 %v3750
    %3763 = vmatprep.subr.bf16.mxu0 0
    %3764 = vmatpush1.bf16.msra.mxu0 0
    %3765 = vmatprep.subr.bf16.mxu0 0
    %3766 = vmatpush1.bf16.msra.mxu0 0
    %3767 = vmatprep.subr.bf16.mxu0 0
    %3768 = vmatpush1.bf16.msra.mxu0 0
    %3769 = vmatprep.subr.bf16.mxu0 0
    %3770 = vmatpush1.bf16.msra.mxu0 0
    %3771 = vmatprep.subr.bf16.mxu0 0
    %3772 = vmatpush1.bf16.msra.mxu0 0
    %3773 = vmatprep.subr.bf16.mxu0 0
    %3774 = vmatpush1.bf16.msra.mxu0 0
    %3775 = vmatprep.subr.bf16.mxu0 0
    %3776 = vmatpush1.bf16.msra.mxu0 0
    %3777 = vmatprep.subr.bf16.mxu0 0
    %3778 = vmatpush1.bf16.msra.mxu0 0
    %3779 = vmatprep.subr.bf16.mxu0 0
    %3780 = vmatpush1.bf16.msra.mxu0 0
    %3781 = vmatprep.subr.bf16.mxu0 0
    %3782 = vmatpush1.bf16.msra.mxu0 0
    %3783 = vmatprep.subr.bf16.mxu0 0
    %3784 = vmatpush1.bf16.msra.mxu0 0
    %3785 = vmatprep.subr.bf16.mxu0 0
    %3786 = vmatpush1.bf16.msra.mxu0 0
    %3787 = vmatprep.subr.bf16.mxu0 0
    %3788 = vmatpush1.bf16.msra.mxu0 0
    %3789 = vmatprep.subr.bf16.mxu0 0
    %3790 = vmatpush1.bf16.msra.mxu0 0
    %3791 = vmatprep.subr.bf16.mxu0 0
    %3792 = vmatpush1.bf16.msra.mxu0 0
    %3793 = vmatprep.mubr.bf16.mxu0 0
    %3794 = vmatmul.mubr.bf16.gmra.mrb[0].mxu0 %v3759
    %v3795 = vpop.f32.mrb[0].mxu0
    %v3796 = vadd.f32 0.0, %v3795
    %v3797 = vpop.f32.mrb[0].mxu0
    %v3798 = vpop.f32.mrb[0].mxu0
    %v3799 = vadd.f32 0.0, %v3798
    %v3800 = vpop.f32.mrb[0].mxu0
    %3801 = vdwg.mxu0
    %v3802 = vpack.c.bf16 %v3799, %v3796
    %v3803 = vld [vmem:[%s59] sm:$0xf]
    %v3804 = vld [vmem:[%s59 + $0x4] sm:$0xf]
    %v3807 = vunpack.c.l.b16 %v3803
    %v3808 = vunpack.c.l.b16 %v3804
    %v3809 = vpack.c.b16 %v3808, %v3807
    %v3812 = vsel %vm3285, %v3802, 0
    %3814 = vmatprep.subr.bf16.mxu0 0
    %3815 = vmatpush1.bf16.msra.mxu0 %v3809
    %3816 = vmatprep.subr.bf16.mxu0 0
    %3817 = vmatpush1.bf16.msra.mxu0 0
    %3818 = vmatprep.subr.bf16.mxu0 0
    %3819 = vmatpush1.bf16.msra.mxu0 0
    %3820 = vmatprep.subr.bf16.mxu0 0
    %3821 = vmatpush1.bf16.msra.mxu0 0
    %3822 = vmatprep.subr.bf16.mxu0 0
    %3823 = vmatpush1.bf16.msra.mxu0 0
    %3824 = vmatprep.subr.bf16.mxu0 0
    %3825 = vmatpush1.bf16.msra.mxu0 0
    %3826 = vmatprep.subr.bf16.mxu0 0
    %3827 = vmatpush1.bf16.msra.mxu0 0
    %3828 = vmatprep.subr.bf16.mxu0 0
    %3829 = vmatpush1.bf16.msra.mxu0 0
    %3830 = vmatprep.subr.bf16.mxu0 0
    %3831 = vmatpush1.bf16.msra.mxu0 0
    %3832 = vmatprep.subr.bf16.mxu0 0
    %3833 = vmatpush1.bf16.msra.mxu0 0
    %3834 = vmatprep.subr.bf16.mxu0 0
    %3835 = vmatpush1.bf16.msra.mxu0 0
    %3836 = vmatprep.subr.bf16.mxu0 0
    %3837 = vmatpush1.bf16.msra.mxu0 0
    %3838 = vmatprep.subr.bf16.mxu0 0
    %3839 = vmatpush1.bf16.msra.mxu0 0
    %3840 = vmatprep.subr.bf16.mxu0 0
    %3841 = vmatpush1.bf16.msra.mxu0 0
    %3842 = vmatprep.subr.bf16.mxu0 0
    %3843 = vmatpush1.bf16.msra.mxu0 0
    %3844 = vmatprep.subr.bf16.mxu0 0
    %3845 = vmatpush1.bf16.msra.mxu0 0
    %3846 = vmatprep.mubr.bf16.mxu0 0
    %3847 = vmatmul.mubr.bf16.gmra.mrb[0].mxu0 %v3812
    %v3848 = vpop.f32.mrb[0].mxu0
    %v3849 = vadd.f32 0.0, %v3848
    %v3850 = vpop.f32.mrb[0].mxu0
    %v3851 = vpop.f32.mrb[0].mxu0
    %v3852 = vadd.f32 0.0, %v3851
    %v3853 = vpop.f32.mrb[0].mxu0
    %3854 = vdwg.mxu0
    loop: start=1, step=1, limit=9
    $region362: #{forward.1} parent=1 // loop_pre_header
      _
    $region363: #{forward.1} parent=1 // loop_header
      %s3856 = sphi 1, %s3860
      %p3857 = scmp.ge.s32.totalorder %s3856, 9
      %v3861 = vphi %v3849, %v3972
      %v3862 = vphi %v3852, %v3973
    $region364: #{forward.1} parent=1 // loop_header_branch
      %3859 = sbr.rel (%p3857) target = $region368
    $region365: #{forward.1} parent=1 // loop_body
      %s3863 = smul.u32 %s3856, 2
      %s3864 = smul.addr %s3863, 4
      %s3865 = scalar_lea.vmem %s57, %s3864
      %v3866 = vld [vmem:[%s3865] sm:$0xf]
      %v3867 = vld [vmem:[%s3865 + $0x4] sm:$0xf]
      %v3870 = vunpack.c.l.b16 %v3866
      %v3871 = vunpack.c.l.b16 %v3867
      %v3872 = vpack.c.b16 %v3871, %v3870
      %v3874 = vsel %vm3285, %v3872, 0
      %3876 = vmatprep.subr.bf16.mxu0 0
      %3877 = vmatpush1.bf16.msra.mxu0 %v3750
      %3878 = vmatprep.subr.bf16.mxu0 0
      %3879 = vmatpush1.bf16.msra.mxu0 0
      %3880 = vmatprep.subr.bf16.mxu0 0
      %3881 = vmatpush1.bf16.msra.mxu0 0
      %3882 = vmatprep.subr.bf16.mxu0 0
      %3883 = vmatpush1.bf16.msra.mxu0 0
      %3884 = vmatprep.subr.bf16.mxu0 0
      %3885 = vmatpush1.bf16.msra.mxu0 0
      %3886 = vmatprep.subr.bf16.mxu0 0
      %3887 = vmatpush1.bf16.msra.mxu0 0
      %3888 = vmatprep.subr.bf16.mxu0 0
      %3889 = vmatpush1.bf16.msra.mxu0 0
      %3890 = vmatprep.subr.bf16.mxu0 0
      %3891 = vmatpush1.bf16.msra.mxu0 0
      %3892 = vmatprep.subr.bf16.mxu0 0
      %3893 = vmatpush1.bf16.msra.mxu0 0
      %3894 = vmatprep.subr.bf16.mxu0 0
      %3895 = vmatpush1.bf16.msra.mxu0 0
      %3896 = vmatprep.subr.bf16.mxu0 0
      %3897 = vmatpush1.bf16.msra.mxu0 0
      %3898 = vmatprep.subr.bf16.mxu0 0
      %3899 = vmatpush1.bf16.msra.mxu0 0
      %3900 = vmatprep.subr.bf16.mxu0 0
      %3901 = vmatpush1.bf16.msra.mxu0 0
      %3902 = vmatprep.subr.bf16.mxu0 0
      %3903 = vmatpush1.bf16.msra.mxu0 0
      %3904 = vmatprep.subr.bf16.mxu0 0
      %3905 = vmatpush1.bf16.msra.mxu0 0
      %3906 = vmatprep.subr.bf16.mxu0 0
      %3907 = vmatpush1.bf16.msra.mxu0 0
      %3908 = vmatprep.mubr.bf16.mxu0 0
      %3909 = vmatmul.mubr.bf16.gmra.mrb[0].mxu0 %v3874
      %v3910 = vpop.f32.mrb[0].mxu0
      %v3911 = vadd.f32 0.0, %v3910
      %v3912 = vpop.f32.mrb[0].mxu0
      %v3913 = vpop.f32.mrb[0].mxu0
      %v3914 = vadd.f32 0.0, %v3913
      %v3915 = vpop.f32.mrb[0].mxu0
      %3916 = vdwg.mxu0
      %v3917 = vpack.c.bf16 %v3914, %v3911
      %s3918 = smul.addr %s3863, 4
      %s3919 = scalar_lea.vmem %s59, %s3918
      %v3920 = vld [vmem:[%s3919] sm:$0xf]
      %v3921 = vld [vmem:[%s3919 + $0x4] sm:$0xf]
      %v3924 = vunpack.c.l.b16 %v3920
      %v3925 = vunpack.c.l.b16 %v3921
      %v3926 = vpack.c.b16 %v3925, %v3924
      %v3929 = vsel %vm3285, %v3917, 0
      %3931 = vmatprep.subr.bf16.mxu0 0
      %3932 = vmatpush1.bf16.msra.mxu0 %v3926
      %3933 = vmatprep.subr.bf16.mxu0 0
      %3934 = vmatpush1.bf16.msra.mxu0 0
      %3935 = vmatprep.subr.bf16.mxu0 0
      %3936 = vmatpush1.bf16.msra.mxu0 0
      %3937 = vmatprep.subr.bf16.mxu0 0
      %3938 = vmatpush1.bf16.msra.mxu0 0
      %3939 = vmatprep.subr.bf16.mxu0 0
      %3940 = vmatpush1.bf16.msra.mxu0 0
      %3941 = vmatprep.subr.bf16.mxu0 0
      %3942 = vmatpush1.bf16.msra.mxu0 0
      %3943 = vmatprep.subr.bf16.mxu0 0
      %3944 = vmatpush1.bf16.msra.mxu0 0
      %3945 = vmatprep.subr.bf16.mxu0 0
      %3946 = vmatpush1.bf16.msra.mxu0 0
      %3947 = vmatprep.subr.bf16.mxu0 0
      %3948 = vmatpush1.bf16.msra.mxu0 0
      %3949 = vmatprep.subr.bf16.mxu0 0
      %3950 = vmatpush1.bf16.msra.mxu0 0
      %3951 = vmatprep.subr.bf16.mxu0 0
      %3952 = vmatpush1.bf16.msra.mxu0 0
      %3953 = vmatprep.subr.bf16.mxu0 0
      %3954 = vmatpush1.bf16.msra.mxu0 0
      %3955 = vmatprep.subr.bf16.mxu0 0
      %3956 = vmatpush1.bf16.msra.mxu0 0
      %3957 = vmatprep.subr.bf16.mxu0 0
      %3958 = vmatpush1.bf16.msra.mxu0 0
      %3959 = vmatprep.subr.bf16.mxu0 0
      %3960 = vmatpush1.bf16.msra.mxu0 0
      %3961 = vmatprep.subr.bf16.mxu0 0
      %3962 = vmatpush1.bf16.msra.mxu0 0
      %3963 = vmatprep.mubr.bf16.mxu0 0
      %3964 = vmatmul.mubr.bf16.gmra.mrb[0].mxu0 %v3929
      %v3965 = vpop.f32.mrb[0].mxu0
      %v3966 = vadd.f32 0.0, %v3965
      %v3967 = vpop.f32.mrb[0].mxu0
      %v3968 = vpop.f32.mrb[0].mxu0
      %v3969 = vadd.f32 0.0, %v3968
      %v3970 = vpop.f32.mrb[0].mxu0
      %3971 = vdwg.mxu0
      %v3972 = vadd.f32 %v3861, %v3966
      %v3973 = vadd.f32 %v3862, %v3969
    $region366: #{forward.1} parent=1 // loop_footer
      %s3860 = sadd.s32 1, %s3856
    $region367: #{forward.1} parent=1 // loop_footer_branch
      %3855 = sbr.rel target = $region363
    $region368: #{forward.1} parent=1 // loop_exit
      _
    %v3974 = vld [vmem:[%s61] sm:$0x1]
    %v3976 = vlaneseq
    %v3977 = vshrl.u32 %v3976, 7
    %v3978 = vsub.s32 0, %v3977
    %v3979 = vrot.slane %v3974, %v3978
    %v3981 = vadd.f32 %v3861, %v3979
    %v3982 = vadd.f32 %v3862, %v3979
    %v3983 = vadd.f32 %v3981, %v3513
    %v3984 = vadd.f32 %v3982, %v3514
    %v3985 = vmax.f32 %v3983, 0.0
    %v3986 = vmax.f32 %v3984, 0.0
    %v3987 = vpack.c.bf16 %v3986, %v3985
    %v3988 = vld [vmem:[%s75] sm:$0x3]
    %v3990 = vsel %vm3285, %v3988, 0
    %3992 = vmatprep.subr.bf16.mxu0 0
    %3993 = vmatpush1.bf16.msra.mxu0 %v3987
    %3994 = vmatprep.subr.bf16.mxu0 0
    %3995 = vmatpush1.bf16.msra.mxu0 0
    %3996 = vmatprep.subr.bf16.mxu0 0
    %3997 = vmatpush1.bf16.msra.mxu0 0
    %3998 = vmatprep.subr.bf16.mxu0 0
    %3999 = vmatpush1.bf16.msra.mxu0 0
    %4000 = vmatprep.subr.bf16.mxu0 0
    %4001 = vmatpush1.bf16.msra.mxu0 0
    %4002 = vmatprep.subr.bf16.mxu0 0
    %4003 = vmatpush1.bf16.msra.mxu0 0
    %4004 = vmatprep.subr.bf16.mxu0 0
    %4005 = vmatpush1.bf16.msra.mxu0 0
    %4006 = vmatprep.subr.bf16.mxu0 0
    %4007 = vmatpush1.bf16.msra.mxu0 0
    %4008 = vmatprep.subr.bf16.mxu0 0
    %4009 = vmatpush1.bf16.msra.mxu0 0
    %4010 = vmatprep.subr.bf16.mxu0 0
    %4011 = vmatpush1.bf16.msra.mxu0 0
    %4012 = vmatprep.subr.bf16.mxu0 0
    %4013 = vmatpush1.bf16.msra.mxu0 0
    %4014 = vmatprep.subr.bf16.mxu0 0
    %4015 = vmatpush1.bf16.msra.mxu0 0
    %4016 = vmatprep.subr.bf16.mxu0 0
    %4017 = vmatpush1.bf16.msra.mxu0 0
    %4018 = vmatprep.subr.bf16.mxu0 0
    %4019 = vmatpush1.bf16.msra.mxu0 0
    %4020 = vmatprep.subr.bf16.mxu0 0
    %4021 = vmatpush1.bf16.msra.mxu0 0
    %4022 = vmatprep.subr.bf16.mxu0 0
    %4023 = vmatpush1.bf16.msra.mxu0 0
    %4024 = vmatprep.mubr.bf16.mxu0 0
    %4025 = vmatmul.mubr.bf16.gmra.mrb[0].mxu0 %v3990
    %v4026 = vpop.f32.mrb[0].mxu0
    %v4027 = vadd.f32 0.0, %v4026
    %v4028 = vpop.f32.mrb[0].mxu0
    %v4029 = vpop.f32.mrb[0].mxu0
    %v4030 = vpop.f32.mrb[0].mxu0
    %4031 = vdwg.mxu0
    %v4032 = vpack.c.bf16 %v4027, %v4027
    %v4033 = vld [vmem:[%s77] sm:$0xf]
    %v4034 = vld [vmem:[%s77 + $0x4] sm:$0xf]
    %v4035 = vld [vmem:[%s79] sm:$0x1]
    %v4037 = vlaneseq
    %v4038 = vshrl.u32 %v4037, 7
    %v4039 = vsub.s32 0, %v4038
    %v4040 = vrot.slane %v4035, %v4039
    %v4044 = vunpack.c.l.b16 %v4033
    %v4045 = vunpack.c.l.b16 %v4034
    %v4046 = vpack.c.b16 %v4045, %v4044
    %v4049 = vsel %vm3285, %v4032, 0
    %4051 = vmatprep.subr.bf16.mxu0 0
    %4052 = vmatpush1.bf16.msra.mxu0 %v4046
    %4053 = vmatprep.subr.bf16.mxu0 0
    %4054 = vmatpush1.bf16.msra.mxu0 0
    %4055 = vmatprep.subr.bf16.mxu0 0
    %4056 = vmatpush1.bf16.msra.mxu0 0
    %4057 = vmatprep.subr.bf16.mxu0 0
    %4058 = vmatpush1.bf16.msra.mxu0 0
    %4059 = vmatprep.subr.bf16.mxu0 0
    %4060 = vmatpush1.bf16.msra.mxu0 0
    %4061 = vmatprep.subr.bf16.mxu0 0
    %4062 = vmatpush1.bf16.msra.mxu0 0
    %4063 = vmatprep.subr.bf16.mxu0 0
    %4064 = vmatpush1.bf16.msra.mxu0 0
    %4065 = vmatprep.subr.bf16.mxu0 0
    %4066 = vmatpush1.bf16.msra.mxu0 0
    %4067 = vmatprep.subr.bf16.mxu0 0
    %4068 = vmatpush1.bf16.msra.mxu0 0
    %4069 = vmatprep.subr.bf16.mxu0 0
    %4070 = vmatpush1.bf16.msra.mxu0 0
    %4071 = vmatprep.subr.bf16.mxu0 0
    %4072 = vmatpush1.bf16.msra.mxu0 0
    %4073 = vmatprep.subr.bf16.mxu0 0
    %4074 = vmatpush1.bf16.msra.mxu0 0
    %4075 = vmatprep.subr.bf16.mxu0 0
    %4076 = vmatpush1.bf16.msra.mxu0 0
    %4077 = vmatprep.subr.bf16.mxu0 0
    %4078 = vmatpush1.bf16.msra.mxu0 0
    %4079 = vmatprep.subr.bf16.mxu0 0
    %4080 = vmatpush1.bf16.msra.mxu0 0
    %4081 = vmatprep.subr.bf16.mxu0 0
    %4082 = vmatpush1.bf16.msra.mxu0 0
    %4083 = vmatprep.mubr.bf16.mxu0 0
    %4084 = vmatmul.mubr.bf16.gmra.mrb[0].mxu0 %v4049
    %v4085 = vpop.f32.mrb[0].mxu0
    %v4086 = vadd.f32 %v4040, %v4085
    %v4087 = vpop.f32.mrb[0].mxu0
    %v4088 = vpop.f32.mrb[0].mxu0
    %v4089 = vpop.f32.mrb[0].mxu0
    %4090 = vdwg.mxu0
    %v4091 = vld [vmem:[%s63] sm:$0x3]
    %v4093 = vsel %vm3285, %v4091, 0
    %4095 = vmatprep.subr.bf16.mxu0 0
    %4096 = vmatpush1.bf16.msra.mxu0 %v3987
    %4097 = vmatprep.subr.bf16.mxu0 0
    %4098 = vmatpush1.bf16.msra.mxu0 0
    %4099 = vmatprep.subr.bf16.mxu0 0
    %4100 = vmatpush1.bf16.msra.mxu0 0
    %4101 = vmatprep.subr.bf16.mxu0 0
    %4102 = vmatpush1.bf16.msra.mxu0 0
    %4103 = vmatprep.subr.bf16.mxu0 0
    %4104 = vmatpush1.bf16.msra.mxu0 0
    %4105 = vmatprep.subr.bf16.mxu0 0
    %4106 = vmatpush1.bf16.msra.mxu0 0
    %4107 = vmatprep.subr.bf16.mxu0 0
    %4108 = vmatpush1.bf16.msra.mxu0 0
    %4109 = vmatprep.subr.bf16.mxu0 0
    %4110 = vmatpush1.bf16.msra.mxu0 0
    %4111 = vmatprep.subr.bf16.mxu0 0
    %4112 = vmatpush1.bf16.msra.mxu0 0
    %4113 = vmatprep.subr.bf16.mxu0 0
    %4114 = vmatpush1.bf16.msra.mxu0 0
    %4115 = vmatprep.subr.bf16.mxu0 0
    %4116 = vmatpush1.bf16.msra.mxu0 0
    %4117 = vmatprep.subr.bf16.mxu0 0
    %4118 = vmatpush1.bf16.msra.mxu0 0
    %4119 = vmatprep.subr.bf16.mxu0 0
    %4120 = vmatpush1.bf16.msra.mxu0 0
    %4121 = vmatprep.subr.bf16.mxu0 0
    %4122 = vmatpush1.bf16.msra.mxu0 0
    %4123 = vmatprep.subr.bf16.mxu0 0
    %4124 = vmatpush1.bf16.msra.mxu0 0
    %4125 = vmatprep.subr.bf16.mxu0 0
    %4126 = vmatpush1.bf16.msra.mxu0 0
    %4127 = vmatprep.mubr.bf16.mxu0 0
    %4128 = vmatmul.mubr.bf16.gmra.mrb[0].mxu0 %v4093
    %v4129 = vpop.f32.mrb[0].mxu0
    %v4130 = vadd.f32 0.0, %v4129
    %v4131 = vpop.f32.mrb[0].mxu0
    %v4132 = vpop.f32.mrb[0].mxu0
    %v4133 = vpop.f32.mrb[0].mxu0
    %4134 = vdwg.mxu0
    %v4135 = vpack.c.bf16 %v4130, %v4130
    %v4136 = vld [vmem:[%s65] sm:$0xf]
    %v4137 = vld [vmem:[%s65 + $0x4] sm:$0xf]
    %v4140 = vunpack.c.l.b16 %v4136
    %v4141 = vunpack.c.l.b16 %v4137
    %v4142 = vpack.c.b16 %v4141, %v4140
    %v4145 = vsel %vm3285, %v4135, 0
    %4147 = vmatprep.subr.bf16.mxu0 0
    %4148 = vmatpush1.bf16.msra.mxu0 %v4142
    %4149 = vmatprep.subr.bf16.mxu0 0
    %4150 = vmatpush1.bf16.msra.mxu0 0
    %4151 = vmatprep.subr.bf16.mxu0 0
    %4152 = vmatpush1.bf16.msra.mxu0 0
    %4153 = vmatprep.subr.bf16.mxu0 0
    %4154 = vmatpush1.bf16.msra.mxu0 0
    %4155 = vmatprep.subr.bf16.mxu0 0
    %4156 = vmatpush1.bf16.msra.mxu0 0
    %4157 = vmatprep.subr.bf16.mxu0 0
    %4158 = vmatpush1.bf16.msra.mxu0 0
    %4159 = vmatprep.subr.bf16.mxu0 0
    %4160 = vmatpush1.bf16.msra.mxu0 0
    %4161 = vmatprep.subr.bf16.mxu0 0
    %4162 = vmatpush1.bf16.msra.mxu0 0
    %4163 = vmatprep.subr.bf16.mxu0 0
    %4164 = vmatpush1.bf16.msra.mxu0 0
    %4165 = vmatprep.subr.bf16.mxu0 0
    %4166 = vmatpush1.bf16.msra.mxu0 0
    %4167 = vmatprep.subr.bf16.mxu0 0
    %4168 = vmatpush1.bf16.msra.mxu0 0
    %4169 = vmatprep.subr.bf16.mxu0 0
    %4170 = vmatpush1.bf16.msra.mxu0 0
    %4171 = vmatprep.subr.bf16.mxu0 0
    %4172 = vmatpush1.bf16.msra.mxu0 0
    %4173 = vmatprep.subr.bf16.mxu0 0
    %4174 = vmatpush1.bf16.msra.mxu0 0
    %4175 = vmatprep.subr.bf16.mxu0 0
    %4176 = vmatpush1.bf16.msra.mxu0 0
    %4177 = vmatprep.subr.bf16.mxu0 0
    %4178 = vmatpush1.bf16.msra.mxu0 0
    %4179 = vmatprep.mubr.bf16.mxu0 0
    %4180 = vmatmul.mubr.bf16.gmra.mrb[0].mxu0 %v4145
    %v4181 = vpop.f32.mrb[0].mxu0
    %v4182 = vadd.f32 0.0, %v4181
    %v4183 = vpop.f32.mrb[0].mxu0
    %v4184 = vpop.f32.mrb[0].mxu0
    %v4185 = vpop.f32.mrb[0].mxu0
    %4186 = vdwg.mxu0
    loop: start=1, step=1, limit=9
    $region369: #{forward.1} parent=1 // loop_pre_header
      _
    $region370: #{forward.1} parent=1 // loop_header
      %s4188 = sphi 1, %s4192
      %p4189 = scmp.ge.s32.totalorder %s4188, 9
      %v4193 = vphi %v4182, %v4295
    $region371: #{forward.1} parent=1 // loop_header_branch
      %4191 = sbr.rel (%p4189) target = $region375
    $region372: #{forward.1} parent=1 // loop_body
      %s4194 = smul.addr %s4188, 2
      %s4195 = scalar_lea.vmem %s63, %s4194
      %v4196 = vld [vmem:[%s4195] sm:$0x3]
      %v4198 = vsel %vm3285, %v4196, 0
      %4200 = vmatprep.subr.bf16.mxu0 0
      %4201 = vmatpush1.bf16.msra.mxu0 %v3987
      %4202 = vmatprep.subr.bf16.mxu0 0
      %4203 = vmatpush1.bf16.msra.mxu0 0
      %4204 = vmatprep.subr.bf16.mxu0 0
      %4205 = vmatpush1.bf16.msra.mxu0 0
      %4206 = vmatprep.subr.bf16.mxu0 0
      %4207 = vmatpush1.bf16.msra.mxu0 0
      %4208 = vmatprep.subr.bf16.mxu0 0
      %4209 = vmatpush1.bf16.msra.mxu0 0
      %4210 = vmatprep.subr.bf16.mxu0 0
      %4211 = vmatpush1.bf16.msra.mxu0 0
      %4212 = vmatprep.subr.bf16.mxu0 0
      %4213 = vmatpush1.bf16.msra.mxu0 0
      %4214 = vmatprep.subr.bf16.mxu0 0
      %4215 = vmatpush1.bf16.msra.mxu0 0
      %4216 = vmatprep.subr.bf16.mxu0 0
      %4217 = vmatpush1.bf16.msra.mxu0 0
      %4218 = vmatprep.subr.bf16.mxu0 0
      %4219 = vmatpush1.bf16.msra.mxu0 0
      %4220 = vmatprep.subr.bf16.mxu0 0
      %4221 = vmatpush1.bf16.msra.mxu0 0
      %4222 = vmatprep.subr.bf16.mxu0 0
      %4223 = vmatpush1.bf16.msra.mxu0 0
      %4224 = vmatprep.subr.bf16.mxu0 0
      %4225 = vmatpush1.bf16.msra.mxu0 0
      %4226 = vmatprep.subr.bf16.mxu0 0
      %4227 = vmatpush1.bf16.msra.mxu0 0
      %4228 = vmatprep.subr.bf16.mxu0 0
      %4229 = vmatpush1.bf16.msra.mxu0 0
      %4230 = vmatprep.subr.bf16.mxu0 0
      %4231 = vmatpush1.bf16.msra.mxu0 0
      %4232 = vmatprep.mubr.bf16.mxu0 0
      %4233 = vmatmul.mubr.bf16.gmra.mrb[0].mxu0 %v4198
      %v4234 = vpop.f32.mrb[0].mxu0
      %v4235 = vadd.f32 0.0, %v4234
      %v4236 = vpop.f32.mrb[0].mxu0
      %v4237 = vpop.f32.mrb[0].mxu0
      %v4238 = vpop.f32.mrb[0].mxu0
      %4239 = vdwg.mxu0
      %v4240 = vpack.c.bf16 %v4235, %v4235
      %s4241 = smul.u32 %s4188, 2
      %s4242 = smul.addr %s4241, 4
      %s4243 = scalar_lea.vmem %s65, %s4242
      %v4244 = vld [vmem:[%s4243] sm:$0xf]
      %v4245 = vld [vmem:[%s4243 + $0x4] sm:$0xf]
      %v4248 = vunpack.c.l.b16 %v4244
      %v4249 = vunpack.c.l.b16 %v4245
      %v4250 = vpack.c.b16 %v4249, %v4248
      %v4253 = vsel %vm3285, %v4240, 0
      %4255 = vmatprep.subr.bf16.mxu0 0
      %4256 = vmatpush1.bf16.msra.mxu0 %v4250
      %4257 = vmatprep.subr.bf16.mxu0 0
      %4258 = vmatpush1.bf16.msra.mxu0 0
      %4259 = vmatprep.subr.bf16.mxu0 0
      %4260 = vmatpush1.bf16.msra.mxu0 0
      %4261 = vmatprep.subr.bf16.mxu0 0
      %4262 = vmatpush1.bf16.msra.mxu0 0
      %4263 = vmatprep.subr.bf16.mxu0 0
      %4264 = vmatpush1.bf16.msra.mxu0 0
      %4265 = vmatprep.subr.bf16.mxu0 0
      %4266 = vmatpush1.bf16.msra.mxu0 0
      %4267 = vmatprep.subr.bf16.mxu0 0
      %4268 = vmatpush1.bf16.msra.mxu0 0
      %4269 = vmatprep.subr.bf16.mxu0 0
      %4270 = vmatpush1.bf16.msra.mxu0 0
      %4271 = vmatprep.subr.bf16.mxu0 0
      %4272 = vmatpush1.bf16.msra.mxu0 0
      %4273 = vmatprep.subr.bf16.mxu0 0
      %4274 = vmatpush1.bf16.msra.mxu0 0
      %4275 = vmatprep.subr.bf16.mxu0 0
      %4276 = vmatpush1.bf16.msra.mxu0 0
      %4277 = vmatprep.subr.bf16.mxu0 0
      %4278 = vmatpush1.bf16.msra.mxu0 0
      %4279 = vmatprep.subr.bf16.mxu0 0
      %4280 = vmatpush1.bf16.msra.mxu0 0
      %4281 = vmatprep.subr.bf16.mxu0 0
      %4282 = vmatpush1.bf16.msra.mxu0 0
      %4283 = vmatprep.subr.bf16.mxu0 0
      %4284 = vmatpush1.bf16.msra.mxu0 0
      %4285 = vmatprep.subr.bf16.mxu0 0
      %4286 = vmatpush1.bf16.msra.mxu0 0
      %4287 = vmatprep.mubr.bf16.mxu0 0
      %4288 = vmatmul.mubr.bf16.gmra.mrb[0].mxu0 %v4253
      %v4289 = vpop.f32.mrb[0].mxu0
      %v4290 = vadd.f32 0.0, %v4289
      %v4291 = vpop.f32.mrb[0].mxu0
      %v4292 = vpop.f32.mrb[0].mxu0
      %v4293 = vpop.f32.mrb[0].mxu0
      %4294 = vdwg.mxu0
      %v4295 = vadd.f32 %v4193, %v4290
    $region373: #{forward.1} parent=1 // loop_footer
      %s4192 = sadd.s32 1, %s4188
    $region374: #{forward.1} parent=1 // loop_footer_branch
      %4187 = sbr.rel target = $region370
    $region375: #{forward.1} parent=1 // loop_exit
      _
    %v4296 = vld [vmem:[%s67] sm:$0x1]
    %v4298 = vlaneseq
    %v4299 = vshrl.u32 %v4298, 7
    %v4300 = vsub.s32 0, %v4299
    %v4301 = vrot.slane %v4296, %v4300
    %v4303 = vadd.f32 %v4193, %v4301
    %v4304 = vmax.f32 %v4303, 0.0
    %v4305 = vpack.c.bf16 %v4304, %v4304
    %v4306 = vld [vmem:[%s69] sm:$0x3]
    %vm4307 = vcmask 31744
    %v4309 = vsel %vm4307, %v4306, 0
    %v4312 = vsel %vm719, %v4305, 0
    %4314 = vmatprep.subr.bf16.mxu0 0
    %4315 = vmatpush1.bf16.msra.mxu0 %v4312
    %4316 = vmatprep.subr.bf16.mxu0 0
    %4317 = vmatpush1.bf16.msra.mxu0 0
    %4318 = vmatprep.subr.bf16.mxu0 0
    %4319 = vmatpush1.bf16.msra.mxu0 0
    %4320 = vmatprep.subr.bf16.mxu0 0
    %4321 = vmatpush1.bf16.msra.mxu0 0
    %4322 = vmatprep.subr.bf16.mxu0 0
    %4323 = vmatpush1.bf16.msra.mxu0 0
    %4324 = vmatprep.subr.bf16.mxu0 0
    %4325 = vmatpush1.bf16.msra.mxu0 0
    %4326 = vmatprep.subr.bf16.mxu0 0
    %4327 = vmatpush1.bf16.msra.mxu0 0
    %4328 = vmatprep.subr.bf16.mxu0 0
    %4329 = vmatpush1.bf16.msra.mxu0 0
    %4330 = vmatprep.subr.bf16.mxu0 0
    %4331 = vmatpush1.bf16.msra.mxu0 0
    %4332 = vmatprep.subr.bf16.mxu0 0
    %4333 = vmatpush1.bf16.msra.mxu0 0
    %4334 = vmatprep.subr.bf16.mxu0 0
    %4335 = vmatpush1.bf16.msra.mxu0 0
    %4336 = vmatprep.subr.bf16.mxu0 0
    %4337 = vmatpush1.bf16.msra.mxu0 0
    %4338 = vmatprep.subr.bf16.mxu0 0
    %4339 = vmatpush1.bf16.msra.mxu0 0
    %4340 = vmatprep.subr.bf16.mxu0 0
    %4341 = vmatpush1.bf16.msra.mxu0 0
    %4342 = vmatprep.subr.bf16.mxu0 0
    %4343 = vmatpush1.bf16.msra.mxu0 0
    %4344 = vmatprep.subr.bf16.mxu0 0
    %4345 = vmatpush1.bf16.msra.mxu0 0
    %4346 = vmatprep.mubr.bf16.mxu0 0
    %4347 = vmatmul.mubr.bf16.gmra.mrb[0].mxu0 %v4309
    %v4348 = vpop.f32.mrb[0].mxu0
    %v4349 = vadd.f32 0.0, %v4348
    %v4350 = vpop.f32.mrb[0].mxu0
    %v4351 = vpop.f32.mrb[0].mxu0
    %v4352 = vpop.f32.mrb[0].mxu0
    %4353 = vdwg.mxu0
    %v4354 = vpack.c.bf16 %v4349, %v4349
    %v4355 = vld [vmem:[%s71] sm:$0xf]
    %v4356 = vld [vmem:[%s71 + $0x4] sm:$0xf]
    %v4357 = vld [vmem:[%s71 + $0x8] sm:$0xf]
    %v4358 = vld [vmem:[%s71 + $0xc] sm:$0xf]
    %v4363 = vunpack.c.l.b16 %v4355
    %v4364 = vunpack.c.l.b16 %v4356
    %v4365 = vunpack.c.l.b16 %v4357
    %v4366 = vunpack.c.l.b16 %v4358
    %v4367 = vpack.c.b16 %v4364, %v4363
    %v4368 = vpack.c.b16 %v4366, %v4365
    %vm4371 = vcmask 261120
    %v4373 = vsel %vm4371, %v4354, 0
    %4375 = vmatprep.subr.bf16.mxu0 0
    %4376 = vmatpush1.bf16.msra.mxu0 %v4367
    %4377 = vmatprep.subr.bf16.mxu0 0
    %4378 = vmatpush1.bf16.msra.mxu0 %v4368
    %4379 = vmatprep.subr.bf16.mxu0 0
    %4380 = vmatpush1.bf16.msra.mxu0 0
    %4381 = vmatprep.subr.bf16.mxu0 0
    %4382 = vmatpush1.bf16.msra.mxu0 0
    %4383 = vmatprep.subr.bf16.mxu0 0
    %4384 = vmatpush1.bf16.msra.mxu0 0
    %4385 = vmatprep.subr.bf16.mxu0 0
    %4386 = vmatpush1.bf16.msra.mxu0 0
    %4387 = vmatprep.subr.bf16.mxu0 0
    %4388 = vmatpush1.bf16.msra.mxu0 0
    %4389 = vmatprep.subr.bf16.mxu0 0
    %4390 = vmatpush1.bf16.msra.mxu0 0
    %4391 = vmatprep.subr.bf16.mxu0 0
    %4392 = vmatpush1.bf16.msra.mxu0 0
    %4393 = vmatprep.subr.bf16.mxu0 0
    %4394 = vmatpush1.bf16.msra.mxu0 0
    %4395 = vmatprep.subr.bf16.mxu0 0
    %4396 = vmatpush1.bf16.msra.mxu0 0
    %4397 = vmatprep.subr.bf16.mxu0 0
    %4398 = vmatpush1.bf16.msra.mxu0 0
    %4399 = vmatprep.subr.bf16.mxu0 0
    %4400 = vmatpush1.bf16.msra.mxu0 0
    %4401 = vmatprep.subr.bf16.mxu0 0
    %4402 = vmatpush1.bf16.msra.mxu0 0
    %4403 = vmatprep.subr.bf16.mxu0 0
    %4404 = vmatpush1.bf16.msra.mxu0 0
    %4405 = vmatprep.subr.bf16.mxu0 0
    %4406 = vmatpush1.bf16.msra.mxu0 0
    %4407 = vmatprep.mubr.bf16.mxu0 0
    %4408 = vmatmul.mubr.bf16.gmra.mrb[0].mxu0 %v4373
    %v4409 = vpop.f32.mrb[0].mxu0
    %v4410 = vadd.f32 0.0, %v4409
    %v4411 = vpop.f32.mrb[0].mxu0
    %v4412 = vpop.f32.mrb[0].mxu0
    %v4413 = vpop.f32.mrb[0].mxu0
    %4414 = vdwg.mxu0
    loop: start=1, step=1, limit=9
    $region376: #{forward.1} parent=1 // loop_pre_header
      _
    $region377: #{forward.1} parent=1 // loop_header
      %s4416 = sphi 1, %s4420
      %p4417 = scmp.ge.s32.totalorder %s4416, 9
      %v4421 = vphi %v4410, %v4531
    $region378: #{forward.1} parent=1 // loop_header_branch
      %4419 = sbr.rel (%p4417) target = $region382
    $region379: #{forward.1} parent=1 // loop_body
      %s4422 = smul.addr %s4416, 2
      %s4423 = scalar_lea.vmem %s69, %s4422
      %v4424 = vld [vmem:[%s4423] sm:$0x3]
      %v4426 = vsel %vm4307, %v4424, 0
      %4428 = vmatprep.subr.bf16.mxu0 0
      %4429 = vmatpush1.bf16.msra.mxu0 %v4312
      %4430 = vmatprep.subr.bf16.mxu0 0
      %4431 = vmatpush1.bf16.msra.mxu0 0
      %4432 = vmatprep.subr.bf16.mxu0 0
      %4433 = vmatpush1.bf16.msra.mxu0 0
      %4434 = vmatprep.subr.bf16.mxu0 0
      %4435 = vmatpush1.bf16.msra.mxu0 0
      %4436 = vmatprep.subr.bf16.mxu0 0
      %4437 = vmatpush1.bf16.msra.mxu0 0
      %4438 = vmatprep.subr.bf16.mxu0 0
      %4439 = vmatpush1.bf16.msra.mxu0 0
      %4440 = vmatprep.subr.bf16.mxu0 0
      %4441 = vmatpush1.bf16.msra.mxu0 0
      %4442 = vmatprep.subr.bf16.mxu0 0
      %4443 = vmatpush1.bf16.msra.mxu0 0
      %4444 = vmatprep.subr.bf16.mxu0 0
      %4445 = vmatpush1.bf16.msra.mxu0 0
      %4446 = vmatprep.subr.bf16.mxu0 0
      %4447 = vmatpush1.bf16.msra.mxu0 0
      %4448 = vmatprep.subr.bf16.mxu0 0
      %4449 = vmatpush1.bf16.msra.mxu0 0
      %4450 = vmatprep.subr.bf16.mxu0 0
      %4451 = vmatpush1.bf16.msra.mxu0 0
      %4452 = vmatprep.subr.bf16.mxu0 0
      %4453 = vmatpush1.bf16.msra.mxu0 0
      %4454 = vmatprep.subr.bf16.mxu0 0
      %4455 = vmatpush1.bf16.msra.mxu0 0
      %4456 = vmatprep.subr.bf16.mxu0 0
      %4457 = vmatpush1.bf16.msra.mxu0 0
      %4458 = vmatprep.subr.bf16.mxu0 0
      %4459 = vmatpush1.bf16.msra.mxu0 0
      %4460 = vmatprep.mubr.bf16.mxu0 0
      %4461 = vmatmul.mubr.bf16.gmra.mrb[0].mxu0 %v4426
      %v4462 = vpop.f32.mrb[0].mxu0
      %v4463 = vadd.f32 0.0, %v4462
      %v4464 = vpop.f32.mrb[0].mxu0
      %v4465 = vpop.f32.mrb[0].mxu0
      %v4466 = vpop.f32.mrb[0].mxu0
      %4467 = vdwg.mxu0
      %v4468 = vpack.c.bf16 %v4463, %v4463
      %s4469 = smul.u32 %s4416, 4
      %s4470 = smul.addr %s4469, 4
      %s4471 = scalar_lea.vmem %s71, %s4470
      %v4472 = vld [vmem:[%s4471] sm:$0xf]
      %v4473 = vld [vmem:[%s4471 + $0x4] sm:$0xf]
      %v4474 = vld [vmem:[%s4471 + $0x8] sm:$0xf]
      %v4475 = vld [vmem:[%s4471 + $0xc] sm:$0xf]
      %v4480 = vunpack.c.l.b16 %v4472
      %v4481 = vunpack.c.l.b16 %v4473
      %v4482 = vunpack.c.l.b16 %v4474
      %v4483 = vunpack.c.l.b16 %v4475
      %v4484 = vpack.c.b16 %v4481, %v4480
      %v4485 = vpack.c.b16 %v4483, %v4482
      %v4489 = vsel %vm4371, %v4468, 0
      %4491 = vmatprep.subr.bf16.mxu0 0
      %4492 = vmatpush1.bf16.msra.mxu0 %v4484
      %4493 = vmatprep.subr.bf16.mxu0 0
      %4494 = vmatpush1.bf16.msra.mxu0 %v4485
      %4495 = vmatprep.subr.bf16.mxu0 0
      %4496 = vmatpush1.bf16.msra.mxu0 0
      %4497 = vmatprep.subr.bf16.mxu0 0
      %4498 = vmatpush1.bf16.msra.mxu0 0
      %4499 = vmatprep.subr.bf16.mxu0 0
      %4500 = vmatpush1.bf16.msra.mxu0 0
      %4501 = vmatprep.subr.bf16.mxu0 0
      %4502 = vmatpush1.bf16.msra.mxu0 0
      %4503 = vmatprep.subr.bf16.mxu0 0
      %4504 = vmatpush1.bf16.msra.mxu0 0
      %4505 = vmatprep.subr.bf16.mxu0 0
      %4506 = vmatpush1.bf16.msra.mxu0 0
      %4507 = vmatprep.subr.bf16.mxu0 0
      %4508 = vmatpush1.bf16.msra.mxu0 0
      %4509 = vmatprep.subr.bf16.mxu0 0
      %4510 = vmatpush1.bf16.msra.mxu0 0
      %4511 = vmatprep.subr.bf16.mxu0 0
      %4512 = vmatpush1.bf16.msra.mxu0 0
      %4513 = vmatprep.subr.bf16.mxu0 0
      %4514 = vmatpush1.bf16.msra.mxu0 0
      %4515 = vmatprep.subr.bf16.mxu0 0
      %4516 = vmatpush1.bf16.msra.mxu0 0
      %4517 = vmatprep.subr.bf16.mxu0 0
      %4518 = vmatpush1.bf16.msra.mxu0 0
      %4519 = vmatprep.subr.bf16.mxu0 0
      %4520 = vmatpush1.bf16.msra.mxu0 0
      %4521 = vmatprep.subr.bf16.mxu0 0
      %4522 = vmatpush1.bf16.msra.mxu0 0
      %4523 = vmatprep.mubr.bf16.mxu0 0
      %4524 = vmatmul.mubr.bf16.gmra.mrb[0].mxu0 %v4489
      %v4525 = vpop.f32.mrb[0].mxu0
      %v4526 = vadd.f32 0.0, %v4525
      %v4527 = vpop.f32.mrb[0].mxu0
      %v4528 = vpop.f32.mrb[0].mxu0
      %v4529 = vpop.f32.mrb[0].mxu0
      %4530 = vdwg.mxu0
      %v4531 = vadd.f32 %v4421, %v4526
    $region380: #{forward.1} parent=1 // loop_footer
      %s4420 = sadd.s32 1, %s4416
    $region381: #{forward.1} parent=1 // loop_footer_branch
      %4415 = sbr.rel target = $region377
    $region382: #{forward.1} parent=1 // loop_exit
      _
    %v4532 = vld [vmem:[%s73] sm:$0x1]
    %v4534 = vlaneseq
    %v4535 = vshrl.u32 %v4534, 7
    %v4536 = vsub.s32 0, %v4535
    %v4537 = vrot.slane %v4532, %v4536
    %v4539 = vadd.f32 %v4421, %v4537
    %v4540 = vadd.f32 %v4539, %v4086
    %v4541 = vmax.f32 %v4540, 0.0
    %v4542 = vpack.c.bf16 %v4541, %v4541
    %v4543 = vld [vmem:[%s81] sm:$0x3]
    %v4545 = vsel %vm4307, %v4543, 0
    %v4548 = vsel %vm719, %v4542, 0
    %4550 = vmatprep.subr.bf16.mxu0 0
    %4551 = vmatpush1.bf16.msra.mxu0 %v4548
    %4552 = vmatprep.subr.bf16.mxu0 0
    %4553 = vmatpush1.bf16.msra.mxu0 0
    %4554 = vmatprep.subr.bf16.mxu0 0
    %4555 = vmatpush1.bf16.msra.mxu0 0
    %4556 = vmatprep.subr.bf16.mxu0 0
    %4557 = vmatpush1.bf16.msra.mxu0 0
    %4558 = vmatprep.subr.bf16.mxu0 0
    %4559 = vmatpush1.bf16.msra.mxu0 0
    %4560 = vmatprep.subr.bf16.mxu0 0
    %4561 = vmatpush1.bf16.msra.mxu0 0
    %4562 = vmatprep.subr.bf16.mxu0 0
    %4563 = vmatpush1.bf16.msra.mxu0 0
    %4564 = vmatprep.subr.bf16.mxu0 0
    %4565 = vmatpush1.bf16.msra.mxu0 0
    %4566 = vmatprep.subr.bf16.mxu0 0
    %4567 = vmatpush1.bf16.msra.mxu0 0
    %4568 = vmatprep.subr.bf16.mxu0 0
    %4569 = vmatpush1.bf16.msra.mxu0 0
    %4570 = vmatprep.subr.bf16.mxu0 0
    %4571 = vmatpush1.bf16.msra.mxu0 0
    %4572 = vmatprep.subr.bf16.mxu0 0
    %4573 = vmatpush1.bf16.msra.mxu0 0
    %4574 = vmatprep.subr.bf16.mxu0 0
    %4575 = vmatpush1.bf16.msra.mxu0 0
    %4576 = vmatprep.subr.bf16.mxu0 0
    %4577 = vmatpush1.bf16.msra.mxu0 0
    %4578 = vmatprep.subr.bf16.mxu0 0
    %4579 = vmatpush1.bf16.msra.mxu0 0
    %4580 = vmatprep.subr.bf16.mxu0 0
    %4581 = vmatpush1.bf16.msra.mxu0 0
    %4582 = vmatprep.mubr.bf16.mxu0 0
    %4583 = vmatmul.mubr.bf16.gmra.mrb[0].mxu0 %v4545
    %v4584 = vpop.f32.mrb[0].mxu0
    %v4585 = vadd.f32 0.0, %v4584
    %v4586 = vpop.f32.mrb[0].mxu0
    %v4587 = vpop.f32.mrb[0].mxu0
    %v4588 = vpop.f32.mrb[0].mxu0
    %4589 = vdwg.mxu0
    %v4590 = vpack.c.bf16 %v4585, %v4585
    %v4591 = vld [vmem:[%s83] sm:$0xf]
    %v4592 = vld [vmem:[%s83 + $0x4] sm:$0xf]
    %v4593 = vld [vmem:[%s83 + $0x8] sm:$0xf]
    %v4594 = vld [vmem:[%s83 + $0xc] sm:$0xf]
    %v4599 = vunpack.c.l.b16 %v4591
    %v4600 = vunpack.c.l.b16 %v4592
    %v4601 = vunpack.c.l.b16 %v4593
    %v4602 = vunpack.c.l.b16 %v4594
    %v4603 = vpack.c.b16 %v4600, %v4599
    %v4604 = vpack.c.b16 %v4602, %v4601
    %v4608 = vsel %vm4371, %v4590, 0
    %4610 = vmatprep.subr.bf16.mxu0 0
    %4611 = vmatpush1.bf16.msra.mxu0 %v4603
    %4612 = vmatprep.subr.bf16.mxu0 0
    %4613 = vmatpush1.bf16.msra.mxu0 %v4604
    %4614 = vmatprep.subr.bf16.mxu0 0
    %4615 = vmatpush1.bf16.msra.mxu0 0
    %4616 = vmatprep.subr.bf16.mxu0 0
    %4617 = vmatpush1.bf16.msra.mxu0 0
    %4618 = vmatprep.subr.bf16.mxu0 0
    %4619 = vmatpush1.bf16.msra.mxu0 0
    %4620 = vmatprep.subr.bf16.mxu0 0
    %4621 = vmatpush1.bf16.msra.mxu0 0
    %4622 = vmatprep.subr.bf16.mxu0 0
    %4623 = vmatpush1.bf16.msra.mxu0 0
    %4624 = vmatprep.subr.bf16.mxu0 0
    %4625 = vmatpush1.bf16.msra.mxu0 0
    %4626 = vmatprep.subr.bf16.mxu0 0
    %4627 = vmatpush1.bf16.msra.mxu0 0
    %4628 = vmatprep.subr.bf16.mxu0 0
    %4629 = vmatpush1.bf16.msra.mxu0 0
    %4630 = vmatprep.subr.bf16.mxu0 0
    %4631 = vmatpush1.bf16.msra.mxu0 0
    %4632 = vmatprep.subr.bf16.mxu0 0
    %4633 = vmatpush1.bf16.msra.mxu0 0
    %4634 = vmatprep.subr.bf16.mxu0 0
    %4635 = vmatpush1.bf16.msra.mxu0 0
    %4636 = vmatprep.subr.bf16.mxu0 0
    %4637 = vmatpush1.bf16.msra.mxu0 0
    %4638 = vmatprep.subr.bf16.mxu0 0
    %4639 = vmatpush1.bf16.msra.mxu0 0
    %4640 = vmatprep.subr.bf16.mxu0 0
    %4641 = vmatpush1.bf16.msra.mxu0 0
    %4642 = vmatprep.mubr.bf16.mxu0 0
    %4643 = vmatmul.mubr.bf16.gmra.mrb[0].mxu0 %v4608
    %v4644 = vpop.f32.mrb[0].mxu0
    %v4645 = vadd.f32 0.0, %v4644
    %v4646 = vpop.f32.mrb[0].mxu0
    %v4647 = vpop.f32.mrb[0].mxu0
    %v4648 = vpop.f32.mrb[0].mxu0
    %4649 = vdwg.mxu0
    loop: start=1, step=1, limit=9
    $region383: #{forward.1} parent=1 // loop_pre_header
      _
    $region384: #{forward.1} parent=1 // loop_header
      %s4651 = sphi 1, %s4655
      %p4652 = scmp.ge.s32.totalorder %s4651, 9
      %v4656 = vphi %v4645, %v4766
    $region385: #{forward.1} parent=1 // loop_header_branch
      %4654 = sbr.rel (%p4652) target = $region389
    $region386: #{forward.1} parent=1 // loop_body
      %s4657 = smul.addr %s4651, 2
      %s4658 = scalar_lea.vmem %s81, %s4657
      %v4659 = vld [vmem:[%s4658] sm:$0x3]
      %v4661 = vsel %vm4307, %v4659, 0
      %4663 = vmatprep.subr.bf16.mxu0 0
      %4664 = vmatpush1.bf16.msra.mxu0 %v4548
      %4665 = vmatprep.subr.bf16.mxu0 0
      %4666 = vmatpush1.bf16.msra.mxu0 0
      %4667 = vmatprep.subr.bf16.mxu0 0
      %4668 = vmatpush1.bf16.msra.mxu0 0
      %4669 = vmatprep.subr.bf16.mxu0 0
      %4670 = vmatpush1.bf16.msra.mxu0 0
      %4671 = vmatprep.subr.bf16.mxu0 0
      %4672 = vmatpush1.bf16.msra.mxu0 0
      %4673 = vmatprep.subr.bf16.mxu0 0
      %4674 = vmatpush1.bf16.msra.mxu0 0
      %4675 = vmatprep.subr.bf16.mxu0 0
      %4676 = vmatpush1.bf16.msra.mxu0 0
      %4677 = vmatprep.subr.bf16.mxu0 0
      %4678 = vmatpush1.bf16.msra.mxu0 0
      %4679 = vmatprep.subr.bf16.mxu0 0
      %4680 = vmatpush1.bf16.msra.mxu0 0
      %4681 = vmatprep.subr.bf16.mxu0 0
      %4682 = vmatpush1.bf16.msra.mxu0 0
      %4683 = vmatprep.subr.bf16.mxu0 0
      %4684 = vmatpush1.bf16.msra.mxu0 0
      %4685 = vmatprep.subr.bf16.mxu0 0
      %4686 = vmatpush1.bf16.msra.mxu0 0
      %4687 = vmatprep.subr.bf16.mxu0 0
      %4688 = vmatpush1.bf16.msra.mxu0 0
      %4689 = vmatprep.subr.bf16.mxu0 0
      %4690 = vmatpush1.bf16.msra.mxu0 0
      %4691 = vmatprep.subr.bf16.mxu0 0
      %4692 = vmatpush1.bf16.msra.mxu0 0
      %4693 = vmatprep.subr.bf16.mxu0 0
      %4694 = vmatpush1.bf16.msra.mxu0 0
      %4695 = vmatprep.mubr.bf16.mxu0 0
      %4696 = vmatmul.mubr.bf16.gmra.mrb[0].mxu0 %v4661
      %v4697 = vpop.f32.mrb[0].mxu0
      %v4698 = vadd.f32 0.0, %v4697
      %v4699 = vpop.f32.mrb[0].mxu0
      %v4700 = vpop.f32.mrb[0].mxu0
      %v4701 = vpop.f32.mrb[0].mxu0
      %4702 = vdwg.mxu0
      %v4703 = vpack.c.bf16 %v4698, %v4698
      %s4704 = smul.u32 %s4651, 4
      %s4705 = smul.addr %s4704, 4
      %s4706 = scalar_lea.vmem %s83, %s4705
      %v4707 = vld [vmem:[%s4706] sm:$0xf]
      %v4708 = vld [vmem:[%s4706 + $0x4] sm:$0xf]
      %v4709 = vld [vmem:[%s4706 + $0x8] sm:$0xf]
      %v4710 = vld [vmem:[%s4706 + $0xc] sm:$0xf]
      %v4715 = vunpack.c.l.b16 %v4707
      %v4716 = vunpack.c.l.b16 %v4708
      %v4717 = vunpack.c.l.b16 %v4709
      %v4718 = vunpack.c.l.b16 %v4710
      %v4719 = vpack.c.b16 %v4716, %v4715
      %v4720 = vpack.c.b16 %v4718, %v4717
      %v4724 = vsel %vm4371, %v4703, 0
      %4726 = vmatprep.subr.bf16.mxu0 0
      %4727 = vmatpush1.bf16.msra.mxu0 %v4719
      %4728 = vmatprep.subr.bf16.mxu0 0
      %4729 = vmatpush1.bf16.msra.mxu0 %v4720
      %4730 = vmatprep.subr.bf16.mxu0 0
      %4731 = vmatpush1.bf16.msra.mxu0 0
      %4732 = vmatprep.subr.bf16.mxu0 0
      %4733 = vmatpush1.bf16.msra.mxu0 0
      %4734 = vmatprep.subr.bf16.mxu0 0
      %4735 = vmatpush1.bf16.msra.mxu0 0
      %4736 = vmatprep.subr.bf16.mxu0 0
      %4737 = vmatpush1.bf16.msra.mxu0 0
      %4738 = vmatprep.subr.bf16.mxu0 0
      %4739 = vmatpush1.bf16.msra.mxu0 0
      %4740 = vmatprep.subr.bf16.mxu0 0
      %4741 = vmatpush1.bf16.msra.mxu0 0
      %4742 = vmatprep.subr.bf16.mxu0 0
      %4743 = vmatpush1.bf16.msra.mxu0 0
      %4744 = vmatprep.subr.bf16.mxu0 0
      %4745 = vmatpush1.bf16.msra.mxu0 0
      %4746 = vmatprep.subr.bf16.mxu0 0
      %4747 = vmatpush1.bf16.msra.mxu0 0
      %4748 = vmatprep.subr.bf16.mxu0 0
      %4749 = vmatpush1.bf16.msra.mxu0 0
      %4750 = vmatprep.subr.bf16.mxu0 0
      %4751 = vmatpush1.bf16.msra.mxu0 0
      %4752 = vmatprep.subr.bf16.mxu0 0
      %4753 = vmatpush1.bf16.msra.mxu0 0
      %4754 = vmatprep.subr.bf16.mxu0 0
      %4755 = vmatpush1.bf16.msra.mxu0 0
      %4756 = vmatprep.subr.bf16.mxu0 0
      %4757 = vmatpush1.bf16.msra.mxu0 0
      %4758 = vmatprep.mubr.bf16.mxu0 0
      %4759 = vmatmul.mubr.bf16.gmra.mrb[0].mxu0 %v4724
      %v4760 = vpop.f32.mrb[0].mxu0
      %v4761 = vadd.f32 0.0, %v4760
      %v4762 = vpop.f32.mrb[0].mxu0
      %v4763 = vpop.f32.mrb[0].mxu0
      %v4764 = vpop.f32.mrb[0].mxu0
      %4765 = vdwg.mxu0
      %v4766 = vadd.f32 %v4656, %v4761
    $region387: #{forward.1} parent=1 // loop_footer
      %s4655 = sadd.s32 1, %s4651
    $region388: #{forward.1} parent=1 // loop_footer_branch
      %4650 = sbr.rel target = $region384
    $region389: #{forward.1} parent=1 // loop_exit
      _
    %v4767 = vld [vmem:[%s85] sm:$0x1]
    %v4769 = vlaneseq
    %v4770 = vshrl.u32 %v4769, 7
    %v4771 = vsub.s32 0, %v4770
    %v4772 = vrot.slane %v4767, %v4771
    %v4774 = vadd.f32 %v4656, %v4772
    %v4775 = vmax.f32 %v4774, 0.0
    %v4776 = vpack.c.bf16 %v4775, %v4775
    %v4777 = vld [vmem:[%s87] sm:$0x3]
    %v4779 = vsel %vm4307, %v4777, 0
    %v4782 = vsel %vm719, %v4776, 0
    %4784 = vmatprep.subr.bf16.mxu0 0
    %4785 = vmatpush1.bf16.msra.mxu0 %v4782
    %4786 = vmatprep.subr.bf16.mxu0 0
    %4787 = vmatpush1.bf16.msra.mxu0 0
    %4788 = vmatprep.subr.bf16.mxu0 0
    %4789 = vmatpush1.bf16.msra.mxu0 0
    %4790 = vmatprep.subr.bf16.mxu0 0
    %4791 = vmatpush1.bf16.msra.mxu0 0
    %4792 = vmatprep.subr.bf16.mxu0 0
    %4793 = vmatpush1.bf16.msra.mxu0 0
    %4794 = vmatprep.subr.bf16.mxu0 0
    %4795 = vmatpush1.bf16.msra.mxu0 0
    %4796 = vmatprep.subr.bf16.mxu0 0
    %4797 = vmatpush1.bf16.msra.mxu0 0
    %4798 = vmatprep.subr.bf16.mxu0 0
    %4799 = vmatpush1.bf16.msra.mxu0 0
    %4800 = vmatprep.subr.bf16.mxu0 0
    %4801 = vmatpush1.bf16.msra.mxu0 0
    %4802 = vmatprep.subr.bf16.mxu0 0
    %4803 = vmatpush1.bf16.msra.mxu0 0
    %4804 = vmatprep.subr.bf16.mxu0 0
    %4805 = vmatpush1.bf16.msra.mxu0 0
    %4806 = vmatprep.subr.bf16.mxu0 0
    %4807 = vmatpush1.bf16.msra.mxu0 0
    %4808 = vmatprep.subr.bf16.mxu0 0
    %4809 = vmatpush1.bf16.msra.mxu0 0
    %4810 = vmatprep.subr.bf16.mxu0 0
    %4811 = vmatpush1.bf16.msra.mxu0 0
    %4812 = vmatprep.subr.bf16.mxu0 0
    %4813 = vmatpush1.bf16.msra.mxu0 0
    %4814 = vmatprep.subr.bf16.mxu0 0
    %4815 = vmatpush1.bf16.msra.mxu0 0
    %4816 = vmatprep.mubr.bf16.mxu0 0
    %4817 = vmatmul.mubr.bf16.gmra.mrb[0].mxu0 %v4779
    %v4818 = vpop.f32.mrb[0].mxu0
    %v4819 = vadd.f32 0.0, %v4818
    %v4820 = vpop.f32.mrb[0].mxu0
    %v4821 = vpop.f32.mrb[0].mxu0
    %v4822 = vpop.f32.mrb[0].mxu0
    %4823 = vdwg.mxu0
    %v4824 = vpack.c.bf16 %v4819, %v4819
    %v4825 = vld [vmem:[%s89] sm:$0xf]
    %v4826 = vld [vmem:[%s89 + $0x4] sm:$0xf]
    %v4827 = vld [vmem:[%s89 + $0x8] sm:$0xf]
    %v4828 = vld [vmem:[%s89 + $0xc] sm:$0xf]
    %v4833 = vunpack.c.l.b16 %v4825
    %v4834 = vunpack.c.l.b16 %v4826
    %v4835 = vunpack.c.l.b16 %v4827
    %v4836 = vunpack.c.l.b16 %v4828
    %v4837 = vpack.c.b16 %v4834, %v4833
    %v4838 = vpack.c.b16 %v4836, %v4835
    %v4842 = vsel %vm4371, %v4824, 0
    %4844 = vmatprep.subr.bf16.mxu0 0
    %4845 = vmatpush1.bf16.msra.mxu0 %v4837
    %4846 = vmatprep.subr.bf16.mxu0 0
    %4847 = vmatpush1.bf16.msra.mxu0 %v4838
    %4848 = vmatprep.subr.bf16.mxu0 0
    %4849 = vmatpush1.bf16.msra.mxu0 0
    %4850 = vmatprep.subr.bf16.mxu0 0
    %4851 = vmatpush1.bf16.msra.mxu0 0
    %4852 = vmatprep.subr.bf16.mxu0 0
    %4853 = vmatpush1.bf16.msra.mxu0 0
    %4854 = vmatprep.subr.bf16.mxu0 0
    %4855 = vmatpush1.bf16.msra.mxu0 0
    %4856 = vmatprep.subr.bf16.mxu0 0
    %4857 = vmatpush1.bf16.msra.mxu0 0
    %4858 = vmatprep.subr.bf16.mxu0 0
    %4859 = vmatpush1.bf16.msra.mxu0 0
    %4860 = vmatprep.subr.bf16.mxu0 0
    %4861 = vmatpush1.bf16.msra.mxu0 0
    %4862 = vmatprep.subr.bf16.mxu0 0
    %4863 = vmatpush1.bf16.msra.mxu0 0
    %4864 = vmatprep.subr.bf16.mxu0 0
    %4865 = vmatpush1.bf16.msra.mxu0 0
    %4866 = vmatprep.subr.bf16.mxu0 0
    %4867 = vmatpush1.bf16.msra.mxu0 0
    %4868 = vmatprep.subr.bf16.mxu0 0
    %4869 = vmatpush1.bf16.msra.mxu0 0
    %4870 = vmatprep.subr.bf16.mxu0 0
    %4871 = vmatpush1.bf16.msra.mxu0 0
    %4872 = vmatprep.subr.bf16.mxu0 0
    %4873 = vmatpush1.bf16.msra.mxu0 0
    %4874 = vmatprep.subr.bf16.mxu0 0
    %4875 = vmatpush1.bf16.msra.mxu0 0
    %4876 = vmatprep.mubr.bf16.mxu0 0
    %4877 = vmatmul.mubr.bf16.gmra.mrb[0].mxu0 %v4842
    %v4878 = vpop.f32.mrb[0].mxu0
    %v4879 = vadd.f32 0.0, %v4878
    %v4880 = vpop.f32.mrb[0].mxu0
    %v4881 = vpop.f32.mrb[0].mxu0
    %v4882 = vpop.f32.mrb[0].mxu0
    %4883 = vdwg.mxu0
    loop: start=1, step=1, limit=9
    $region390: #{forward.1} parent=1 // loop_pre_header
      _
    $region391: #{forward.1} parent=1 // loop_header
      %s4885 = sphi 1, %s4889
      %p4886 = scmp.ge.s32.totalorder %s4885, 9
      %v4890 = vphi %v4879, %v5000
    $region392: #{forward.1} parent=1 // loop_header_branch
      %4888 = sbr.rel (%p4886) target = $region396
    $region393: #{forward.1} parent=1 // loop_body
      %s4891 = smul.addr %s4885, 2
      %s4892 = scalar_lea.vmem %s87, %s4891
      %v4893 = vld [vmem:[%s4892] sm:$0x3]
      %v4895 = vsel %vm4307, %v4893, 0
      %4897 = vmatprep.subr.bf16.mxu0 0
      %4898 = vmatpush1.bf16.msra.mxu0 %v4782
      %4899 = vmatprep.subr.bf16.mxu0 0
      %4900 = vmatpush1.bf16.msra.mxu0 0
      %4901 = vmatprep.subr.bf16.mxu0 0
      %4902 = vmatpush1.bf16.msra.mxu0 0
      %4903 = vmatprep.subr.bf16.mxu0 0
      %4904 = vmatpush1.bf16.msra.mxu0 0
      %4905 = vmatprep.subr.bf16.mxu0 0
      %4906 = vmatpush1.bf16.msra.mxu0 0
      %4907 = vmatprep.subr.bf16.mxu0 0
      %4908 = vmatpush1.bf16.msra.mxu0 0
      %4909 = vmatprep.subr.bf16.mxu0 0
      %4910 = vmatpush1.bf16.msra.mxu0 0
      %4911 = vmatprep.subr.bf16.mxu0 0
      %4912 = vmatpush1.bf16.msra.mxu0 0
      %4913 = vmatprep.subr.bf16.mxu0 0
      %4914 = vmatpush1.bf16.msra.mxu0 0
      %4915 = vmatprep.subr.bf16.mxu0 0
      %4916 = vmatpush1.bf16.msra.mxu0 0
      %4917 = vmatprep.subr.bf16.mxu0 0
      %4918 = vmatpush1.bf16.msra.mxu0 0
      %4919 = vmatprep.subr.bf16.mxu0 0
      %4920 = vmatpush1.bf16.msra.mxu0 0
      %4921 = vmatprep.subr.bf16.mxu0 0
      %4922 = vmatpush1.bf16.msra.mxu0 0
      %4923 = vmatprep.subr.bf16.mxu0 0
      %4924 = vmatpush1.bf16.msra.mxu0 0
      %4925 = vmatprep.subr.bf16.mxu0 0
      %4926 = vmatpush1.bf16.msra.mxu0 0
      %4927 = vmatprep.subr.bf16.mxu0 0
      %4928 = vmatpush1.bf16.msra.mxu0 0
      %4929 = vmatprep.mubr.bf16.mxu0 0
      %4930 = vmatmul.mubr.bf16.gmra.mrb[0].mxu0 %v4895
      %v4931 = vpop.f32.mrb[0].mxu0
      %v4932 = vadd.f32 0.0, %v4931
      %v4933 = vpop.f32.mrb[0].mxu0
      %v4934 = vpop.f32.mrb[0].mxu0
      %v4935 = vpop.f32.mrb[0].mxu0
      %4936 = vdwg.mxu0
      %v4937 = vpack.c.bf16 %v4932, %v4932
      %s4938 = smul.u32 %s4885, 4
      %s4939 = smul.addr %s4938, 4
      %s4940 = scalar_lea.vmem %s89, %s4939
      %v4941 = vld [vmem:[%s4940] sm:$0xf]
      %v4942 = vld [vmem:[%s4940 + $0x4] sm:$0xf]
      %v4943 = vld [vmem:[%s4940 + $0x8] sm:$0xf]
      %v4944 = vld [vmem:[%s4940 + $0xc] sm:$0xf]
      %v4949 = vunpack.c.l.b16 %v4941
      %v4950 = vunpack.c.l.b16 %v4942
      %v4951 = vunpack.c.l.b16 %v4943
      %v4952 = vunpack.c.l.b16 %v4944
      %v4953 = vpack.c.b16 %v4950, %v4949
      %v4954 = vpack.c.b16 %v4952, %v4951
      %v4958 = vsel %vm4371, %v4937, 0
      %4960 = vmatprep.subr.bf16.mxu0 0
      %4961 = vmatpush1.bf16.msra.mxu0 %v4953
      %4962 = vmatprep.subr.bf16.mxu0 0
      %4963 = vmatpush1.bf16.msra.mxu0 %v4954
      %4964 = vmatprep.subr.bf16.mxu0 0
      %4965 = vmatpush1.bf16.msra.mxu0 0
      %4966 = vmatprep.subr.bf16.mxu0 0
      %4967 = vmatpush1.bf16.msra.mxu0 0
      %4968 = vmatprep.subr.bf16.mxu0 0
      %4969 = vmatpush1.bf16.msra.mxu0 0
      %4970 = vmatprep.subr.bf16.mxu0 0
      %4971 = vmatpush1.bf16.msra.mxu0 0
      %4972 = vmatprep.subr.bf16.mxu0 0
      %4973 = vmatpush1.bf16.msra.mxu0 0
      %4974 = vmatprep.subr.bf16.mxu0 0
      %4975 = vmatpush1.bf16.msra.mxu0 0
      %4976 = vmatprep.subr.bf16.mxu0 0
      %4977 = vmatpush1.bf16.msra.mxu0 0
      %4978 = vmatprep.subr.bf16.mxu0 0
      %4979 = vmatpush1.bf16.msra.mxu0 0
      %4980 = vmatprep.subr.bf16.mxu0 0
      %4981 = vmatpush1.bf16.msra.mxu0 0
      %4982 = vmatprep.subr.bf16.mxu0 0
      %4983 = vmatpush1.bf16.msra.mxu0 0
      %4984 = vmatprep.subr.bf16.mxu0 0
      %4985 = vmatpush1.bf16.msra.mxu0 0
      %4986 = vmatprep.subr.bf16.mxu0 0
      %4987 = vmatpush1.bf16.msra.mxu0 0
      %4988 = vmatprep.subr.bf16.mxu0 0
      %4989 = vmatpush1.bf16.msra.mxu0 0
      %4990 = vmatprep.subr.bf16.mxu0 0
      %4991 = vmatpush1.bf16.msra.mxu0 0
      %4992 = vmatprep.mubr.bf16.mxu0 0
      %4993 = vmatmul.mubr.bf16.gmra.mrb[0].mxu0 %v4958
      %v4994 = vpop.f32.mrb[0].mxu0
      %v4995 = vadd.f32 0.0, %v4994
      %v4996 = vpop.f32.mrb[0].mxu0
      %v4997 = vpop.f32.mrb[0].mxu0
      %v4998 = vpop.f32.mrb[0].mxu0
      %4999 = vdwg.mxu0
      %v5000 = vadd.f32 %v4890, %v4995
    $region394: #{forward.1} parent=1 // loop_footer
      %s4889 = sadd.s32 1, %s4885
    $region395: #{forward.1} parent=1 // loop_footer_branch
      %4884 = sbr.rel target = $region391
    $region396: #{forward.1} parent=1 // loop_exit
      _
    %v5001 = vld [vmem:[%s91] sm:$0x1]
    %v5003 = vlaneseq
    %v5004 = vshrl.u32 %v5003, 7
    %v5005 = vsub.s32 0, %v5004
    %v5006 = vrot.slane %v5001, %v5005
    %v5008 = vadd.f32 %v4890, %v5006
    %v5009 = vadd.f32 %v5008, %v4541
    %v5010 = vmax.f32 %v5009, 0.0
    %v5011 = vpack.c.bf16 %v5010, %v5010
    %v5012 = vld [vmem:[#allocation16] sm:$0x1]
    %v5014 = vsel %vm4307, %v5012, 0
    %v5017 = vsel %vm719, %v5011, 0
    %5019 = vmatprep.subr.bf16.mxu0 0
    %5020 = vmatpush1.bf16.msra.mxu0 %v5017
    %5021 = vmatprep.subr.bf16.mxu0 0
    %5022 = vmatpush1.bf16.msra.mxu0 0
    %5023 = vmatprep.subr.bf16.mxu0 0
    %5024 = vmatpush1.bf16.msra.mxu0 0
    %5025 = vmatprep.subr.bf16.mxu0 0
    %5026 = vmatpush1.bf16.msra.mxu0 0
    %5027 = vmatprep.subr.bf16.mxu0 0
    %5028 = vmatpush1.bf16.msra.mxu0 0
    %5029 = vmatprep.subr.bf16.mxu0 0
    %5030 = vmatpush1.bf16.msra.mxu0 0
    %5031 = vmatprep.subr.bf16.mxu0 0
    %5032 = vmatpush1.bf16.msra.mxu0 0
    %5033 = vmatprep.subr.bf16.mxu0 0
    %5034 = vmatpush1.bf16.msra.mxu0 0
    %5035 = vmatprep.subr.bf16.mxu0 0
    %5036 = vmatpush1.bf16.msra.mxu0 0
    %5037 = vmatprep.subr.bf16.mxu0 0
    %5038 = vmatpush1.bf16.msra.mxu0 0
    %5039 = vmatprep.subr.bf16.mxu0 0
    %5040 = vmatpush1.bf16.msra.mxu0 0
    %5041 = vmatprep.subr.bf16.mxu0 0
    %5042 = vmatpush1.bf16.msra.mxu0 0
    %5043 = vmatprep.subr.bf16.mxu0 0
    %5044 = vmatpush1.bf16.msra.mxu0 0
    %5045 = vmatprep.subr.bf16.mxu0 0
    %5046 = vmatpush1.bf16.msra.mxu0 0
    %5047 = vmatprep.subr.bf16.mxu0 0
    %5048 = vmatpush1.bf16.msra.mxu0 0
    %5049 = vmatprep.subr.bf16.mxu0 0
    %5050 = vmatpush1.bf16.msra.mxu0 0
    %5051 = vmatprep.mubr.bf16.mxu0 0
    %5052 = vmatmul.mubr.bf16.gmra.mrb[0].mxu0 %v5014
    %v5053 = vpop.f32.mrb[0].mxu0
    %v5054 = vadd.f32 0.0, %v5053
    %v5055 = vpop.f32.mrb[0].mxu0
    %v5056 = vpop.f32.mrb[0].mxu0
    %v5057 = vpop.f32.mrb[0].mxu0
    %5058 = vdwg.mxu0
    %v5059 = vpack.c.bf16 %v5054, %v5054
    %v5060 = vld [vmem:[%s107] sm:$0xf]
    %v5061 = vld [vmem:[%s107 + $0x4] sm:$0xf]
    %v5062 = vld [vmem:[%s107 + $0x8] sm:$0xf]
    %v5063 = vld [vmem:[%s107 + $0xc] sm:$0xf]
    %v5064 = vld [vmem:[#allocation17] sm:$0x1]
    %v5069 = vunpack.c.l.b16 %v5060
    %v5070 = vunpack.c.l.b16 %v5061
    %v5071 = vunpack.c.l.b16 %v5062
    %v5072 = vunpack.c.l.b16 %v5063
    %v5073 = vpack.c.b16 %v5070, %v5069
    %v5074 = vpack.c.b16 %v5072, %v5071
    %v5078 = vsel %vm4371, %v5059, 0
    %5080 = vmatprep.subr.bf16.mxu0 0
    %5081 = vmatpush1.bf16.msra.mxu0 %v5073
    %5082 = vmatprep.subr.bf16.mxu0 0
    %5083 = vmatpush1.bf16.msra.mxu0 %v5074
    %5084 = vmatprep.subr.bf16.mxu0 0
    %5085 = vmatpush1.bf16.msra.mxu0 0
    %5086 = vmatprep.subr.bf16.mxu0 0
    %5087 = vmatpush1.bf16.msra.mxu0 0
    %5088 = vmatprep.subr.bf16.mxu0 0
    %5089 = vmatpush1.bf16.msra.mxu0 0
    %5090 = vmatprep.subr.bf16.mxu0 0
    %5091 = vmatpush1.bf16.msra.mxu0 0
    %5092 = vmatprep.subr.bf16.mxu0 0
    %5093 = vmatpush1.bf16.msra.mxu0 0
    %5094 = vmatprep.subr.bf16.mxu0 0
    %5095 = vmatpush1.bf16.msra.mxu0 0
    %5096 = vmatprep.subr.bf16.mxu0 0
    %5097 = vmatpush1.bf16.msra.mxu0 0
    %5098 = vmatprep.subr.bf16.mxu0 0
    %5099 = vmatpush1.bf16.msra.mxu0 0
    %5100 = vmatprep.subr.bf16.mxu0 0
    %5101 = vmatpush1.bf16.msra.mxu0 0
    %5102 = vmatprep.subr.bf16.mxu0 0
    %5103 = vmatpush1.bf16.msra.mxu0 0
    %5104 = vmatprep.subr.bf16.mxu0 0
    %5105 = vmatpush1.bf16.msra.mxu0 0
    %5106 = vmatprep.subr.bf16.mxu0 0
    %5107 = vmatpush1.bf16.msra.mxu0 0
    %5108 = vmatprep.subr.bf16.mxu0 0
    %5109 = vmatpush1.bf16.msra.mxu0 0
    %5110 = vmatprep.subr.bf16.mxu0 0
    %5111 = vmatpush1.bf16.msra.mxu0 0
    %5112 = vmatprep.mubr.bf16.mxu0 0
    %5113 = vmatmul.mubr.bf16.gmra.mrb[0].mxu0 %v5078
    %v5114 = vpop.f32.mrb[0].mxu0
    %v5115 = vadd.f32 %v5064, %v5114
    %v5116 = vpop.f32.mrb[0].mxu0
    %v5117 = vpop.f32.mrb[0].mxu0
    %v5118 = vpop.f32.mrb[0].mxu0
    %5119 = vdwg.mxu0
    %v5120 = vld [vmem:[%s93] sm:$0x1]
    %v5122 = vsel %vm4307, %v5120, 0
    %5124 = vmatprep.subr.bf16.mxu0 0
    %5125 = vmatpush1.bf16.msra.mxu0 %v5017
    %5126 = vmatprep.subr.bf16.mxu0 0
    %5127 = vmatpush1.bf16.msra.mxu0 0
    %5128 = vmatprep.subr.bf16.mxu0 0
    %5129 = vmatpush1.bf16.msra.mxu0 0
    %5130 = vmatprep.subr.bf16.mxu0 0
    %5131 = vmatpush1.bf16.msra.mxu0 0
    %5132 = vmatprep.subr.bf16.mxu0 0
    %5133 = vmatpush1.bf16.msra.mxu0 0
    %5134 = vmatprep.subr.bf16.mxu0 0
    %5135 = vmatpush1.bf16.msra.mxu0 0
    %5136 = vmatprep.subr.bf16.mxu0 0
    %5137 = vmatpush1.bf16.msra.mxu0 0
    %5138 = vmatprep.subr.bf16.mxu0 0
    %5139 = vmatpush1.bf16.msra.mxu0 0
    %5140 = vmatprep.subr.bf16.mxu0 0
    %5141 = vmatpush1.bf16.msra.mxu0 0
    %5142 = vmatprep.subr.bf16.mxu0 0
    %5143 = vmatpush1.bf16.msra.mxu0 0
    %5144 = vmatprep.subr.bf16.mxu0 0
    %5145 = vmatpush1.bf16.msra.mxu0 0
    %5146 = vmatprep.subr.bf16.mxu0 0
    %5147 = vmatpush1.bf16.msra.mxu0 0
    %5148 = vmatprep.subr.bf16.mxu0 0
    %5149 = vmatpush1.bf16.msra.mxu0 0
    %5150 = vmatprep.subr.bf16.mxu0 0
    %5151 = vmatpush1.bf16.msra.mxu0 0
    %5152 = vmatprep.subr.bf16.mxu0 0
    %5153 = vmatpush1.bf16.msra.mxu0 0
    %5154 = vmatprep.subr.bf16.mxu0 0
    %5155 = vmatpush1.bf16.msra.mxu0 0
    %5156 = vmatprep.mubr.bf16.mxu0 0
    %5157 = vmatmul.mubr.bf16.gmra.mrb[0].mxu0 %v5122
    %v5158 = vpop.f32.mrb[0].mxu0
    %v5159 = vadd.f32 0.0, %v5158
    %v5160 = vpop.f32.mrb[0].mxu0
    %v5161 = vpop.f32.mrb[0].mxu0
    %v5162 = vpop.f32.mrb[0].mxu0
    %5163 = vdwg.mxu0
    %v5164 = vpack.c.bf16 %v5159, %v5159
    %v5165 = vld [vmem:[%s95] sm:$0xf]
    %v5166 = vld [vmem:[%s95 + $0x4] sm:$0xf]
    %v5167 = vld [vmem:[%s95 + $0x8] sm:$0xf]
    %v5168 = vld [vmem:[%s95 + $0xc] sm:$0xf]
    %v5173 = vunpack.c.l.b16 %v5165
    %v5174 = vunpack.c.l.b16 %v5166
    %v5175 = vunpack.c.l.b16 %v5167
    %v5176 = vunpack.c.l.b16 %v5168
    %v5177 = vpack.c.b16 %v5174, %v5173
    %v5178 = vpack.c.b16 %v5176, %v5175
    %v5182 = vsel %vm4371, %v5164, 0
    %5184 = vmatprep.subr.bf16.mxu0 0
    %5185 = vmatpush1.bf16.msra.mxu0 %v5177
    %5186 = vmatprep.subr.bf16.mxu0 0
    %5187 = vmatpush1.bf16.msra.mxu0 %v5178
    %5188 = vmatprep.subr.bf16.mxu0 0
    %5189 = vmatpush1.bf16.msra.mxu0 0
    %5190 = vmatprep.subr.bf16.mxu0 0
    %5191 = vmatpush1.bf16.msra.mxu0 0
    %5192 = vmatprep.subr.bf16.mxu0 0
    %5193 = vmatpush1.bf16.msra.mxu0 0
    %5194 = vmatprep.subr.bf16.mxu0 0
    %5195 = vmatpush1.bf16.msra.mxu0 0
    %5196 = vmatprep.subr.bf16.mxu0 0
    %5197 = vmatpush1.bf16.msra.mxu0 0
    %5198 = vmatprep.subr.bf16.mxu0 0
    %5199 = vmatpush1.bf16.msra.mxu0 0
    %5200 = vmatprep.subr.bf16.mxu0 0
    %5201 = vmatpush1.bf16.msra.mxu0 0
    %5202 = vmatprep.subr.bf16.mxu0 0
    %5203 = vmatpush1.bf16.msra.mxu0 0
    %5204 = vmatprep.subr.bf16.mxu0 0
    %5205 = vmatpush1.bf16.msra.mxu0 0
    %5206 = vmatprep.subr.bf16.mxu0 0
    %5207 = vmatpush1.bf16.msra.mxu0 0
    %5208 = vmatprep.subr.bf16.mxu0 0
    %5209 = vmatpush1.bf16.msra.mxu0 0
    %5210 = vmatprep.subr.bf16.mxu0 0
    %5211 = vmatpush1.bf16.msra.mxu0 0
    %5212 = vmatprep.subr.bf16.mxu0 0
    %5213 = vmatpush1.bf16.msra.mxu0 0
    %5214 = vmatprep.subr.bf16.mxu0 0
    %5215 = vmatpush1.bf16.msra.mxu0 0
    %5216 = vmatprep.mubr.bf16.mxu0 0
    %5217 = vmatmul.mubr.bf16.gmra.mrb[0].mxu0 %v5182
    %v5218 = vpop.f32.mrb[0].mxu0
    %v5219 = vadd.f32 0.0, %v5218
    %v5220 = vpop.f32.mrb[0].mxu0
    %v5221 = vpop.f32.mrb[0].mxu0
    %v5222 = vpop.f32.mrb[0].mxu0
    %5223 = vdwg.mxu0
    loop: start=1, step=1, limit=9
    $region397: #{forward.1} parent=1 // loop_pre_header
      _
    $region398: #{forward.1} parent=1 // loop_header
      %s5225 = sphi 1, %s5229
      %p5226 = scmp.ge.s32.totalorder %s5225, 9
      %v5230 = vphi %v5219, %v5339
    $region399: #{forward.1} parent=1 // loop_header_branch
      %5228 = sbr.rel (%p5226) target = $region403
    $region400: #{forward.1} parent=1 // loop_body
      %s5231 = scalar_lea.vmem %s93, %s5225
      %v5232 = vld [vmem:[%s5231] sm:$0x1]
      %v5234 = vsel %vm4307, %v5232, 0
      %5236 = vmatprep.subr.bf16.mxu0 0
      %5237 = vmatpush1.bf16.msra.mxu0 %v5017
      %5238 = vmatprep.subr.bf16.mxu0 0
      %5239 = vmatpush1.bf16.msra.mxu0 0
      %5240 = vmatprep.subr.bf16.mxu0 0
      %5241 = vmatpush1.bf16.msra.mxu0 0
      %5242 = vmatprep.subr.bf16.mxu0 0
      %5243 = vmatpush1.bf16.msra.mxu0 0
      %5244 = vmatprep.subr.bf16.mxu0 0
      %5245 = vmatpush1.bf16.msra.mxu0 0
      %5246 = vmatprep.subr.bf16.mxu0 0
      %5247 = vmatpush1.bf16.msra.mxu0 0
      %5248 = vmatprep.subr.bf16.mxu0 0
      %5249 = vmatpush1.bf16.msra.mxu0 0
      %5250 = vmatprep.subr.bf16.mxu0 0
      %5251 = vmatpush1.bf16.msra.mxu0 0
      %5252 = vmatprep.subr.bf16.mxu0 0
      %5253 = vmatpush1.bf16.msra.mxu0 0
      %5254 = vmatprep.subr.bf16.mxu0 0
      %5255 = vmatpush1.bf16.msra.mxu0 0
      %5256 = vmatprep.subr.bf16.mxu0 0
      %5257 = vmatpush1.bf16.msra.mxu0 0
      %5258 = vmatprep.subr.bf16.mxu0 0
      %5259 = vmatpush1.bf16.msra.mxu0 0
      %5260 = vmatprep.subr.bf16.mxu0 0
      %5261 = vmatpush1.bf16.msra.mxu0 0
      %5262 = vmatprep.subr.bf16.mxu0 0
      %5263 = vmatpush1.bf16.msra.mxu0 0
      %5264 = vmatprep.subr.bf16.mxu0 0
      %5265 = vmatpush1.bf16.msra.mxu0 0
      %5266 = vmatprep.subr.bf16.mxu0 0
      %5267 = vmatpush1.bf16.msra.mxu0 0
      %5268 = vmatprep.mubr.bf16.mxu0 0
      %5269 = vmatmul.mubr.bf16.gmra.mrb[0].mxu0 %v5234
      %v5270 = vpop.f32.mrb[0].mxu0
      %v5271 = vadd.f32 0.0, %v5270
      %v5272 = vpop.f32.mrb[0].mxu0
      %v5273 = vpop.f32.mrb[0].mxu0
      %v5274 = vpop.f32.mrb[0].mxu0
      %5275 = vdwg.mxu0
      %v5276 = vpack.c.bf16 %v5271, %v5271
      %s5277 = smul.u32 %s5225, 4
      %s5278 = smul.addr %s5277, 4
      %s5279 = scalar_lea.vmem %s95, %s5278
      %v5280 = vld [vmem:[%s5279] sm:$0xf]
      %v5281 = vld [vmem:[%s5279 + $0x4] sm:$0xf]
      %v5282 = vld [vmem:[%s5279 + $0x8] sm:$0xf]
      %v5283 = vld [vmem:[%s5279 + $0xc] sm:$0xf]
      %v5288 = vunpack.c.l.b16 %v5280
      %v5289 = vunpack.c.l.b16 %v5281
      %v5290 = vunpack.c.l.b16 %v5282
      %v5291 = vunpack.c.l.b16 %v5283
      %v5292 = vpack.c.b16 %v5289, %v5288
      %v5293 = vpack.c.b16 %v5291, %v5290
      %v5297 = vsel %vm4371, %v5276, 0
      %5299 = vmatprep.subr.bf16.mxu0 0
      %5300 = vmatpush1.bf16.msra.mxu0 %v5292
      %5301 = vmatprep.subr.bf16.mxu0 0
      %5302 = vmatpush1.bf16.msra.mxu0 %v5293
      %5303 = vmatprep.subr.bf16.mxu0 0
      %5304 = vmatpush1.bf16.msra.mxu0 0
      %5305 = vmatprep.subr.bf16.mxu0 0
      %5306 = vmatpush1.bf16.msra.mxu0 0
      %5307 = vmatprep.subr.bf16.mxu0 0
      %5308 = vmatpush1.bf16.msra.mxu0 0
      %5309 = vmatprep.subr.bf16.mxu0 0
      %5310 = vmatpush1.bf16.msra.mxu0 0
      %5311 = vmatprep.subr.bf16.mxu0 0
      %5312 = vmatpush1.bf16.msra.mxu0 0
      %5313 = vmatprep.subr.bf16.mxu0 0
      %5314 = vmatpush1.bf16.msra.mxu0 0
      %5315 = vmatprep.subr.bf16.mxu0 0
      %5316 = vmatpush1.bf16.msra.mxu0 0
      %5317 = vmatprep.subr.bf16.mxu0 0
      %5318 = vmatpush1.bf16.msra.mxu0 0
      %5319 = vmatprep.subr.bf16.mxu0 0
      %5320 = vmatpush1.bf16.msra.mxu0 0
      %5321 = vmatprep.subr.bf16.mxu0 0
      %5322 = vmatpush1.bf16.msra.mxu0 0
      %5323 = vmatprep.subr.bf16.mxu0 0
      %5324 = vmatpush1.bf16.msra.mxu0 0
      %5325 = vmatprep.subr.bf16.mxu0 0
      %5326 = vmatpush1.bf16.msra.mxu0 0
      %5327 = vmatprep.subr.bf16.mxu0 0
      %5328 = vmatpush1.bf16.msra.mxu0 0
      %5329 = vmatprep.subr.bf16.mxu0 0
      %5330 = vmatpush1.bf16.msra.mxu0 0
      %5331 = vmatprep.mubr.bf16.mxu0 0
      %5332 = vmatmul.mubr.bf16.gmra.mrb[0].mxu0 %v5297
      %v5333 = vpop.f32.mrb[0].mxu0
      %v5334 = vadd.f32 0.0, %v5333
      %v5335 = vpop.f32.mrb[0].mxu0
      %v5336 = vpop.f32.mrb[0].mxu0
      %v5337 = vpop.f32.mrb[0].mxu0
      %5338 = vdwg.mxu0
      %v5339 = vadd.f32 %v5230, %v5334
    $region401: #{forward.1} parent=1 // loop_footer
      %s5229 = sadd.s32 1, %s5225
    $region402: #{forward.1} parent=1 // loop_footer_branch
      %5224 = sbr.rel target = $region398
    $region403: #{forward.1} parent=1 // loop_exit
      _
    %v5340 = vld [vmem:[%s97] sm:$0x1]
    %v5341 = vadd.f32 %v5230, %v5340
    %v5342 = vmax.f32 %v5341, 0.0
    %v5343 = vld [vmem:[%s99] sm:$0x1]
    %v5344 = vunpack.c.l.bf16 %v5343
    %5346 = vset.pattern.permute.xlu0 0
    %5347 = vperm.xlu0 %5346, %v5344
    %v5348 = vpop.permute.xlu0 %5347
    %v5351 = vunpack.c.l.s4 269488144
    %v5352 = vunpack.c.0.s8 %v5351
    %v5353 = vlaneseq
    %v5354 = vshrl.u32 %v5353, 7
    %v5355 = vsub.s32 %v5352, %v5354
    %v5356 = vrot.slane %v5348, %v5355
    %v5357 = vmul.f32 %v5342, %v5356
    %v5358 = vpack.c.bf16 %v5357, %v5357
    %v5359 = vld [vmem:[%s101] sm:$0xf]
    %v5360 = vld [vmem:[%s101 + $0x4] sm:$0xf]
    %v5361 = vld [vmem:[%s101 + $0x8] sm:$0xf]
    %v5362 = vld [vmem:[%s101 + $0xc] sm:$0xf]
    %v5363 = vld [vmem:[%s101 + $0x10] sm:$0xf]
    %v5364 = vld [vmem:[%s101 + $0x14] sm:$0xf]
    %v5365 = vld [vmem:[%s101 + $0x18] sm:$0xf]
    %v5366 = vld [vmem:[%s101 + $0x1c] sm:$0xf]
    %v5375 = vunpack.c.l.b16 %v5359
    %v5376 = vunpack.c.l.b16 %v5360
    %v5377 = vunpack.c.l.b16 %v5361
    %v5378 = vunpack.c.l.b16 %v5362
    %v5379 = vunpack.c.l.b16 %v5363
    %v5380 = vunpack.c.l.b16 %v5364
    %v5381 = vunpack.c.l.b16 %v5365
    %v5382 = vunpack.c.l.b16 %v5366
    %v5383 = vpack.c.b16 %v5376, %v5375
    %v5384 = vpack.c.b16 %v5378, %v5377
    %v5385 = vpack.c.b16 %v5380, %v5379
    %v5386 = vpack.c.b16 %v5382, %v5381
    %v5392 = vsel %vm1217, %v5358, 0
    %5394 = vmatprep.subr.bf16.mxu0 0
    %5395 = vmatpush1.bf16.msra.mxu0 %v5383
    %5396 = vmatprep.subr.bf16.mxu0 0
    %5397 = vmatpush1.bf16.msra.mxu0 %v5384
    %5398 = vmatprep.subr.bf16.mxu0 0
    %5399 = vmatpush1.bf16.msra.mxu0 %v5385
    %5400 = vmatprep.subr.bf16.mxu0 0
    %5401 = vmatpush1.bf16.msra.mxu0 %v5386
    %5402 = vmatprep.subr.bf16.mxu0 0
    %5403 = vmatpush1.bf16.msra.mxu0 0
    %5404 = vmatprep.subr.bf16.mxu0 0
    %5405 = vmatpush1.bf16.msra.mxu0 0
    %5406 = vmatprep.subr.bf16.mxu0 0
    %5407 = vmatpush1.bf16.msra.mxu0 0
    %5408 = vmatprep.subr.bf16.mxu0 0
    %5409 = vmatpush1.bf16.msra.mxu0 0
    %5410 = vmatprep.subr.bf16.mxu0 0
    %5411 = vmatpush1.bf16.msra.mxu0 0
    %5412 = vmatprep.subr.bf16.mxu0 0
    %5413 = vmatpush1.bf16.msra.mxu0 0
    %5414 = vmatprep.subr.bf16.mxu0 0
    %5415 = vmatpush1.bf16.msra.mxu0 0
    %5416 = vmatprep.subr.bf16.mxu0 0
    %5417 = vmatpush1.bf16.msra.mxu0 0
    %5418 = vmatprep.subr.bf16.mxu0 0
    %5419 = vmatpush1.bf16.msra.mxu0 0
    %5420 = vmatprep.subr.bf16.mxu0 0
    %5421 = vmatpush1.bf16.msra.mxu0 0
    %5422 = vmatprep.subr.bf16.mxu0 0
    %5423 = vmatpush1.bf16.msra.mxu0 0
    %5424 = vmatprep.subr.bf16.mxu0 0
    %5425 = vmatpush1.bf16.msra.mxu0 0
    %5426 = vmatprep.mubr.bf16.mxu0 0
    %5427 = vmatmul.mubr.bf16.gmra.mrb[0].mxu0 %v5392
    %v5428 = vpop.f32.mrb[0].mxu0
    %v5429 = vadd.f32 0.0, %v5428
    %v5430 = vpop.f32.mrb[0].mxu0
    %v5431 = vpop.f32.mrb[0].mxu0
    %v5432 = vpop.f32.mrb[0].mxu0
    %5433 = vdwg.mxu0
    loop: start=1, step=1, limit=9
    $region404: #{forward.1} parent=1 // loop_pre_header
      _
    $region405: #{forward.1} parent=1 // loop_header
      %s5435 = sphi 1, %s5439
      %p5436 = scmp.ge.s32.totalorder %s5435, 9
      %v5440 = vphi %v5429, %v5536
    $region406: #{forward.1} parent=1 // loop_header_branch
      %5438 = sbr.rel (%p5436) target = $region410
    $region407: #{forward.1} parent=1 // loop_body
      %s5441 = scalar_lea.vmem %s99, %s5435
      %v5442 = vld [vmem:[%s5441] sm:$0x1]
      %v5443 = vunpack.c.l.bf16 %v5442
      %5445 = vset.pattern.permute.xlu0 0
      %5446 = vperm.xlu0 %5445, %v5443
      %v5447 = vpop.permute.xlu0 %5446
      %v5450 = vunpack.c.l.s4 269488144
      %v5451 = vunpack.c.0.s8 %v5450
      %v5452 = vlaneseq
      %v5453 = vshrl.u32 %v5452, 7
      %v5454 = vsub.s32 %v5451, %v5453
      %v5455 = vrot.slane %v5447, %v5454
      %v5456 = vmul.f32 %v5342, %v5455
      %v5457 = vpack.c.bf16 %v5456, %v5456
      %s5458 = smul.u32 %s5435, 8
      %s5459 = smul.addr %s5458, 4
      %s5460 = scalar_lea.vmem %s101, %s5459
      %v5461 = vld [vmem:[%s5460] sm:$0xf]
      %v5462 = vld [vmem:[%s5460 + $0x4] sm:$0xf]
      %v5463 = vld [vmem:[%s5460 + $0x8] sm:$0xf]
      %v5464 = vld [vmem:[%s5460 + $0xc] sm:$0xf]
      %v5465 = vld [vmem:[%s5460 + $0x10] sm:$0xf]
      %v5466 = vld [vmem:[%s5460 + $0x14] sm:$0xf]
      %v5467 = vld [vmem:[%s5460 + $0x18] sm:$0xf]
      %v5468 = vld [vmem:[%s5460 + $0x1c] sm:$0xf]
      %v5477 = vunpack.c.l.b16 %v5461
      %v5478 = vunpack.c.l.b16 %v5462
      %v5479 = vunpack.c.l.b16 %v5463
      %v5480 = vunpack.c.l.b16 %v5464
      %v5481 = vunpack.c.l.b16 %v5465
      %v5482 = vunpack.c.l.b16 %v5466
      %v5483 = vunpack.c.l.b16 %v5467
      %v5484 = vunpack.c.l.b16 %v5468
      %v5485 = vpack.c.b16 %v5478, %v5477
      %v5486 = vpack.c.b16 %v5480, %v5479
      %v5487 = vpack.c.b16 %v5482, %v5481
      %v5488 = vpack.c.b16 %v5484, %v5483
      %v5494 = vsel %vm1217, %v5457, 0
      %5496 = vmatprep.subr.bf16.mxu0 0
      %5497 = vmatpush1.bf16.msra.mxu0 %v5485
      %5498 = vmatprep.subr.bf16.mxu0 0
      %5499 = vmatpush1.bf16.msra.mxu0 %v5486
      %5500 = vmatprep.subr.bf16.mxu0 0
      %5501 = vmatpush1.bf16.msra.mxu0 %v5487
      %5502 = vmatprep.subr.bf16.mxu0 0
      %5503 = vmatpush1.bf16.msra.mxu0 %v5488
      %5504 = vmatprep.subr.bf16.mxu0 0
      %5505 = vmatpush1.bf16.msra.mxu0 0
      %5506 = vmatprep.subr.bf16.mxu0 0
      %5507 = vmatpush1.bf16.msra.mxu0 0
      %5508 = vmatprep.subr.bf16.mxu0 0
      %5509 = vmatpush1.bf16.msra.mxu0 0
      %5510 = vmatprep.subr.bf16.mxu0 0
      %5511 = vmatpush1.bf16.msra.mxu0 0
      %5512 = vmatprep.subr.bf16.mxu0 0
      %5513 = vmatpush1.bf16.msra.mxu0 0
      %5514 = vmatprep.subr.bf16.mxu0 0
      %5515 = vmatpush1.bf16.msra.mxu0 0
      %5516 = vmatprep.subr.bf16.mxu0 0
      %5517 = vmatpush1.bf16.msra.mxu0 0
      %5518 = vmatprep.subr.bf16.mxu0 0
      %5519 = vmatpush1.bf16.msra.mxu0 0
      %5520 = vmatprep.subr.bf16.mxu0 0
      %5521 = vmatpush1.bf16.msra.mxu0 0
      %5522 = vmatprep.subr.bf16.mxu0 0
      %5523 = vmatpush1.bf16.msra.mxu0 0
      %5524 = vmatprep.subr.bf16.mxu0 0
      %5525 = vmatpush1.bf16.msra.mxu0 0
      %5526 = vmatprep.subr.bf16.mxu0 0
      %5527 = vmatpush1.bf16.msra.mxu0 0
      %5528 = vmatprep.mubr.bf16.mxu0 0
      %5529 = vmatmul.mubr.bf16.gmra.mrb[0].mxu0 %v5494
      %v5530 = vpop.f32.mrb[0].mxu0
      %v5531 = vadd.f32 0.0, %v5530
      %v5532 = vpop.f32.mrb[0].mxu0
      %v5533 = vpop.f32.mrb[0].mxu0
      %v5534 = vpop.f32.mrb[0].mxu0
      %5535 = vdwg.mxu0
      %v5536 = vadd.f32 %v5440, %v5531
    $region408: #{forward.1} parent=1 // loop_footer
      %s5439 = sadd.s32 1, %s5435
    $region409: #{forward.1} parent=1 // loop_footer_branch
      %5434 = sbr.rel target = $region405
    $region410: #{forward.1} parent=1 // loop_exit
      _
    %v5537 = vld [vmem:[%s103] sm:$0x1]
    %v5538 = vadd.f32 %v5440, %v5537
    %v5539 = vadd.f32 %v5538, %v5115
    %v5540 = vmax.f32 %v5539, 0.0
    %v5541 = vld [vmem:[%s111] sm:$0x1]
    %v5542 = vunpack.c.l.bf16 %v5541
    %5544 = vset.pattern.permute.xlu0 0
    %5545 = vperm.xlu0 %5544, %v5542
    %v5546 = vpop.permute.xlu0 %5545
    %v5549 = vunpack.c.l.s4 269488144
    %v5550 = vunpack.c.0.s8 %v5549
    %v5551 = vlaneseq
    %v5552 = vshrl.u32 %v5551, 7
    %v5553 = vsub.s32 %v5550, %v5552
    %v5554 = vrot.slane %v5546, %v5553
    %v5555 = vmul.f32 %v5540, %v5554
    %v5556 = vpack.c.bf16 %v5555, %v5555
    %v5557 = vld [vmem:[%s113] sm:$0xf]
    %v5558 = vld [vmem:[%s113 + $0x4] sm:$0xf]
    %v5559 = vld [vmem:[%s113 + $0x8] sm:$0xf]
    %v5560 = vld [vmem:[%s113 + $0xc] sm:$0xf]
    %v5561 = vld [vmem:[%s113 + $0x10] sm:$0xf]
    %v5562 = vld [vmem:[%s113 + $0x14] sm:$0xf]
    %v5563 = vld [vmem:[%s113 + $0x18] sm:$0xf]
    %v5564 = vld [vmem:[%s113 + $0x1c] sm:$0xf]
    %v5573 = vunpack.c.l.b16 %v5557
    %v5574 = vunpack.c.l.b16 %v5558
    %v5575 = vunpack.c.l.b16 %v5559
    %v5576 = vunpack.c.l.b16 %v5560
    %v5577 = vunpack.c.l.b16 %v5561
    %v5578 = vunpack.c.l.b16 %v5562
    %v5579 = vunpack.c.l.b16 %v5563
    %v5580 = vunpack.c.l.b16 %v5564
    %v5581 = vpack.c.b16 %v5574, %v5573
    %v5582 = vpack.c.b16 %v5576, %v5575
    %v5583 = vpack.c.b16 %v5578, %v5577
    %v5584 = vpack.c.b16 %v5580, %v5579
    %v5590 = vsel %vm1217, %v5556, 0
    %5592 = vmatprep.subr.bf16.mxu0 0
    %5593 = vmatpush1.bf16.msra.mxu0 %v5581
    %5594 = vmatprep.subr.bf16.mxu0 0
    %5595 = vmatpush1.bf16.msra.mxu0 %v5582
    %5596 = vmatprep.subr.bf16.mxu0 0
    %5597 = vmatpush1.bf16.msra.mxu0 %v5583
    %5598 = vmatprep.subr.bf16.mxu0 0
    %5599 = vmatpush1.bf16.msra.mxu0 %v5584
    %5600 = vmatprep.subr.bf16.mxu0 0
    %5601 = vmatpush1.bf16.msra.mxu0 0
    %5602 = vmatprep.subr.bf16.mxu0 0
    %5603 = vmatpush1.bf16.msra.mxu0 0
    %5604 = vmatprep.subr.bf16.mxu0 0
    %5605 = vmatpush1.bf16.msra.mxu0 0
    %5606 = vmatprep.subr.bf16.mxu0 0
    %5607 = vmatpush1.bf16.msra.mxu0 0
    %5608 = vmatprep.subr.bf16.mxu0 0
    %5609 = vmatpush1.bf16.msra.mxu0 0
    %5610 = vmatprep.subr.bf16.mxu0 0
    %5611 = vmatpush1.bf16.msra.mxu0 0
    %5612 = vmatprep.subr.bf16.mxu0 0
    %5613 = vmatpush1.bf16.msra.mxu0 0
    %5614 = vmatprep.subr.bf16.mxu0 0
    %5615 = vmatpush1.bf16.msra.mxu0 0
    %5616 = vmatprep.subr.bf16.mxu0 0
    %5617 = vmatpush1.bf16.msra.mxu0 0
    %5618 = vmatprep.subr.bf16.mxu0 0
    %5619 = vmatpush1.bf16.msra.mxu0 0
    %5620 = vmatprep.subr.bf16.mxu0 0
    %5621 = vmatpush1.bf16.msra.mxu0 0
    %5622 = vmatprep.subr.bf16.mxu0 0
    %5623 = vmatpush1.bf16.msra.mxu0 0
    %5624 = vmatprep.mubr.bf16.mxu0 0
    %5625 = vmatmul.mubr.bf16.gmra.mrb[0].mxu0 %v5590
    %v5626 = vpop.f32.mrb[0].mxu0
    %v5627 = vadd.f32 0.0, %v5626
    %v5628 = vpop.f32.mrb[0].mxu0
    %v5629 = vpop.f32.mrb[0].mxu0
    %v5630 = vpop.f32.mrb[0].mxu0
    %5631 = vdwg.mxu0
    loop: start=1, step=1, limit=9
    $region411: #{forward.1} parent=1 // loop_pre_header
      _
    $region412: #{forward.1} parent=1 // loop_header
      %s5633 = sphi 1, %s5637
      %p5634 = scmp.ge.s32.totalorder %s5633, 9
      %v5638 = vphi %v5627, %v5734
    $region413: #{forward.1} parent=1 // loop_header_branch
      %5636 = sbr.rel (%p5634) target = $region417
    $region414: #{forward.1} parent=1 // loop_body
      %s5639 = scalar_lea.vmem %s111, %s5633
      %v5640 = vld [vmem:[%s5639] sm:$0x1]
      %v5641 = vunpack.c.l.bf16 %v5640
      %5643 = vset.pattern.permute.xlu0 0
      %5644 = vperm.xlu0 %5643, %v5641
      %v5645 = vpop.permute.xlu0 %5644
      %v5648 = vunpack.c.l.s4 269488144
      %v5649 = vunpack.c.0.s8 %v5648
      %v5650 = vlaneseq
      %v5651 = vshrl.u32 %v5650, 7
      %v5652 = vsub.s32 %v5649, %v5651
      %v5653 = vrot.slane %v5645, %v5652
      %v5654 = vmul.f32 %v5540, %v5653
      %v5655 = vpack.c.bf16 %v5654, %v5654
      %s5656 = smul.u32 %s5633, 8
      %s5657 = smul.addr %s5656, 4
      %s5658 = scalar_lea.vmem %s113, %s5657
      %v5659 = vld [vmem:[%s5658] sm:$0xf]
      %v5660 = vld [vmem:[%s5658 + $0x4] sm:$0xf]
      %v5661 = vld [vmem:[%s5658 + $0x8] sm:$0xf]
      %v5662 = vld [vmem:[%s5658 + $0xc] sm:$0xf]
      %v5663 = vld [vmem:[%s5658 + $0x10] sm:$0xf]
      %v5664 = vld [vmem:[%s5658 + $0x14] sm:$0xf]
      %v5665 = vld [vmem:[%s5658 + $0x18] sm:$0xf]
      %v5666 = vld [vmem:[%s5658 + $0x1c] sm:$0xf]
      %v5675 = vunpack.c.l.b16 %v5659
      %v5676 = vunpack.c.l.b16 %v5660
      %v5677 = vunpack.c.l.b16 %v5661
      %v5678 = vunpack.c.l.b16 %v5662
      %v5679 = vunpack.c.l.b16 %v5663
      %v5680 = vunpack.c.l.b16 %v5664
      %v5681 = vunpack.c.l.b16 %v5665
      %v5682 = vunpack.c.l.b16 %v5666
      %v5683 = vpack.c.b16 %v5676, %v5675
      %v5684 = vpack.c.b16 %v5678, %v5677
      %v5685 = vpack.c.b16 %v5680, %v5679
      %v5686 = vpack.c.b16 %v5682, %v5681
      %v5692 = vsel %vm1217, %v5655, 0
      %5694 = vmatprep.subr.bf16.mxu0 0
      %5695 = vmatpush1.bf16.msra.mxu0 %v5683
      %5696 = vmatprep.subr.bf16.mxu0 0
      %5697 = vmatpush1.bf16.msra.mxu0 %v5684
      %5698 = vmatprep.subr.bf16.mxu0 0
      %5699 = vmatpush1.bf16.msra.mxu0 %v5685
      %5700 = vmatprep.subr.bf16.mxu0 0
      %5701 = vmatpush1.bf16.msra.mxu0 %v5686
      %5702 = vmatprep.subr.bf16.mxu0 0
      %5703 = vmatpush1.bf16.msra.mxu0 0
      %5704 = vmatprep.subr.bf16.mxu0 0
      %5705 = vmatpush1.bf16.msra.mxu0 0
      %5706 = vmatprep.subr.bf16.mxu0 0
      %5707 = vmatpush1.bf16.msra.mxu0 0
      %5708 = vmatprep.subr.bf16.mxu0 0
      %5709 = vmatpush1.bf16.msra.mxu0 0
      %5710 = vmatprep.subr.bf16.mxu0 0
      %5711 = vmatpush1.bf16.msra.mxu0 0
      %5712 = vmatprep.subr.bf16.mxu0 0
      %5713 = vmatpush1.bf16.msra.mxu0 0
      %5714 = vmatprep.subr.bf16.mxu0 0
      %5715 = vmatpush1.bf16.msra.mxu0 0
      %5716 = vmatprep.subr.bf16.mxu0 0
      %5717 = vmatpush1.bf16.msra.mxu0 0
      %5718 = vmatprep.subr.bf16.mxu0 0
      %5719 = vmatpush1.bf16.msra.mxu0 0
      %5720 = vmatprep.subr.bf16.mxu0 0
      %5721 = vmatpush1.bf16.msra.mxu0 0
      %5722 = vmatprep.subr.bf16.mxu0 0
      %5723 = vmatpush1.bf16.msra.mxu0 0
      %5724 = vmatprep.subr.bf16.mxu0 0
      %5725 = vmatpush1.bf16.msra.mxu0 0
      %5726 = vmatprep.mubr.bf16.mxu0 0
      %5727 = vmatmul.mubr.bf16.gmra.mrb[0].mxu0 %v5692
      %v5728 = vpop.f32.mrb[0].mxu0
      %v5729 = vadd.f32 0.0, %v5728
      %v5730 = vpop.f32.mrb[0].mxu0
      %v5731 = vpop.f32.mrb[0].mxu0
      %v5732 = vpop.f32.mrb[0].mxu0
      %5733 = vdwg.mxu0
      %v5734 = vadd.f32 %v5638, %v5729
    $region415: #{forward.1} parent=1 // loop_footer
      %s5637 = sadd.s32 1, %s5633
    $region416: #{forward.1} parent=1 // loop_footer_branch
      %5632 = sbr.rel target = $region412
    $region417: #{forward.1} parent=1 // loop_exit
      _
    %v5735 = vld [vmem:[#allocation19] sm:$0x1]
    %v5736 = vadd.f32 %v5638, %v5735
    %v5737 = vmax.f32 %v5736, 0.0
    %v5738 = vld [vmem:[%s117] sm:$0x1]
    %v5739 = vunpack.c.l.bf16 %v5738
    %5741 = vset.pattern.permute.xlu0 0
    %5742 = vperm.xlu0 %5741, %v5739
    %v5743 = vpop.permute.xlu0 %5742
    %v5746 = vunpack.c.l.s4 269488144
    %v5747 = vunpack.c.0.s8 %v5746
    %v5748 = vlaneseq
    %v5749 = vshrl.u32 %v5748, 7
    %v5750 = vsub.s32 %v5747, %v5749
    %v5751 = vrot.slane %v5743, %v5750
    %v5752 = vmul.f32 %v5737, %v5751
    %v5753 = vpack.c.bf16 %v5752, %v5752
    %v5754 = vld [vmem:[%s119] sm:$0xf]
    %v5755 = vld [vmem:[%s119 + $0x4] sm:$0xf]
    %v5756 = vld [vmem:[%s119 + $0x8] sm:$0xf]
    %v5757 = vld [vmem:[%s119 + $0xc] sm:$0xf]
    %v5758 = vld [vmem:[%s119 + $0x10] sm:$0xf]
    %v5759 = vld [vmem:[%s119 + $0x14] sm:$0xf]
    %v5760 = vld [vmem:[%s119 + $0x18] sm:$0xf]
    %v5761 = vld [vmem:[%s119 + $0x1c] sm:$0xf]
    %v5770 = vunpack.c.l.b16 %v5754
    %v5771 = vunpack.c.l.b16 %v5755
    %v5772 = vunpack.c.l.b16 %v5756
    %v5773 = vunpack.c.l.b16 %v5757
    %v5774 = vunpack.c.l.b16 %v5758
    %v5775 = vunpack.c.l.b16 %v5759
    %v5776 = vunpack.c.l.b16 %v5760
    %v5777 = vunpack.c.l.b16 %v5761
    %v5778 = vpack.c.b16 %v5771, %v5770
    %v5779 = vpack.c.b16 %v5773, %v5772
    %v5780 = vpack.c.b16 %v5775, %v5774
    %v5781 = vpack.c.b16 %v5777, %v5776
    %v5787 = vsel %vm1217, %v5753, 0
    %5789 = vmatprep.subr.bf16.mxu0 0
    %5790 = vmatpush1.bf16.msra.mxu0 %v5778
    %5791 = vmatprep.subr.bf16.mxu0 0
    %5792 = vmatpush1.bf16.msra.mxu0 %v5779
    %5793 = vmatprep.subr.bf16.mxu0 0
    %5794 = vmatpush1.bf16.msra.mxu0 %v5780
    %5795 = vmatprep.subr.bf16.mxu0 0
    %5796 = vmatpush1.bf16.msra.mxu0 %v5781
    %5797 = vmatprep.subr.bf16.mxu0 0
    %5798 = vmatpush1.bf16.msra.mxu0 0
    %5799 = vmatprep.subr.bf16.mxu0 0
    %5800 = vmatpush1.bf16.msra.mxu0 0
    %5801 = vmatprep.subr.bf16.mxu0 0
    %5802 = vmatpush1.bf16.msra.mxu0 0
    %5803 = vmatprep.subr.bf16.mxu0 0
    %5804 = vmatpush1.bf16.msra.mxu0 0
    %5805 = vmatprep.subr.bf16.mxu0 0
    %5806 = vmatpush1.bf16.msra.mxu0 0
    %5807 = vmatprep.subr.bf16.mxu0 0
    %5808 = vmatpush1.bf16.msra.mxu0 0
    %5809 = vmatprep.subr.bf16.mxu0 0
    %5810 = vmatpush1.bf16.msra.mxu0 0
    %5811 = vmatprep.subr.bf16.mxu0 0
    %5812 = vmatpush1.bf16.msra.mxu0 0
    %5813 = vmatprep.subr.bf16.mxu0 0
    %5814 = vmatpush1.bf16.msra.mxu0 0
    %5815 = vmatprep.subr.bf16.mxu0 0
    %5816 = vmatpush1.bf16.msra.mxu0 0
    %5817 = vmatprep.subr.bf16.mxu0 0
    %5818 = vmatpush1.bf16.msra.mxu0 0
    %5819 = vmatprep.subr.bf16.mxu0 0
    %5820 = vmatpush1.bf16.msra.mxu0 0
    %5821 = vmatprep.mubr.bf16.mxu0 0
    %5822 = vmatmul.mubr.bf16.gmra.mrb[0].mxu0 %v5787
    %v5823 = vpop.f32.mrb[0].mxu0
    %v5824 = vadd.f32 0.0, %v5823
    %v5825 = vpop.f32.mrb[0].mxu0
    %v5826 = vpop.f32.mrb[0].mxu0
    %v5827 = vpop.f32.mrb[0].mxu0
    %5828 = vdwg.mxu0
    loop: start=1, step=1, limit=9
    $region418: #{forward.1} parent=1 // loop_pre_header
      _
    $region419: #{forward.1} parent=1 // loop_header
      %s5830 = sphi 1, %s5834
      %p5831 = scmp.ge.s32.totalorder %s5830, 9
      %v5835 = vphi %v5824, %v5931
    $region420: #{forward.1} parent=1 // loop_header_branch
      %5833 = sbr.rel (%p5831) target = $region424
    $region421: #{forward.1} parent=1 // loop_body
      %s5836 = scalar_lea.vmem %s117, %s5830
      %v5837 = vld [vmem:[%s5836] sm:$0x1]
      %v5838 = vunpack.c.l.bf16 %v5837
      %5840 = vset.pattern.permute.xlu0 0
      %5841 = vperm.xlu0 %5840, %v5838
      %v5842 = vpop.permute.xlu0 %5841
      %v5845 = vunpack.c.l.s4 269488144
      %v5846 = vunpack.c.0.s8 %v5845
      %v5847 = vlaneseq
      %v5848 = vshrl.u32 %v5847, 7
      %v5849 = vsub.s32 %v5846, %v5848
      %v5850 = vrot.slane %v5842, %v5849
      %v5851 = vmul.f32 %v5737, %v5850
      %v5852 = vpack.c.bf16 %v5851, %v5851
      %s5853 = smul.u32 %s5830, 8
      %s5854 = smul.addr %s5853, 4
      %s5855 = scalar_lea.vmem %s119, %s5854
      %v5856 = vld [vmem:[%s5855] sm:$0xf]
      %v5857 = vld [vmem:[%s5855 + $0x4] sm:$0xf]
      %v5858 = vld [vmem:[%s5855 + $0x8] sm:$0xf]
      %v5859 = vld [vmem:[%s5855 + $0xc] sm:$0xf]
      %v5860 = vld [vmem:[%s5855 + $0x10] sm:$0xf]
      %v5861 = vld [vmem:[%s5855 + $0x14] sm:$0xf]
      %v5862 = vld [vmem:[%s5855 + $0x18] sm:$0xf]
      %v5863 = vld [vmem:[%s5855 + $0x1c] sm:$0xf]
      %v5872 = vunpack.c.l.b16 %v5856
      %v5873 = vunpack.c.l.b16 %v5857
      %v5874 = vunpack.c.l.b16 %v5858
      %v5875 = vunpack.c.l.b16 %v5859
      %v5876 = vunpack.c.l.b16 %v5860
      %v5877 = vunpack.c.l.b16 %v5861
      %v5878 = vunpack.c.l.b16 %v5862
      %v5879 = vunpack.c.l.b16 %v5863
      %v5880 = vpack.c.b16 %v5873, %v5872
      %v5881 = vpack.c.b16 %v5875, %v5874
      %v5882 = vpack.c.b16 %v5877, %v5876
      %v5883 = vpack.c.b16 %v5879, %v5878
      %v5889 = vsel %vm1217, %v5852, 0
      %5891 = vmatprep.subr.bf16.mxu0 0
      %5892 = vmatpush1.bf16.msra.mxu0 %v5880
      %5893 = vmatprep.subr.bf16.mxu0 0
      %5894 = vmatpush1.bf16.msra.mxu0 %v5881
      %5895 = vmatprep.subr.bf16.mxu0 0
      %5896 = vmatpush1.bf16.msra.mxu0 %v5882
      %5897 = vmatprep.subr.bf16.mxu0 0
      %5898 = vmatpush1.bf16.msra.mxu0 %v5883
      %5899 = vmatprep.subr.bf16.mxu0 0
      %5900 = vmatpush1.bf16.msra.mxu0 0
      %5901 = vmatprep.subr.bf16.mxu0 0
      %5902 = vmatpush1.bf16.msra.mxu0 0
      %5903 = vmatprep.subr.bf16.mxu0 0
      %5904 = vmatpush1.bf16.msra.mxu0 0
      %5905 = vmatprep.subr.bf16.mxu0 0
      %5906 = vmatpush1.bf16.msra.mxu0 0
      %5907 = vmatprep.subr.bf16.mxu0 0
      %5908 = vmatpush1.bf16.msra.mxu0 0
      %5909 = vmatprep.subr.bf16.mxu0 0
      %5910 = vmatpush1.bf16.msra.mxu0 0
      %5911 = vmatprep.subr.bf16.mxu0 0
      %5912 = vmatpush1.bf16.msra.mxu0 0
      %5913 = vmatprep.subr.bf16.mxu0 0
      %5914 = vmatpush1.bf16.msra.mxu0 0
      %5915 = vmatprep.subr.bf16.mxu0 0
      %5916 = vmatpush1.bf16.msra.mxu0 0
      %5917 = vmatprep.subr.bf16.mxu0 0
      %5918 = vmatpush1.bf16.msra.mxu0 0
      %5919 = vmatprep.subr.bf16.mxu0 0
      %5920 = vmatpush1.bf16.msra.mxu0 0
      %5921 = vmatprep.subr.bf16.mxu0 0
      %5922 = vmatpush1.bf16.msra.mxu0 0
      %5923 = vmatprep.mubr.bf16.mxu0 0
      %5924 = vmatmul.mubr.bf16.gmra.mrb[0].mxu0 %v5889
      %v5925 = vpop.f32.mrb[0].mxu0
      %v5926 = vadd.f32 0.0, %v5925
      %v5927 = vpop.f32.mrb[0].mxu0
      %v5928 = vpop.f32.mrb[0].mxu0
      %v5929 = vpop.f32.mrb[0].mxu0
      %5930 = vdwg.mxu0
      %v5931 = vadd.f32 %v5835, %v5926
    $region422: #{forward.1} parent=1 // loop_footer
      %s5834 = sadd.s32 1, %s5830
    $region423: #{forward.1} parent=1 // loop_footer_branch
      %5829 = sbr.rel target = $region419
    $region424: #{forward.1} parent=1 // loop_exit
      _
    %v5932 = vld [vmem:[#allocation20] sm:$0x1]
    %v5933 = vadd.f32 %v5835, %v5932
    %v5934 = vadd.f32 %v5933, %v5540
    %v5935 = vmax.f32 %v5934, 0.0
    %v5936 = vadd.f32 %v5935, 0.0
    %v5937 = vpack.c.bf16 %v5936, %v5936
    %v5938 = vld [vmem:[%s123] sm:$0xf]
    %v5939 = vld [vmem:[%s123 + $0x4] sm:$0xf]
    %v5940 = vld [vmem:[%s123 + $0x8] sm:$0xf]
    %v5941 = vld [vmem:[%s123 + $0xc] sm:$0xf]
    %v5942 = vld [vmem:[%s123 + $0x10] sm:$0xf]
    %v5943 = vld [vmem:[%s123 + $0x14] sm:$0xf]
    %v5944 = vld [vmem:[%s123 + $0x18] sm:$0xf]
    %v5945 = vld [vmem:[%s123 + $0x1c] sm:$0xf]
    %v5946 = vld [vmem:[#allocation22] sm:$0x1]
    %v5955 = vunpack.c.l.b16 %v5938
    %v5956 = vunpack.c.l.b16 %v5939
    %v5957 = vunpack.c.l.b16 %v5940
    %v5958 = vunpack.c.l.b16 %v5941
    %v5959 = vunpack.c.l.b16 %v5942
    %v5960 = vunpack.c.l.b16 %v5943
    %v5961 = vunpack.c.l.b16 %v5944
    %v5962 = vunpack.c.l.b16 %v5945
    %v5963 = vpack.c.b16 %v5956, %v5955
    %v5964 = vpack.c.b16 %v5958, %v5957
    %v5965 = vpack.c.b16 %v5960, %v5959
    %v5966 = vpack.c.b16 %v5962, %v5961
    %v5972 = vsel %vm1217, %v5937, 0
    %5974 = vmatprep.subr.bf16.mxu0 0
    %5975 = vmatpush1.bf16.msra.mxu0 %v5963
    %5976 = vmatprep.subr.bf16.mxu0 0
    %5977 = vmatpush1.bf16.msra.mxu0 %v5964
    %5978 = vmatprep.subr.bf16.mxu0 0
    %5979 = vmatpush1.bf16.msra.mxu0 %v5965
    %5980 = vmatprep.subr.bf16.mxu0 0
    %5981 = vmatpush1.bf16.msra.mxu0 %v5966
    %5982 = vmatprep.subr.bf16.mxu0 0
    %5983 = vmatpush1.bf16.msra.mxu0 0
    %5984 = vmatprep.subr.bf16.mxu0 0
    %5985 = vmatpush1.bf16.msra.mxu0 0
    %5986 = vmatprep.subr.bf16.mxu0 0
    %5987 = vmatpush1.bf16.msra.mxu0 0
    %5988 = vmatprep.subr.bf16.mxu0 0
    %5989 = vmatpush1.bf16.msra.mxu0 0
    %5990 = vmatprep.subr.bf16.mxu0 0
    %5991 = vmatpush1.bf16.msra.mxu0 0
    %5992 = vmatprep.subr.bf16.mxu0 0
    %5993 = vmatpush1.bf16.msra.mxu0 0
    %5994 = vmatprep.subr.bf16.mxu0 0
    %5995 = vmatpush1.bf16.msra.mxu0 0
    %5996 = vmatprep.subr.bf16.mxu0 0
    %5997 = vmatpush1.bf16.msra.mxu0 0
    %5998 = vmatprep.subr.bf16.mxu0 0
    %5999 = vmatpush1.bf16.msra.mxu0 0
    %6000 = vmatprep.subr.bf16.mxu0 0
    %6001 = vmatpush1.bf16.msra.mxu0 0
    %6002 = vmatprep.subr.bf16.mxu0 0
    %6003 = vmatpush1.bf16.msra.mxu0 0
    %6004 = vmatprep.subr.bf16.mxu0 0
    %6005 = vmatpush1.bf16.msra.mxu0 0
    %6006 = vmatprep.mubr.bf16.mxu0 0
    %6007 = vmatmul.mubr.bf16.gmra.mrb[0].mxu0 %v5972
    %v6008 = vpop.f32.mrb[0].mxu0
    %v6009 = vadd.f32 %v5946, %v6008
    %v6010 = vpop.f32.mrb[0].mxu0
    %v6011 = vpop.f32.mrb[0].mxu0
    %v6012 = vpop.f32.mrb[0].mxu0
    %6013 = vdwg.mxu0
    %v6014 = vlaneseq
    %v6015 = vand.u32 %v6014, 127
    %v6016 = vcvt.s32.f32 %v6015
    %vm6017 = vcmask 8192
    %v6018 = vsel %vm6017, %v6009, -inf
    %6019 = vmax.xlane.f32.xlu0 %v6018
    %v6020 = vpop.xlane.xlu0 %6019
    %vm6021 = vcmp.ge.f32.partialorder %v6009, %v6020
    %v6022 = vsel %vm6021, %v6016, 2.0
    %v6023 = vsel %vm6017, %v6022, inf
    %6024 = vmin.xlane.f32.xlu0 %v6023
    %v6025 = vpop.xlane.xlu0 %6024
    %v6026 = vcvt.f32.s32.to.zero.pseudo %v6025
    %vm6027 = vcmask 0
    %6028 = vst.msk [vmem:[#allocation23] sm:$0x1] %vm6027, %v6026
    // Predicated region
    $region425: #{forward.1} parent=1 // pred_check
      _
    $region426: #{forward.1} parent=1 // pred_check_branch
      %6030 = sbr.rel (0) target = $region428
    $region427: #{forward.1} parent=1 // pred_region
      %s6032 = ssub.s32 16, 16
      %6033 = vsyncadd [#allocation4], %s6032
      %s6035 = sshll.u32 [#allocation23], 4
      %s6036 = int_to_ptr.vmem [resolvable:$true] %s6035
      %6038 = dma.vmem_to_hbm [thread:$0]  %s6036, 16, %s127, [#allocation4]
    $region428: #{forward.1} parent=1 // pred_fallthru
      _
    // Predicated region
    $region429: #{forward.1} parent=1 // pred_check
      _
    $region430: #{forward.1} parent=1 // pred_check_branch
      %6040 = sbr.rel (0) target = $region432
    $region431: #{forward.1} parent=1 // pred_region
      %6041 = dma.done [#allocation4], 16
    $region432: #{forward.1} parent=1 // pred_fallthru
      _
    %6042 = vsyncpa [#allocation3], 1
    %6043 = vsyncpa [#allocation6], 1
    %6044 = vsyncpa [#allocation9], 1
    %6045 = vsyncpa [#allocation12], 1
    %6046 = vsyncpa [#allocation15], 1
    %6047 = vsyncpa [#allocation18], 1
    %6048 = vsyncpa [#allocation21], 1
    %6049 = vsyncpa [#allocation4], 1

</llo_original>
